<compile_context>
chip_gen: v7x
topology: tpu7x:2x2x1
jax: 0.10.0
libtpu: 0.0.40
codegen_flags: <defaults>
</compile_context>

<pallas_src>
import functools

import jax
import jax.numpy as jnp
from jax.experimental import pallas as pl
from jax.experimental.pallas import tpu as pltpu

_VMEM_LIMIT_BYTES = 48 * 1024 * 1024  # explicit; fits v5e/v6e/v7x budgets


# ----------------------------------------------------------------------------
# helpers
# ----------------------------------------------------------------------------

def _triple(v):
    if isinstance(v, (list, tuple)):
        assert len(v) == 3
        return tuple(int(i) for i in v)
    return (int(v),) * 3


def _pick_tile(n, target):
    """Largest divisor of n that is <= target (>=1)."""
    target = max(1, min(int(target), int(n)))
    for t in range(target, 0, -1):
        if n % t == 0:
            return t
    return 1


def _fold_bn(bn):
    gamma, beta, mean, var, eps = bn
    scale = gamma / jnp.sqrt(var + eps)
    shift = beta - mean * scale
    return scale, shift


def _fold_w_full(w_oidhw):
    # (C_out, C_in, kt, kh, kw) -> (kt, kh*kw*C_in, C_out); K order = (dh, dw, ci)
    co, ci, kt, kh, kw = w_oidhw.shape
    w = jnp.transpose(w_oidhw, (2, 3, 4, 1, 0))
    return w.reshape(kt, kh * kw * ci, co)


def _fold_w_spatial(w_oidhw):
    # (C_out, C_in, 1, kh, kw) -> (kh*kw*C_in, C_out); K order = (dh, dw, ci)
    co, ci, _, kh, kw = w_oidhw.shape
    w = jnp.transpose(w_oidhw[:, :, 0], (2, 3, 1, 0))
    return w.reshape(kh * kw * ci, co)


def _fold_w_temporal(w_oidhw):
    # (C_out, C_mid, kt, 1, 1) -> (kt, C_mid, C_out)
    return jnp.transpose(w_oidhw[:, :, :, 0, 0], (2, 1, 0))


def _spatial_window(x_slab, dh, dw, h_out, w_out, sh, sw):
    """Static (possibly strided) spatial window of a loaded value."""
    h_span = (dh + (h_out - 1) * sh + 1)
    w_span = (dw + (w_out - 1) * sw + 1)
    return jax.lax.slice(
        x_slab,
        (0, dh, dw, 0),
        (x_slab.shape[0], h_span, w_span, x_slab.shape[3]),
        (1, sh, sw, 1))


def _im2col_spatial(x_slab, kh, kw, h_out, w_out, sh, sw):
    """Fold the (kh,kw) taps into the contraction dim: (T, h_out, w_out, kh*kw*C)."""
    cols = []
    for dh in range(kh):
        for dw in range(kw):
            cols.append(_spatial_window(x_slab, dh, dw, h_out, w_out, sh, sw))
    if len(cols) == 1:
        return cols[0]
    return jnp.concatenate(cols, axis=-1)


def _temporal_slice(arr, dt, tt, st):
    if st == 1:
        return jax.lax.slice_in_dim(arr, dt, dt + tt, axis=0)
    # TODO(synk): verify strided-slice lowering / perf for stride-2 stages.
    return jax.lax.slice_in_dim(arr, dt, dt + (tt - 1) * st + 1,
                                stride=st, axis=0)


# ----------------------------------------------------------------------------
# kernel 1: fused separable  (spatial conv + bn1 + relu) -> (temporal + bn2 + relu)
# ----------------------------------------------------------------------------

def _sep_fused_kernel(x_ref, w1_ref, s1_ref, b1_ref, w2_ref, s2_ref, b2_ref,
                      out_ref, mid_ref, *,
                      kh, kw, sh, sw, kt, st, pt, t_unpadded, h_out, w_out, tt):
    # x_ref   : (1, Tp, Hp, Wp, C_in)  bf16 padded volume (resident per batch)
    # w1_ref  : (kh*kw*C_in, C_out)    bf16 folded spatial weights
    # w2_ref  : (kt, C_out, C_out)     bf16 temporal weights
    # s*/b*   : (1, C_out) f32 folded BatchNorm scale / shift
    # out_ref : (1, tt, h_out, w_out, C_out)
    # mid_ref : (tt_in, h_out, w_out, C_out) bf16 scratch (spatial intermediate)
    c_in = x_ref.shape[-1]
    c_out = out_ref.shape[-1]
    tt_in = (tt - 1) * st + kt

    ti = pl.program_id(1)
    t0 = pl.multiple_of(ti * (tt * st), tt * st)   # start row, padded-T coords

    # ---- stage 1: spatial (1,kh,kw) conv + BN1 + ReLU into VMEM scratch ----
    x_slab = x_ref[0, pl.ds(t0, tt_in), :, :, :]            # (tt_in, Hp, Wp, C_in)
    patch = _im2col_spatial(x_slab, kh, kw, h_out, w_out, sh, sw)
    rows1 = tt_in * h_out * w_out
    acc1 = jnp.dot(patch.reshape(rows1, kh * kw * c_in), w1_ref[...],
                   preferred_element_type=jnp.float32)       # one MXU matmul
    y1 = jnp.maximum(acc1 * s1_ref[...] + b1_ref[...], 0.0)
    y1 = y1.reshape(tt_in, h_out, w_out, c_out)
    # Temporal zero-padding of conv2 pads the *post bn1+relu* intermediate
    # with zeros; mask out rows that fall in the padded-T region.
    t_idx = t0 + jax.lax.broadcasted_iota(jnp.int32, (tt_in, 1, 1, 1), 0)
    valid = (t_idx >= pt) & (t_idx < pt + t_unpadded)
    mid_ref[...] = jnp.where(valid, y1, 0.0).astype(mid_ref.dtype)

    # ---- stage 2: temporal (kt,1,1) conv + BN2 + ReLU -> output tile -------
    rows2 = tt * h_out * w_out
    mid = mid_ref[...]
    acc2 = jnp.zeros((rows2, c_out), jnp.float32)
    for dt in range(kt):
        m = _temporal_slice(mid, dt, tt, st)                 # (tt, h, w, C_out)
        acc2 = acc2 + jnp.dot(m.reshape(rows2, c_out), w2_ref[dt],
                              preferred_element_type=jnp.float32)
    y2 = jnp.maximum(acc2 * s2_ref[...] + b2_ref[...], 0.0)
    out_ref[0] = y2.reshape(tt, h_out, w_out, c_out).astype(out_ref.dtype)


def sep_conv_bn_relu_fused(x_cl, w1_oidhw, scale1, shift1, w2_oidhw, scale2,
                           shift2, *, stride, padding,
                           out_dtype=jnp.bfloat16, t_tile=4):
    """Fused separable STConv3D: spatial conv+bn1+relu then temporal conv+bn2+relu.

    x_cl: (B, T, H, W, C_in) channels-last activations.
    """
    B, T, H, W, c_in = x_cl.shape
    c_out = w1_oidhw.shape[0]
    kh, kw = int(w1_oidhw.shape[3]), int(w1_oidhw.shape[4])
    kt = int(w2_oidhw.shape[2])
    st, sh, sw = stride        # temporal stride -> conv2, spatial -> conv1
    pt, ph, pw = padding       # temporal pad    -> conv2, spatial -> conv1

    # TODO(synk): HBM-side pad = one extra activation pass; fold into kernel.
    xp = jnp.pad(x_cl.astype(jnp.bfloat16),
                 ((0, 0), (pt, pt), (ph, ph), (pw, pw), (0, 0)))
    Tp, Hp, Wp = T + 2 * pt, H + 2 * ph, W + 2 * pw
    h_out = (Hp - kh) // sh + 1
    w_out = (Wp - kw) // sw + 1
    t_out = (Tp - kt) // st + 1
    tt = _pick_tile(t_out, t_tile)
    tt_in = (tt - 1) * st + kt

    w1f = _fold_w_spatial(w1_oidhw).astype(jnp.bfloat16)
    w2f = _fold_w_temporal(w2_oidhw).astype(jnp.bfloat16)
    s1 = scale1.reshape(1, c_out).astype(jnp.float32)
    b1 = shift1.reshape(1, c_out).astype(jnp.float32)
    s2 = scale2.reshape(1, c_out).astype(jnp.float32)
    b2 = shift2.reshape(1, c_out).astype(jnp.float32)

    kernel = functools.partial(
        _sep_fused_kernel, kh=kh, kw=kw, sh=sh, sw=sw, kt=kt, st=st, pt=pt,
        t_unpadded=T, h_out=h_out, w_out=w_out, tt=tt)

    return pl.pallas_call(
        kernel,
        out_shape=jax.ShapeDtypeStruct((B, t_out, h_out, w_out, c_out),
                                       out_dtype),
        grid_spec=pltpu.PrefetchScalarGridSpec(
            num_scalar_prefetch=0,
            grid=(B, t_out // tt),
            in_specs=[
                # per-batch padded volume; constant over the T-tile axis so it
                # is fetched once per batch element and stays VMEM-resident.
                # TODO(synk): halo-stream T/H tiles at production sizes.
                pl.BlockSpec((1, Tp, Hp, Wp, c_in),
                             lambda b, t: (b, 0, 0, 0, 0)),
                # grid-invariant weights / BN params (resident).
                pl.BlockSpec((kh * kw * c_in, c_out), lambda b, t: (0, 0)),
                pl.BlockSpec((1, c_out), lambda b, t: (0, 0)),
                pl.BlockSpec((1, c_out), lambda b, t: (0, 0)),
                pl.BlockSpec((kt, c_out, c_out), lambda b, t: (0, 0, 0)),
                pl.BlockSpec((1, c_out), lambda b, t: (0, 0)),
                pl.BlockSpec((1, c_out), lambda b, t: (0, 0)),
            ],
            out_specs=pl.BlockSpec((1, tt, h_out, w_out, c_out),
                                   lambda b, t: (b, t, 0, 0, 0)),
            scratch_shapes=[pltpu.VMEM((tt_in, h_out, w_out, c_out),
                                       jnp.bfloat16)],
        ),
        compiler_params=pltpu.CompilerParams(
            dimension_semantics=("parallel", "parallel"),
            vmem_limit_bytes=_VMEM_LIMIT_BYTES),
    )(xp, w1f, s1, b1, w2f, s2, b2)


# ----------------------------------------------------------------------------
# kernel 2: non-separable full (kt,kh,kw) conv + bn + relu
# ----------------------------------------------------------------------------

def _conv3d_bn_relu_kernel(x_ref, w_ref, s_ref, b_ref, out_ref, acc_ref, *,
                           kt, kh, kw, st, sh, sw, h_out, w_out, tt):
    # x_ref  : (1, Tp, Hp, Wp, C_in) bf16 padded volume (resident per batch)
    # w_ref  : (kt, kh*kw*C_in, C_out) bf16 folded weights
    # s/b    : (1, C_out) f32
    # out_ref: (1, tt, h_out, w_out, C_out)
    # acc_ref: (tt*h_out*w_out, C_out) f32 scratch accumulator
    c_in = x_ref.shape[-1]
    c_out = out_ref.shape[-1]
    tt_in = (tt - 1) * st + kt
    rows = tt * h_out * w_out

    ti = pl.program_id(1)
    t0 = pl.multiple_of(ti * (tt * st), tt * st)

    x_slab = x_ref[0, pl.ds(t0, tt_in), :, :, :]             # (tt_in, Hp, Wp, C_in)
    acc_ref[...] = jnp.zeros_like(acc_ref)
    for dt in range(kt):                                     # kt big matmuls / tile
        xt = _temporal_slice(x_slab, dt, tt, st)             # (tt, Hp, Wp, C_in)
        patch = _im2col_spatial(xt, kh, kw, h_out, w_out, sh, sw)
        acc_ref[...] += jnp.dot(patch.reshape(rows, kh * kw * c_in),
                                w_ref[dt],
                                preferred_element_type=jnp.float32)

    y = jnp.maximum(acc_ref[...] * s_ref[...] + b_ref[...], 0.0)
    out_ref[0] = y.reshape(tt, h_out, w_out, c_out).astype(out_ref.dtype)


def conv3d_bn_relu(x_cl, w_oidhw, scale, shift, *, stride, padding,
                   out_dtype=jnp.bfloat16, t_tile=4):
    """Fused Conv3d(bias=False) + folded BatchNorm + ReLU, blocked over (B, T)."""
    B, T, H, W, c_in = x_cl.shape
    c_out, _, kt, kh, kw = (int(s) for s in w_oidhw.shape)
    st, sh, sw = stride
    pt, ph, pw = padding

    # TODO(synk): HBM-side pad = one extra activation pass; fold into kernel.
    xp = jnp.pad(x_cl.astype(jnp.bfloat16),
                 ((0, 0), (pt, pt), (ph, ph), (pw, pw), (0, 0)))
    Tp, Hp, Wp = T + 2 * pt, H + 2 * ph, W + 2 * pw
    t_out = (Tp - kt) // st + 1
    h_out = (Hp - kh) // sh + 1
    w_out = (Wp - kw) // sw + 1
    tt = _pick_tile(t_out, t_tile)
    rows = tt * h_out * w_out

    wf = _fold_w_full(w_oidhw).astype(jnp.bfloat16)
    s2 = scale.reshape(1, c_out).astype(jnp.float32)
    b2 = shift.reshape(1, c_out).astype(jnp.float32)

    kernel = functools.partial(
        _conv3d_bn_relu_kernel, kt=kt, kh=kh, kw=kw, st=st, sh=sh, sw=sw,
        h_out=h_out, w_out=w_out, tt=tt)

    return pl.pallas_call(
        kernel,
        out_shape=jax.ShapeDtypeStruct((B, t_out, h_out, w_out, c_out),
                                       out_dtype),
        grid_spec=pltpu.PrefetchScalarGridSpec(
            num_scalar_prefetch=0,
            grid=(B, t_out // tt),
            in_specs=[
                pl.BlockSpec((1, Tp, Hp, Wp, c_in),
                             lambda b, t: (b, 0, 0, 0, 0)),
                pl.BlockSpec((kt, kh * kw * c_in, c_out),
                             lambda b, t: (0, 0, 0)),
                pl.BlockSpec((1, c_out), lambda b, t: (0, 0)),
                pl.BlockSpec((1, c_out), lambda b, t: (0, 0)),
            ],
            out_specs=pl.BlockSpec((1, tt, h_out, w_out, c_out),
                                   lambda b, t: (b, t, 0, 0, 0)),
            scratch_shapes=[pltpu.VMEM((rows, c_out), jnp.float32)],
        ),
        compiler_params=pltpu.CompilerParams(
            dimension_semantics=("parallel", "parallel"),
            vmem_limit_bytes=_VMEM_LIMIT_BYTES),
    )(xp, wf, s2, b2)


# ----------------------------------------------------------------------------
# STConv3D wrappers (eval-mode forward)
# ----------------------------------------------------------------------------

def stconv3d_forward_ndhwc(x_ndhwc, params, *, kernel_size, stride=1,
                           padding=0, separable=False,
                           out_dtype=jnp.bfloat16, t_tile=4):
    """Channels-last entry point (use this when chaining S3D blocks)."""
    ks = _triple(kernel_size)
    st = _triple(stride)
    pd = _triple(padding)

    scale1, shift1 = _fold_bn(params["bn1"])
    if separable:
        assert ks[0] != 1, "separable STConv3D requires temporal kernel != 1"
        scale2, shift2 = _fold_bn(params["bn2"])
        return sep_conv_bn_relu_fused(
            x_ndhwc, params["conv1_w"], scale1, shift1,
            params["conv2_w"], scale2, shift2,
            stride=st, padding=pd, out_dtype=out_dtype, t_tile=t_tile)
    return conv3d_bn_relu(x_ndhwc, params["conv1_w"], scale1, shift1,
                          stride=st, padding=pd, out_dtype=out_dtype,
                          t_tile=t_tile)


def stconv3d_forward(x_ncdhw, params, *, kernel_size, stride=1, padding=0,
                     separable=False, out_dtype=jnp.float32, t_tile=4):
    """PyTorch-layout (NCDHW) entry point. For chained blocks prefer the
    NDHWC entry point to avoid per-block HBM transposes."""
    x = jnp.transpose(x_ncdhw, (0, 2, 3, 4, 1))
    y = stconv3d_forward_ndhwc(x, params, kernel_size=kernel_size,
                               stride=stride, padding=padding,
                               separable=separable, out_dtype=out_dtype,
                               t_tile=t_tile)
    return jnp.transpose(y, (0, 4, 1, 2, 3))


# ----------------------------------------------------------------------------
# Pure-JAX reference (mirrors PyTorch eval-mode forward; bf16 conv inputs)
# ----------------------------------------------------------------------------

def _ref_conv_bn_relu(x, w, bn, stride, padding):
    gamma, beta, mean, var, eps = bn
    y = jax.lax.conv_general_dilated(
        x.astype(jnp.bfloat16), w.astype(jnp.bfloat16),
        window_strides=stride,
        padding=[(p, p) for p in padding],
        dimension_numbers=("NCDHW", "OIDHW", "NCDHW"),
        preferred_element_type=jnp.float32)
    inv = (gamma / jnp.sqrt(var + eps))[None, :, None, None, None]
    y = (y - mean[None, :, None, None, None]) * inv \
        + beta[None, :, None, None, None]
    return jnp.maximum(y, 0.0)


def stconv3d_reference(x, params, *, kernel_size, stride=1, padding=0,
                       separable=False):
    st = _triple(stride)
    pd = _triple(padding)
    if separable:
        sp_st, sp_pd = (1, st[1], st[2]), (0, pd[1], pd[2])
        tm_st, tm_pd = (st[0], 1, 1), (pd[0], 0, 0)
        y = _ref_conv_bn_relu(x, params["conv1_w"], params["bn1"], sp_st, sp_pd)
        y = _ref_conv_bn_relu(y, params["conv2_w"], params["bn2"], tm_st, tm_pd)
    else:
        y = _ref_conv_bn_relu(x, params["conv1_w"], params["bn1"], st, pd)
    return y


if __name__ == "__main__":
    # Scaled-down S3D block: input_dim=8, output_dim=16, kernel=(3,3,3),
    # stride=1, padding=1; input batch=2, C=8, T=8, H=W=16.
    B, Cin, Cout, T, H, W = 2, 8, 16, 8, 16, 16

    key = jax.random.PRNGKey(0)
    keys = jax.random.split(key, 8)

    def make_bn(k, c):
        k1, k2, k3, k4 = jax.random.split(k, 4)
        gamma = jax.random.uniform(k1, (c,), jnp.float32, 0.5, 1.5)
        beta = 0.1 * jax.random.normal(k2, (c,), jnp.float32)
        mean = 0.1 * jax.random.normal(k3, (c,), jnp.float32)
        var = jax.random.uniform(k4, (c,), jnp.float32, 0.5, 1.5)
        return (gamma, beta, mean, var, 1e-5)

    x = jax.random.normal(keys[0], (B, Cin, T, H, W), jnp.float32)

    # --- separable=True: spatial (1,3,3) conv then temporal (3,1,1), fused ---
    lim1 = 1.0 / (Cin * 3 * 3) ** 0.5
    w1 = jax.random.uniform(keys[1], (Cout, Cin, 1, 3, 3), jnp.float32,
                            -lim1, lim1)
    lim2 = 1.0 / (Cout * 3) ** 0.5
    w2 = jax.random.uniform(keys[2], (Cout, Cout, 3, 1, 1), jnp.float32,
                            -lim2, lim2)
    params_sep = {"conv1_w": w1, "bn1": make_bn(keys[3], Cout),
                  "conv2_w": w2, "bn2": make_bn(keys[4], Cout)}

    out_sep = stconv3d_forward(x, params_sep, kernel_size=(3, 3, 3),
                               stride=1, padding=1, separable=True)
    out_sep = jax.block_until_ready(out_sep)
    ref_sep = stconv3d_reference(x, params_sep, kernel_size=(3, 3, 3),
                                 stride=1, padding=1, separable=True)
    assert out_sep.shape == (B, Cout, T, H, W)
    assert jnp.allclose(out_sep, ref_sep, atol=2e-2, rtol=2e-2), \
        "separable STConv3D mismatch vs reference"

    # --- separable=False: full (3,3,3) conv ---
    lim3 = 1.0 / (Cin * 27) ** 0.5
    w3 = jax.random.uniform(keys[5], (Cout, Cin, 3, 3, 3), jnp.float32,
                            -lim3, lim3)
    params_full = {"conv1_w": w3, "bn1": make_bn(keys[6], Cout)}

    out_full = stconv3d_forward(x, params_full, kernel_size=(3, 3, 3),
                                stride=1, padding=1, separable=False)
    out_full = jax.block_until_ready(out_full)
    ref_full = stconv3d_reference(x, params_full, kernel_size=(3, 3, 3),
                                  stride=1, padding=1, separable=False)
    assert out_full.shape == (B, Cout, T, H, W)
    assert jnp.allclose(out_full, ref_full, atol=2e-2, rtol=2e-2), \
        "non-separable STConv3D mismatch vs reference"

    print("KERNEL_OK")
</pallas_src>

<mosaic_0001>
module attributes {stable_mosaic.version = 11 : i64} {
  func.func @_sep_fused_kernel(%arg0: i32, %arg1: i32, %arg2: memref<1x10x18x18x8xbf16, #tpu.memory_space<vmem>>, %arg3: memref<72x16xbf16, #tpu.memory_space<vmem>>, %arg4: memref<1x16xf32, #tpu.memory_space<vmem>>, %arg5: memref<1x16xf32, #tpu.memory_space<vmem>>, %arg6: memref<3x16x16xbf16, #tpu.memory_space<vmem>>, %arg7: memref<1x16xf32, #tpu.memory_space<vmem>>, %arg8: memref<1x16xf32, #tpu.memory_space<vmem>>, %arg9: memref<1x4x16x16x16xf32, #tpu.memory_space<vmem>>, %arg10: memref<6x16x16x16xbf16, #tpu.memory_space<vmem>>) attributes {dimension_semantics = [#tpu.dimension_semantics<parallel>, #tpu.dimension_semantics<parallel>], iteration_bounds = array<i64: 2, 2>, scalar_prefetch = 0 : i64, scratch_operands = 1 : i64, tpu.core_type = #tpu.core_type<tc>, window_params = [{transform_indices = @transform_0, window_bounds = array<i64: 1, 10, 18, 18, 8>}, {pipeline_mode = #tpu.pipeline_mode<synchronous>, transform_indices = @transform_1, window_bounds = array<i64: 72, 16>}, {pipeline_mode = #tpu.pipeline_mode<synchronous>, transform_indices = @transform_2, window_bounds = array<i64: 1, 16>}, {pipeline_mode = #tpu.pipeline_mode<synchronous>, transform_indices = @transform_3, window_bounds = array<i64: 1, 16>}, {pipeline_mode = #tpu.pipeline_mode<synchronous>, transform_indices = @transform_4, window_bounds = array<i64: 3, 16, 16>}, {pipeline_mode = #tpu.pipeline_mode<synchronous>, transform_indices = @transform_5, window_bounds = array<i64: 1, 16>}, {pipeline_mode = #tpu.pipeline_mode<synchronous>, transform_indices = @transform_6, window_bounds = array<i64: 1, 16>}, {transform_indices = @transform_7, window_bounds = array<i64: 1, 4, 16, 16, 16>}]} {
    %c4_i32 = arith.constant 4 : i32
    %0 = arith.muli %arg1, %c4_i32 : i32
    %1 = tpu.assume_multiple %0, 4 : i32
    %c0 = arith.constant 0 : index
    %2 = arith.index_cast %1 : i32 to index
    %c0_0 = arith.constant 0 : index
    %c0_1 = arith.constant 0 : index
    %c0_2 = arith.constant 0 : index
    %3 = vector.load %arg2[%c0, %2, %c0_0, %c0_1, %c0_2] : memref<1x10x18x18x8xbf16, #tpu.memory_space<vmem>>, vector<1x6x18x18x8xbf16>
    %4 = vector.shape_cast %3 : vector<1x6x18x18x8xbf16> to vector<6x18x18x8xbf16>
    %5 = vector.extract_strided_slice %4 {offsets = [0, 0, 0, 0], sizes = [6, 16, 16, 8], strides = [1, 1, 1, 1]} : vector<6x18x18x8xbf16> to vector<6x16x16x8xbf16>
    %6 = vector.extract_strided_slice %4 {offsets = [0, 0, 1, 0], sizes = [6, 16, 16, 8], strides = [1, 1, 1, 1]} : vector<6x18x18x8xbf16> to vector<6x16x16x8xbf16>
    %7 = vector.extract_strided_slice %4 {offsets = [0, 0, 2, 0], sizes = [6, 16, 16, 8], strides = [1, 1, 1, 1]} : vector<6x18x18x8xbf16> to vector<6x16x16x8xbf16>
    %8 = vector.extract_strided_slice %4 {offsets = [0, 1, 0, 0], sizes = [6, 16, 16, 8], strides = [1, 1, 1, 1]} : vector<6x18x18x8xbf16> to vector<6x16x16x8xbf16>
    %9 = vector.extract_strided_slice %4 {offsets = [0, 1, 1, 0], sizes = [6, 16, 16, 8], strides = [1, 1, 1, 1]} : vector<6x18x18x8xbf16> to vector<6x16x16x8xbf16>
    %10 = vector.extract_strided_slice %4 {offsets = [0, 1, 2, 0], sizes = [6, 16, 16, 8], strides = [1, 1, 1, 1]} : vector<6x18x18x8xbf16> to vector<6x16x16x8xbf16>
    %11 = vector.extract_strided_slice %4 {offsets = [0, 2, 0, 0], sizes = [6, 16, 16, 8], strides = [1, 1, 1, 1]} : vector<6x18x18x8xbf16> to vector<6x16x16x8xbf16>
    %12 = vector.extract_strided_slice %4 {offsets = [0, 2, 1, 0], sizes = [6, 16, 16, 8], strides = [1, 1, 1, 1]} : vector<6x18x18x8xbf16> to vector<6x16x16x8xbf16>
    %13 = vector.extract_strided_slice %4 {offsets = [0, 2, 2, 0], sizes = [6, 16, 16, 8], strides = [1, 1, 1, 1]} : vector<6x18x18x8xbf16> to vector<6x16x16x8xbf16>
    %14 = tpu.concatenate %5, %6, %7, %8, %9, %10, %11, %12, %13 in 3 : vector<6x16x16x8xbf16>, vector<6x16x16x8xbf16>, vector<6x16x16x8xbf16>, vector<6x16x16x8xbf16>, vector<6x16x16x8xbf16>, vector<6x16x16x8xbf16>, vector<6x16x16x8xbf16>, vector<6x16x16x8xbf16>, vector<6x16x16x8xbf16> -> vector<6x16x16x72xbf16>
    %15 = vector.shape_cast %14 : vector<6x16x16x72xbf16> to vector<1536x72xbf16>
    %c0_3 = arith.constant 0 : index
    %c0_4 = arith.constant 0 : index
    %16 = vector.load %arg3[%c0_3, %c0_4] : memref<72x16xbf16, #tpu.memory_space<vmem>>, vector<72x16xbf16>
    %cst = arith.constant dense<0.000000e+00> : vector<1536x16xf32>
    %17 = tpu.matmul %15, %16, %cst {dimension_numbers = #tpu.dot_dimension_numbers<[1], [0], [0], [1], [0, 0, 1, 1], [], []>} : vector<1536x72xbf16>, vector<72x16xbf16>, vector<1536x16xf32> -> vector<1536x16xf32>
    %c0_5 = arith.constant 0 : index
    %c0_6 = arith.constant 0 : index
    %18 = vector.load %arg4[%c0_5, %c0_6] : memref<1x16xf32, #tpu.memory_space<vmem>>, vector<1x16xf32>
    %19 = vector.broadcast %18 : vector<1x16xf32> to vector<1536x16xf32>
    %20 = arith.mulf %17, %19 : vector<1536x16xf32>
    %c0_7 = arith.constant 0 : index
    %c0_8 = arith.constant 0 : index
    %21 = vector.load %arg5[%c0_7, %c0_8] : memref<1x16xf32, #tpu.memory_space<vmem>>, vector<1x16xf32>
    %22 = vector.broadcast %21 : vector<1x16xf32> to vector<1536x16xf32>
    %23 = arith.addf %20, %22 : vector<1536x16xf32>
    %cst_9 = arith.constant 0.000000e+00 : f32
    %24 = vector.broadcast %cst_9 : f32 to vector<1536x16xf32>
    %25 = arith.maximumf %23, %24 : vector<1536x16xf32>
    %26 = vector.shape_cast %25 : vector<1536x16xf32> to vector<6x16x16x16xf32>
    %27 = tpu.iota {dimensions = array<i32: 0>} : vector<6x1x1x1xi32>
    %28 = vector.broadcast %1 : i32 to vector<6x1x1x1xi32>
    %29 = arith.addi %28, %27 : vector<6x1x1x1xi32>
    %c1_i32 = arith.constant 1 : i32
    %30 = vector.broadcast %c1_i32 : i32 to vector<6x1x1x1xi32>
    %31 = arith.cmpi sge, %29, %30 : vector<6x1x1x1xi32>
    %c9_i32 = arith.constant 9 : i32
    %32 = vector.broadcast %c9_i32 : i32 to vector<6x1x1x1xi32>
    %33 = arith.cmpi slt, %29, %32 : vector<6x1x1x1xi32>
    %34 = arith.andi %31, %33 : vector<6x1x1x1xi1>
    %cst_10 = arith.constant 0.000000e+00 : f32
    %35 = vector.shape_cast %34 : vector<6x1x1x1xi1> to vector<6x1x1x1xi1>
    %36 = vector.broadcast %35 : vector<6x1x1x1xi1> to vector<6x16x16x16xi1>
    %37 = vector.broadcast %cst_10 : f32 to vector<6x16x16x16xf32>
    %38 = arith.select %36, %26, %37 : vector<6x16x16x16xi1>, vector<6x16x16x16xf32>
    %39 = arith.truncf %38 : vector<6x16x16x16xf32> to vector<6x16x16x16xbf16>
    %c0_11 = arith.constant 0 : index
    %c0_12 = arith.constant 0 : index
    %c0_13 = arith.constant 0 : index
    %c0_14 = arith.constant 0 : index
    %40 = vector.load %arg10[%c0_11, %c0_12, %c0_13, %c0_14] : memref<6x16x16x16xbf16, #tpu.memory_space<vmem>>, vector<6x16x16x16xbf16>
    tpu.vector_store %arg10[%c0_11, %c0_12, %c0_13, %c0_14], %39 {strides = array<i32>} : memref<6x16x16x16xbf16, #tpu.memory_space<vmem>>, vector<6x16x16x16xbf16>,
    %c0_15 = arith.constant 0 : index
    %c0_16 = arith.constant 0 : index
    %c0_17 = arith.constant 0 : index
    %c0_18 = arith.constant 0 : index
    %41 = vector.load %arg10[%c0_15, %c0_16, %c0_17, %c0_18] : memref<6x16x16x16xbf16, #tpu.memory_space<vmem>>, vector<6x16x16x16xbf16>
    %cst_19 = arith.constant 0.000000e+00 : f32
    %42 = vector.broadcast %cst_19 : f32 to vector<1024x16xf32>
    %43 = vector.extract_strided_slice %41 {offsets = [0, 0, 0, 0], sizes = [4, 16, 16, 16], strides = [1, 1, 1, 1]} : vector<6x16x16x16xbf16> to vector<4x16x16x16xbf16>
    %44 = vector.shape_cast %43 : vector<4x16x16x16xbf16> to vector<1024x16xbf16>
    %c0_20 = arith.constant 0 : index
    %c0_21 = arith.constant 0 : index
    %c0_22 = arith.constant 0 : index
    %45 = vector.load %arg6[%c0_20, %c0_21, %c0_22] : memref<3x16x16xbf16, #tpu.memory_space<vmem>>, vector<1x16x16xbf16>
    %46 = vector.shape_cast %45 : vector<1x16x16xbf16> to vector<16x16xbf16>
    %cst_23 = arith.constant dense<0.000000e+00> : vector<1024x16xf32>
    %47 = tpu.matmul %44, %46, %cst_23 {dimension_numbers = #tpu.dot_dimension_numbers<[1], [0], [0], [1], [0, 0, 1, 1], [], []>} : vector<1024x16xbf16>, vector<16x16xbf16>, vector<1024x16xf32> -> vector<1024x16xf32>
    %48 = arith.addf %42, %47 : vector<1024x16xf32>
    %49 = vector.extract_strided_slice %41 {offsets = [1, 0, 0, 0], sizes = [4, 16, 16, 16], strides = [1, 1, 1, 1]} : vector<6x16x16x16xbf16> to vector<4x16x16x16xbf16>
    %50 = vector.shape_cast %49 : vector<4x16x16x16xbf16> to vector<1024x16xbf16>
    %c1 = arith.constant 1 : index
    %c0_24 = arith.constant 0 : index
    %c0_25 = arith.constant 0 : index
    %51 = vector.load %arg6[%c1, %c0_24, %c0_25] : memref<3x16x16xbf16, #tpu.memory_space<vmem>>, vector<1x16x16xbf16>
    %52 = vector.shape_cast %51 : vector<1x16x16xbf16> to vector<16x16xbf16>
    %cst_26 = arith.constant dense<0.000000e+00> : vector<1024x16xf32>
    %53 = tpu.matmul %50, %52, %cst_26 {dimension_numbers = #tpu.dot_dimension_numbers<[1], [0], [0], [1], [0, 0, 1, 1], [], []>} : vector<1024x16xbf16>, vector<16x16xbf16>, vector<1024x16xf32> -> vector<1024x16xf32>
    %54 = arith.addf %48, %53 : vector<1024x16xf32>
    %55 = vector.extract_strided_slice %41 {offsets = [2, 0, 0, 0], sizes = [4, 16, 16, 16], strides = [1, 1, 1, 1]} : vector<6x16x16x16xbf16> to vector<4x16x16x16xbf16>
    %56 = vector.shape_cast %55 : vector<4x16x16x16xbf16> to vector<1024x16xbf16>
    %c2 = arith.constant 2 : index
    %c0_27 = arith.constant 0 : index
    %c0_28 = arith.constant 0 : index
    %57 = vector.load %arg6[%c2, %c0_27, %c0_28] : memref<3x16x16xbf16, #tpu.memory_space<vmem>>, vector<1x16x16xbf16>
    %58 = vector.shape_cast %57 : vector<1x16x16xbf16> to vector<16x16xbf16>
    %cst_29 = arith.constant dense<0.000000e+00> : vector<1024x16xf32>
    %59 = tpu.matmul %56, %58, %cst_29 {dimension_numbers = #tpu.dot_dimension_numbers<[1], [0], [0], [1], [0, 0, 1, 1], [], []>} : vector<1024x16xbf16>, vector<16x16xbf16>, vector<1024x16xf32> -> vector<1024x16xf32>
    %60 = arith.addf %54, %59 : vector<1024x16xf32>
    %c0_30 = arith.constant 0 : index
    %c0_31 = arith.constant 0 : index
    %61 = vector.load %arg7[%c0_30, %c0_31] : memref<1x16xf32, #tpu.memory_space<vmem>>, vector<1x16xf32>
    %62 = vector.broadcast %61 : vector<1x16xf32> to vector<1024x16xf32>
    %63 = arith.mulf %60, %62 : vector<1024x16xf32>
    %c0_32 = arith.constant 0 : index
    %c0_33 = arith.constant 0 : index
    %64 = vector.load %arg8[%c0_32, %c0_33] : memref<1x16xf32, #tpu.memory_space<vmem>>, vector<1x16xf32>
    %65 = vector.broadcast %64 : vector<1x16xf32> to vector<1024x16xf32>
    %66 = arith.addf %63, %65 : vector<1024x16xf32>
    %cst_34 = arith.constant 0.000000e+00 : f32
    %67 = vector.broadcast %cst_34 : f32 to vector<1024x16xf32>
    %68 = arith.maximumf %66, %67 : vector<1024x16xf32>
    %69 = vector.shape_cast %68 : vector<1024x16xf32> to vector<4x16x16x16xf32>
    %c0_35 = arith.constant 0 : index
    %c0_36 = arith.constant 0 : index
    %c0_37 = arith.constant 0 : index
    %c0_38 = arith.constant 0 : index
    %c0_39 = arith.constant 0 : index
    %70 = vector.load %arg9[%c0_35, %c0_36, %c0_37, %c0_38, %c0_39] : memref<1x4x16x16x16xf32, #tpu.memory_space<vmem>>, vector<1x4x16x16x16xf32>
    %71 = vector.shape_cast %70 : vector<1x4x16x16x16xf32> to vector<4x16x16x16xf32>
    %72 = vector.shape_cast %69 : vector<4x16x16x16xf32> to vector<1x4x16x16x16xf32>
    tpu.vector_store %arg9[%c0_35, %c0_36, %c0_37, %c0_38, %c0_39], %72 {strides = array<i32>} : memref<1x4x16x16x16xf32, #tpu.memory_space<vmem>>, vector<1x4x16x16x16xf32>,
    return
  }
  func.func @transform_0(%arg0: i32, %arg1: i32) -> (i32, i32, i32, i32, i32) {
    %c0_i32 = arith.constant 0 : i32
    %c0_i32_0 = arith.constant 0 : i32
    %c0_i32_1 = arith.constant 0 : i32
    %c0_i32_2 = arith.constant 0 : i32
    %c0_i32_3 = arith.constant 0 : i32
    return %arg0, %c0_i32, %c0_i32_0, %c0_i32_1, %c0_i32_2 : i32, i32, i32, i32, i32
  }
  func.func @transform_1(%arg0: i32, %arg1: i32) -> (i32, i32) {
    %c0_i32 = arith.constant 0 : i32
    %c0_i32_0 = arith.constant 0 : i32
    %c0_i32_1 = arith.constant 0 : i32
    return %c0_i32, %c0_i32_0 : i32, i32
  }
  func.func @transform_2(%arg0: i32, %arg1: i32) -> (i32, i32) {
    %c0_i32 = arith.constant 0 : i32
    %c0_i32_0 = arith.constant 0 : i32
    %c0_i32_1 = arith.constant 0 : i32
    return %c0_i32, %c0_i32_0 : i32, i32
  }
  func.func @transform_3(%arg0: i32, %arg1: i32) -> (i32, i32) {
    %c0_i32 = arith.constant 0 : i32
    %c0_i32_0 = arith.constant 0 : i32
    %c0_i32_1 = arith.constant 0 : i32
    return %c0_i32, %c0_i32_0 : i32, i32
  }
  func.func @transform_4(%arg0: i32, %arg1: i32) -> (i32, i32, i32) {
    %c0_i32 = arith.constant 0 : i32
    %c0_i32_0 = arith.constant 0 : i32
    %c0_i32_1 = arith.constant 0 : i32
    %c0_i32_2 = arith.constant 0 : i32
    return %c0_i32, %c0_i32_0, %c0_i32_1 : i32, i32, i32
  }
  func.func @transform_5(%arg0: i32, %arg1: i32) -> (i32, i32) {
    %c0_i32 = arith.constant 0 : i32
    %c0_i32_0 = arith.constant 0 : i32
    %c0_i32_1 = arith.constant 0 : i32
    return %c0_i32, %c0_i32_0 : i32, i32
  }
  func.func @transform_6(%arg0: i32, %arg1: i32) -> (i32, i32) {
    %c0_i32 = arith.constant 0 : i32
    %c0_i32_0 = arith.constant 0 : i32
    %c0_i32_1 = arith.constant 0 : i32
    return %c0_i32, %c0_i32_0 : i32, i32
  }
  func.func @transform_7(%arg0: i32, %arg1: i32) -> (i32, i32, i32, i32, i32) {
    %c0_i32 = arith.constant 0 : i32
    %c0_i32_0 = arith.constant 0 : i32
    %c0_i32_1 = arith.constant 0 : i32
    %c0_i32_2 = arith.constant 0 : i32
    return %arg0, %arg1, %c0_i32, %c0_i32_0, %c0_i32_1 : i32, i32, i32, i32, i32
  }
}

</mosaic_0001>

<llo_original>
// kernel: tpu_custom_call.1
$region0: #{tpu_custom_call.1}
  #allocation0 [shape = 'u32[]', space=smem, size = 0x4, offset = 0x4, fixed_abs, tag = 'smem constant byte address 0x4 - core index']
  #allocation1 [shape = 'u32[144,128]{1,0:T(1,128)}', space=vmem, size = 0x12000, scoped, tag = 'internal scratch']
  #allocation2 [shape = 'bf16[6,16,16,16]{3,2,1,0:T(16,128)(2,1)}', space=vmem, size = 0x60000, scoped, tag = 'scratch operand']
  %s0 = inlined_call_operand.vmem [shape: bf16[2,10,18,18,8], index: 0, kind: input, shape index: {}]
  %s1 = inlined_call_operand.vmem [shape: bf16[72,16], index: 1, kind: input, shape index: {}]
  %s2 = inlined_call_operand.vmem [shape: f32[1,16], index: 2, kind: input, shape index: {}]
  %s3 = inlined_call_operand.vmem [shape: f32[1,16], index: 3, kind: input, shape index: {}]
  %s4 = inlined_call_operand.vmem [shape: bf16[3,16,16], index: 4, kind: input, shape index: {}]
  %s5 = inlined_call_operand.vmem [shape: f32[1,16], index: 5, kind: input, shape index: {}]
  %s6 = inlined_call_operand.vmem [shape: f32[1,16], index: 6, kind: input, shape index: {}]
  %s7 = inlined_call_operand.hbm [shape: f32[2,8,16,16,16], index: 7, kind: output, shape index: {}]
  %s8 = sld [smem:[#allocation0]]
  $region61: #{tpu_custom_call.1} parent=0
    _
  %s10 = ssub.s32 1, %s8
  %s11 = scalar_select 0, %s10, %s8
  $region1: #{tpu_custom_call.1} parent=0
    #allocation3 [shape = 'u8[1048576]{0}', space=vmem, size = 0x100000, scoped, tag = 'output window, operand 0']
    #allocation4 [shape = 's32[2]{0}', space=sflag, size = 0x8, scoped, tag = 'scoped memory for tpu_custom_call.1']
    %12 = vsyncpa [#allocation4], 0
    %s13 = scalar_lea.sflag [#allocation4], 1
    %14 = vsyncpa %s13, 0
    loop: start=0, step=1, limit=6
    $region2: #{tpu_custom_call.1} parent=1 // loop_pre_header
      _
    $region3: #{tpu_custom_call.1} parent=1 // loop_header
      %s16 = sphi 0, %s20
      %p17 = scmp.ge.s32.totalorder %s16, 6
      %s23 = sphi 0, %s35
      %s24 = sphi 0, %s31
      %s25 = sphi 0, %s23
      %s26 = sphi 0, %s24
      %s27 = sphi 0, %s25
      %s28 = sphi 0, %s26
      %s38 = sphi 0, %s40
      %s41 = sphi 0, %s38
      %s42 = sphi 0, %s41
      %s58 = sphi 0, %s42
      %s62 = sphi 0, %s62
      %s64 = sphi 0, %s62
      %s65 = sphi 0, %s64
      %s79 = sphi 0, %s65
      %s83 = sphi 0, %s83
      %s85 = sphi 0, %s83
      %s86 = sphi 0, %s85
      %s100 = sphi 0, %s86
      %s104 = sphi 0, %s104
      %s106 = sphi 0, %s104
      %s107 = sphi 0, %s106
      %s121 = sphi 0, %s107
      %s125 = sphi 0, %s125
      %s127 = sphi 0, %s125
      %s128 = sphi 0, %s127
      %s142 = sphi 0, %s128
      %s146 = sphi 0, %s146
      %s148 = sphi 0, %s146
      %s149 = sphi 0, %s148
      %s163 = sphi 0, %s149
      %s167 = sphi 0, %s167
      %s169 = sphi 0, %s167
      %s170 = sphi 0, %s169
      %s184 = sphi 0, %s170
      %s192 = sphi 0, %s194
      %s195 = sphi 0, %s192
      %s196 = sphi 0, %s195
      %s212 = sphi 0, %s196
    $region4: #{tpu_custom_call.1} parent=1 // loop_header_branch
      %19 = sbr.rel (%p17) target = $region8
    $region5: #{tpu_custom_call.1} parent=1 // loop_body
      %s21 = ssub.s32 %s16, 1
      %s22 = ssub.s32 %s16, 2
      %s29 = sadd.s32 1, %s24
      %p30 = scmp.ge.s32.totalorder %s29, 2
      %s31 = scalar_select %p30, 0, %s29
      %s32 = sadd.s32 1, %s23
      %s33 = scalar_select %p30, %s32, %s23
      %p34 = scmp.ge.s32.totalorder %s33, 2
      %s35 = scalar_select %p34, 0, %s33
      %s36 = ssub.s32 %s23, %s35
      %p37 = scmp.eq.s32.totalorder %s36, 0
      %s39 = sadd.s32 %s38, 1
      %s40 = scalar_select %p37, %s38, %s39
      %p43 = pneg %p37
      %p44 = scmp.eq.s32.totalorder %s16, 3
      %p45 = por %p43, %p44
      %p46 = scmp.ne.s32.totalorder %s38, %s41
      %p47 = scmp.eq.s32.totalorder %s16, 0
      %p48 = por %p46, %p47
      %p49 = scmp.ne.s32.totalorder %s38, %s41
      %p50 = scmp.eq.s32.totalorder %s21, 3
      %p51 = por %p49, %p50
      %p52 = scmp.ne.s32.totalorder %s41, %s42
      %p53 = scmp.eq.s32.totalorder %s21, 0
      %p54 = por %p52, %p53
      %p55 = scmp.ne.s32.totalorder %s41, %s42
      %p56 = scmp.eq.s32.totalorder %s22, 3
      %p57 = por %p55, %p56
      %p59 = scmp.ne.s32.totalorder %s42, %s58
      %p60 = scmp.eq.s32.totalorder %s22, 0
      %p61 = por %p59, %p60
      %s63 = sadd.s32 %s62, 1
      %p66 = scmp.eq.s32.totalorder %s16, 3
      %p67 = scmp.ne.s32.totalorder %s62, %s64
      %p68 = scmp.eq.s32.totalorder %s16, 0
      %p69 = por %p67, %p68
      %p70 = scmp.ne.s32.totalorder %s62, %s64
      %p71 = scmp.eq.s32.totalorder %s21, 3
      %p72 = por %p70, %p71
      %p73 = scmp.ne.s32.totalorder %s64, %s65
      %p74 = scmp.eq.s32.totalorder %s21, 0
      %p75 = por %p73, %p74
      %p76 = scmp.ne.s32.totalorder %s64, %s65
      %p77 = scmp.eq.s32.totalorder %s22, 3
      %p78 = por %p76, %p77
      %p80 = scmp.ne.s32.totalorder %s65, %s79
      %p81 = scmp.eq.s32.totalorder %s22, 0
      %p82 = por %p80, %p81
      %s84 = sadd.s32 %s83, 1
      %p87 = scmp.eq.s32.totalorder %s16, 3
      %p88 = scmp.ne.s32.totalorder %s83, %s85
      %p89 = scmp.eq.s32.totalorder %s16, 0
      %p90 = por %p88, %p89
      %p91 = scmp.ne.s32.totalorder %s83, %s85
      %p92 = scmp.eq.s32.totalorder %s21, 3
      %p93 = por %p91, %p92
      %p94 = scmp.ne.s32.totalorder %s85, %s86
      %p95 = scmp.eq.s32.totalorder %s21, 0
      %p96 = por %p94, %p95
      %p97 = scmp.ne.s32.totalorder %s85, %s86
      %p98 = scmp.eq.s32.totalorder %s22, 3
      %p99 = por %p97, %p98
      %p101 = scmp.ne.s32.totalorder %s86, %s100
      %p102 = scmp.eq.s32.totalorder %s22, 0
      %p103 = por %p101, %p102
      %s105 = sadd.s32 %s104, 1
      %p108 = scmp.eq.s32.totalorder %s16, 3
      %p109 = scmp.ne.s32.totalorder %s104, %s106
      %p110 = scmp.eq.s32.totalorder %s16, 0
      %p111 = por %p109, %p110
      %p112 = scmp.ne.s32.totalorder %s104, %s106
      %p113 = scmp.eq.s32.totalorder %s21, 3
      %p114 = por %p112, %p113
      %p115 = scmp.ne.s32.totalorder %s106, %s107
      %p116 = scmp.eq.s32.totalorder %s21, 0
      %p117 = por %p115, %p116
      %p118 = scmp.ne.s32.totalorder %s106, %s107
      %p119 = scmp.eq.s32.totalorder %s22, 3
      %p120 = por %p118, %p119
      %p122 = scmp.ne.s32.totalorder %s107, %s121
      %p123 = scmp.eq.s32.totalorder %s22, 0
      %p124 = por %p122, %p123
      %s126 = sadd.s32 %s125, 1
      %p129 = scmp.eq.s32.totalorder %s16, 3
      %p130 = scmp.ne.s32.totalorder %s125, %s127
      %p131 = scmp.eq.s32.totalorder %s16, 0
      %p132 = por %p130, %p131
      %p133 = scmp.ne.s32.totalorder %s125, %s127
      %p134 = scmp.eq.s32.totalorder %s21, 3
      %p135 = por %p133, %p134
      %p136 = scmp.ne.s32.totalorder %s127, %s128
      %p137 = scmp.eq.s32.totalorder %s21, 0
      %p138 = por %p136, %p137
      %p139 = scmp.ne.s32.totalorder %s127, %s128
      %p140 = scmp.eq.s32.totalorder %s22, 3
      %p141 = por %p139, %p140
      %p143 = scmp.ne.s32.totalorder %s128, %s142
      %p144 = scmp.eq.s32.totalorder %s22, 0
      %p145 = por %p143, %p144
      %s147 = sadd.s32 %s146, 1
      %p150 = scmp.eq.s32.totalorder %s16, 3
      %p151 = scmp.ne.s32.totalorder %s146, %s148
      %p152 = scmp.eq.s32.totalorder %s16, 0
      %p153 = por %p151, %p152
      %p154 = scmp.ne.s32.totalorder %s146, %s148
      %p155 = scmp.eq.s32.totalorder %s21, 3
      %p156 = por %p154, %p155
      %p157 = scmp.ne.s32.totalorder %s148, %s149
      %p158 = scmp.eq.s32.totalorder %s21, 0
      %p159 = por %p157, %p158
      %p160 = scmp.ne.s32.totalorder %s148, %s149
      %p161 = scmp.eq.s32.totalorder %s22, 3
      %p162 = por %p160, %p161
      %p164 = scmp.ne.s32.totalorder %s149, %s163
      %p165 = scmp.eq.s32.totalorder %s22, 0
      %p166 = por %p164, %p165
      %s168 = sadd.s32 %s167, 1
      %p171 = scmp.eq.s32.totalorder %s16, 3
      %p172 = scmp.ne.s32.totalorder %s167, %s169
      %p173 = scmp.eq.s32.totalorder %s16, 0
      %p174 = por %p172, %p173
      %p175 = scmp.ne.s32.totalorder %s167, %s169
      %p176 = scmp.eq.s32.totalorder %s21, 3
      %p177 = por %p175, %p176
      %p178 = scmp.ne.s32.totalorder %s169, %s170
      %p179 = scmp.eq.s32.totalorder %s21, 0
      %p180 = por %p178, %p179
      %p181 = scmp.ne.s32.totalorder %s169, %s170
      %p182 = scmp.eq.s32.totalorder %s22, 3
      %p183 = por %p181, %p182
      %p185 = scmp.ne.s32.totalorder %s170, %s184
      %p186 = scmp.eq.s32.totalorder %s22, 0
      %p187 = por %p185, %p186
      %s188 = ssub.s32 %s23, %s35
      %s189 = ssub.s32 %s24, %s31
      %s190 = sor.u32 %s188, %s189
      %p191 = scmp.eq.s32.totalorder %s190, 0
      %s193 = sadd.s32 %s192, 1
      %s194 = scalar_select %p191, %s192, %s193
      %p197 = pneg %p191
      %p198 = scmp.eq.s32.totalorder %s16, 3
      %p199 = por %p197, %p198
      %p200 = scmp.ne.s32.totalorder %s192, %s195
      %p201 = scmp.eq.s32.totalorder %s16, 0
      %p202 = por %p200, %p201
      %p203 = scmp.ne.s32.totalorder %s192, %s195
      %p204 = scmp.eq.s32.totalorder %s21, 3
      %p205 = por %p203, %p204
      %p206 = scmp.ne.s32.totalorder %s195, %s196
      %p207 = scmp.eq.s32.totalorder %s21, 0
      %p208 = por %p206, %p207
      %p209 = scmp.ne.s32.totalorder %s195, %s196
      %p210 = scmp.eq.s32.totalorder %s22, 3
      %p211 = por %p209, %p210
      %p213 = scmp.ne.s32.totalorder %s196, %s212
      %p214 = scmp.eq.s32.totalorder %s22, 0
      %p215 = por %p213, %p214
      %p216 = scmp.le.s32.totalorder 1, %s16
      %p217 = scmp.lt.s32.totalorder %s16, 5
      %p218 = pnand %p216, %p217
      %p219 = pneg %p218
      // Predicated region
      $region9: #{tpu_custom_call.1} parent=5 // pred_check
        _
      $region10: #{tpu_custom_call.1} parent=5 // pred_check_branch
        %221 = sbr.rel (%p218) target = $region12
      $region11: #{tpu_custom_call.1} parent=5 // pred_region
        %s222 = ssub.s32 %s16, 1
        // Predicated region
        $region13: #{tpu_custom_call.1} parent=11 // pred_check
          %p223 = pneg %p75
        $region14: #{tpu_custom_call.1} parent=11 // pred_check_branch
          %225 = sbr.rel (%p223) target = $region16
        $region15: #{tpu_custom_call.1} parent=11 // pred_region
          _
        $region16: #{tpu_custom_call.1} parent=11 // pred_fallthru
          _
        // Predicated region
        $region17: #{tpu_custom_call.1} parent=11 // pred_check
          %p226 = pneg %p96
        $region18: #{tpu_custom_call.1} parent=11 // pred_check_branch
          %228 = sbr.rel (%p226) target = $region20
        $region19: #{tpu_custom_call.1} parent=11 // pred_region
          _
        $region20: #{tpu_custom_call.1} parent=11 // pred_fallthru
          _
        // Predicated region
        $region21: #{tpu_custom_call.1} parent=11 // pred_check
          %p229 = pneg %p117
        $region22: #{tpu_custom_call.1} parent=11 // pred_check_branch
          %231 = sbr.rel (%p229) target = $region24
        $region23: #{tpu_custom_call.1} parent=11 // pred_region
          _
        $region24: #{tpu_custom_call.1} parent=11 // pred_fallthru
          _
        // Predicated region
        $region25: #{tpu_custom_call.1} parent=11 // pred_check
          %p232 = pneg %p138
        $region26: #{tpu_custom_call.1} parent=11 // pred_check_branch
          %234 = sbr.rel (%p232) target = $region28
        $region27: #{tpu_custom_call.1} parent=11 // pred_region
          _
        $region28: #{tpu_custom_call.1} parent=11 // pred_fallthru
          _
        // Predicated region
        $region29: #{tpu_custom_call.1} parent=11 // pred_check
          %p235 = pneg %p159
        $region30: #{tpu_custom_call.1} parent=11 // pred_check_branch
          %237 = sbr.rel (%p235) target = $region32
        $region31: #{tpu_custom_call.1} parent=11 // pred_region
          _
        $region32: #{tpu_custom_call.1} parent=11 // pred_fallthru
          _
        // Predicated region
        $region33: #{tpu_custom_call.1} parent=11 // pred_check
          %p238 = pneg %p180
        $region34: #{tpu_custom_call.1} parent=11 // pred_check_branch
          %240 = sbr.rel (%p238) target = $region36
        $region35: #{tpu_custom_call.1} parent=11 // pred_region
          _
        $region36: #{tpu_custom_call.1} parent=11 // pred_fallthru
          _
      $region12: #{tpu_custom_call.1} parent=5 // pred_fallthru
        _
      %p241 = scmp.lt.s32.totalorder %s16, 4
      // Predicated region
      $region37: #{tpu_custom_call.1} parent=5 // pred_check
        %p242 = pneg %p241
      $region38: #{tpu_custom_call.1} parent=5 // pred_check_branch
        %244 = sbr.rel (%p242) target = $region40
      $region39: #{tpu_custom_call.1} parent=5 // pred_region
        // Predicated region
        $region41: #{tpu_custom_call.1} parent=39 // pred_check
          %p245 = pneg %p48
        $region42: #{tpu_custom_call.1} parent=39 // pred_check_branch
          %247 = sbr.rel (%p245) target = $region44
        $region43: #{tpu_custom_call.1} parent=39 // pred_region
          %p248 = scmp.lt.s32.totalorder %s23, 1
          %s249 = scalar_select %p248, %s23, 1
          %s250 = smul.addr %s249, 540
          %s251 = smul.addr %s250, 4
          %s252 = scalar_lea.vmem %s0, %s251
        $region44: #{tpu_custom_call.1} parent=39 // pred_fallthru
          _
      $region40: #{tpu_custom_call.1} parent=5 // pred_fallthru
        _
      %p253 = scmp.le.s32.totalorder 1, %s16
      %p254 = scmp.lt.s32.totalorder %s16, 5
      %p255 = pnand %p253, %p254
      %p256 = pneg %p255
      // Predicated region
      $region45: #{tpu_custom_call.1} parent=5 // pred_check
        _
      $region46: #{tpu_custom_call.1} parent=5 // pred_check_branch
        %258 = sbr.rel (%p255) target = $region48
      $region47: #{tpu_custom_call.1} parent=5 // pred_region
        %s259 = ssub.s32 %s16, 1
        %p260 = scmp.lt.s32.totalorder %s25, 1
        %s261 = scalar_select %p260, %s25, 1
        %s262 = smul.addr %s261, 540
        %s263 = smul.addr %s262, 4
        %s264 = scalar_lea.vmem %s0, %s263
        %p265 = pneg %p54
        %p266 = pneg %p51
        %p267 = pneg %p75
        %p268 = pneg %p72
        %p269 = pneg %p96
        %p270 = pneg %p93
        %p271 = pneg %p117
        %p272 = pneg %p114
        %p273 = pneg %p138
        %p274 = pneg %p135
        %p275 = pneg %p159
        %p276 = pneg %p156
        %p277 = pneg %p180
        %p278 = pneg %p177
        %p279 = pneg %p208
        %p280 = pneg %p205
        %s281 = sand.u32 %s195, 1
        %s282 = scalar_lea.sflag [#allocation4], %s281
        %s283 = sand.u32 %s195, 1
        %s284 = smul.addr %s283, 1024
        %s285 = scalar_lea.vmem [#allocation3], %s284
        %p286 = scmp.lt.s32.totalorder %s25, 1
        %s287 = scalar_select %p286, %s25, 1
        %s288 = smul.addr %s287, 540
        %s289 = smul.addr %s288, 4
        %s290 = scalar_lea.vmem %s0, %s289
        %s291 = smul.u32 4, %s26
        %s293 = smul.u32 %s26, 4
        %s294 = smul.u32 %s293, 54
        %s295 = smul.addr %s294, 4
        %s296 = scalar_lea.vmem %s290, %s295
        %v297 = vld [vmem:[%s296] sm:$0xf]
        %v298 = vld [vmem:[%s296 + $0x4] sm:$0xf]
        %v299 = vld [vmem:[%s296 + $0x8] sm:$0x1]
        %v300 = vld [vmem:[%s296 + $0xc] sm:$0xf]
        %v301 = vld [vmem:[%s296 + $0x10] sm:$0xf]
        %v302 = vld [vmem:[%s296 + $0x14] sm:$0x1]
        %v303 = vld [vmem:[%s296 + $0x18] sm:$0xf]
        %v304 = vld [vmem:[%s296 + $0x1c] sm:$0xf]
        %v305 = vld [vmem:[%s296 + $0x20] sm:$0x1]
        %v306 = vld [vmem:[%s296 + $0x24] sm:$0xf]
        %v307 = vld [vmem:[%s296 + $0x28] sm:$0xf]
        %v308 = vld [vmem:[%s296 + $0x2c] sm:$0x1]
        %v309 = vld [vmem:[%s296 + $0x30] sm:$0xf]
        %v310 = vld [vmem:[%s296 + $0x34] sm:$0xf]
        %v311 = vld [vmem:[%s296 + $0x38] sm:$0x1]
        %v312 = vld [vmem:[%s296 + $0x3c] sm:$0xf]
        %v313 = vld [vmem:[%s296 + $0x40] sm:$0xf]
        %v314 = vld [vmem:[%s296 + $0x44] sm:$0x1]
        %v315 = vld [vmem:[%s296 + $0x48] sm:$0xf]
        %v316 = vld [vmem:[%s296 + $0x4c] sm:$0xf]
        %v317 = vld [vmem:[%s296 + $0x50] sm:$0x1]
        %v318 = vld [vmem:[%s296 + $0x54] sm:$0xf]
        %v319 = vld [vmem:[%s296 + $0x58] sm:$0xf]
        %v320 = vld [vmem:[%s296 + $0x5c] sm:$0x1]
        %v321 = vld [vmem:[%s296 + $0x60] sm:$0xf]
        %v322 = vld [vmem:[%s296 + $0x64] sm:$0xf]
        %v323 = vld [vmem:[%s296 + $0x68] sm:$0x1]
        %v324 = vld [vmem:[%s296 + $0x6c] sm:$0xf]
        %v325 = vld [vmem:[%s296 + $0x70] sm:$0xf]
        %v326 = vld [vmem:[%s296 + $0x74] sm:$0x1]
        %v327 = vld [vmem:[%s296 + $0x78] sm:$0xf]
        %v328 = vld [vmem:[%s296 + $0x7c] sm:$0xf]
        %v329 = vld [vmem:[%s296 + $0x80] sm:$0x1]
        %v330 = vld [vmem:[%s296 + $0x84] sm:$0xf]
        %v331 = vld [vmem:[%s296 + $0x88] sm:$0xf]
        %v332 = vld [vmem:[%s296 + $0x8c] sm:$0x1]
        %v333 = vld [vmem:[%s296 + $0x90] sm:$0xf]
        %v334 = vld [vmem:[%s296 + $0x94] sm:$0xf]
        %v335 = vld [vmem:[%s296 + $0x98] sm:$0x1]
        %v336 = vld [vmem:[%s296 + $0x9c] sm:$0xf]
        %v337 = vld [vmem:[%s296 + $0xa0] sm:$0xf]
        %v338 = vld [vmem:[%s296 + $0xa4] sm:$0x1]
        %v339 = vld [vmem:[%s296 + $0xa8] sm:$0xf]
        %v340 = vld [vmem:[%s296 + $0xac] sm:$0xf]
        %v341 = vld [vmem:[%s296 + $0xb0] sm:$0x1]
        %v342 = vld [vmem:[%s296 + $0xb4] sm:$0xf]
        %v343 = vld [vmem:[%s296 + $0xb8] sm:$0xf]
        %v344 = vld [vmem:[%s296 + $0xbc] sm:$0x1]
        %v345 = vld [vmem:[%s296 + $0xc0] sm:$0xf]
        %v346 = vld [vmem:[%s296 + $0xc4] sm:$0xf]
        %v347 = vld [vmem:[%s296 + $0xc8] sm:$0x1]
        %v348 = vld [vmem:[%s296 + $0xcc] sm:$0xf]
        %v349 = vld [vmem:[%s296 + $0xd0] sm:$0xf]
        %v350 = vld [vmem:[%s296 + $0xd4] sm:$0x1]
        %v351 = vld [vmem:[%s296 + $0xd8] sm:$0xf]
        %v352 = vld [vmem:[%s296 + $0xdc] sm:$0xf]
        %v353 = vld [vmem:[%s296 + $0xe0] sm:$0x1]
        %v354 = vld [vmem:[%s296 + $0xe4] sm:$0xf]
        %v355 = vld [vmem:[%s296 + $0xe8] sm:$0xf]
        %v356 = vld [vmem:[%s296 + $0xec] sm:$0x1]
        %v357 = vld [vmem:[%s296 + $0xf0] sm:$0xf]
        %v358 = vld [vmem:[%s296 + $0xf4] sm:$0xf]
        %v359 = vld [vmem:[%s296 + $0xf8] sm:$0x1]
        %v360 = vld [vmem:[%s296 + $0xfc] sm:$0xf]
        %v361 = vld [vmem:[%s296 + $0x100] sm:$0xf]
        %v362 = vld [vmem:[%s296 + $0x104] sm:$0x1]
        %v363 = vld [vmem:[%s296 + $0x108] sm:$0xf]
        %v364 = vld [vmem:[%s296 + $0x10c] sm:$0xf]
        %v365 = vld [vmem:[%s296 + $0x110] sm:$0x1]
        %v366 = vld [vmem:[%s296 + $0x114] sm:$0xf]
        %v367 = vld [vmem:[%s296 + $0x118] sm:$0xf]
        %v368 = vld [vmem:[%s296 + $0x11c] sm:$0x1]
        %v369 = vld [vmem:[%s296 + $0x120] sm:$0xf]
        %v370 = vld [vmem:[%s296 + $0x124] sm:$0xf]
        %v371 = vld [vmem:[%s296 + $0x128] sm:$0x1]
        %v372 = vld [vmem:[%s296 + $0x12c] sm:$0xf]
        %v373 = vld [vmem:[%s296 + $0x130] sm:$0xf]
        %v374 = vld [vmem:[%s296 + $0x134] sm:$0x1]
        %v375 = vld [vmem:[%s296 + $0x138] sm:$0xf]
        %v376 = vld [vmem:[%s296 + $0x13c] sm:$0xf]
        %v377 = vld [vmem:[%s296 + $0x140] sm:$0x1]
        %v378 = vld [vmem:[%s296 + $0x144] sm:$0xf]
        %v379 = vld [vmem:[%s296 + $0x148] sm:$0xf]
        %v380 = vld [vmem:[%s296 + $0x14c] sm:$0x1]
        %v381 = vld [vmem:[%s296 + $0x150] sm:$0xf]
        %v382 = vld [vmem:[%s296 + $0x154] sm:$0xf]
        %v383 = vld [vmem:[%s296 + $0x158] sm:$0x1]
        %v384 = vld [vmem:[%s296 + $0x15c] sm:$0xf]
        %v385 = vld [vmem:[%s296 + $0x160] sm:$0xf]
        %v386 = vld [vmem:[%s296 + $0x164] sm:$0x1]
        %v387 = vld [vmem:[%s296 + $0x168] sm:$0xf]
        %v388 = vld [vmem:[%s296 + $0x16c] sm:$0xf]
        %v389 = vld [vmem:[%s296 + $0x170] sm:$0x1]
        %v390 = vld [vmem:[%s296 + $0x174] sm:$0xf]
        %v391 = vld [vmem:[%s296 + $0x178] sm:$0xf]
        %v392 = vld [vmem:[%s296 + $0x17c] sm:$0x1]
        %v393 = vld [vmem:[%s296 + $0x180] sm:$0xf]
        %v394 = vld [vmem:[%s296 + $0x184] sm:$0xf]
        %v395 = vld [vmem:[%s296 + $0x188] sm:$0x1]
        %v396 = vld [vmem:[%s296 + $0x18c] sm:$0xf]
        %v397 = vld [vmem:[%s296 + $0x190] sm:$0xf]
        %v398 = vld [vmem:[%s296 + $0x194] sm:$0x1]
        %v399 = vld [vmem:[%s296 + $0x198] sm:$0xf]
        %v400 = vld [vmem:[%s296 + $0x19c] sm:$0xf]
        %v401 = vld [vmem:[%s296 + $0x1a0] sm:$0x1]
        %v402 = vld [vmem:[%s296 + $0x1a4] sm:$0xf]
        %v403 = vld [vmem:[%s296 + $0x1a8] sm:$0xf]
        %v404 = vld [vmem:[%s296 + $0x1ac] sm:$0x1]
        %v405 = vld [vmem:[%s296 + $0x1b0] sm:$0xf]
        %v406 = vld [vmem:[%s296 + $0x1b4] sm:$0xf]
        %v407 = vld [vmem:[%s296 + $0x1b8] sm:$0x1]
        %v408 = vld [vmem:[%s296 + $0x1bc] sm:$0xf]
        %v409 = vld [vmem:[%s296 + $0x1c0] sm:$0xf]
        %v410 = vld [vmem:[%s296 + $0x1c4] sm:$0x1]
        %v411 = vld [vmem:[%s296 + $0x1c8] sm:$0xf]
        %v412 = vld [vmem:[%s296 + $0x1cc] sm:$0xf]
        %v413 = vld [vmem:[%s296 + $0x1d0] sm:$0x1]
        %v414 = vld [vmem:[%s296 + $0x1d4] sm:$0xf]
        %v415 = vld [vmem:[%s296 + $0x1d8] sm:$0xf]
        %v416 = vld [vmem:[%s296 + $0x1dc] sm:$0x1]
        %v417 = vld [vmem:[%s296 + $0x1e0] sm:$0xf]
        %v418 = vld [vmem:[%s296 + $0x1e4] sm:$0xf]
        %v419 = vld [vmem:[%s296 + $0x1e8] sm:$0x1]
        %v420 = vld [vmem:[%s296 + $0x1ec] sm:$0xf]
        %v421 = vld [vmem:[%s296 + $0x1f0] sm:$0xf]
        %v422 = vld [vmem:[%s296 + $0x1f4] sm:$0x1]
        %v423 = vld [vmem:[%s296 + $0x1f8] sm:$0xf]
        %v424 = vld [vmem:[%s296 + $0x1fc] sm:$0xf]
        %v425 = vld [vmem:[%s296 + $0x200] sm:$0x1]
        %v426 = vld [vmem:[%s296 + $0x204] sm:$0xf]
        %v427 = vld [vmem:[%s296 + $0x208] sm:$0xf]
        %v428 = vld [vmem:[%s296 + $0x20c] sm:$0x1]
        %v429 = vld [vmem:[%s296 + $0x210] sm:$0xf]
        %v430 = vld [vmem:[%s296 + $0x214] sm:$0xf]
        %v431 = vld [vmem:[%s296 + $0x218] sm:$0x1]
        %v432 = vld [vmem:[%s296 + $0x21c] sm:$0xf]
        %v433 = vld [vmem:[%s296 + $0x220] sm:$0xf]
        %v434 = vld [vmem:[%s296 + $0x224] sm:$0x1]
        %v435 = vld [vmem:[%s296 + $0x228] sm:$0xf]
        %v436 = vld [vmem:[%s296 + $0x22c] sm:$0xf]
        %v437 = vld [vmem:[%s296 + $0x230] sm:$0x1]
        %v438 = vld [vmem:[%s296 + $0x234] sm:$0xf]
        %v439 = vld [vmem:[%s296 + $0x238] sm:$0xf]
        %v440 = vld [vmem:[%s296 + $0x23c] sm:$0x1]
        %v441 = vld [vmem:[%s296 + $0x240] sm:$0xf]
        %v442 = vld [vmem:[%s296 + $0x244] sm:$0xf]
        %v443 = vld [vmem:[%s296 + $0x248] sm:$0x1]
        %v444 = vld [vmem:[%s296 + $0x24c] sm:$0xf]
        %v445 = vld [vmem:[%s296 + $0x250] sm:$0xf]
        %v446 = vld [vmem:[%s296 + $0x254] sm:$0x1]
        %v447 = vld [vmem:[%s296 + $0x258] sm:$0xf]
        %v448 = vld [vmem:[%s296 + $0x25c] sm:$0xf]
        %v449 = vld [vmem:[%s296 + $0x260] sm:$0x1]
        %v450 = vld [vmem:[%s296 + $0x264] sm:$0xf]
        %v451 = vld [vmem:[%s296 + $0x268] sm:$0xf]
        %v452 = vld [vmem:[%s296 + $0x26c] sm:$0x1]
        %v453 = vld [vmem:[%s296 + $0x270] sm:$0xf]
        %v454 = vld [vmem:[%s296 + $0x274] sm:$0xf]
        %v455 = vld [vmem:[%s296 + $0x278] sm:$0x1]
        %v456 = vld [vmem:[%s296 + $0x27c] sm:$0xf]
        %v457 = vld [vmem:[%s296 + $0x280] sm:$0xf]
        %v458 = vld [vmem:[%s296 + $0x284] sm:$0x1]
        %v459 = vld [vmem:[%s296 + $0x288] sm:$0xf]
        %v460 = vld [vmem:[%s296 + $0x28c] sm:$0xf]
        %v461 = vld [vmem:[%s296 + $0x290] sm:$0x1]
        %v462 = vld [vmem:[%s296 + $0x294] sm:$0xf]
        %v463 = vld [vmem:[%s296 + $0x298] sm:$0xf]
        %v464 = vld [vmem:[%s296 + $0x29c] sm:$0x1]
        %v465 = vld [vmem:[%s296 + $0x2a0] sm:$0xf]
        %v466 = vld [vmem:[%s296 + $0x2a4] sm:$0xf]
        %v467 = vld [vmem:[%s296 + $0x2a8] sm:$0x1]
        %v468 = vld [vmem:[%s296 + $0x2ac] sm:$0xf]
        %v469 = vld [vmem:[%s296 + $0x2b0] sm:$0xf]
        %v470 = vld [vmem:[%s296 + $0x2b4] sm:$0x1]
        %v471 = vld [vmem:[%s296 + $0x2b8] sm:$0xf]
        %v472 = vld [vmem:[%s296 + $0x2bc] sm:$0xf]
        %v473 = vld [vmem:[%s296 + $0x2c0] sm:$0x1]
        %v474 = vld [vmem:[%s296 + $0x2c4] sm:$0xf]
        %v475 = vld [vmem:[%s296 + $0x2c8] sm:$0xf]
        %v476 = vld [vmem:[%s296 + $0x2cc] sm:$0x1]
        %v477 = vld [vmem:[%s296 + $0x2d0] sm:$0xf]
        %v478 = vld [vmem:[%s296 + $0x2d4] sm:$0xf]
        %v479 = vld [vmem:[%s296 + $0x2d8] sm:$0x1]
        %v480 = vld [vmem:[%s296 + $0x2dc] sm:$0xf]
        %v481 = vld [vmem:[%s296 + $0x2e0] sm:$0xf]
        %v482 = vld [vmem:[%s296 + $0x2e4] sm:$0x1]
        %v483 = vld [vmem:[%s296 + $0x2e8] sm:$0xf]
        %v484 = vld [vmem:[%s296 + $0x2ec] sm:$0xf]
        %v485 = vld [vmem:[%s296 + $0x2f0] sm:$0x1]
        %v486 = vld [vmem:[%s296 + $0x2f4] sm:$0xf]
        %v487 = vld [vmem:[%s296 + $0x2f8] sm:$0xf]
        %v488 = vld [vmem:[%s296 + $0x2fc] sm:$0x1]
        %v489 = vld [vmem:[%s296 + $0x300] sm:$0xf]
        %v490 = vld [vmem:[%s296 + $0x304] sm:$0xf]
        %v491 = vld [vmem:[%s296 + $0x308] sm:$0x1]
        %v492 = vld [vmem:[%s296 + $0x30c] sm:$0xf]
        %v493 = vld [vmem:[%s296 + $0x310] sm:$0xf]
        %v494 = vld [vmem:[%s296 + $0x314] sm:$0x1]
        %v495 = vld [vmem:[%s296 + $0x318] sm:$0xf]
        %v496 = vld [vmem:[%s296 + $0x31c] sm:$0xf]
        %v497 = vld [vmem:[%s296 + $0x320] sm:$0x1]
        %v498 = vld [vmem:[%s296 + $0x324] sm:$0xf]
        %v499 = vld [vmem:[%s296 + $0x328] sm:$0xf]
        %v500 = vld [vmem:[%s296 + $0x32c] sm:$0x1]
        %v501 = vld [vmem:[%s296 + $0x330] sm:$0xf]
        %v502 = vld [vmem:[%s296 + $0x334] sm:$0xf]
        %v503 = vld [vmem:[%s296 + $0x338] sm:$0x1]
        %v504 = vld [vmem:[%s296 + $0x33c] sm:$0xf]
        %v505 = vld [vmem:[%s296 + $0x340] sm:$0xf]
        %v506 = vld [vmem:[%s296 + $0x344] sm:$0x1]
        %v507 = vld [vmem:[%s296 + $0x348] sm:$0xf]
        %v508 = vld [vmem:[%s296 + $0x34c] sm:$0xf]
        %v509 = vld [vmem:[%s296 + $0x350] sm:$0x1]
        %v510 = vld [vmem:[%s296 + $0x354] sm:$0xf]
        %v511 = vld [vmem:[%s296 + $0x358] sm:$0xf]
        %v512 = vld [vmem:[%s296 + $0x35c] sm:$0x1]
        %v513 = vld [vmem:[%s296 + $0x360] sm:$0xf]
        %v514 = vld [vmem:[%s296 + $0x364] sm:$0xf]
        %v515 = vld [vmem:[%s296 + $0x368] sm:$0x1]
        %v516 = vld [vmem:[%s296 + $0x36c] sm:$0xf]
        %v517 = vld [vmem:[%s296 + $0x370] sm:$0xf]
        %v518 = vld [vmem:[%s296 + $0x374] sm:$0x1]
        %v519 = vld [vmem:[%s296 + $0x378] sm:$0xf]
        %v520 = vld [vmem:[%s296 + $0x37c] sm:$0xf]
        %v521 = vld [vmem:[%s296 + $0x380] sm:$0x1]
        %v522 = vld [vmem:[%s296 + $0x384] sm:$0xf]
        %v523 = vld [vmem:[%s296 + $0x388] sm:$0xf]
        %v524 = vld [vmem:[%s296 + $0x38c] sm:$0x1]
        %v525 = vld [vmem:[%s296 + $0x390] sm:$0xf]
        %v526 = vld [vmem:[%s296 + $0x394] sm:$0xf]
        %v527 = vld [vmem:[%s296 + $0x398] sm:$0x1]
        %v528 = vld [vmem:[%s296 + $0x39c] sm:$0xf]
        %v529 = vld [vmem:[%s296 + $0x3a0] sm:$0xf]
        %v530 = vld [vmem:[%s296 + $0x3a4] sm:$0x1]
        %v531 = vld [vmem:[%s296 + $0x3a8] sm:$0xf]
        %v532 = vld [vmem:[%s296 + $0x3ac] sm:$0xf]
        %v533 = vld [vmem:[%s296 + $0x3b0] sm:$0x1]
        %v534 = vld [vmem:[%s296 + $0x3b4] sm:$0xf]
        %v535 = vld [vmem:[%s296 + $0x3b8] sm:$0xf]
        %v536 = vld [vmem:[%s296 + $0x3bc] sm:$0x1]
        %v537 = vld [vmem:[%s296 + $0x3c0] sm:$0xf]
        %v538 = vld [vmem:[%s296 + $0x3c4] sm:$0xf]
        %v539 = vld [vmem:[%s296 + $0x3c8] sm:$0x1]
        %v540 = vld [vmem:[%s296 + $0x3cc] sm:$0xf]
        %v541 = vld [vmem:[%s296 + $0x3d0] sm:$0xf]
        %v542 = vld [vmem:[%s296 + $0x3d4] sm:$0x1]
        %v543 = vld [vmem:[%s296 + $0x3d8] sm:$0xf]
        %v544 = vld [vmem:[%s296 + $0x3dc] sm:$0xf]
        %v545 = vld [vmem:[%s296 + $0x3e0] sm:$0x1]
        %v546 = vld [vmem:[%s296 + $0x3e4] sm:$0xf]
        %v547 = vld [vmem:[%s296 + $0x3e8] sm:$0xf]
        %v548 = vld [vmem:[%s296 + $0x3ec] sm:$0x1]
        %v549 = vld [vmem:[%s296 + $0x3f0] sm:$0xf]
        %v550 = vld [vmem:[%s296 + $0x3f4] sm:$0xf]
        %v551 = vld [vmem:[%s296 + $0x3f8] sm:$0x1]
        %v552 = vld [vmem:[%s296 + $0x3fc] sm:$0xf]
        %v553 = vld [vmem:[%s296 + $0x400] sm:$0xf]
        %v554 = vld [vmem:[%s296 + $0x404] sm:$0x1]
        %v555 = vld [vmem:[%s296 + $0x408] sm:$0xf]
        %v556 = vld [vmem:[%s296 + $0x40c] sm:$0xf]
        %v557 = vld [vmem:[%s296 + $0x410] sm:$0x1]
        %v558 = vld [vmem:[%s296 + $0x414] sm:$0xf]
        %v559 = vld [vmem:[%s296 + $0x418] sm:$0xf]
        %v560 = vld [vmem:[%s296 + $0x41c] sm:$0x1]
        %v561 = vld [vmem:[%s296 + $0x420] sm:$0xf]
        %v562 = vld [vmem:[%s296 + $0x424] sm:$0xf]
        %v563 = vld [vmem:[%s296 + $0x428] sm:$0x1]
        %v564 = vld [vmem:[%s296 + $0x42c] sm:$0xf]
        %v565 = vld [vmem:[%s296 + $0x430] sm:$0xf]
        %v566 = vld [vmem:[%s296 + $0x434] sm:$0x1]
        %v567 = vld [vmem:[%s296 + $0x438] sm:$0xf]
        %v568 = vld [vmem:[%s296 + $0x43c] sm:$0xf]
        %v569 = vld [vmem:[%s296 + $0x440] sm:$0x1]
        %v570 = vld [vmem:[%s296 + $0x444] sm:$0xf]
        %v571 = vld [vmem:[%s296 + $0x448] sm:$0xf]
        %v572 = vld [vmem:[%s296 + $0x44c] sm:$0x1]
        %v573 = vld [vmem:[%s296 + $0x450] sm:$0xf]
        %v574 = vld [vmem:[%s296 + $0x454] sm:$0xf]
        %v575 = vld [vmem:[%s296 + $0x458] sm:$0x1]
        %v576 = vld [vmem:[%s296 + $0x45c] sm:$0xf]
        %v577 = vld [vmem:[%s296 + $0x460] sm:$0xf]
        %v578 = vld [vmem:[%s296 + $0x464] sm:$0x1]
        %v579 = vld [vmem:[%s296 + $0x468] sm:$0xf]
        %v580 = vld [vmem:[%s296 + $0x46c] sm:$0xf]
        %v581 = vld [vmem:[%s296 + $0x470] sm:$0x1]
        %v582 = vld [vmem:[%s296 + $0x474] sm:$0xf]
        %v583 = vld [vmem:[%s296 + $0x478] sm:$0xf]
        %v584 = vld [vmem:[%s296 + $0x47c] sm:$0x1]
        %v585 = vld [vmem:[%s296 + $0x480] sm:$0xf]
        %v586 = vld [vmem:[%s296 + $0x484] sm:$0xf]
        %v587 = vld [vmem:[%s296 + $0x488] sm:$0x1]
        %v588 = vld [vmem:[%s296 + $0x48c] sm:$0xf]
        %v589 = vld [vmem:[%s296 + $0x490] sm:$0xf]
        %v590 = vld [vmem:[%s296 + $0x494] sm:$0x1]
        %v591 = vld [vmem:[%s296 + $0x498] sm:$0xf]
        %v592 = vld [vmem:[%s296 + $0x49c] sm:$0xf]
        %v593 = vld [vmem:[%s296 + $0x4a0] sm:$0x1]
        %v594 = vld [vmem:[%s296 + $0x4a4] sm:$0xf]
        %v595 = vld [vmem:[%s296 + $0x4a8] sm:$0xf]
        %v596 = vld [vmem:[%s296 + $0x4ac] sm:$0x1]
        %v597 = vld [vmem:[%s296 + $0x4b0] sm:$0xf]
        %v598 = vld [vmem:[%s296 + $0x4b4] sm:$0xf]
        %v599 = vld [vmem:[%s296 + $0x4b8] sm:$0x1]
        %v600 = vld [vmem:[%s296 + $0x4bc] sm:$0xf]
        %v601 = vld [vmem:[%s296 + $0x4c0] sm:$0xf]
        %v602 = vld [vmem:[%s296 + $0x4c4] sm:$0x1]
        %v603 = vld [vmem:[%s296 + $0x4c8] sm:$0xf]
        %v604 = vld [vmem:[%s296 + $0x4cc] sm:$0xf]
        %v605 = vld [vmem:[%s296 + $0x4d0] sm:$0x1]
        %v606 = vld [vmem:[%s296 + $0x4d4] sm:$0xf]
        %v607 = vld [vmem:[%s296 + $0x4d8] sm:$0xf]
        %v608 = vld [vmem:[%s296 + $0x4dc] sm:$0x1]
        %v609 = vld [vmem:[%s296 + $0x4e0] sm:$0xf]
        %v610 = vld [vmem:[%s296 + $0x4e4] sm:$0xf]
        %v611 = vld [vmem:[%s296 + $0x4e8] sm:$0x1]
        %v612 = vld [vmem:[%s296 + $0x4ec] sm:$0xf]
        %v613 = vld [vmem:[%s296 + $0x4f0] sm:$0xf]
        %v614 = vld [vmem:[%s296 + $0x4f4] sm:$0x1]
        %v615 = vld [vmem:[%s296 + $0x4f8] sm:$0xf]
        %v616 = vld [vmem:[%s296 + $0x4fc] sm:$0xf]
        %v617 = vld [vmem:[%s296 + $0x500] sm:$0x1]
        %v618 = vld [vmem:[%s296 + $0x504] sm:$0xf]
        %v619 = vld [vmem:[%s296 + $0x508] sm:$0xf]
        %v620 = vld [vmem:[%s296 + $0x50c] sm:$0x1]
        %v813 = vunpack.c.l.b16 %v297
        %v814 = vunpack.c.l.b16 %v298
        %v815 = vunpack.c.l.b16 %v300
        %v816 = vunpack.c.l.b16 %v301
        %v817 = vunpack.c.l.b16 %v303
        %v818 = vunpack.c.l.b16 %v304
        %v819 = vunpack.c.l.b16 %v306
        %v820 = vunpack.c.l.b16 %v307
        %v821 = vunpack.c.l.b16 %v309
        %v822 = vunpack.c.l.b16 %v310
        %v823 = vunpack.c.l.b16 %v312
        %v824 = vunpack.c.l.b16 %v313
        %v825 = vunpack.c.l.b16 %v315
        %v826 = vunpack.c.l.b16 %v316
        %v827 = vunpack.c.l.b16 %v318
        %v828 = vunpack.c.l.b16 %v319
        %v829 = vunpack.c.l.b16 %v321
        %v830 = vunpack.c.l.b16 %v322
        %v831 = vunpack.c.l.b16 %v324
        %v832 = vunpack.c.l.b16 %v325
        %v833 = vunpack.c.l.b16 %v327
        %v834 = vunpack.c.l.b16 %v328
        %v835 = vunpack.c.l.b16 %v330
        %v836 = vunpack.c.l.b16 %v331
        %v837 = vunpack.c.l.b16 %v333
        %v838 = vunpack.c.l.b16 %v334
        %v839 = vunpack.c.l.b16 %v336
        %v840 = vunpack.c.l.b16 %v337
        %v841 = vunpack.c.l.b16 %v339
        %v842 = vunpack.c.l.b16 %v340
        %v843 = vunpack.c.l.b16 %v342
        %v844 = vunpack.c.l.b16 %v343
        %v845 = vunpack.c.l.b16 %v351
        %v846 = vunpack.c.l.b16 %v352
        %v847 = vunpack.c.l.b16 %v354
        %v848 = vunpack.c.l.b16 %v355
        %v849 = vunpack.c.l.b16 %v357
        %v850 = vunpack.c.l.b16 %v358
        %v851 = vunpack.c.l.b16 %v360
        %v852 = vunpack.c.l.b16 %v361
        %v853 = vunpack.c.l.b16 %v363
        %v854 = vunpack.c.l.b16 %v364
        %v855 = vunpack.c.l.b16 %v366
        %v856 = vunpack.c.l.b16 %v367
        %v857 = vunpack.c.l.b16 %v369
        %v858 = vunpack.c.l.b16 %v370
        %v859 = vunpack.c.l.b16 %v372
        %v860 = vunpack.c.l.b16 %v373
        %v861 = vunpack.c.l.b16 %v375
        %v862 = vunpack.c.l.b16 %v376
        %v863 = vunpack.c.l.b16 %v378
        %v864 = vunpack.c.l.b16 %v379
        %v865 = vunpack.c.l.b16 %v381
        %v866 = vunpack.c.l.b16 %v382
        %v867 = vunpack.c.l.b16 %v384
        %v868 = vunpack.c.l.b16 %v385
        %v869 = vunpack.c.l.b16 %v387
        %v870 = vunpack.c.l.b16 %v388
        %v871 = vunpack.c.l.b16 %v390
        %v872 = vunpack.c.l.b16 %v391
        %v873 = vunpack.c.l.b16 %v393
        %v874 = vunpack.c.l.b16 %v394
        %v875 = vunpack.c.l.b16 %v396
        %v876 = vunpack.c.l.b16 %v397
        %v877 = vunpack.c.l.b16 %v405
        %v878 = vunpack.c.l.b16 %v406
        %v879 = vunpack.c.l.b16 %v408
        %v880 = vunpack.c.l.b16 %v409
        %v881 = vunpack.c.l.b16 %v411
        %v882 = vunpack.c.l.b16 %v412
        %v883 = vunpack.c.l.b16 %v414
        %v884 = vunpack.c.l.b16 %v415
        %v885 = vunpack.c.l.b16 %v417
        %v886 = vunpack.c.l.b16 %v418
        %v887 = vunpack.c.l.b16 %v420
        %v888 = vunpack.c.l.b16 %v421
        %v889 = vunpack.c.l.b16 %v423
        %v890 = vunpack.c.l.b16 %v424
        %v891 = vunpack.c.l.b16 %v426
        %v892 = vunpack.c.l.b16 %v427
        %v893 = vunpack.c.l.b16 %v429
        %v894 = vunpack.c.l.b16 %v430
        %v895 = vunpack.c.l.b16 %v432
        %v896 = vunpack.c.l.b16 %v433
        %v897 = vunpack.c.l.b16 %v435
        %v898 = vunpack.c.l.b16 %v436
        %v899 = vunpack.c.l.b16 %v438
        %v900 = vunpack.c.l.b16 %v439
        %v901 = vunpack.c.l.b16 %v441
        %v902 = vunpack.c.l.b16 %v442
        %v903 = vunpack.c.l.b16 %v444
        %v904 = vunpack.c.l.b16 %v445
        %v905 = vunpack.c.l.b16 %v447
        %v906 = vunpack.c.l.b16 %v448
        %v907 = vunpack.c.l.b16 %v450
        %v908 = vunpack.c.l.b16 %v451
        %v909 = vunpack.c.l.b16 %v459
        %v910 = vunpack.c.l.b16 %v460
        %v911 = vunpack.c.l.b16 %v462
        %v912 = vunpack.c.l.b16 %v463
        %v913 = vunpack.c.l.b16 %v465
        %v914 = vunpack.c.l.b16 %v466
        %v915 = vunpack.c.l.b16 %v468
        %v916 = vunpack.c.l.b16 %v469
        %v917 = vunpack.c.l.b16 %v471
        %v918 = vunpack.c.l.b16 %v472
        %v919 = vunpack.c.l.b16 %v474
        %v920 = vunpack.c.l.b16 %v475
        %v921 = vunpack.c.l.b16 %v477
        %v922 = vunpack.c.l.b16 %v478
        %v923 = vunpack.c.l.b16 %v480
        %v924 = vunpack.c.l.b16 %v481
        %v925 = vunpack.c.l.b16 %v483
        %v926 = vunpack.c.l.b16 %v484
        %v927 = vunpack.c.l.b16 %v486
        %v928 = vunpack.c.l.b16 %v487
        %v929 = vunpack.c.l.b16 %v489
        %v930 = vunpack.c.l.b16 %v490
        %v931 = vunpack.c.l.b16 %v492
        %v932 = vunpack.c.l.b16 %v493
        %v933 = vunpack.c.l.b16 %v495
        %v934 = vunpack.c.l.b16 %v496
        %v935 = vunpack.c.l.b16 %v498
        %v936 = vunpack.c.l.b16 %v499
        %v937 = vunpack.c.l.b16 %v501
        %v938 = vunpack.c.l.b16 %v502
        %v939 = vunpack.c.l.b16 %v504
        %v940 = vunpack.c.l.b16 %v505
        %v941 = vunpack.c.l.b16 %v513
        %v942 = vunpack.c.l.b16 %v514
        %v943 = vunpack.c.l.b16 %v516
        %v944 = vunpack.c.l.b16 %v517
        %v945 = vunpack.c.l.b16 %v519
        %v946 = vunpack.c.l.b16 %v520
        %v947 = vunpack.c.l.b16 %v522
        %v948 = vunpack.c.l.b16 %v523
        %v949 = vunpack.c.l.b16 %v525
        %v950 = vunpack.c.l.b16 %v526
        %v951 = vunpack.c.l.b16 %v528
        %v952 = vunpack.c.l.b16 %v529
        %v953 = vunpack.c.l.b16 %v531
        %v954 = vunpack.c.l.b16 %v532
        %v955 = vunpack.c.l.b16 %v534
        %v956 = vunpack.c.l.b16 %v535
        %v957 = vunpack.c.l.b16 %v537
        %v958 = vunpack.c.l.b16 %v538
        %v959 = vunpack.c.l.b16 %v540
        %v960 = vunpack.c.l.b16 %v541
        %v961 = vunpack.c.l.b16 %v543
        %v962 = vunpack.c.l.b16 %v544
        %v963 = vunpack.c.l.b16 %v546
        %v964 = vunpack.c.l.b16 %v547
        %v965 = vunpack.c.l.b16 %v549
        %v966 = vunpack.c.l.b16 %v550
        %v967 = vunpack.c.l.b16 %v552
        %v968 = vunpack.c.l.b16 %v553
        %v969 = vunpack.c.l.b16 %v555
        %v970 = vunpack.c.l.b16 %v556
        %v971 = vunpack.c.l.b16 %v558
        %v972 = vunpack.c.l.b16 %v559
        %v973 = vunpack.c.l.b16 %v567
        %v974 = vunpack.c.l.b16 %v568
        %v975 = vunpack.c.l.b16 %v570
        %v976 = vunpack.c.l.b16 %v571
        %v977 = vunpack.c.l.b16 %v573
        %v978 = vunpack.c.l.b16 %v574
        %v979 = vunpack.c.l.b16 %v576
        %v980 = vunpack.c.l.b16 %v577
        %v981 = vunpack.c.l.b16 %v579
        %v982 = vunpack.c.l.b16 %v580
        %v983 = vunpack.c.l.b16 %v582
        %v984 = vunpack.c.l.b16 %v583
        %v985 = vunpack.c.l.b16 %v585
        %v986 = vunpack.c.l.b16 %v586
        %v987 = vunpack.c.l.b16 %v588
        %v988 = vunpack.c.l.b16 %v589
        %v989 = vunpack.c.l.b16 %v591
        %v990 = vunpack.c.l.b16 %v592
        %v991 = vunpack.c.l.b16 %v594
        %v992 = vunpack.c.l.b16 %v595
        %v993 = vunpack.c.l.b16 %v597
        %v994 = vunpack.c.l.b16 %v598
        %v995 = vunpack.c.l.b16 %v600
        %v996 = vunpack.c.l.b16 %v601
        %v997 = vunpack.c.l.b16 %v603
        %v998 = vunpack.c.l.b16 %v604
        %v999 = vunpack.c.l.b16 %v606
        %v1000 = vunpack.c.l.b16 %v607
        %v1001 = vunpack.c.l.b16 %v609
        %v1002 = vunpack.c.l.b16 %v610
        %v1003 = vunpack.c.l.b16 %v612
        %v1004 = vunpack.c.l.b16 %v613
        %v1005 = vpack.c.b16 %v814, %v813
        %v1006 = vpack.c.b16 %v816, %v815
        %v1007 = vpack.c.b16 %v818, %v817
        %v1008 = vpack.c.b16 %v820, %v819
        %v1009 = vpack.c.b16 %v822, %v821
        %v1010 = vpack.c.b16 %v824, %v823
        %v1011 = vpack.c.b16 %v826, %v825
        %v1012 = vpack.c.b16 %v828, %v827
        %v1013 = vpack.c.b16 %v830, %v829
        %v1014 = vpack.c.b16 %v832, %v831
        %v1015 = vpack.c.b16 %v834, %v833
        %v1016 = vpack.c.b16 %v836, %v835
        %v1017 = vpack.c.b16 %v838, %v837
        %v1018 = vpack.c.b16 %v840, %v839
        %v1019 = vpack.c.b16 %v842, %v841
        %v1020 = vpack.c.b16 %v844, %v843
        %v1021 = vpack.c.b16 %v846, %v845
        %v1022 = vpack.c.b16 %v848, %v847
        %v1023 = vpack.c.b16 %v850, %v849
        %v1024 = vpack.c.b16 %v852, %v851
        %v1025 = vpack.c.b16 %v854, %v853
        %v1026 = vpack.c.b16 %v856, %v855
        %v1027 = vpack.c.b16 %v858, %v857
        %v1028 = vpack.c.b16 %v860, %v859
        %v1029 = vpack.c.b16 %v862, %v861
        %v1030 = vpack.c.b16 %v864, %v863
        %v1031 = vpack.c.b16 %v866, %v865
        %v1032 = vpack.c.b16 %v868, %v867
        %v1033 = vpack.c.b16 %v870, %v869
        %v1034 = vpack.c.b16 %v872, %v871
        %v1035 = vpack.c.b16 %v874, %v873
        %v1036 = vpack.c.b16 %v876, %v875
        %v1037 = vpack.c.b16 %v878, %v877
        %v1038 = vpack.c.b16 %v880, %v879
        %v1039 = vpack.c.b16 %v882, %v881
        %v1040 = vpack.c.b16 %v884, %v883
        %v1041 = vpack.c.b16 %v886, %v885
        %v1042 = vpack.c.b16 %v888, %v887
        %v1043 = vpack.c.b16 %v890, %v889
        %v1044 = vpack.c.b16 %v892, %v891
        %v1045 = vpack.c.b16 %v894, %v893
        %v1046 = vpack.c.b16 %v896, %v895
        %v1047 = vpack.c.b16 %v898, %v897
        %v1048 = vpack.c.b16 %v900, %v899
        %v1049 = vpack.c.b16 %v902, %v901
        %v1050 = vpack.c.b16 %v904, %v903
        %v1051 = vpack.c.b16 %v906, %v905
        %v1052 = vpack.c.b16 %v908, %v907
        %v1053 = vpack.c.b16 %v910, %v909
        %v1054 = vpack.c.b16 %v912, %v911
        %v1055 = vpack.c.b16 %v914, %v913
        %v1056 = vpack.c.b16 %v916, %v915
        %v1057 = vpack.c.b16 %v918, %v917
        %v1058 = vpack.c.b16 %v920, %v919
        %v1059 = vpack.c.b16 %v922, %v921
        %v1060 = vpack.c.b16 %v924, %v923
        %v1061 = vpack.c.b16 %v926, %v925
        %v1062 = vpack.c.b16 %v928, %v927
        %v1063 = vpack.c.b16 %v930, %v929
        %v1064 = vpack.c.b16 %v932, %v931
        %v1065 = vpack.c.b16 %v934, %v933
        %v1066 = vpack.c.b16 %v936, %v935
        %v1067 = vpack.c.b16 %v938, %v937
        %v1068 = vpack.c.b16 %v940, %v939
        %v1069 = vpack.c.b16 %v942, %v941
        %v1070 = vpack.c.b16 %v944, %v943
        %v1071 = vpack.c.b16 %v946, %v945
        %v1072 = vpack.c.b16 %v948, %v947
        %v1073 = vpack.c.b16 %v950, %v949
        %v1074 = vpack.c.b16 %v952, %v951
        %v1075 = vpack.c.b16 %v954, %v953
        %v1076 = vpack.c.b16 %v956, %v955
        %v1077 = vpack.c.b16 %v958, %v957
        %v1078 = vpack.c.b16 %v960, %v959
        %v1079 = vpack.c.b16 %v962, %v961
        %v1080 = vpack.c.b16 %v964, %v963
        %v1081 = vpack.c.b16 %v966, %v965
        %v1082 = vpack.c.b16 %v968, %v967
        %v1083 = vpack.c.b16 %v970, %v969
        %v1084 = vpack.c.b16 %v972, %v971
        %v1085 = vpack.c.b16 %v974, %v973
        %v1086 = vpack.c.b16 %v976, %v975
        %v1087 = vpack.c.b16 %v978, %v977
        %v1088 = vpack.c.b16 %v980, %v979
        %v1089 = vpack.c.b16 %v982, %v981
        %v1090 = vpack.c.b16 %v984, %v983
        %v1091 = vpack.c.b16 %v986, %v985
        %v1092 = vpack.c.b16 %v988, %v987
        %v1093 = vpack.c.b16 %v990, %v989
        %v1094 = vpack.c.b16 %v992, %v991
        %v1095 = vpack.c.b16 %v994, %v993
        %v1096 = vpack.c.b16 %v996, %v995
        %v1097 = vpack.c.b16 %v998, %v997
        %v1098 = vpack.c.b16 %v1000, %v999
        %v1099 = vpack.c.b16 %v1002, %v1001
        %v1100 = vpack.c.b16 %v1004, %v1003
        %v1197 = vunpack.c.l.b16 %v299
        %v1198 = vunpack.c.l.b16 %v302
        %v1199 = vunpack.c.l.b16 %v305
        %v1200 = vunpack.c.l.b16 %v308
        %v1201 = vunpack.c.l.b16 %v311
        %v1202 = vunpack.c.l.b16 %v314
        %v1203 = vunpack.c.l.b16 %v317
        %v1204 = vunpack.c.l.b16 %v320
        %v1205 = vunpack.c.l.b16 %v323
        %v1206 = vunpack.c.l.b16 %v326
        %v1207 = vunpack.c.l.b16 %v329
        %v1208 = vunpack.c.l.b16 %v332
        %v1209 = vunpack.c.l.b16 %v335
        %v1210 = vunpack.c.l.b16 %v338
        %v1211 = vunpack.c.l.b16 %v341
        %v1212 = vunpack.c.l.b16 %v344
        %v1213 = vunpack.c.l.b16 %v353
        %v1214 = vunpack.c.l.b16 %v356
        %v1215 = vunpack.c.l.b16 %v359
        %v1216 = vunpack.c.l.b16 %v362
        %v1217 = vunpack.c.l.b16 %v365
        %v1218 = vunpack.c.l.b16 %v368
        %v1219 = vunpack.c.l.b16 %v371
        %v1220 = vunpack.c.l.b16 %v374
        %v1221 = vunpack.c.l.b16 %v377
        %v1222 = vunpack.c.l.b16 %v380
        %v1223 = vunpack.c.l.b16 %v383
        %v1224 = vunpack.c.l.b16 %v386
        %v1225 = vunpack.c.l.b16 %v389
        %v1226 = vunpack.c.l.b16 %v392
        %v1227 = vunpack.c.l.b16 %v395
        %v1228 = vunpack.c.l.b16 %v398
        %v1229 = vunpack.c.l.b16 %v407
        %v1230 = vunpack.c.l.b16 %v410
        %v1231 = vunpack.c.l.b16 %v413
        %v1232 = vunpack.c.l.b16 %v416
        %v1233 = vunpack.c.l.b16 %v419
        %v1234 = vunpack.c.l.b16 %v422
        %v1235 = vunpack.c.l.b16 %v425
        %v1236 = vunpack.c.l.b16 %v428
        %v1237 = vunpack.c.l.b16 %v431
        %v1238 = vunpack.c.l.b16 %v434
        %v1239 = vunpack.c.l.b16 %v437
        %v1240 = vunpack.c.l.b16 %v440
        %v1241 = vunpack.c.l.b16 %v443
        %v1242 = vunpack.c.l.b16 %v446
        %v1243 = vunpack.c.l.b16 %v449
        %v1244 = vunpack.c.l.b16 %v452
        %v1245 = vunpack.c.l.b16 %v461
        %v1246 = vunpack.c.l.b16 %v464
        %v1247 = vunpack.c.l.b16 %v467
        %v1248 = vunpack.c.l.b16 %v470
        %v1249 = vunpack.c.l.b16 %v473
        %v1250 = vunpack.c.l.b16 %v476
        %v1251 = vunpack.c.l.b16 %v479
        %v1252 = vunpack.c.l.b16 %v482
        %v1253 = vunpack.c.l.b16 %v485
        %v1254 = vunpack.c.l.b16 %v488
        %v1255 = vunpack.c.l.b16 %v491
        %v1256 = vunpack.c.l.b16 %v494
        %v1257 = vunpack.c.l.b16 %v497
        %v1258 = vunpack.c.l.b16 %v500
        %v1259 = vunpack.c.l.b16 %v503
        %v1260 = vunpack.c.l.b16 %v506
        %v1261 = vunpack.c.l.b16 %v515
        %v1262 = vunpack.c.l.b16 %v518
        %v1263 = vunpack.c.l.b16 %v521
        %v1264 = vunpack.c.l.b16 %v524
        %v1265 = vunpack.c.l.b16 %v527
        %v1266 = vunpack.c.l.b16 %v530
        %v1267 = vunpack.c.l.b16 %v533
        %v1268 = vunpack.c.l.b16 %v536
        %v1269 = vunpack.c.l.b16 %v539
        %v1270 = vunpack.c.l.b16 %v542
        %v1271 = vunpack.c.l.b16 %v545
        %v1272 = vunpack.c.l.b16 %v548
        %v1273 = vunpack.c.l.b16 %v551
        %v1274 = vunpack.c.l.b16 %v554
        %v1275 = vunpack.c.l.b16 %v557
        %v1276 = vunpack.c.l.b16 %v560
        %v1277 = vunpack.c.l.b16 %v569
        %v1278 = vunpack.c.l.b16 %v572
        %v1279 = vunpack.c.l.b16 %v575
        %v1280 = vunpack.c.l.b16 %v578
        %v1281 = vunpack.c.l.b16 %v581
        %v1282 = vunpack.c.l.b16 %v584
        %v1283 = vunpack.c.l.b16 %v587
        %v1284 = vunpack.c.l.b16 %v590
        %v1285 = vunpack.c.l.b16 %v593
        %v1286 = vunpack.c.l.b16 %v596
        %v1287 = vunpack.c.l.b16 %v599
        %v1288 = vunpack.c.l.b16 %v602
        %v1289 = vunpack.c.l.b16 %v605
        %v1290 = vunpack.c.l.b16 %v608
        %v1291 = vunpack.c.l.b16 %v611
        %v1292 = vunpack.c.l.b16 %v614
        %v1293 = vpack.c.b16 %v1197, %v1197
        %v1294 = vpack.c.b16 %v1198, %v1198
        %v1295 = vpack.c.b16 %v1199, %v1199
        %v1296 = vpack.c.b16 %v1200, %v1200
        %v1297 = vpack.c.b16 %v1201, %v1201
        %v1298 = vpack.c.b16 %v1202, %v1202
        %v1299 = vpack.c.b16 %v1203, %v1203
        %v1300 = vpack.c.b16 %v1204, %v1204
        %v1301 = vpack.c.b16 %v1205, %v1205
        %v1302 = vpack.c.b16 %v1206, %v1206
        %v1303 = vpack.c.b16 %v1207, %v1207
        %v1304 = vpack.c.b16 %v1208, %v1208
        %v1305 = vpack.c.b16 %v1209, %v1209
        %v1306 = vpack.c.b16 %v1210, %v1210
        %v1307 = vpack.c.b16 %v1211, %v1211
        %v1308 = vpack.c.b16 %v1212, %v1212
        %v1309 = vpack.c.b16 %v1213, %v1213
        %v1310 = vpack.c.b16 %v1214, %v1214
        %v1311 = vpack.c.b16 %v1215, %v1215
        %v1312 = vpack.c.b16 %v1216, %v1216
        %v1313 = vpack.c.b16 %v1217, %v1217
        %v1314 = vpack.c.b16 %v1218, %v1218
        %v1315 = vpack.c.b16 %v1219, %v1219
        %v1316 = vpack.c.b16 %v1220, %v1220
        %v1317 = vpack.c.b16 %v1221, %v1221
        %v1318 = vpack.c.b16 %v1222, %v1222
        %v1319 = vpack.c.b16 %v1223, %v1223
        %v1320 = vpack.c.b16 %v1224, %v1224
        %v1321 = vpack.c.b16 %v1225, %v1225
        %v1322 = vpack.c.b16 %v1226, %v1226
        %v1323 = vpack.c.b16 %v1227, %v1227
        %v1324 = vpack.c.b16 %v1228, %v1228
        %v1325 = vpack.c.b16 %v1229, %v1229
        %v1326 = vpack.c.b16 %v1230, %v1230
        %v1327 = vpack.c.b16 %v1231, %v1231
        %v1328 = vpack.c.b16 %v1232, %v1232
        %v1329 = vpack.c.b16 %v1233, %v1233
        %v1330 = vpack.c.b16 %v1234, %v1234
        %v1331 = vpack.c.b16 %v1235, %v1235
        %v1332 = vpack.c.b16 %v1236, %v1236
        %v1333 = vpack.c.b16 %v1237, %v1237
        %v1334 = vpack.c.b16 %v1238, %v1238
        %v1335 = vpack.c.b16 %v1239, %v1239
        %v1336 = vpack.c.b16 %v1240, %v1240
        %v1337 = vpack.c.b16 %v1241, %v1241
        %v1338 = vpack.c.b16 %v1242, %v1242
        %v1339 = vpack.c.b16 %v1243, %v1243
        %v1340 = vpack.c.b16 %v1244, %v1244
        %v1341 = vpack.c.b16 %v1245, %v1245
        %v1342 = vpack.c.b16 %v1246, %v1246
        %v1343 = vpack.c.b16 %v1247, %v1247
        %v1344 = vpack.c.b16 %v1248, %v1248
        %v1345 = vpack.c.b16 %v1249, %v1249
        %v1346 = vpack.c.b16 %v1250, %v1250
        %v1347 = vpack.c.b16 %v1251, %v1251
        %v1348 = vpack.c.b16 %v1252, %v1252
        %v1349 = vpack.c.b16 %v1253, %v1253
        %v1350 = vpack.c.b16 %v1254, %v1254
        %v1351 = vpack.c.b16 %v1255, %v1255
        %v1352 = vpack.c.b16 %v1256, %v1256
        %v1353 = vpack.c.b16 %v1257, %v1257
        %v1354 = vpack.c.b16 %v1258, %v1258
        %v1355 = vpack.c.b16 %v1259, %v1259
        %v1356 = vpack.c.b16 %v1260, %v1260
        %v1357 = vpack.c.b16 %v1261, %v1261
        %v1358 = vpack.c.b16 %v1262, %v1262
        %v1359 = vpack.c.b16 %v1263, %v1263
        %v1360 = vpack.c.b16 %v1264, %v1264
        %v1361 = vpack.c.b16 %v1265, %v1265
        %v1362 = vpack.c.b16 %v1266, %v1266
        %v1363 = vpack.c.b16 %v1267, %v1267
        %v1364 = vpack.c.b16 %v1268, %v1268
        %v1365 = vpack.c.b16 %v1269, %v1269
        %v1366 = vpack.c.b16 %v1270, %v1270
        %v1367 = vpack.c.b16 %v1271, %v1271
        %v1368 = vpack.c.b16 %v1272, %v1272
        %v1369 = vpack.c.b16 %v1273, %v1273
        %v1370 = vpack.c.b16 %v1274, %v1274
        %v1371 = vpack.c.b16 %v1275, %v1275
        %v1372 = vpack.c.b16 %v1276, %v1276
        %v1373 = vpack.c.b16 %v1277, %v1277
        %v1374 = vpack.c.b16 %v1278, %v1278
        %v1375 = vpack.c.b16 %v1279, %v1279
        %v1376 = vpack.c.b16 %v1280, %v1280
        %v1377 = vpack.c.b16 %v1281, %v1281
        %v1378 = vpack.c.b16 %v1282, %v1282
        %v1379 = vpack.c.b16 %v1283, %v1283
        %v1380 = vpack.c.b16 %v1284, %v1284
        %v1381 = vpack.c.b16 %v1285, %v1285
        %v1382 = vpack.c.b16 %v1286, %v1286
        %v1383 = vpack.c.b16 %v1287, %v1287
        %v1384 = vpack.c.b16 %v1288, %v1288
        %v1385 = vpack.c.b16 %v1289, %v1289
        %v1386 = vpack.c.b16 %v1290, %v1290
        %v1387 = vpack.c.b16 %v1291, %v1291
        %v1388 = vpack.c.b16 %v1292, %v1292
        %vm1389 = vsmask.f32 7424
        %v1391 = vshrl.u32 %v1005, 16
        %v1393 = vshll.u32 %v1005, 16
        %v1395 = vrot.slane %v1393, 1
        %v1396 = vor.u32 %v1391, %v1395
        %v1398 = vshll.u32 %v1293, 16
        %v1400 = vrot.slane %v1398, 1
        %v1401 = vsel %vm1389, %v1396, %v1400
        %v1403 = vshrl.u32 %v1006, 16
        %v1405 = vshll.u32 %v1006, 16
        %v1407 = vrot.slane %v1405, 1
        %v1408 = vor.u32 %v1403, %v1407
        %v1410 = vshll.u32 %v1294, 16
        %v1412 = vrot.slane %v1410, 1
        %v1413 = vsel %vm1389, %v1408, %v1412
        %v1415 = vshrl.u32 %v1007, 16
        %v1417 = vshll.u32 %v1007, 16
        %v1419 = vrot.slane %v1417, 1
        %v1420 = vor.u32 %v1415, %v1419
        %v1422 = vshll.u32 %v1295, 16
        %v1424 = vrot.slane %v1422, 1
        %v1425 = vsel %vm1389, %v1420, %v1424
        %v1427 = vshrl.u32 %v1008, 16
        %v1429 = vshll.u32 %v1008, 16
        %v1431 = vrot.slane %v1429, 1
        %v1432 = vor.u32 %v1427, %v1431
        %v1434 = vshll.u32 %v1296, 16
        %v1436 = vrot.slane %v1434, 1
        %v1437 = vsel %vm1389, %v1432, %v1436
        %v1439 = vshrl.u32 %v1009, 16
        %v1441 = vshll.u32 %v1009, 16
        %v1443 = vrot.slane %v1441, 1
        %v1444 = vor.u32 %v1439, %v1443
        %v1446 = vshll.u32 %v1297, 16
        %v1448 = vrot.slane %v1446, 1
        %v1449 = vsel %vm1389, %v1444, %v1448
        %v1451 = vshrl.u32 %v1010, 16
        %v1453 = vshll.u32 %v1010, 16
        %v1455 = vrot.slane %v1453, 1
        %v1456 = vor.u32 %v1451, %v1455
        %v1458 = vshll.u32 %v1298, 16
        %v1460 = vrot.slane %v1458, 1
        %v1461 = vsel %vm1389, %v1456, %v1460
        %v1463 = vshrl.u32 %v1011, 16
        %v1465 = vshll.u32 %v1011, 16
        %v1467 = vrot.slane %v1465, 1
        %v1468 = vor.u32 %v1463, %v1467
        %v1470 = vshll.u32 %v1299, 16
        %v1472 = vrot.slane %v1470, 1
        %v1473 = vsel %vm1389, %v1468, %v1472
        %v1475 = vshrl.u32 %v1012, 16
        %v1477 = vshll.u32 %v1012, 16
        %v1479 = vrot.slane %v1477, 1
        %v1480 = vor.u32 %v1475, %v1479
        %v1482 = vshll.u32 %v1300, 16
        %v1484 = vrot.slane %v1482, 1
        %v1485 = vsel %vm1389, %v1480, %v1484
        %v1487 = vshrl.u32 %v1013, 16
        %v1489 = vshll.u32 %v1013, 16
        %v1491 = vrot.slane %v1489, 1
        %v1492 = vor.u32 %v1487, %v1491
        %v1494 = vshll.u32 %v1301, 16
        %v1496 = vrot.slane %v1494, 1
        %v1497 = vsel %vm1389, %v1492, %v1496
        %v1499 = vshrl.u32 %v1014, 16
        %v1501 = vshll.u32 %v1014, 16
        %v1503 = vrot.slane %v1501, 1
        %v1504 = vor.u32 %v1499, %v1503
        %v1506 = vshll.u32 %v1302, 16
        %v1508 = vrot.slane %v1506, 1
        %v1509 = vsel %vm1389, %v1504, %v1508
        %v1511 = vshrl.u32 %v1015, 16
        %v1513 = vshll.u32 %v1015, 16
        %v1515 = vrot.slane %v1513, 1
        %v1516 = vor.u32 %v1511, %v1515
        %v1518 = vshll.u32 %v1303, 16
        %v1520 = vrot.slane %v1518, 1
        %v1521 = vsel %vm1389, %v1516, %v1520
        %v1523 = vshrl.u32 %v1016, 16
        %v1525 = vshll.u32 %v1016, 16
        %v1527 = vrot.slane %v1525, 1
        %v1528 = vor.u32 %v1523, %v1527
        %v1530 = vshll.u32 %v1304, 16
        %v1532 = vrot.slane %v1530, 1
        %v1533 = vsel %vm1389, %v1528, %v1532
        %v1535 = vshrl.u32 %v1017, 16
        %v1537 = vshll.u32 %v1017, 16
        %v1539 = vrot.slane %v1537, 1
        %v1540 = vor.u32 %v1535, %v1539
        %v1542 = vshll.u32 %v1305, 16
        %v1544 = vrot.slane %v1542, 1
        %v1545 = vsel %vm1389, %v1540, %v1544
        %v1547 = vshrl.u32 %v1018, 16
        %v1549 = vshll.u32 %v1018, 16
        %v1551 = vrot.slane %v1549, 1
        %v1552 = vor.u32 %v1547, %v1551
        %v1554 = vshll.u32 %v1306, 16
        %v1556 = vrot.slane %v1554, 1
        %v1557 = vsel %vm1389, %v1552, %v1556
        %v1559 = vshrl.u32 %v1019, 16
        %v1561 = vshll.u32 %v1019, 16
        %v1563 = vrot.slane %v1561, 1
        %v1564 = vor.u32 %v1559, %v1563
        %v1566 = vshll.u32 %v1307, 16
        %v1568 = vrot.slane %v1566, 1
        %v1569 = vsel %vm1389, %v1564, %v1568
        %v1571 = vshrl.u32 %v1020, 16
        %v1573 = vshll.u32 %v1020, 16
        %v1575 = vrot.slane %v1573, 1
        %v1576 = vor.u32 %v1571, %v1575
        %v1578 = vshll.u32 %v1308, 16
        %v1580 = vrot.slane %v1578, 1
        %v1581 = vsel %vm1389, %v1576, %v1580
        %v1583 = vshrl.u32 %v1021, 16
        %v1585 = vshll.u32 %v1021, 16
        %v1587 = vrot.slane %v1585, 1
        %v1588 = vor.u32 %v1583, %v1587
        %v1590 = vshll.u32 %v1309, 16
        %v1592 = vrot.slane %v1590, 1
        %v1593 = vsel %vm1389, %v1588, %v1592
        %v1595 = vshrl.u32 %v1022, 16
        %v1597 = vshll.u32 %v1022, 16
        %v1599 = vrot.slane %v1597, 1
        %v1600 = vor.u32 %v1595, %v1599
        %v1602 = vshll.u32 %v1310, 16
        %v1604 = vrot.slane %v1602, 1
        %v1605 = vsel %vm1389, %v1600, %v1604
        %v1607 = vshrl.u32 %v1023, 16
        %v1609 = vshll.u32 %v1023, 16
        %v1611 = vrot.slane %v1609, 1
        %v1612 = vor.u32 %v1607, %v1611
        %v1614 = vshll.u32 %v1311, 16
        %v1616 = vrot.slane %v1614, 1
        %v1617 = vsel %vm1389, %v1612, %v1616
        %v1619 = vshrl.u32 %v1024, 16
        %v1621 = vshll.u32 %v1024, 16
        %v1623 = vrot.slane %v1621, 1
        %v1624 = vor.u32 %v1619, %v1623
        %v1626 = vshll.u32 %v1312, 16
        %v1628 = vrot.slane %v1626, 1
        %v1629 = vsel %vm1389, %v1624, %v1628
        %v1631 = vshrl.u32 %v1025, 16
        %v1633 = vshll.u32 %v1025, 16
        %v1635 = vrot.slane %v1633, 1
        %v1636 = vor.u32 %v1631, %v1635
        %v1638 = vshll.u32 %v1313, 16
        %v1640 = vrot.slane %v1638, 1
        %v1641 = vsel %vm1389, %v1636, %v1640
        %v1643 = vshrl.u32 %v1026, 16
        %v1645 = vshll.u32 %v1026, 16
        %v1647 = vrot.slane %v1645, 1
        %v1648 = vor.u32 %v1643, %v1647
        %v1650 = vshll.u32 %v1314, 16
        %v1652 = vrot.slane %v1650, 1
        %v1653 = vsel %vm1389, %v1648, %v1652
        %v1655 = vshrl.u32 %v1027, 16
        %v1657 = vshll.u32 %v1027, 16
        %v1659 = vrot.slane %v1657, 1
        %v1660 = vor.u32 %v1655, %v1659
        %v1662 = vshll.u32 %v1315, 16
        %v1664 = vrot.slane %v1662, 1
        %v1665 = vsel %vm1389, %v1660, %v1664
        %v1667 = vshrl.u32 %v1028, 16
        %v1669 = vshll.u32 %v1028, 16
        %v1671 = vrot.slane %v1669, 1
        %v1672 = vor.u32 %v1667, %v1671
        %v1674 = vshll.u32 %v1316, 16
        %v1676 = vrot.slane %v1674, 1
        %v1677 = vsel %vm1389, %v1672, %v1676
        %v1679 = vshrl.u32 %v1029, 16
        %v1681 = vshll.u32 %v1029, 16
        %v1683 = vrot.slane %v1681, 1
        %v1684 = vor.u32 %v1679, %v1683
        %v1686 = vshll.u32 %v1317, 16
        %v1688 = vrot.slane %v1686, 1
        %v1689 = vsel %vm1389, %v1684, %v1688
        %v1691 = vshrl.u32 %v1030, 16
        %v1693 = vshll.u32 %v1030, 16
        %v1695 = vrot.slane %v1693, 1
        %v1696 = vor.u32 %v1691, %v1695
        %v1698 = vshll.u32 %v1318, 16
        %v1700 = vrot.slane %v1698, 1
        %v1701 = vsel %vm1389, %v1696, %v1700
        %v1703 = vshrl.u32 %v1031, 16
        %v1705 = vshll.u32 %v1031, 16
        %v1707 = vrot.slane %v1705, 1
        %v1708 = vor.u32 %v1703, %v1707
        %v1710 = vshll.u32 %v1319, 16
        %v1712 = vrot.slane %v1710, 1
        %v1713 = vsel %vm1389, %v1708, %v1712
        %v1715 = vshrl.u32 %v1032, 16
        %v1717 = vshll.u32 %v1032, 16
        %v1719 = vrot.slane %v1717, 1
        %v1720 = vor.u32 %v1715, %v1719
        %v1722 = vshll.u32 %v1320, 16
        %v1724 = vrot.slane %v1722, 1
        %v1725 = vsel %vm1389, %v1720, %v1724
        %v1727 = vshrl.u32 %v1033, 16
        %v1729 = vshll.u32 %v1033, 16
        %v1731 = vrot.slane %v1729, 1
        %v1732 = vor.u32 %v1727, %v1731
        %v1734 = vshll.u32 %v1321, 16
        %v1736 = vrot.slane %v1734, 1
        %v1737 = vsel %vm1389, %v1732, %v1736
        %v1739 = vshrl.u32 %v1034, 16
        %v1741 = vshll.u32 %v1034, 16
        %v1743 = vrot.slane %v1741, 1
        %v1744 = vor.u32 %v1739, %v1743
        %v1746 = vshll.u32 %v1322, 16
        %v1748 = vrot.slane %v1746, 1
        %v1749 = vsel %vm1389, %v1744, %v1748
        %v1751 = vshrl.u32 %v1035, 16
        %v1753 = vshll.u32 %v1035, 16
        %v1755 = vrot.slane %v1753, 1
        %v1756 = vor.u32 %v1751, %v1755
        %v1758 = vshll.u32 %v1323, 16
        %v1760 = vrot.slane %v1758, 1
        %v1761 = vsel %vm1389, %v1756, %v1760
        %v1763 = vshrl.u32 %v1036, 16
        %v1765 = vshll.u32 %v1036, 16
        %v1767 = vrot.slane %v1765, 1
        %v1768 = vor.u32 %v1763, %v1767
        %v1770 = vshll.u32 %v1324, 16
        %v1772 = vrot.slane %v1770, 1
        %v1773 = vsel %vm1389, %v1768, %v1772
        %v1775 = vshrl.u32 %v1037, 16
        %v1777 = vshll.u32 %v1037, 16
        %v1779 = vrot.slane %v1777, 1
        %v1780 = vor.u32 %v1775, %v1779
        %v1782 = vshll.u32 %v1325, 16
        %v1784 = vrot.slane %v1782, 1
        %v1785 = vsel %vm1389, %v1780, %v1784
        %v1787 = vshrl.u32 %v1038, 16
        %v1789 = vshll.u32 %v1038, 16
        %v1791 = vrot.slane %v1789, 1
        %v1792 = vor.u32 %v1787, %v1791
        %v1794 = vshll.u32 %v1326, 16
        %v1796 = vrot.slane %v1794, 1
        %v1797 = vsel %vm1389, %v1792, %v1796
        %v1799 = vshrl.u32 %v1039, 16
        %v1801 = vshll.u32 %v1039, 16
        %v1803 = vrot.slane %v1801, 1
        %v1804 = vor.u32 %v1799, %v1803
        %v1806 = vshll.u32 %v1327, 16
        %v1808 = vrot.slane %v1806, 1
        %v1809 = vsel %vm1389, %v1804, %v1808
        %v1811 = vshrl.u32 %v1040, 16
        %v1813 = vshll.u32 %v1040, 16
        %v1815 = vrot.slane %v1813, 1
        %v1816 = vor.u32 %v1811, %v1815
        %v1818 = vshll.u32 %v1328, 16
        %v1820 = vrot.slane %v1818, 1
        %v1821 = vsel %vm1389, %v1816, %v1820
        %v1823 = vshrl.u32 %v1041, 16
        %v1825 = vshll.u32 %v1041, 16
        %v1827 = vrot.slane %v1825, 1
        %v1828 = vor.u32 %v1823, %v1827
        %v1830 = vshll.u32 %v1329, 16
        %v1832 = vrot.slane %v1830, 1
        %v1833 = vsel %vm1389, %v1828, %v1832
        %v1835 = vshrl.u32 %v1042, 16
        %v1837 = vshll.u32 %v1042, 16
        %v1839 = vrot.slane %v1837, 1
        %v1840 = vor.u32 %v1835, %v1839
        %v1842 = vshll.u32 %v1330, 16
        %v1844 = vrot.slane %v1842, 1
        %v1845 = vsel %vm1389, %v1840, %v1844
        %v1847 = vshrl.u32 %v1043, 16
        %v1849 = vshll.u32 %v1043, 16
        %v1851 = vrot.slane %v1849, 1
        %v1852 = vor.u32 %v1847, %v1851
        %v1854 = vshll.u32 %v1331, 16
        %v1856 = vrot.slane %v1854, 1
        %v1857 = vsel %vm1389, %v1852, %v1856
        %v1859 = vshrl.u32 %v1044, 16
        %v1861 = vshll.u32 %v1044, 16
        %v1863 = vrot.slane %v1861, 1
        %v1864 = vor.u32 %v1859, %v1863
        %v1866 = vshll.u32 %v1332, 16
        %v1868 = vrot.slane %v1866, 1
        %v1869 = vsel %vm1389, %v1864, %v1868
        %v1871 = vshrl.u32 %v1045, 16
        %v1873 = vshll.u32 %v1045, 16
        %v1875 = vrot.slane %v1873, 1
        %v1876 = vor.u32 %v1871, %v1875
        %v1878 = vshll.u32 %v1333, 16
        %v1880 = vrot.slane %v1878, 1
        %v1881 = vsel %vm1389, %v1876, %v1880
        %v1883 = vshrl.u32 %v1046, 16
        %v1885 = vshll.u32 %v1046, 16
        %v1887 = vrot.slane %v1885, 1
        %v1888 = vor.u32 %v1883, %v1887
        %v1890 = vshll.u32 %v1334, 16
        %v1892 = vrot.slane %v1890, 1
        %v1893 = vsel %vm1389, %v1888, %v1892
        %v1895 = vshrl.u32 %v1047, 16
        %v1897 = vshll.u32 %v1047, 16
        %v1899 = vrot.slane %v1897, 1
        %v1900 = vor.u32 %v1895, %v1899
        %v1902 = vshll.u32 %v1335, 16
        %v1904 = vrot.slane %v1902, 1
        %v1905 = vsel %vm1389, %v1900, %v1904
        %v1907 = vshrl.u32 %v1048, 16
        %v1909 = vshll.u32 %v1048, 16
        %v1911 = vrot.slane %v1909, 1
        %v1912 = vor.u32 %v1907, %v1911
        %v1914 = vshll.u32 %v1336, 16
        %v1916 = vrot.slane %v1914, 1
        %v1917 = vsel %vm1389, %v1912, %v1916
        %v1919 = vshrl.u32 %v1049, 16
        %v1921 = vshll.u32 %v1049, 16
        %v1923 = vrot.slane %v1921, 1
        %v1924 = vor.u32 %v1919, %v1923
        %v1926 = vshll.u32 %v1337, 16
        %v1928 = vrot.slane %v1926, 1
        %v1929 = vsel %vm1389, %v1924, %v1928
        %v1931 = vshrl.u32 %v1050, 16
        %v1933 = vshll.u32 %v1050, 16
        %v1935 = vrot.slane %v1933, 1
        %v1936 = vor.u32 %v1931, %v1935
        %v1938 = vshll.u32 %v1338, 16
        %v1940 = vrot.slane %v1938, 1
        %v1941 = vsel %vm1389, %v1936, %v1940
        %v1943 = vshrl.u32 %v1051, 16
        %v1945 = vshll.u32 %v1051, 16
        %v1947 = vrot.slane %v1945, 1
        %v1948 = vor.u32 %v1943, %v1947
        %v1950 = vshll.u32 %v1339, 16
        %v1952 = vrot.slane %v1950, 1
        %v1953 = vsel %vm1389, %v1948, %v1952
        %v1955 = vshrl.u32 %v1052, 16
        %v1957 = vshll.u32 %v1052, 16
        %v1959 = vrot.slane %v1957, 1
        %v1960 = vor.u32 %v1955, %v1959
        %v1962 = vshll.u32 %v1340, 16
        %v1964 = vrot.slane %v1962, 1
        %v1965 = vsel %vm1389, %v1960, %v1964
        %v1967 = vshrl.u32 %v1053, 16
        %v1969 = vshll.u32 %v1053, 16
        %v1971 = vrot.slane %v1969, 1
        %v1972 = vor.u32 %v1967, %v1971
        %v1974 = vshll.u32 %v1341, 16
        %v1976 = vrot.slane %v1974, 1
        %v1977 = vsel %vm1389, %v1972, %v1976
        %v1979 = vshrl.u32 %v1054, 16
        %v1981 = vshll.u32 %v1054, 16
        %v1983 = vrot.slane %v1981, 1
        %v1984 = vor.u32 %v1979, %v1983
        %v1986 = vshll.u32 %v1342, 16
        %v1988 = vrot.slane %v1986, 1
        %v1989 = vsel %vm1389, %v1984, %v1988
        %v1991 = vshrl.u32 %v1055, 16
        %v1993 = vshll.u32 %v1055, 16
        %v1995 = vrot.slane %v1993, 1
        %v1996 = vor.u32 %v1991, %v1995
        %v1998 = vshll.u32 %v1343, 16
        %v2000 = vrot.slane %v1998, 1
        %v2001 = vsel %vm1389, %v1996, %v2000
        %v2003 = vshrl.u32 %v1056, 16
        %v2005 = vshll.u32 %v1056, 16
        %v2007 = vrot.slane %v2005, 1
        %v2008 = vor.u32 %v2003, %v2007
        %v2010 = vshll.u32 %v1344, 16
        %v2012 = vrot.slane %v2010, 1
        %v2013 = vsel %vm1389, %v2008, %v2012
        %v2015 = vshrl.u32 %v1057, 16
        %v2017 = vshll.u32 %v1057, 16
        %v2019 = vrot.slane %v2017, 1
        %v2020 = vor.u32 %v2015, %v2019
        %v2022 = vshll.u32 %v1345, 16
        %v2024 = vrot.slane %v2022, 1
        %v2025 = vsel %vm1389, %v2020, %v2024
        %v2027 = vshrl.u32 %v1058, 16
        %v2029 = vshll.u32 %v1058, 16
        %v2031 = vrot.slane %v2029, 1
        %v2032 = vor.u32 %v2027, %v2031
        %v2034 = vshll.u32 %v1346, 16
        %v2036 = vrot.slane %v2034, 1
        %v2037 = vsel %vm1389, %v2032, %v2036
        %v2039 = vshrl.u32 %v1059, 16
        %v2041 = vshll.u32 %v1059, 16
        %v2043 = vrot.slane %v2041, 1
        %v2044 = vor.u32 %v2039, %v2043
        %v2046 = vshll.u32 %v1347, 16
        %v2048 = vrot.slane %v2046, 1
        %v2049 = vsel %vm1389, %v2044, %v2048
        %v2051 = vshrl.u32 %v1060, 16
        %v2053 = vshll.u32 %v1060, 16
        %v2055 = vrot.slane %v2053, 1
        %v2056 = vor.u32 %v2051, %v2055
        %v2058 = vshll.u32 %v1348, 16
        %v2060 = vrot.slane %v2058, 1
        %v2061 = vsel %vm1389, %v2056, %v2060
        %v2063 = vshrl.u32 %v1061, 16
        %v2065 = vshll.u32 %v1061, 16
        %v2067 = vrot.slane %v2065, 1
        %v2068 = vor.u32 %v2063, %v2067
        %v2070 = vshll.u32 %v1349, 16
        %v2072 = vrot.slane %v2070, 1
        %v2073 = vsel %vm1389, %v2068, %v2072
        %v2075 = vshrl.u32 %v1062, 16
        %v2077 = vshll.u32 %v1062, 16
        %v2079 = vrot.slane %v2077, 1
        %v2080 = vor.u32 %v2075, %v2079
        %v2082 = vshll.u32 %v1350, 16
        %v2084 = vrot.slane %v2082, 1
        %v2085 = vsel %vm1389, %v2080, %v2084
        %v2087 = vshrl.u32 %v1063, 16
        %v2089 = vshll.u32 %v1063, 16
        %v2091 = vrot.slane %v2089, 1
        %v2092 = vor.u32 %v2087, %v2091
        %v2094 = vshll.u32 %v1351, 16
        %v2096 = vrot.slane %v2094, 1
        %v2097 = vsel %vm1389, %v2092, %v2096
        %v2099 = vshrl.u32 %v1064, 16
        %v2101 = vshll.u32 %v1064, 16
        %v2103 = vrot.slane %v2101, 1
        %v2104 = vor.u32 %v2099, %v2103
        %v2106 = vshll.u32 %v1352, 16
        %v2108 = vrot.slane %v2106, 1
        %v2109 = vsel %vm1389, %v2104, %v2108
        %v2111 = vshrl.u32 %v1065, 16
        %v2113 = vshll.u32 %v1065, 16
        %v2115 = vrot.slane %v2113, 1
        %v2116 = vor.u32 %v2111, %v2115
        %v2118 = vshll.u32 %v1353, 16
        %v2120 = vrot.slane %v2118, 1
        %v2121 = vsel %vm1389, %v2116, %v2120
        %v2123 = vshrl.u32 %v1066, 16
        %v2125 = vshll.u32 %v1066, 16
        %v2127 = vrot.slane %v2125, 1
        %v2128 = vor.u32 %v2123, %v2127
        %v2130 = vshll.u32 %v1354, 16
        %v2132 = vrot.slane %v2130, 1
        %v2133 = vsel %vm1389, %v2128, %v2132
        %v2135 = vshrl.u32 %v1067, 16
        %v2137 = vshll.u32 %v1067, 16
        %v2139 = vrot.slane %v2137, 1
        %v2140 = vor.u32 %v2135, %v2139
        %v2142 = vshll.u32 %v1355, 16
        %v2144 = vrot.slane %v2142, 1
        %v2145 = vsel %vm1389, %v2140, %v2144
        %v2147 = vshrl.u32 %v1068, 16
        %v2149 = vshll.u32 %v1068, 16
        %v2151 = vrot.slane %v2149, 1
        %v2152 = vor.u32 %v2147, %v2151
        %v2154 = vshll.u32 %v1356, 16
        %v2156 = vrot.slane %v2154, 1
        %v2157 = vsel %vm1389, %v2152, %v2156
        %v2159 = vshrl.u32 %v1069, 16
        %v2161 = vshll.u32 %v1069, 16
        %v2163 = vrot.slane %v2161, 1
        %v2164 = vor.u32 %v2159, %v2163
        %v2166 = vshll.u32 %v1357, 16
        %v2168 = vrot.slane %v2166, 1
        %v2169 = vsel %vm1389, %v2164, %v2168
        %v2171 = vshrl.u32 %v1070, 16
        %v2173 = vshll.u32 %v1070, 16
        %v2175 = vrot.slane %v2173, 1
        %v2176 = vor.u32 %v2171, %v2175
        %v2178 = vshll.u32 %v1358, 16
        %v2180 = vrot.slane %v2178, 1
        %v2181 = vsel %vm1389, %v2176, %v2180
        %v2183 = vshrl.u32 %v1071, 16
        %v2185 = vshll.u32 %v1071, 16
        %v2187 = vrot.slane %v2185, 1
        %v2188 = vor.u32 %v2183, %v2187
        %v2190 = vshll.u32 %v1359, 16
        %v2192 = vrot.slane %v2190, 1
        %v2193 = vsel %vm1389, %v2188, %v2192
        %v2195 = vshrl.u32 %v1072, 16
        %v2197 = vshll.u32 %v1072, 16
        %v2199 = vrot.slane %v2197, 1
        %v2200 = vor.u32 %v2195, %v2199
        %v2202 = vshll.u32 %v1360, 16
        %v2204 = vrot.slane %v2202, 1
        %v2205 = vsel %vm1389, %v2200, %v2204
        %v2207 = vshrl.u32 %v1073, 16
        %v2209 = vshll.u32 %v1073, 16
        %v2211 = vrot.slane %v2209, 1
        %v2212 = vor.u32 %v2207, %v2211
        %v2214 = vshll.u32 %v1361, 16
        %v2216 = vrot.slane %v2214, 1
        %v2217 = vsel %vm1389, %v2212, %v2216
        %v2219 = vshrl.u32 %v1074, 16
        %v2221 = vshll.u32 %v1074, 16
        %v2223 = vrot.slane %v2221, 1
        %v2224 = vor.u32 %v2219, %v2223
        %v2226 = vshll.u32 %v1362, 16
        %v2228 = vrot.slane %v2226, 1
        %v2229 = vsel %vm1389, %v2224, %v2228
        %v2231 = vshrl.u32 %v1075, 16
        %v2233 = vshll.u32 %v1075, 16
        %v2235 = vrot.slane %v2233, 1
        %v2236 = vor.u32 %v2231, %v2235
        %v2238 = vshll.u32 %v1363, 16
        %v2240 = vrot.slane %v2238, 1
        %v2241 = vsel %vm1389, %v2236, %v2240
        %v2243 = vshrl.u32 %v1076, 16
        %v2245 = vshll.u32 %v1076, 16
        %v2247 = vrot.slane %v2245, 1
        %v2248 = vor.u32 %v2243, %v2247
        %v2250 = vshll.u32 %v1364, 16
        %v2252 = vrot.slane %v2250, 1
        %v2253 = vsel %vm1389, %v2248, %v2252
        %v2255 = vshrl.u32 %v1077, 16
        %v2257 = vshll.u32 %v1077, 16
        %v2259 = vrot.slane %v2257, 1
        %v2260 = vor.u32 %v2255, %v2259
        %v2262 = vshll.u32 %v1365, 16
        %v2264 = vrot.slane %v2262, 1
        %v2265 = vsel %vm1389, %v2260, %v2264
        %v2267 = vshrl.u32 %v1078, 16
        %v2269 = vshll.u32 %v1078, 16
        %v2271 = vrot.slane %v2269, 1
        %v2272 = vor.u32 %v2267, %v2271
        %v2274 = vshll.u32 %v1366, 16
        %v2276 = vrot.slane %v2274, 1
        %v2277 = vsel %vm1389, %v2272, %v2276
        %v2279 = vshrl.u32 %v1079, 16
        %v2281 = vshll.u32 %v1079, 16
        %v2283 = vrot.slane %v2281, 1
        %v2284 = vor.u32 %v2279, %v2283
        %v2286 = vshll.u32 %v1367, 16
        %v2288 = vrot.slane %v2286, 1
        %v2289 = vsel %vm1389, %v2284, %v2288
        %v2291 = vshrl.u32 %v1080, 16
        %v2293 = vshll.u32 %v1080, 16
        %v2295 = vrot.slane %v2293, 1
        %v2296 = vor.u32 %v2291, %v2295
        %v2298 = vshll.u32 %v1368, 16
        %v2300 = vrot.slane %v2298, 1
        %v2301 = vsel %vm1389, %v2296, %v2300
        %v2303 = vshrl.u32 %v1081, 16
        %v2305 = vshll.u32 %v1081, 16
        %v2307 = vrot.slane %v2305, 1
        %v2308 = vor.u32 %v2303, %v2307
        %v2310 = vshll.u32 %v1369, 16
        %v2312 = vrot.slane %v2310, 1
        %v2313 = vsel %vm1389, %v2308, %v2312
        %v2315 = vshrl.u32 %v1082, 16
        %v2317 = vshll.u32 %v1082, 16
        %v2319 = vrot.slane %v2317, 1
        %v2320 = vor.u32 %v2315, %v2319
        %v2322 = vshll.u32 %v1370, 16
        %v2324 = vrot.slane %v2322, 1
        %v2325 = vsel %vm1389, %v2320, %v2324
        %v2327 = vshrl.u32 %v1083, 16
        %v2329 = vshll.u32 %v1083, 16
        %v2331 = vrot.slane %v2329, 1
        %v2332 = vor.u32 %v2327, %v2331
        %v2334 = vshll.u32 %v1371, 16
        %v2336 = vrot.slane %v2334, 1
        %v2337 = vsel %vm1389, %v2332, %v2336
        %v2339 = vshrl.u32 %v1084, 16
        %v2341 = vshll.u32 %v1084, 16
        %v2343 = vrot.slane %v2341, 1
        %v2344 = vor.u32 %v2339, %v2343
        %v2346 = vshll.u32 %v1372, 16
        %v2348 = vrot.slane %v2346, 1
        %v2349 = vsel %vm1389, %v2344, %v2348
        %v2351 = vshrl.u32 %v1085, 16
        %v2353 = vshll.u32 %v1085, 16
        %v2355 = vrot.slane %v2353, 1
        %v2356 = vor.u32 %v2351, %v2355
        %v2358 = vshll.u32 %v1373, 16
        %v2360 = vrot.slane %v2358, 1
        %v2361 = vsel %vm1389, %v2356, %v2360
        %v2363 = vshrl.u32 %v1086, 16
        %v2365 = vshll.u32 %v1086, 16
        %v2367 = vrot.slane %v2365, 1
        %v2368 = vor.u32 %v2363, %v2367
        %v2370 = vshll.u32 %v1374, 16
        %v2372 = vrot.slane %v2370, 1
        %v2373 = vsel %vm1389, %v2368, %v2372
        %v2375 = vshrl.u32 %v1087, 16
        %v2377 = vshll.u32 %v1087, 16
        %v2379 = vrot.slane %v2377, 1
        %v2380 = vor.u32 %v2375, %v2379
        %v2382 = vshll.u32 %v1375, 16
        %v2384 = vrot.slane %v2382, 1
        %v2385 = vsel %vm1389, %v2380, %v2384
        %v2387 = vshrl.u32 %v1088, 16
        %v2389 = vshll.u32 %v1088, 16
        %v2391 = vrot.slane %v2389, 1
        %v2392 = vor.u32 %v2387, %v2391
        %v2394 = vshll.u32 %v1376, 16
        %v2396 = vrot.slane %v2394, 1
        %v2397 = vsel %vm1389, %v2392, %v2396
        %v2399 = vshrl.u32 %v1089, 16
        %v2401 = vshll.u32 %v1089, 16
        %v2403 = vrot.slane %v2401, 1
        %v2404 = vor.u32 %v2399, %v2403
        %v2406 = vshll.u32 %v1377, 16
        %v2408 = vrot.slane %v2406, 1
        %v2409 = vsel %vm1389, %v2404, %v2408
        %v2411 = vshrl.u32 %v1090, 16
        %v2413 = vshll.u32 %v1090, 16
        %v2415 = vrot.slane %v2413, 1
        %v2416 = vor.u32 %v2411, %v2415
        %v2418 = vshll.u32 %v1378, 16
        %v2420 = vrot.slane %v2418, 1
        %v2421 = vsel %vm1389, %v2416, %v2420
        %v2423 = vshrl.u32 %v1091, 16
        %v2425 = vshll.u32 %v1091, 16
        %v2427 = vrot.slane %v2425, 1
        %v2428 = vor.u32 %v2423, %v2427
        %v2430 = vshll.u32 %v1379, 16
        %v2432 = vrot.slane %v2430, 1
        %v2433 = vsel %vm1389, %v2428, %v2432
        %v2435 = vshrl.u32 %v1092, 16
        %v2437 = vshll.u32 %v1092, 16
        %v2439 = vrot.slane %v2437, 1
        %v2440 = vor.u32 %v2435, %v2439
        %v2442 = vshll.u32 %v1380, 16
        %v2444 = vrot.slane %v2442, 1
        %v2445 = vsel %vm1389, %v2440, %v2444
        %v2447 = vshrl.u32 %v1093, 16
        %v2449 = vshll.u32 %v1093, 16
        %v2451 = vrot.slane %v2449, 1
        %v2452 = vor.u32 %v2447, %v2451
        %v2454 = vshll.u32 %v1381, 16
        %v2456 = vrot.slane %v2454, 1
        %v2457 = vsel %vm1389, %v2452, %v2456
        %v2459 = vshrl.u32 %v1094, 16
        %v2461 = vshll.u32 %v1094, 16
        %v2463 = vrot.slane %v2461, 1
        %v2464 = vor.u32 %v2459, %v2463
        %v2466 = vshll.u32 %v1382, 16
        %v2468 = vrot.slane %v2466, 1
        %v2469 = vsel %vm1389, %v2464, %v2468
        %v2471 = vshrl.u32 %v1095, 16
        %v2473 = vshll.u32 %v1095, 16
        %v2475 = vrot.slane %v2473, 1
        %v2476 = vor.u32 %v2471, %v2475
        %v2478 = vshll.u32 %v1383, 16
        %v2480 = vrot.slane %v2478, 1
        %v2481 = vsel %vm1389, %v2476, %v2480
        %v2483 = vshrl.u32 %v1096, 16
        %v2485 = vshll.u32 %v1096, 16
        %v2487 = vrot.slane %v2485, 1
        %v2488 = vor.u32 %v2483, %v2487
        %v2490 = vshll.u32 %v1384, 16
        %v2492 = vrot.slane %v2490, 1
        %v2493 = vsel %vm1389, %v2488, %v2492
        %v2495 = vshrl.u32 %v1097, 16
        %v2497 = vshll.u32 %v1097, 16
        %v2499 = vrot.slane %v2497, 1
        %v2500 = vor.u32 %v2495, %v2499
        %v2502 = vshll.u32 %v1385, 16
        %v2504 = vrot.slane %v2502, 1
        %v2505 = vsel %vm1389, %v2500, %v2504
        %v2507 = vshrl.u32 %v1098, 16
        %v2509 = vshll.u32 %v1098, 16
        %v2511 = vrot.slane %v2509, 1
        %v2512 = vor.u32 %v2507, %v2511
        %v2514 = vshll.u32 %v1386, 16
        %v2516 = vrot.slane %v2514, 1
        %v2517 = vsel %vm1389, %v2512, %v2516
        %v2519 = vshrl.u32 %v1099, 16
        %v2521 = vshll.u32 %v1099, 16
        %v2523 = vrot.slane %v2521, 1
        %v2524 = vor.u32 %v2519, %v2523
        %v2526 = vshll.u32 %v1387, 16
        %v2528 = vrot.slane %v2526, 1
        %v2529 = vsel %vm1389, %v2524, %v2528
        %v2531 = vshrl.u32 %v1100, 16
        %v2533 = vshll.u32 %v1100, 16
        %v2535 = vrot.slane %v2533, 1
        %v2536 = vor.u32 %v2531, %v2535
        %v2538 = vshll.u32 %v1388, 16
        %v2540 = vrot.slane %v2538, 1
        %v2541 = vsel %vm1389, %v2536, %v2540
        %2542 = vrot.lane.b32.xlu0 %v1401, 8
        %v2543 = vpop.permute.xlu0 %2542
        %2544 = vrot.lane.b32.xlu0 %v1413, 8
        %v2545 = vpop.permute.xlu0 %2544
        %2546 = vrot.lane.b32.xlu0 %v1425, 8
        %v2547 = vpop.permute.xlu0 %2546
        %2548 = vrot.lane.b32.xlu0 %v1437, 8
        %v2549 = vpop.permute.xlu0 %2548
        %2550 = vrot.lane.b32.xlu0 %v1449, 8
        %v2551 = vpop.permute.xlu0 %2550
        %2552 = vrot.lane.b32.xlu0 %v1461, 8
        %v2553 = vpop.permute.xlu0 %2552
        %2554 = vrot.lane.b32.xlu0 %v1473, 8
        %v2555 = vpop.permute.xlu0 %2554
        %2556 = vrot.lane.b32.xlu0 %v1485, 8
        %v2557 = vpop.permute.xlu0 %2556
        %2558 = vrot.lane.b32.xlu0 %v1497, 8
        %v2559 = vpop.permute.xlu0 %2558
        %2560 = vrot.lane.b32.xlu0 %v1509, 8
        %v2561 = vpop.permute.xlu0 %2560
        %2562 = vrot.lane.b32.xlu0 %v1521, 8
        %v2563 = vpop.permute.xlu0 %2562
        %2564 = vrot.lane.b32.xlu0 %v1533, 8
        %v2565 = vpop.permute.xlu0 %2564
        %2566 = vrot.lane.b32.xlu0 %v1545, 8
        %v2567 = vpop.permute.xlu0 %2566
        %2568 = vrot.lane.b32.xlu0 %v1557, 8
        %v2569 = vpop.permute.xlu0 %2568
        %2570 = vrot.lane.b32.xlu0 %v1569, 8
        %v2571 = vpop.permute.xlu0 %2570
        %2572 = vrot.lane.b32.xlu0 %v1581, 8
        %v2573 = vpop.permute.xlu0 %2572
        %2574 = vrot.lane.b32.xlu0 %v1593, 8
        %v2575 = vpop.permute.xlu0 %2574
        %2576 = vrot.lane.b32.xlu0 %v1605, 8
        %v2577 = vpop.permute.xlu0 %2576
        %2578 = vrot.lane.b32.xlu0 %v1617, 8
        %v2579 = vpop.permute.xlu0 %2578
        %2580 = vrot.lane.b32.xlu0 %v1629, 8
        %v2581 = vpop.permute.xlu0 %2580
        %2582 = vrot.lane.b32.xlu0 %v1641, 8
        %v2583 = vpop.permute.xlu0 %2582
        %2584 = vrot.lane.b32.xlu0 %v1653, 8
        %v2585 = vpop.permute.xlu0 %2584
        %2586 = vrot.lane.b32.xlu0 %v1665, 8
        %v2587 = vpop.permute.xlu0 %2586
        %2588 = vrot.lane.b32.xlu0 %v1677, 8
        %v2589 = vpop.permute.xlu0 %2588
        %2590 = vrot.lane.b32.xlu0 %v1689, 8
        %v2591 = vpop.permute.xlu0 %2590
        %2592 = vrot.lane.b32.xlu0 %v1701, 8
        %v2593 = vpop.permute.xlu0 %2592
        %2594 = vrot.lane.b32.xlu0 %v1713, 8
        %v2595 = vpop.permute.xlu0 %2594
        %2596 = vrot.lane.b32.xlu0 %v1725, 8
        %v2597 = vpop.permute.xlu0 %2596
        %2598 = vrot.lane.b32.xlu0 %v1737, 8
        %v2599 = vpop.permute.xlu0 %2598
        %2600 = vrot.lane.b32.xlu0 %v1749, 8
        %v2601 = vpop.permute.xlu0 %2600
        %2602 = vrot.lane.b32.xlu0 %v1761, 8
        %v2603 = vpop.permute.xlu0 %2602
        %2604 = vrot.lane.b32.xlu0 %v1773, 8
        %v2605 = vpop.permute.xlu0 %2604
        %2606 = vrot.lane.b32.xlu0 %v1785, 8
        %v2607 = vpop.permute.xlu0 %2606
        %2608 = vrot.lane.b32.xlu0 %v1797, 8
        %v2609 = vpop.permute.xlu0 %2608
        %2610 = vrot.lane.b32.xlu0 %v1809, 8
        %v2611 = vpop.permute.xlu0 %2610
        %2612 = vrot.lane.b32.xlu0 %v1821, 8
        %v2613 = vpop.permute.xlu0 %2612
        %2614 = vrot.lane.b32.xlu0 %v1833, 8
        %v2615 = vpop.permute.xlu0 %2614
        %2616 = vrot.lane.b32.xlu0 %v1845, 8
        %v2617 = vpop.permute.xlu0 %2616
        %2618 = vrot.lane.b32.xlu0 %v1857, 8
        %v2619 = vpop.permute.xlu0 %2618
        %2620 = vrot.lane.b32.xlu0 %v1869, 8
        %v2621 = vpop.permute.xlu0 %2620
        %2622 = vrot.lane.b32.xlu0 %v1881, 8
        %v2623 = vpop.permute.xlu0 %2622
        %2624 = vrot.lane.b32.xlu0 %v1893, 8
        %v2625 = vpop.permute.xlu0 %2624
        %2626 = vrot.lane.b32.xlu0 %v1905, 8
        %v2627 = vpop.permute.xlu0 %2626
        %2628 = vrot.lane.b32.xlu0 %v1917, 8
        %v2629 = vpop.permute.xlu0 %2628
        %2630 = vrot.lane.b32.xlu0 %v1929, 8
        %v2631 = vpop.permute.xlu0 %2630
        %2632 = vrot.lane.b32.xlu0 %v1941, 8
        %v2633 = vpop.permute.xlu0 %2632
        %2634 = vrot.lane.b32.xlu0 %v1953, 8
        %v2635 = vpop.permute.xlu0 %2634
        %2636 = vrot.lane.b32.xlu0 %v1965, 8
        %v2637 = vpop.permute.xlu0 %2636
        %2638 = vrot.lane.b32.xlu0 %v1977, 8
        %v2639 = vpop.permute.xlu0 %2638
        %2640 = vrot.lane.b32.xlu0 %v1989, 8
        %v2641 = vpop.permute.xlu0 %2640
        %2642 = vrot.lane.b32.xlu0 %v2001, 8
        %v2643 = vpop.permute.xlu0 %2642
        %2644 = vrot.lane.b32.xlu0 %v2013, 8
        %v2645 = vpop.permute.xlu0 %2644
        %2646 = vrot.lane.b32.xlu0 %v2025, 8
        %v2647 = vpop.permute.xlu0 %2646
        %2648 = vrot.lane.b32.xlu0 %v2037, 8
        %v2649 = vpop.permute.xlu0 %2648
        %2650 = vrot.lane.b32.xlu0 %v2049, 8
        %v2651 = vpop.permute.xlu0 %2650
        %2652 = vrot.lane.b32.xlu0 %v2061, 8
        %v2653 = vpop.permute.xlu0 %2652
        %2654 = vrot.lane.b32.xlu0 %v2073, 8
        %v2655 = vpop.permute.xlu0 %2654
        %2656 = vrot.lane.b32.xlu0 %v2085, 8
        %v2657 = vpop.permute.xlu0 %2656
        %2658 = vrot.lane.b32.xlu0 %v2097, 8
        %v2659 = vpop.permute.xlu0 %2658
        %2660 = vrot.lane.b32.xlu0 %v2109, 8
        %v2661 = vpop.permute.xlu0 %2660
        %2662 = vrot.lane.b32.xlu0 %v2121, 8
        %v2663 = vpop.permute.xlu0 %2662
        %2664 = vrot.lane.b32.xlu0 %v2133, 8
        %v2665 = vpop.permute.xlu0 %2664
        %2666 = vrot.lane.b32.xlu0 %v2145, 8
        %v2667 = vpop.permute.xlu0 %2666
        %2668 = vrot.lane.b32.xlu0 %v2157, 8
        %v2669 = vpop.permute.xlu0 %2668
        %2670 = vrot.lane.b32.xlu0 %v2169, 8
        %v2671 = vpop.permute.xlu0 %2670
        %2672 = vrot.lane.b32.xlu0 %v2181, 8
        %v2673 = vpop.permute.xlu0 %2672
        %2674 = vrot.lane.b32.xlu0 %v2193, 8
        %v2675 = vpop.permute.xlu0 %2674
        %2676 = vrot.lane.b32.xlu0 %v2205, 8
        %v2677 = vpop.permute.xlu0 %2676
        %2678 = vrot.lane.b32.xlu0 %v2217, 8
        %v2679 = vpop.permute.xlu0 %2678
        %2680 = vrot.lane.b32.xlu0 %v2229, 8
        %v2681 = vpop.permute.xlu0 %2680
        %2682 = vrot.lane.b32.xlu0 %v2241, 8
        %v2683 = vpop.permute.xlu0 %2682
        %2684 = vrot.lane.b32.xlu0 %v2253, 8
        %v2685 = vpop.permute.xlu0 %2684
        %2686 = vrot.lane.b32.xlu0 %v2265, 8
        %v2687 = vpop.permute.xlu0 %2686
        %2688 = vrot.lane.b32.xlu0 %v2277, 8
        %v2689 = vpop.permute.xlu0 %2688
        %2690 = vrot.lane.b32.xlu0 %v2289, 8
        %v2691 = vpop.permute.xlu0 %2690
        %2692 = vrot.lane.b32.xlu0 %v2301, 8
        %v2693 = vpop.permute.xlu0 %2692
        %2694 = vrot.lane.b32.xlu0 %v2313, 8
        %v2695 = vpop.permute.xlu0 %2694
        %2696 = vrot.lane.b32.xlu0 %v2325, 8
        %v2697 = vpop.permute.xlu0 %2696
        %2698 = vrot.lane.b32.xlu0 %v2337, 8
        %v2699 = vpop.permute.xlu0 %2698
        %2700 = vrot.lane.b32.xlu0 %v2349, 8
        %v2701 = vpop.permute.xlu0 %2700
        %2702 = vrot.lane.b32.xlu0 %v2361, 8
        %v2703 = vpop.permute.xlu0 %2702
        %2704 = vrot.lane.b32.xlu0 %v2373, 8
        %v2705 = vpop.permute.xlu0 %2704
        %2706 = vrot.lane.b32.xlu0 %v2385, 8
        %v2707 = vpop.permute.xlu0 %2706
        %2708 = vrot.lane.b32.xlu0 %v2397, 8
        %v2709 = vpop.permute.xlu0 %2708
        %2710 = vrot.lane.b32.xlu0 %v2409, 8
        %v2711 = vpop.permute.xlu0 %2710
        %2712 = vrot.lane.b32.xlu0 %v2421, 8
        %v2713 = vpop.permute.xlu0 %2712
        %2714 = vrot.lane.b32.xlu0 %v2433, 8
        %v2715 = vpop.permute.xlu0 %2714
        %2716 = vrot.lane.b32.xlu0 %v2445, 8
        %v2717 = vpop.permute.xlu0 %2716
        %2718 = vrot.lane.b32.xlu0 %v2457, 8
        %v2719 = vpop.permute.xlu0 %2718
        %2720 = vrot.lane.b32.xlu0 %v2469, 8
        %v2721 = vpop.permute.xlu0 %2720
        %2722 = vrot.lane.b32.xlu0 %v2481, 8
        %v2723 = vpop.permute.xlu0 %2722
        %2724 = vrot.lane.b32.xlu0 %v2493, 8
        %v2725 = vpop.permute.xlu0 %2724
        %2726 = vrot.lane.b32.xlu0 %v2505, 8
        %v2727 = vpop.permute.xlu0 %2726
        %2728 = vrot.lane.b32.xlu0 %v2517, 8
        %v2729 = vpop.permute.xlu0 %2728
        %2730 = vrot.lane.b32.xlu0 %v2529, 8
        %v2731 = vpop.permute.xlu0 %2730
        %2732 = vrot.lane.b32.xlu0 %v2541, 8
        %v2733 = vpop.permute.xlu0 %2732
        %vm2734 = vcmask 1046528
        %v2735 = vrot.slane %v1005, 1
        %v2736 = vrot.slane %v1293, 1
        %v2737 = vsel %vm2734, %v2735, %v2736
        %v2738 = vrot.slane %v1006, 1
        %v2739 = vrot.slane %v1294, 1
        %v2740 = vsel %vm2734, %v2738, %v2739
        %v2741 = vrot.slane %v1007, 1
        %v2742 = vrot.slane %v1295, 1
        %v2743 = vsel %vm2734, %v2741, %v2742
        %v2744 = vrot.slane %v1008, 1
        %v2745 = vrot.slane %v1296, 1
        %v2746 = vsel %vm2734, %v2744, %v2745
        %v2747 = vrot.slane %v1009, 1
        %v2748 = vrot.slane %v1297, 1
        %v2749 = vsel %vm2734, %v2747, %v2748
        %v2750 = vrot.slane %v1010, 1
        %v2751 = vrot.slane %v1298, 1
        %v2752 = vsel %vm2734, %v2750, %v2751
        %v2753 = vrot.slane %v1011, 1
        %v2754 = vrot.slane %v1299, 1
        %v2755 = vsel %vm2734, %v2753, %v2754
        %v2756 = vrot.slane %v1012, 1
        %v2757 = vrot.slane %v1300, 1
        %v2758 = vsel %vm2734, %v2756, %v2757
        %v2759 = vrot.slane %v1013, 1
        %v2760 = vrot.slane %v1301, 1
        %v2761 = vsel %vm2734, %v2759, %v2760
        %v2762 = vrot.slane %v1014, 1
        %v2763 = vrot.slane %v1302, 1
        %v2764 = vsel %vm2734, %v2762, %v2763
        %v2765 = vrot.slane %v1015, 1
        %v2766 = vrot.slane %v1303, 1
        %v2767 = vsel %vm2734, %v2765, %v2766
        %v2768 = vrot.slane %v1016, 1
        %v2769 = vrot.slane %v1304, 1
        %v2770 = vsel %vm2734, %v2768, %v2769
        %v2771 = vrot.slane %v1017, 1
        %v2772 = vrot.slane %v1305, 1
        %v2773 = vsel %vm2734, %v2771, %v2772
        %v2774 = vrot.slane %v1018, 1
        %v2775 = vrot.slane %v1306, 1
        %v2776 = vsel %vm2734, %v2774, %v2775
        %v2777 = vrot.slane %v1019, 1
        %v2778 = vrot.slane %v1307, 1
        %v2779 = vsel %vm2734, %v2777, %v2778
        %v2780 = vrot.slane %v1020, 1
        %v2781 = vrot.slane %v1308, 1
        %v2782 = vsel %vm2734, %v2780, %v2781
        %v2783 = vrot.slane %v1021, 1
        %v2784 = vrot.slane %v1309, 1
        %v2785 = vsel %vm2734, %v2783, %v2784
        %v2786 = vrot.slane %v1022, 1
        %v2787 = vrot.slane %v1310, 1
        %v2788 = vsel %vm2734, %v2786, %v2787
        %v2789 = vrot.slane %v1023, 1
        %v2790 = vrot.slane %v1311, 1
        %v2791 = vsel %vm2734, %v2789, %v2790
        %v2792 = vrot.slane %v1024, 1
        %v2793 = vrot.slane %v1312, 1
        %v2794 = vsel %vm2734, %v2792, %v2793
        %v2795 = vrot.slane %v1025, 1
        %v2796 = vrot.slane %v1313, 1
        %v2797 = vsel %vm2734, %v2795, %v2796
        %v2798 = vrot.slane %v1026, 1
        %v2799 = vrot.slane %v1314, 1
        %v2800 = vsel %vm2734, %v2798, %v2799
        %v2801 = vrot.slane %v1027, 1
        %v2802 = vrot.slane %v1315, 1
        %v2803 = vsel %vm2734, %v2801, %v2802
        %v2804 = vrot.slane %v1028, 1
        %v2805 = vrot.slane %v1316, 1
        %v2806 = vsel %vm2734, %v2804, %v2805
        %v2807 = vrot.slane %v1029, 1
        %v2808 = vrot.slane %v1317, 1
        %v2809 = vsel %vm2734, %v2807, %v2808
        %v2810 = vrot.slane %v1030, 1
        %v2811 = vrot.slane %v1318, 1
        %v2812 = vsel %vm2734, %v2810, %v2811
        %v2813 = vrot.slane %v1031, 1
        %v2814 = vrot.slane %v1319, 1
        %v2815 = vsel %vm2734, %v2813, %v2814
        %v2816 = vrot.slane %v1032, 1
        %v2817 = vrot.slane %v1320, 1
        %v2818 = vsel %vm2734, %v2816, %v2817
        %v2819 = vrot.slane %v1033, 1
        %v2820 = vrot.slane %v1321, 1
        %v2821 = vsel %vm2734, %v2819, %v2820
        %v2822 = vrot.slane %v1034, 1
        %v2823 = vrot.slane %v1322, 1
        %v2824 = vsel %vm2734, %v2822, %v2823
        %v2825 = vrot.slane %v1035, 1
        %v2826 = vrot.slane %v1323, 1
        %v2827 = vsel %vm2734, %v2825, %v2826
        %v2828 = vrot.slane %v1036, 1
        %v2829 = vrot.slane %v1324, 1
        %v2830 = vsel %vm2734, %v2828, %v2829
        %v2831 = vrot.slane %v1037, 1
        %v2832 = vrot.slane %v1325, 1
        %v2833 = vsel %vm2734, %v2831, %v2832
        %v2834 = vrot.slane %v1038, 1
        %v2835 = vrot.slane %v1326, 1
        %v2836 = vsel %vm2734, %v2834, %v2835
        %v2837 = vrot.slane %v1039, 1
        %v2838 = vrot.slane %v1327, 1
        %v2839 = vsel %vm2734, %v2837, %v2838
        %v2840 = vrot.slane %v1040, 1
        %v2841 = vrot.slane %v1328, 1
        %v2842 = vsel %vm2734, %v2840, %v2841
        %v2843 = vrot.slane %v1041, 1
        %v2844 = vrot.slane %v1329, 1
        %v2845 = vsel %vm2734, %v2843, %v2844
        %v2846 = vrot.slane %v1042, 1
        %v2847 = vrot.slane %v1330, 1
        %v2848 = vsel %vm2734, %v2846, %v2847
        %v2849 = vrot.slane %v1043, 1
        %v2850 = vrot.slane %v1331, 1
        %v2851 = vsel %vm2734, %v2849, %v2850
        %v2852 = vrot.slane %v1044, 1
        %v2853 = vrot.slane %v1332, 1
        %v2854 = vsel %vm2734, %v2852, %v2853
        %v2855 = vrot.slane %v1045, 1
        %v2856 = vrot.slane %v1333, 1
        %v2857 = vsel %vm2734, %v2855, %v2856
        %v2858 = vrot.slane %v1046, 1
        %v2859 = vrot.slane %v1334, 1
        %v2860 = vsel %vm2734, %v2858, %v2859
        %v2861 = vrot.slane %v1047, 1
        %v2862 = vrot.slane %v1335, 1
        %v2863 = vsel %vm2734, %v2861, %v2862
        %v2864 = vrot.slane %v1048, 1
        %v2865 = vrot.slane %v1336, 1
        %v2866 = vsel %vm2734, %v2864, %v2865
        %v2867 = vrot.slane %v1049, 1
        %v2868 = vrot.slane %v1337, 1
        %v2869 = vsel %vm2734, %v2867, %v2868
        %v2870 = vrot.slane %v1050, 1
        %v2871 = vrot.slane %v1338, 1
        %v2872 = vsel %vm2734, %v2870, %v2871
        %v2873 = vrot.slane %v1051, 1
        %v2874 = vrot.slane %v1339, 1
        %v2875 = vsel %vm2734, %v2873, %v2874
        %v2876 = vrot.slane %v1052, 1
        %v2877 = vrot.slane %v1340, 1
        %v2878 = vsel %vm2734, %v2876, %v2877
        %v2879 = vrot.slane %v1053, 1
        %v2880 = vrot.slane %v1341, 1
        %v2881 = vsel %vm2734, %v2879, %v2880
        %v2882 = vrot.slane %v1054, 1
        %v2883 = vrot.slane %v1342, 1
        %v2884 = vsel %vm2734, %v2882, %v2883
        %v2885 = vrot.slane %v1055, 1
        %v2886 = vrot.slane %v1343, 1
        %v2887 = vsel %vm2734, %v2885, %v2886
        %v2888 = vrot.slane %v1056, 1
        %v2889 = vrot.slane %v1344, 1
        %v2890 = vsel %vm2734, %v2888, %v2889
        %v2891 = vrot.slane %v1057, 1
        %v2892 = vrot.slane %v1345, 1
        %v2893 = vsel %vm2734, %v2891, %v2892
        %v2894 = vrot.slane %v1058, 1
        %v2895 = vrot.slane %v1346, 1
        %v2896 = vsel %vm2734, %v2894, %v2895
        %v2897 = vrot.slane %v1059, 1
        %v2898 = vrot.slane %v1347, 1
        %v2899 = vsel %vm2734, %v2897, %v2898
        %v2900 = vrot.slane %v1060, 1
        %v2901 = vrot.slane %v1348, 1
        %v2902 = vsel %vm2734, %v2900, %v2901
        %v2903 = vrot.slane %v1061, 1
        %v2904 = vrot.slane %v1349, 1
        %v2905 = vsel %vm2734, %v2903, %v2904
        %v2906 = vrot.slane %v1062, 1
        %v2907 = vrot.slane %v1350, 1
        %v2908 = vsel %vm2734, %v2906, %v2907
        %v2909 = vrot.slane %v1063, 1
        %v2910 = vrot.slane %v1351, 1
        %v2911 = vsel %vm2734, %v2909, %v2910
        %v2912 = vrot.slane %v1064, 1
        %v2913 = vrot.slane %v1352, 1
        %v2914 = vsel %vm2734, %v2912, %v2913
        %v2915 = vrot.slane %v1065, 1
        %v2916 = vrot.slane %v1353, 1
        %v2917 = vsel %vm2734, %v2915, %v2916
        %v2918 = vrot.slane %v1066, 1
        %v2919 = vrot.slane %v1354, 1
        %v2920 = vsel %vm2734, %v2918, %v2919
        %v2921 = vrot.slane %v1067, 1
        %v2922 = vrot.slane %v1355, 1
        %v2923 = vsel %vm2734, %v2921, %v2922
        %v2924 = vrot.slane %v1068, 1
        %v2925 = vrot.slane %v1356, 1
        %v2926 = vsel %vm2734, %v2924, %v2925
        %v2927 = vrot.slane %v1069, 1
        %v2928 = vrot.slane %v1357, 1
        %v2929 = vsel %vm2734, %v2927, %v2928
        %v2930 = vrot.slane %v1070, 1
        %v2931 = vrot.slane %v1358, 1
        %v2932 = vsel %vm2734, %v2930, %v2931
        %v2933 = vrot.slane %v1071, 1
        %v2934 = vrot.slane %v1359, 1
        %v2935 = vsel %vm2734, %v2933, %v2934
        %v2936 = vrot.slane %v1072, 1
        %v2937 = vrot.slane %v1360, 1
        %v2938 = vsel %vm2734, %v2936, %v2937
        %v2939 = vrot.slane %v1073, 1
        %v2940 = vrot.slane %v1361, 1
        %v2941 = vsel %vm2734, %v2939, %v2940
        %v2942 = vrot.slane %v1074, 1
        %v2943 = vrot.slane %v1362, 1
        %v2944 = vsel %vm2734, %v2942, %v2943
        %v2945 = vrot.slane %v1075, 1
        %v2946 = vrot.slane %v1363, 1
        %v2947 = vsel %vm2734, %v2945, %v2946
        %v2948 = vrot.slane %v1076, 1
        %v2949 = vrot.slane %v1364, 1
        %v2950 = vsel %vm2734, %v2948, %v2949
        %v2951 = vrot.slane %v1077, 1
        %v2952 = vrot.slane %v1365, 1
        %v2953 = vsel %vm2734, %v2951, %v2952
        %v2954 = vrot.slane %v1078, 1
        %v2955 = vrot.slane %v1366, 1
        %v2956 = vsel %vm2734, %v2954, %v2955
        %v2957 = vrot.slane %v1079, 1
        %v2958 = vrot.slane %v1367, 1
        %v2959 = vsel %vm2734, %v2957, %v2958
        %v2960 = vrot.slane %v1080, 1
        %v2961 = vrot.slane %v1368, 1
        %v2962 = vsel %vm2734, %v2960, %v2961
        %v2963 = vrot.slane %v1081, 1
        %v2964 = vrot.slane %v1369, 1
        %v2965 = vsel %vm2734, %v2963, %v2964
        %v2966 = vrot.slane %v1082, 1
        %v2967 = vrot.slane %v1370, 1
        %v2968 = vsel %vm2734, %v2966, %v2967
        %v2969 = vrot.slane %v1083, 1
        %v2970 = vrot.slane %v1371, 1
        %v2971 = vsel %vm2734, %v2969, %v2970
        %v2972 = vrot.slane %v1084, 1
        %v2973 = vrot.slane %v1372, 1
        %v2974 = vsel %vm2734, %v2972, %v2973
        %v2975 = vrot.slane %v1085, 1
        %v2976 = vrot.slane %v1373, 1
        %v2977 = vsel %vm2734, %v2975, %v2976
        %v2978 = vrot.slane %v1086, 1
        %v2979 = vrot.slane %v1374, 1
        %v2980 = vsel %vm2734, %v2978, %v2979
        %v2981 = vrot.slane %v1087, 1
        %v2982 = vrot.slane %v1375, 1
        %v2983 = vsel %vm2734, %v2981, %v2982
        %v2984 = vrot.slane %v1088, 1
        %v2985 = vrot.slane %v1376, 1
        %v2986 = vsel %vm2734, %v2984, %v2985
        %v2987 = vrot.slane %v1089, 1
        %v2988 = vrot.slane %v1377, 1
        %v2989 = vsel %vm2734, %v2987, %v2988
        %v2990 = vrot.slane %v1090, 1
        %v2991 = vrot.slane %v1378, 1
        %v2992 = vsel %vm2734, %v2990, %v2991
        %v2993 = vrot.slane %v1091, 1
        %v2994 = vrot.slane %v1379, 1
        %v2995 = vsel %vm2734, %v2993, %v2994
        %v2996 = vrot.slane %v1092, 1
        %v2997 = vrot.slane %v1380, 1
        %v2998 = vsel %vm2734, %v2996, %v2997
        %v2999 = vrot.slane %v1093, 1
        %v3000 = vrot.slane %v1381, 1
        %v3001 = vsel %vm2734, %v2999, %v3000
        %v3002 = vrot.slane %v1094, 1
        %v3003 = vrot.slane %v1382, 1
        %v3004 = vsel %vm2734, %v3002, %v3003
        %v3005 = vrot.slane %v1095, 1
        %v3006 = vrot.slane %v1383, 1
        %v3007 = vsel %vm2734, %v3005, %v3006
        %v3008 = vrot.slane %v1096, 1
        %v3009 = vrot.slane %v1384, 1
        %v3010 = vsel %vm2734, %v3008, %v3009
        %v3011 = vrot.slane %v1097, 1
        %v3012 = vrot.slane %v1385, 1
        %v3013 = vsel %vm2734, %v3011, %v3012
        %v3014 = vrot.slane %v1098, 1
        %v3015 = vrot.slane %v1386, 1
        %v3016 = vsel %vm2734, %v3014, %v3015
        %v3017 = vrot.slane %v1099, 1
        %v3018 = vrot.slane %v1387, 1
        %v3019 = vsel %vm2734, %v3017, %v3018
        %v3020 = vrot.slane %v1100, 1
        %v3021 = vrot.slane %v1388, 1
        %v3022 = vsel %vm2734, %v3020, %v3021
        %3023 = vrot.lane.b32.xlu0 %v2737, 16
        %v3024 = vpop.permute.xlu0 %3023
        %3025 = vrot.lane.b32.xlu0 %v2740, 16
        %v3026 = vpop.permute.xlu0 %3025
        %3027 = vrot.lane.b32.xlu0 %v2743, 16
        %v3028 = vpop.permute.xlu0 %3027
        %3029 = vrot.lane.b32.xlu0 %v2746, 16
        %v3030 = vpop.permute.xlu0 %3029
        %3031 = vrot.lane.b32.xlu0 %v2749, 16
        %v3032 = vpop.permute.xlu0 %3031
        %3033 = vrot.lane.b32.xlu0 %v2752, 16
        %v3034 = vpop.permute.xlu0 %3033
        %3035 = vrot.lane.b32.xlu0 %v2755, 16
        %v3036 = vpop.permute.xlu0 %3035
        %3037 = vrot.lane.b32.xlu0 %v2758, 16
        %v3038 = vpop.permute.xlu0 %3037
        %3039 = vrot.lane.b32.xlu0 %v2761, 16
        %v3040 = vpop.permute.xlu0 %3039
        %3041 = vrot.lane.b32.xlu0 %v2764, 16
        %v3042 = vpop.permute.xlu0 %3041
        %3043 = vrot.lane.b32.xlu0 %v2767, 16
        %v3044 = vpop.permute.xlu0 %3043
        %3045 = vrot.lane.b32.xlu0 %v2770, 16
        %v3046 = vpop.permute.xlu0 %3045
        %3047 = vrot.lane.b32.xlu0 %v2773, 16
        %v3048 = vpop.permute.xlu0 %3047
        %3049 = vrot.lane.b32.xlu0 %v2776, 16
        %v3050 = vpop.permute.xlu0 %3049
        %3051 = vrot.lane.b32.xlu0 %v2779, 16
        %v3052 = vpop.permute.xlu0 %3051
        %3053 = vrot.lane.b32.xlu0 %v2782, 16
        %v3054 = vpop.permute.xlu0 %3053
        %3055 = vrot.lane.b32.xlu0 %v2785, 16
        %v3056 = vpop.permute.xlu0 %3055
        %3057 = vrot.lane.b32.xlu0 %v2788, 16
        %v3058 = vpop.permute.xlu0 %3057
        %3059 = vrot.lane.b32.xlu0 %v2791, 16
        %v3060 = vpop.permute.xlu0 %3059
        %3061 = vrot.lane.b32.xlu0 %v2794, 16
        %v3062 = vpop.permute.xlu0 %3061
        %3063 = vrot.lane.b32.xlu0 %v2797, 16
        %v3064 = vpop.permute.xlu0 %3063
        %3065 = vrot.lane.b32.xlu0 %v2800, 16
        %v3066 = vpop.permute.xlu0 %3065
        %3067 = vrot.lane.b32.xlu0 %v2803, 16
        %v3068 = vpop.permute.xlu0 %3067
        %3069 = vrot.lane.b32.xlu0 %v2806, 16
        %v3070 = vpop.permute.xlu0 %3069
        %3071 = vrot.lane.b32.xlu0 %v2809, 16
        %v3072 = vpop.permute.xlu0 %3071
        %3073 = vrot.lane.b32.xlu0 %v2812, 16
        %v3074 = vpop.permute.xlu0 %3073
        %3075 = vrot.lane.b32.xlu0 %v2815, 16
        %v3076 = vpop.permute.xlu0 %3075
        %3077 = vrot.lane.b32.xlu0 %v2818, 16
        %v3078 = vpop.permute.xlu0 %3077
        %3079 = vrot.lane.b32.xlu0 %v2821, 16
        %v3080 = vpop.permute.xlu0 %3079
        %3081 = vrot.lane.b32.xlu0 %v2824, 16
        %v3082 = vpop.permute.xlu0 %3081
        %3083 = vrot.lane.b32.xlu0 %v2827, 16
        %v3084 = vpop.permute.xlu0 %3083
        %3085 = vrot.lane.b32.xlu0 %v2830, 16
        %v3086 = vpop.permute.xlu0 %3085
        %3087 = vrot.lane.b32.xlu0 %v2833, 16
        %v3088 = vpop.permute.xlu0 %3087
        %3089 = vrot.lane.b32.xlu0 %v2836, 16
        %v3090 = vpop.permute.xlu0 %3089
        %3091 = vrot.lane.b32.xlu0 %v2839, 16
        %v3092 = vpop.permute.xlu0 %3091
        %3093 = vrot.lane.b32.xlu0 %v2842, 16
        %v3094 = vpop.permute.xlu0 %3093
        %3095 = vrot.lane.b32.xlu0 %v2845, 16
        %v3096 = vpop.permute.xlu0 %3095
        %3097 = vrot.lane.b32.xlu0 %v2848, 16
        %v3098 = vpop.permute.xlu0 %3097
        %3099 = vrot.lane.b32.xlu0 %v2851, 16
        %v3100 = vpop.permute.xlu0 %3099
        %3101 = vrot.lane.b32.xlu0 %v2854, 16
        %v3102 = vpop.permute.xlu0 %3101
        %3103 = vrot.lane.b32.xlu0 %v2857, 16
        %v3104 = vpop.permute.xlu0 %3103
        %3105 = vrot.lane.b32.xlu0 %v2860, 16
        %v3106 = vpop.permute.xlu0 %3105
        %3107 = vrot.lane.b32.xlu0 %v2863, 16
        %v3108 = vpop.permute.xlu0 %3107
        %3109 = vrot.lane.b32.xlu0 %v2866, 16
        %v3110 = vpop.permute.xlu0 %3109
        %3111 = vrot.lane.b32.xlu0 %v2869, 16
        %v3112 = vpop.permute.xlu0 %3111
        %3113 = vrot.lane.b32.xlu0 %v2872, 16
        %v3114 = vpop.permute.xlu0 %3113
        %3115 = vrot.lane.b32.xlu0 %v2875, 16
        %v3116 = vpop.permute.xlu0 %3115
        %3117 = vrot.lane.b32.xlu0 %v2878, 16
        %v3118 = vpop.permute.xlu0 %3117
        %3119 = vrot.lane.b32.xlu0 %v2881, 16
        %v3120 = vpop.permute.xlu0 %3119
        %3121 = vrot.lane.b32.xlu0 %v2884, 16
        %v3122 = vpop.permute.xlu0 %3121
        %3123 = vrot.lane.b32.xlu0 %v2887, 16
        %v3124 = vpop.permute.xlu0 %3123
        %3125 = vrot.lane.b32.xlu0 %v2890, 16
        %v3126 = vpop.permute.xlu0 %3125
        %3127 = vrot.lane.b32.xlu0 %v2893, 16
        %v3128 = vpop.permute.xlu0 %3127
        %3129 = vrot.lane.b32.xlu0 %v2896, 16
        %v3130 = vpop.permute.xlu0 %3129
        %3131 = vrot.lane.b32.xlu0 %v2899, 16
        %v3132 = vpop.permute.xlu0 %3131
        %3133 = vrot.lane.b32.xlu0 %v2902, 16
        %v3134 = vpop.permute.xlu0 %3133
        %3135 = vrot.lane.b32.xlu0 %v2905, 16
        %v3136 = vpop.permute.xlu0 %3135
        %3137 = vrot.lane.b32.xlu0 %v2908, 16
        %v3138 = vpop.permute.xlu0 %3137
        %3139 = vrot.lane.b32.xlu0 %v2911, 16
        %v3140 = vpop.permute.xlu0 %3139
        %3141 = vrot.lane.b32.xlu0 %v2914, 16
        %v3142 = vpop.permute.xlu0 %3141
        %3143 = vrot.lane.b32.xlu0 %v2917, 16
        %v3144 = vpop.permute.xlu0 %3143
        %3145 = vrot.lane.b32.xlu0 %v2920, 16
        %v3146 = vpop.permute.xlu0 %3145
        %3147 = vrot.lane.b32.xlu0 %v2923, 16
        %v3148 = vpop.permute.xlu0 %3147
        %3149 = vrot.lane.b32.xlu0 %v2926, 16
        %v3150 = vpop.permute.xlu0 %3149
        %3151 = vrot.lane.b32.xlu0 %v2929, 16
        %v3152 = vpop.permute.xlu0 %3151
        %3153 = vrot.lane.b32.xlu0 %v2932, 16
        %v3154 = vpop.permute.xlu0 %3153
        %3155 = vrot.lane.b32.xlu0 %v2935, 16
        %v3156 = vpop.permute.xlu0 %3155
        %3157 = vrot.lane.b32.xlu0 %v2938, 16
        %v3158 = vpop.permute.xlu0 %3157
        %3159 = vrot.lane.b32.xlu0 %v2941, 16
        %v3160 = vpop.permute.xlu0 %3159
        %3161 = vrot.lane.b32.xlu0 %v2944, 16
        %v3162 = vpop.permute.xlu0 %3161
        %3163 = vrot.lane.b32.xlu0 %v2947, 16
        %v3164 = vpop.permute.xlu0 %3163
        %3165 = vrot.lane.b32.xlu0 %v2950, 16
        %v3166 = vpop.permute.xlu0 %3165
        %3167 = vrot.lane.b32.xlu0 %v2953, 16
        %v3168 = vpop.permute.xlu0 %3167
        %3169 = vrot.lane.b32.xlu0 %v2956, 16
        %v3170 = vpop.permute.xlu0 %3169
        %3171 = vrot.lane.b32.xlu0 %v2959, 16
        %v3172 = vpop.permute.xlu0 %3171
        %3173 = vrot.lane.b32.xlu0 %v2962, 16
        %v3174 = vpop.permute.xlu0 %3173
        %3175 = vrot.lane.b32.xlu0 %v2965, 16
        %v3176 = vpop.permute.xlu0 %3175
        %3177 = vrot.lane.b32.xlu0 %v2968, 16
        %v3178 = vpop.permute.xlu0 %3177
        %3179 = vrot.lane.b32.xlu0 %v2971, 16
        %v3180 = vpop.permute.xlu0 %3179
        %3181 = vrot.lane.b32.xlu0 %v2974, 16
        %v3182 = vpop.permute.xlu0 %3181
        %3183 = vrot.lane.b32.xlu0 %v2977, 16
        %v3184 = vpop.permute.xlu0 %3183
        %3185 = vrot.lane.b32.xlu0 %v2980, 16
        %v3186 = vpop.permute.xlu0 %3185
        %3187 = vrot.lane.b32.xlu0 %v2983, 16
        %v3188 = vpop.permute.xlu0 %3187
        %3189 = vrot.lane.b32.xlu0 %v2986, 16
        %v3190 = vpop.permute.xlu0 %3189
        %3191 = vrot.lane.b32.xlu0 %v2989, 16
        %v3192 = vpop.permute.xlu0 %3191
        %3193 = vrot.lane.b32.xlu0 %v2992, 16
        %v3194 = vpop.permute.xlu0 %3193
        %3195 = vrot.lane.b32.xlu0 %v2995, 16
        %v3196 = vpop.permute.xlu0 %3195
        %3197 = vrot.lane.b32.xlu0 %v2998, 16
        %v3198 = vpop.permute.xlu0 %3197
        %3199 = vrot.lane.b32.xlu0 %v3001, 16
        %v3200 = vpop.permute.xlu0 %3199
        %3201 = vrot.lane.b32.xlu0 %v3004, 16
        %v3202 = vpop.permute.xlu0 %3201
        %3203 = vrot.lane.b32.xlu0 %v3007, 16
        %v3204 = vpop.permute.xlu0 %3203
        %3205 = vrot.lane.b32.xlu0 %v3010, 16
        %v3206 = vpop.permute.xlu0 %3205
        %3207 = vrot.lane.b32.xlu0 %v3013, 16
        %v3208 = vpop.permute.xlu0 %3207
        %3209 = vrot.lane.b32.xlu0 %v3016, 16
        %v3210 = vpop.permute.xlu0 %3209
        %3211 = vrot.lane.b32.xlu0 %v3019, 16
        %v3212 = vpop.permute.xlu0 %3211
        %3213 = vrot.lane.b32.xlu0 %v3022, 16
        %v3214 = vpop.permute.xlu0 %3213
        %v3227 = vunpack.c.l.b16 %v345
        %v3228 = vunpack.c.l.b16 %v346
        %v3229 = vunpack.c.l.b16 %v399
        %v3230 = vunpack.c.l.b16 %v400
        %v3231 = vunpack.c.l.b16 %v453
        %v3232 = vunpack.c.l.b16 %v454
        %v3233 = vunpack.c.l.b16 %v507
        %v3234 = vunpack.c.l.b16 %v508
        %v3235 = vunpack.c.l.b16 %v561
        %v3236 = vunpack.c.l.b16 %v562
        %v3237 = vunpack.c.l.b16 %v615
        %v3238 = vunpack.c.l.b16 %v616
        %v3239 = vpack.c.b16 %v3228, %v3227
        %v3240 = vpack.c.b16 %v3230, %v3229
        %v3241 = vpack.c.b16 %v3232, %v3231
        %v3242 = vpack.c.b16 %v3234, %v3233
        %v3243 = vpack.c.b16 %v3236, %v3235
        %v3244 = vpack.c.b16 %v3238, %v3237
        %3245 = vrot.lane.b32.xlu0 %v1006, 24
        %v3246 = vpop.permute.xlu0 %3245
        %3247 = vrot.lane.b32.xlu0 %v1007, 24
        %v3248 = vpop.permute.xlu0 %3247
        %3249 = vrot.lane.b32.xlu0 %v1008, 24
        %v3250 = vpop.permute.xlu0 %3249
        %3251 = vrot.lane.b32.xlu0 %v1009, 24
        %v3252 = vpop.permute.xlu0 %3251
        %3253 = vrot.lane.b32.xlu0 %v1010, 24
        %v3254 = vpop.permute.xlu0 %3253
        %3255 = vrot.lane.b32.xlu0 %v1011, 24
        %v3256 = vpop.permute.xlu0 %3255
        %3257 = vrot.lane.b32.xlu0 %v1012, 24
        %v3258 = vpop.permute.xlu0 %3257
        %3259 = vrot.lane.b32.xlu0 %v1013, 24
        %v3260 = vpop.permute.xlu0 %3259
        %3261 = vrot.lane.b32.xlu0 %v1014, 24
        %v3262 = vpop.permute.xlu0 %3261
        %3263 = vrot.lane.b32.xlu0 %v1015, 24
        %v3264 = vpop.permute.xlu0 %3263
        %3265 = vrot.lane.b32.xlu0 %v1016, 24
        %v3266 = vpop.permute.xlu0 %3265
        %3267 = vrot.lane.b32.xlu0 %v1017, 24
        %v3268 = vpop.permute.xlu0 %3267
        %3269 = vrot.lane.b32.xlu0 %v1018, 24
        %v3270 = vpop.permute.xlu0 %3269
        %3271 = vrot.lane.b32.xlu0 %v1019, 24
        %v3272 = vpop.permute.xlu0 %3271
        %3273 = vrot.lane.b32.xlu0 %v1020, 24
        %v3274 = vpop.permute.xlu0 %3273
        %3275 = vrot.lane.b32.xlu0 %v3239, 24
        %v3276 = vpop.permute.xlu0 %3275
        %3277 = vrot.lane.b32.xlu0 %v1022, 24
        %v3278 = vpop.permute.xlu0 %3277
        %3279 = vrot.lane.b32.xlu0 %v1023, 24
        %v3280 = vpop.permute.xlu0 %3279
        %3281 = vrot.lane.b32.xlu0 %v1024, 24
        %v3282 = vpop.permute.xlu0 %3281
        %3283 = vrot.lane.b32.xlu0 %v1025, 24
        %v3284 = vpop.permute.xlu0 %3283
        %3285 = vrot.lane.b32.xlu0 %v1026, 24
        %v3286 = vpop.permute.xlu0 %3285
        %3287 = vrot.lane.b32.xlu0 %v1027, 24
        %v3288 = vpop.permute.xlu0 %3287
        %3289 = vrot.lane.b32.xlu0 %v1028, 24
        %v3290 = vpop.permute.xlu0 %3289
        %3291 = vrot.lane.b32.xlu0 %v1029, 24
        %v3292 = vpop.permute.xlu0 %3291
        %3293 = vrot.lane.b32.xlu0 %v1030, 24
        %v3294 = vpop.permute.xlu0 %3293
        %3295 = vrot.lane.b32.xlu0 %v1031, 24
        %v3296 = vpop.permute.xlu0 %3295
        %3297 = vrot.lane.b32.xlu0 %v1032, 24
        %v3298 = vpop.permute.xlu0 %3297
        %3299 = vrot.lane.b32.xlu0 %v1033, 24
        %v3300 = vpop.permute.xlu0 %3299
        %3301 = vrot.lane.b32.xlu0 %v1034, 24
        %v3302 = vpop.permute.xlu0 %3301
        %3303 = vrot.lane.b32.xlu0 %v1035, 24
        %v3304 = vpop.permute.xlu0 %3303
        %3305 = vrot.lane.b32.xlu0 %v1036, 24
        %v3306 = vpop.permute.xlu0 %3305
        %3307 = vrot.lane.b32.xlu0 %v3240, 24
        %v3308 = vpop.permute.xlu0 %3307
        %3309 = vrot.lane.b32.xlu0 %v1038, 24
        %v3310 = vpop.permute.xlu0 %3309
        %3311 = vrot.lane.b32.xlu0 %v1039, 24
        %v3312 = vpop.permute.xlu0 %3311
        %3313 = vrot.lane.b32.xlu0 %v1040, 24
        %v3314 = vpop.permute.xlu0 %3313
        %3315 = vrot.lane.b32.xlu0 %v1041, 24
        %v3316 = vpop.permute.xlu0 %3315
        %3317 = vrot.lane.b32.xlu0 %v1042, 24
        %v3318 = vpop.permute.xlu0 %3317
        %3319 = vrot.lane.b32.xlu0 %v1043, 24
        %v3320 = vpop.permute.xlu0 %3319
        %3321 = vrot.lane.b32.xlu0 %v1044, 24
        %v3322 = vpop.permute.xlu0 %3321
        %3323 = vrot.lane.b32.xlu0 %v1045, 24
        %v3324 = vpop.permute.xlu0 %3323
        %3325 = vrot.lane.b32.xlu0 %v1046, 24
        %v3326 = vpop.permute.xlu0 %3325
        %3327 = vrot.lane.b32.xlu0 %v1047, 24
        %v3328 = vpop.permute.xlu0 %3327
        %3329 = vrot.lane.b32.xlu0 %v1048, 24
        %v3330 = vpop.permute.xlu0 %3329
        %3331 = vrot.lane.b32.xlu0 %v1049, 24
        %v3332 = vpop.permute.xlu0 %3331
        %3333 = vrot.lane.b32.xlu0 %v1050, 24
        %v3334 = vpop.permute.xlu0 %3333
        %3335 = vrot.lane.b32.xlu0 %v1051, 24
        %v3336 = vpop.permute.xlu0 %3335
        %3337 = vrot.lane.b32.xlu0 %v1052, 24
        %v3338 = vpop.permute.xlu0 %3337
        %3339 = vrot.lane.b32.xlu0 %v3241, 24
        %v3340 = vpop.permute.xlu0 %3339
        %3341 = vrot.lane.b32.xlu0 %v1054, 24
        %v3342 = vpop.permute.xlu0 %3341
        %3343 = vrot.lane.b32.xlu0 %v1055, 24
        %v3344 = vpop.permute.xlu0 %3343
        %3345 = vrot.lane.b32.xlu0 %v1056, 24
        %v3346 = vpop.permute.xlu0 %3345
        %3347 = vrot.lane.b32.xlu0 %v1057, 24
        %v3348 = vpop.permute.xlu0 %3347
        %3349 = vrot.lane.b32.xlu0 %v1058, 24
        %v3350 = vpop.permute.xlu0 %3349
        %3351 = vrot.lane.b32.xlu0 %v1059, 24
        %v3352 = vpop.permute.xlu0 %3351
        %3353 = vrot.lane.b32.xlu0 %v1060, 24
        %v3354 = vpop.permute.xlu0 %3353
        %3355 = vrot.lane.b32.xlu0 %v1061, 24
        %v3356 = vpop.permute.xlu0 %3355
        %3357 = vrot.lane.b32.xlu0 %v1062, 24
        %v3358 = vpop.permute.xlu0 %3357
        %3359 = vrot.lane.b32.xlu0 %v1063, 24
        %v3360 = vpop.permute.xlu0 %3359
        %3361 = vrot.lane.b32.xlu0 %v1064, 24
        %v3362 = vpop.permute.xlu0 %3361
        %3363 = vrot.lane.b32.xlu0 %v1065, 24
        %v3364 = vpop.permute.xlu0 %3363
        %3365 = vrot.lane.b32.xlu0 %v1066, 24
        %v3366 = vpop.permute.xlu0 %3365
        %3367 = vrot.lane.b32.xlu0 %v1067, 24
        %v3368 = vpop.permute.xlu0 %3367
        %3369 = vrot.lane.b32.xlu0 %v1068, 24
        %v3370 = vpop.permute.xlu0 %3369
        %3371 = vrot.lane.b32.xlu0 %v3242, 24
        %v3372 = vpop.permute.xlu0 %3371
        %3373 = vrot.lane.b32.xlu0 %v1070, 24
        %v3374 = vpop.permute.xlu0 %3373
        %3375 = vrot.lane.b32.xlu0 %v1071, 24
        %v3376 = vpop.permute.xlu0 %3375
        %3377 = vrot.lane.b32.xlu0 %v1072, 24
        %v3378 = vpop.permute.xlu0 %3377
        %3379 = vrot.lane.b32.xlu0 %v1073, 24
        %v3380 = vpop.permute.xlu0 %3379
        %3381 = vrot.lane.b32.xlu0 %v1074, 24
        %v3382 = vpop.permute.xlu0 %3381
        %3383 = vrot.lane.b32.xlu0 %v1075, 24
        %v3384 = vpop.permute.xlu0 %3383
        %3385 = vrot.lane.b32.xlu0 %v1076, 24
        %v3386 = vpop.permute.xlu0 %3385
        %3387 = vrot.lane.b32.xlu0 %v1077, 24
        %v3388 = vpop.permute.xlu0 %3387
        %3389 = vrot.lane.b32.xlu0 %v1078, 24
        %v3390 = vpop.permute.xlu0 %3389
        %3391 = vrot.lane.b32.xlu0 %v1079, 24
        %v3392 = vpop.permute.xlu0 %3391
        %3393 = vrot.lane.b32.xlu0 %v1080, 24
        %v3394 = vpop.permute.xlu0 %3393
        %3395 = vrot.lane.b32.xlu0 %v1081, 24
        %v3396 = vpop.permute.xlu0 %3395
        %3397 = vrot.lane.b32.xlu0 %v1082, 24
        %v3398 = vpop.permute.xlu0 %3397
        %3399 = vrot.lane.b32.xlu0 %v1083, 24
        %v3400 = vpop.permute.xlu0 %3399
        %3401 = vrot.lane.b32.xlu0 %v1084, 24
        %v3402 = vpop.permute.xlu0 %3401
        %3403 = vrot.lane.b32.xlu0 %v3243, 24
        %v3404 = vpop.permute.xlu0 %3403
        %3405 = vrot.lane.b32.xlu0 %v1086, 24
        %v3406 = vpop.permute.xlu0 %3405
        %3407 = vrot.lane.b32.xlu0 %v1087, 24
        %v3408 = vpop.permute.xlu0 %3407
        %3409 = vrot.lane.b32.xlu0 %v1088, 24
        %v3410 = vpop.permute.xlu0 %3409
        %3411 = vrot.lane.b32.xlu0 %v1089, 24
        %v3412 = vpop.permute.xlu0 %3411
        %3413 = vrot.lane.b32.xlu0 %v1090, 24
        %v3414 = vpop.permute.xlu0 %3413
        %3415 = vrot.lane.b32.xlu0 %v1091, 24
        %v3416 = vpop.permute.xlu0 %3415
        %3417 = vrot.lane.b32.xlu0 %v1092, 24
        %v3418 = vpop.permute.xlu0 %3417
        %3419 = vrot.lane.b32.xlu0 %v1093, 24
        %v3420 = vpop.permute.xlu0 %3419
        %3421 = vrot.lane.b32.xlu0 %v1094, 24
        %v3422 = vpop.permute.xlu0 %3421
        %3423 = vrot.lane.b32.xlu0 %v1095, 24
        %v3424 = vpop.permute.xlu0 %3423
        %3425 = vrot.lane.b32.xlu0 %v1096, 24
        %v3426 = vpop.permute.xlu0 %3425
        %3427 = vrot.lane.b32.xlu0 %v1097, 24
        %v3428 = vpop.permute.xlu0 %3427
        %3429 = vrot.lane.b32.xlu0 %v1098, 24
        %v3430 = vpop.permute.xlu0 %3429
        %3431 = vrot.lane.b32.xlu0 %v1099, 24
        %v3432 = vpop.permute.xlu0 %3431
        %3433 = vrot.lane.b32.xlu0 %v1100, 24
        %v3434 = vpop.permute.xlu0 %3433
        %3435 = vrot.lane.b32.xlu0 %v3244, 24
        %v3436 = vpop.permute.xlu0 %3435
        %v3443 = vunpack.c.l.b16 %v347
        %v3444 = vunpack.c.l.b16 %v401
        %v3445 = vunpack.c.l.b16 %v455
        %v3446 = vunpack.c.l.b16 %v509
        %v3447 = vunpack.c.l.b16 %v563
        %v3448 = vunpack.c.l.b16 %v617
        %v3449 = vpack.c.b16 %v3443, %v3443
        %v3450 = vpack.c.b16 %v3444, %v3444
        %v3451 = vpack.c.b16 %v3445, %v3445
        %v3452 = vpack.c.b16 %v3446, %v3446
        %v3453 = vpack.c.b16 %v3447, %v3447
        %v3454 = vpack.c.b16 %v3448, %v3448
        %v3456 = vshrl.u32 %v3239, 16
        %v3458 = vshll.u32 %v3239, 16
        %v3460 = vrot.slane %v3458, 1
        %v3461 = vor.u32 %v3456, %v3460
        %v3463 = vshll.u32 %v3449, 16
        %v3465 = vrot.slane %v3463, 1
        %v3466 = vsel %vm1389, %v3461, %v3465
        %v3468 = vshrl.u32 %v3240, 16
        %v3470 = vshll.u32 %v3240, 16
        %v3472 = vrot.slane %v3470, 1
        %v3473 = vor.u32 %v3468, %v3472
        %v3475 = vshll.u32 %v3450, 16
        %v3477 = vrot.slane %v3475, 1
        %v3478 = vsel %vm1389, %v3473, %v3477
        %v3480 = vshrl.u32 %v3241, 16
        %v3482 = vshll.u32 %v3241, 16
        %v3484 = vrot.slane %v3482, 1
        %v3485 = vor.u32 %v3480, %v3484
        %v3487 = vshll.u32 %v3451, 16
        %v3489 = vrot.slane %v3487, 1
        %v3490 = vsel %vm1389, %v3485, %v3489
        %v3492 = vshrl.u32 %v3242, 16
        %v3494 = vshll.u32 %v3242, 16
        %v3496 = vrot.slane %v3494, 1
        %v3497 = vor.u32 %v3492, %v3496
        %v3499 = vshll.u32 %v3452, 16
        %v3501 = vrot.slane %v3499, 1
        %v3502 = vsel %vm1389, %v3497, %v3501
        %v3504 = vshrl.u32 %v3243, 16
        %v3506 = vshll.u32 %v3243, 16
        %v3508 = vrot.slane %v3506, 1
        %v3509 = vor.u32 %v3504, %v3508
        %v3511 = vshll.u32 %v3453, 16
        %v3513 = vrot.slane %v3511, 1
        %v3514 = vsel %vm1389, %v3509, %v3513
        %v3516 = vshrl.u32 %v3244, 16
        %v3518 = vshll.u32 %v3244, 16
        %v3520 = vrot.slane %v3518, 1
        %v3521 = vor.u32 %v3516, %v3520
        %v3523 = vshll.u32 %v3454, 16
        %v3525 = vrot.slane %v3523, 1
        %v3526 = vsel %vm1389, %v3521, %v3525
        %3527 = vrot.lane.b32.xlu0 %v1413, 32
        %v3528 = vpop.permute.xlu0 %3527
        %3529 = vrot.lane.b32.xlu0 %v1425, 32
        %v3530 = vpop.permute.xlu0 %3529
        %3531 = vrot.lane.b32.xlu0 %v1437, 32
        %v3532 = vpop.permute.xlu0 %3531
        %3533 = vrot.lane.b32.xlu0 %v1449, 32
        %v3534 = vpop.permute.xlu0 %3533
        %3535 = vrot.lane.b32.xlu0 %v1461, 32
        %v3536 = vpop.permute.xlu0 %3535
        %3537 = vrot.lane.b32.xlu0 %v1473, 32
        %v3538 = vpop.permute.xlu0 %3537
        %3539 = vrot.lane.b32.xlu0 %v1485, 32
        %v3540 = vpop.permute.xlu0 %3539
        %3541 = vrot.lane.b32.xlu0 %v1497, 32
        %v3542 = vpop.permute.xlu0 %3541
        %3543 = vrot.lane.b32.xlu0 %v1509, 32
        %v3544 = vpop.permute.xlu0 %3543
        %3545 = vrot.lane.b32.xlu0 %v1521, 32
        %v3546 = vpop.permute.xlu0 %3545
        %3547 = vrot.lane.b32.xlu0 %v1533, 32
        %v3548 = vpop.permute.xlu0 %3547
        %3549 = vrot.lane.b32.xlu0 %v1545, 32
        %v3550 = vpop.permute.xlu0 %3549
        %3551 = vrot.lane.b32.xlu0 %v1557, 32
        %v3552 = vpop.permute.xlu0 %3551
        %3553 = vrot.lane.b32.xlu0 %v1569, 32
        %v3554 = vpop.permute.xlu0 %3553
        %3555 = vrot.lane.b32.xlu0 %v1581, 32
        %v3556 = vpop.permute.xlu0 %3555
        %3557 = vrot.lane.b32.xlu0 %v3466, 32
        %v3558 = vpop.permute.xlu0 %3557
        %3559 = vrot.lane.b32.xlu0 %v1605, 32
        %v3560 = vpop.permute.xlu0 %3559
        %3561 = vrot.lane.b32.xlu0 %v1617, 32
        %v3562 = vpop.permute.xlu0 %3561
        %3563 = vrot.lane.b32.xlu0 %v1629, 32
        %v3564 = vpop.permute.xlu0 %3563
        %3565 = vrot.lane.b32.xlu0 %v1641, 32
        %v3566 = vpop.permute.xlu0 %3565
        %3567 = vrot.lane.b32.xlu0 %v1653, 32
        %v3568 = vpop.permute.xlu0 %3567
        %3569 = vrot.lane.b32.xlu0 %v1665, 32
        %v3570 = vpop.permute.xlu0 %3569
        %3571 = vrot.lane.b32.xlu0 %v1677, 32
        %v3572 = vpop.permute.xlu0 %3571
        %3573 = vrot.lane.b32.xlu0 %v1689, 32
        %v3574 = vpop.permute.xlu0 %3573
        %3575 = vrot.lane.b32.xlu0 %v1701, 32
        %v3576 = vpop.permute.xlu0 %3575
        %3577 = vrot.lane.b32.xlu0 %v1713, 32
        %v3578 = vpop.permute.xlu0 %3577
        %3579 = vrot.lane.b32.xlu0 %v1725, 32
        %v3580 = vpop.permute.xlu0 %3579
        %3581 = vrot.lane.b32.xlu0 %v1737, 32
        %v3582 = vpop.permute.xlu0 %3581
        %3583 = vrot.lane.b32.xlu0 %v1749, 32
        %v3584 = vpop.permute.xlu0 %3583
        %3585 = vrot.lane.b32.xlu0 %v1761, 32
        %v3586 = vpop.permute.xlu0 %3585
        %3587 = vrot.lane.b32.xlu0 %v1773, 32
        %v3588 = vpop.permute.xlu0 %3587
        %3589 = vrot.lane.b32.xlu0 %v3478, 32
        %v3590 = vpop.permute.xlu0 %3589
        %3591 = vrot.lane.b32.xlu0 %v1797, 32
        %v3592 = vpop.permute.xlu0 %3591
        %3593 = vrot.lane.b32.xlu0 %v1809, 32
        %v3594 = vpop.permute.xlu0 %3593
        %3595 = vrot.lane.b32.xlu0 %v1821, 32
        %v3596 = vpop.permute.xlu0 %3595
        %3597 = vrot.lane.b32.xlu0 %v1833, 32
        %v3598 = vpop.permute.xlu0 %3597
        %3599 = vrot.lane.b32.xlu0 %v1845, 32
        %v3600 = vpop.permute.xlu0 %3599
        %3601 = vrot.lane.b32.xlu0 %v1857, 32
        %v3602 = vpop.permute.xlu0 %3601
        %3603 = vrot.lane.b32.xlu0 %v1869, 32
        %v3604 = vpop.permute.xlu0 %3603
        %3605 = vrot.lane.b32.xlu0 %v1881, 32
        %v3606 = vpop.permute.xlu0 %3605
        %3607 = vrot.lane.b32.xlu0 %v1893, 32
        %v3608 = vpop.permute.xlu0 %3607
        %3609 = vrot.lane.b32.xlu0 %v1905, 32
        %v3610 = vpop.permute.xlu0 %3609
        %3611 = vrot.lane.b32.xlu0 %v1917, 32
        %v3612 = vpop.permute.xlu0 %3611
        %3613 = vrot.lane.b32.xlu0 %v1929, 32
        %v3614 = vpop.permute.xlu0 %3613
        %3615 = vrot.lane.b32.xlu0 %v1941, 32
        %v3616 = vpop.permute.xlu0 %3615
        %3617 = vrot.lane.b32.xlu0 %v1953, 32
        %v3618 = vpop.permute.xlu0 %3617
        %3619 = vrot.lane.b32.xlu0 %v1965, 32
        %v3620 = vpop.permute.xlu0 %3619
        %3621 = vrot.lane.b32.xlu0 %v3490, 32
        %v3622 = vpop.permute.xlu0 %3621
        %3623 = vrot.lane.b32.xlu0 %v1989, 32
        %v3624 = vpop.permute.xlu0 %3623
        %3625 = vrot.lane.b32.xlu0 %v2001, 32
        %v3626 = vpop.permute.xlu0 %3625
        %3627 = vrot.lane.b32.xlu0 %v2013, 32
        %v3628 = vpop.permute.xlu0 %3627
        %3629 = vrot.lane.b32.xlu0 %v2025, 32
        %v3630 = vpop.permute.xlu0 %3629
        %3631 = vrot.lane.b32.xlu0 %v2037, 32
        %v3632 = vpop.permute.xlu0 %3631
        %3633 = vrot.lane.b32.xlu0 %v2049, 32
        %v3634 = vpop.permute.xlu0 %3633
        %3635 = vrot.lane.b32.xlu0 %v2061, 32
        %v3636 = vpop.permute.xlu0 %3635
        %3637 = vrot.lane.b32.xlu0 %v2073, 32
        %v3638 = vpop.permute.xlu0 %3637
        %3639 = vrot.lane.b32.xlu0 %v2085, 32
        %v3640 = vpop.permute.xlu0 %3639
        %3641 = vrot.lane.b32.xlu0 %v2097, 32
        %v3642 = vpop.permute.xlu0 %3641
        %3643 = vrot.lane.b32.xlu0 %v2109, 32
        %v3644 = vpop.permute.xlu0 %3643
        %3645 = vrot.lane.b32.xlu0 %v2121, 32
        %v3646 = vpop.permute.xlu0 %3645
        %3647 = vrot.lane.b32.xlu0 %v2133, 32
        %v3648 = vpop.permute.xlu0 %3647
        %3649 = vrot.lane.b32.xlu0 %v2145, 32
        %v3650 = vpop.permute.xlu0 %3649
        %3651 = vrot.lane.b32.xlu0 %v2157, 32
        %v3652 = vpop.permute.xlu0 %3651
        %3653 = vrot.lane.b32.xlu0 %v3502, 32
        %v3654 = vpop.permute.xlu0 %3653
        %3655 = vrot.lane.b32.xlu0 %v2181, 32
        %v3656 = vpop.permute.xlu0 %3655
        %3657 = vrot.lane.b32.xlu0 %v2193, 32
        %v3658 = vpop.permute.xlu0 %3657
        %3659 = vrot.lane.b32.xlu0 %v2205, 32
        %v3660 = vpop.permute.xlu0 %3659
        %3661 = vrot.lane.b32.xlu0 %v2217, 32
        %v3662 = vpop.permute.xlu0 %3661
        %3663 = vrot.lane.b32.xlu0 %v2229, 32
        %v3664 = vpop.permute.xlu0 %3663
        %3665 = vrot.lane.b32.xlu0 %v2241, 32
        %v3666 = vpop.permute.xlu0 %3665
        %3667 = vrot.lane.b32.xlu0 %v2253, 32
        %v3668 = vpop.permute.xlu0 %3667
        %3669 = vrot.lane.b32.xlu0 %v2265, 32
        %v3670 = vpop.permute.xlu0 %3669
        %3671 = vrot.lane.b32.xlu0 %v2277, 32
        %v3672 = vpop.permute.xlu0 %3671
        %3673 = vrot.lane.b32.xlu0 %v2289, 32
        %v3674 = vpop.permute.xlu0 %3673
        %3675 = vrot.lane.b32.xlu0 %v2301, 32
        %v3676 = vpop.permute.xlu0 %3675
        %3677 = vrot.lane.b32.xlu0 %v2313, 32
        %v3678 = vpop.permute.xlu0 %3677
        %3679 = vrot.lane.b32.xlu0 %v2325, 32
        %v3680 = vpop.permute.xlu0 %3679
        %3681 = vrot.lane.b32.xlu0 %v2337, 32
        %v3682 = vpop.permute.xlu0 %3681
        %3683 = vrot.lane.b32.xlu0 %v2349, 32
        %v3684 = vpop.permute.xlu0 %3683
        %3685 = vrot.lane.b32.xlu0 %v3514, 32
        %v3686 = vpop.permute.xlu0 %3685
        %3687 = vrot.lane.b32.xlu0 %v2373, 32
        %v3688 = vpop.permute.xlu0 %3687
        %3689 = vrot.lane.b32.xlu0 %v2385, 32
        %v3690 = vpop.permute.xlu0 %3689
        %3691 = vrot.lane.b32.xlu0 %v2397, 32
        %v3692 = vpop.permute.xlu0 %3691
        %3693 = vrot.lane.b32.xlu0 %v2409, 32
        %v3694 = vpop.permute.xlu0 %3693
        %3695 = vrot.lane.b32.xlu0 %v2421, 32
        %v3696 = vpop.permute.xlu0 %3695
        %3697 = vrot.lane.b32.xlu0 %v2433, 32
        %v3698 = vpop.permute.xlu0 %3697
        %3699 = vrot.lane.b32.xlu0 %v2445, 32
        %v3700 = vpop.permute.xlu0 %3699
        %3701 = vrot.lane.b32.xlu0 %v2457, 32
        %v3702 = vpop.permute.xlu0 %3701
        %3703 = vrot.lane.b32.xlu0 %v2469, 32
        %v3704 = vpop.permute.xlu0 %3703
        %3705 = vrot.lane.b32.xlu0 %v2481, 32
        %v3706 = vpop.permute.xlu0 %3705
        %3707 = vrot.lane.b32.xlu0 %v2493, 32
        %v3708 = vpop.permute.xlu0 %3707
        %3709 = vrot.lane.b32.xlu0 %v2505, 32
        %v3710 = vpop.permute.xlu0 %3709
        %3711 = vrot.lane.b32.xlu0 %v2517, 32
        %v3712 = vpop.permute.xlu0 %3711
        %3713 = vrot.lane.b32.xlu0 %v2529, 32
        %v3714 = vpop.permute.xlu0 %3713
        %3715 = vrot.lane.b32.xlu0 %v2541, 32
        %v3716 = vpop.permute.xlu0 %3715
        %3717 = vrot.lane.b32.xlu0 %v3526, 32
        %v3718 = vpop.permute.xlu0 %3717
        %v3719 = vrot.slane %v3239, 1
        %v3720 = vrot.slane %v3449, 1
        %v3721 = vsel %vm2734, %v3719, %v3720
        %v3722 = vrot.slane %v3240, 1
        %v3723 = vrot.slane %v3450, 1
        %v3724 = vsel %vm2734, %v3722, %v3723
        %v3725 = vrot.slane %v3241, 1
        %v3726 = vrot.slane %v3451, 1
        %v3727 = vsel %vm2734, %v3725, %v3726
        %v3728 = vrot.slane %v3242, 1
        %v3729 = vrot.slane %v3452, 1
        %v3730 = vsel %vm2734, %v3728, %v3729
        %v3731 = vrot.slane %v3243, 1
        %v3732 = vrot.slane %v3453, 1
        %v3733 = vsel %vm2734, %v3731, %v3732
        %v3734 = vrot.slane %v3244, 1
        %v3735 = vrot.slane %v3454, 1
        %v3736 = vsel %vm2734, %v3734, %v3735
        %3737 = vrot.lane.b32.xlu0 %v2740, 40
        %v3738 = vpop.permute.xlu0 %3737
        %3739 = vrot.lane.b32.xlu0 %v2743, 40
        %v3740 = vpop.permute.xlu0 %3739
        %3741 = vrot.lane.b32.xlu0 %v2746, 40
        %v3742 = vpop.permute.xlu0 %3741
        %3743 = vrot.lane.b32.xlu0 %v2749, 40
        %v3744 = vpop.permute.xlu0 %3743
        %3745 = vrot.lane.b32.xlu0 %v2752, 40
        %v3746 = vpop.permute.xlu0 %3745
        %3747 = vrot.lane.b32.xlu0 %v2755, 40
        %v3748 = vpop.permute.xlu0 %3747
        %3749 = vrot.lane.b32.xlu0 %v2758, 40
        %v3750 = vpop.permute.xlu0 %3749
        %3751 = vrot.lane.b32.xlu0 %v2761, 40
        %v3752 = vpop.permute.xlu0 %3751
        %3753 = vrot.lane.b32.xlu0 %v2764, 40
        %v3754 = vpop.permute.xlu0 %3753
        %3755 = vrot.lane.b32.xlu0 %v2767, 40
        %v3756 = vpop.permute.xlu0 %3755
        %3757 = vrot.lane.b32.xlu0 %v2770, 40
        %v3758 = vpop.permute.xlu0 %3757
        %3759 = vrot.lane.b32.xlu0 %v2773, 40
        %v3760 = vpop.permute.xlu0 %3759
        %3761 = vrot.lane.b32.xlu0 %v2776, 40
        %v3762 = vpop.permute.xlu0 %3761
        %3763 = vrot.lane.b32.xlu0 %v2779, 40
        %v3764 = vpop.permute.xlu0 %3763
        %3765 = vrot.lane.b32.xlu0 %v2782, 40
        %v3766 = vpop.permute.xlu0 %3765
        %3767 = vrot.lane.b32.xlu0 %v3721, 40
        %v3768 = vpop.permute.xlu0 %3767
        %3769 = vrot.lane.b32.xlu0 %v2788, 40
        %v3770 = vpop.permute.xlu0 %3769
        %3771 = vrot.lane.b32.xlu0 %v2791, 40
        %v3772 = vpop.permute.xlu0 %3771
        %3773 = vrot.lane.b32.xlu0 %v2794, 40
        %v3774 = vpop.permute.xlu0 %3773
        %3775 = vrot.lane.b32.xlu0 %v2797, 40
        %v3776 = vpop.permute.xlu0 %3775
        %3777 = vrot.lane.b32.xlu0 %v2800, 40
        %v3778 = vpop.permute.xlu0 %3777
        %3779 = vrot.lane.b32.xlu0 %v2803, 40
        %v3780 = vpop.permute.xlu0 %3779
        %3781 = vrot.lane.b32.xlu0 %v2806, 40
        %v3782 = vpop.permute.xlu0 %3781
        %3783 = vrot.lane.b32.xlu0 %v2809, 40
        %v3784 = vpop.permute.xlu0 %3783
        %3785 = vrot.lane.b32.xlu0 %v2812, 40
        %v3786 = vpop.permute.xlu0 %3785
        %3787 = vrot.lane.b32.xlu0 %v2815, 40
        %v3788 = vpop.permute.xlu0 %3787
        %3789 = vrot.lane.b32.xlu0 %v2818, 40
        %v3790 = vpop.permute.xlu0 %3789
        %3791 = vrot.lane.b32.xlu0 %v2821, 40
        %v3792 = vpop.permute.xlu0 %3791
        %3793 = vrot.lane.b32.xlu0 %v2824, 40
        %v3794 = vpop.permute.xlu0 %3793
        %3795 = vrot.lane.b32.xlu0 %v2827, 40
        %v3796 = vpop.permute.xlu0 %3795
        %3797 = vrot.lane.b32.xlu0 %v2830, 40
        %v3798 = vpop.permute.xlu0 %3797
        %3799 = vrot.lane.b32.xlu0 %v3724, 40
        %v3800 = vpop.permute.xlu0 %3799
        %3801 = vrot.lane.b32.xlu0 %v2836, 40
        %v3802 = vpop.permute.xlu0 %3801
        %3803 = vrot.lane.b32.xlu0 %v2839, 40
        %v3804 = vpop.permute.xlu0 %3803
        %3805 = vrot.lane.b32.xlu0 %v2842, 40
        %v3806 = vpop.permute.xlu0 %3805
        %3807 = vrot.lane.b32.xlu0 %v2845, 40
        %v3808 = vpop.permute.xlu0 %3807
        %3809 = vrot.lane.b32.xlu0 %v2848, 40
        %v3810 = vpop.permute.xlu0 %3809
        %3811 = vrot.lane.b32.xlu0 %v2851, 40
        %v3812 = vpop.permute.xlu0 %3811
        %3813 = vrot.lane.b32.xlu0 %v2854, 40
        %v3814 = vpop.permute.xlu0 %3813
        %3815 = vrot.lane.b32.xlu0 %v2857, 40
        %v3816 = vpop.permute.xlu0 %3815
        %3817 = vrot.lane.b32.xlu0 %v2860, 40
        %v3818 = vpop.permute.xlu0 %3817
        %3819 = vrot.lane.b32.xlu0 %v2863, 40
        %v3820 = vpop.permute.xlu0 %3819
        %3821 = vrot.lane.b32.xlu0 %v2866, 40
        %v3822 = vpop.permute.xlu0 %3821
        %3823 = vrot.lane.b32.xlu0 %v2869, 40
        %v3824 = vpop.permute.xlu0 %3823
        %3825 = vrot.lane.b32.xlu0 %v2872, 40
        %v3826 = vpop.permute.xlu0 %3825
        %3827 = vrot.lane.b32.xlu0 %v2875, 40
        %v3828 = vpop.permute.xlu0 %3827
        %3829 = vrot.lane.b32.xlu0 %v2878, 40
        %v3830 = vpop.permute.xlu0 %3829
        %3831 = vrot.lane.b32.xlu0 %v3727, 40
        %v3832 = vpop.permute.xlu0 %3831
        %3833 = vrot.lane.b32.xlu0 %v2884, 40
        %v3834 = vpop.permute.xlu0 %3833
        %3835 = vrot.lane.b32.xlu0 %v2887, 40
        %v3836 = vpop.permute.xlu0 %3835
        %3837 = vrot.lane.b32.xlu0 %v2890, 40
        %v3838 = vpop.permute.xlu0 %3837
        %3839 = vrot.lane.b32.xlu0 %v2893, 40
        %v3840 = vpop.permute.xlu0 %3839
        %3841 = vrot.lane.b32.xlu0 %v2896, 40
        %v3842 = vpop.permute.xlu0 %3841
        %3843 = vrot.lane.b32.xlu0 %v2899, 40
        %v3844 = vpop.permute.xlu0 %3843
        %3845 = vrot.lane.b32.xlu0 %v2902, 40
        %v3846 = vpop.permute.xlu0 %3845
        %3847 = vrot.lane.b32.xlu0 %v2905, 40
        %v3848 = vpop.permute.xlu0 %3847
        %3849 = vrot.lane.b32.xlu0 %v2908, 40
        %v3850 = vpop.permute.xlu0 %3849
        %3851 = vrot.lane.b32.xlu0 %v2911, 40
        %v3852 = vpop.permute.xlu0 %3851
        %3853 = vrot.lane.b32.xlu0 %v2914, 40
        %v3854 = vpop.permute.xlu0 %3853
        %3855 = vrot.lane.b32.xlu0 %v2917, 40
        %v3856 = vpop.permute.xlu0 %3855
        %3857 = vrot.lane.b32.xlu0 %v2920, 40
        %v3858 = vpop.permute.xlu0 %3857
        %3859 = vrot.lane.b32.xlu0 %v2923, 40
        %v3860 = vpop.permute.xlu0 %3859
        %3861 = vrot.lane.b32.xlu0 %v2926, 40
        %v3862 = vpop.permute.xlu0 %3861
        %3863 = vrot.lane.b32.xlu0 %v3730, 40
        %v3864 = vpop.permute.xlu0 %3863
        %3865 = vrot.lane.b32.xlu0 %v2932, 40
        %v3866 = vpop.permute.xlu0 %3865
        %3867 = vrot.lane.b32.xlu0 %v2935, 40
        %v3868 = vpop.permute.xlu0 %3867
        %3869 = vrot.lane.b32.xlu0 %v2938, 40
        %v3870 = vpop.permute.xlu0 %3869
        %3871 = vrot.lane.b32.xlu0 %v2941, 40
        %v3872 = vpop.permute.xlu0 %3871
        %3873 = vrot.lane.b32.xlu0 %v2944, 40
        %v3874 = vpop.permute.xlu0 %3873
        %3875 = vrot.lane.b32.xlu0 %v2947, 40
        %v3876 = vpop.permute.xlu0 %3875
        %3877 = vrot.lane.b32.xlu0 %v2950, 40
        %v3878 = vpop.permute.xlu0 %3877
        %3879 = vrot.lane.b32.xlu0 %v2953, 40
        %v3880 = vpop.permute.xlu0 %3879
        %3881 = vrot.lane.b32.xlu0 %v2956, 40
        %v3882 = vpop.permute.xlu0 %3881
        %3883 = vrot.lane.b32.xlu0 %v2959, 40
        %v3884 = vpop.permute.xlu0 %3883
        %3885 = vrot.lane.b32.xlu0 %v2962, 40
        %v3886 = vpop.permute.xlu0 %3885
        %3887 = vrot.lane.b32.xlu0 %v2965, 40
        %v3888 = vpop.permute.xlu0 %3887
        %3889 = vrot.lane.b32.xlu0 %v2968, 40
        %v3890 = vpop.permute.xlu0 %3889
        %3891 = vrot.lane.b32.xlu0 %v2971, 40
        %v3892 = vpop.permute.xlu0 %3891
        %3893 = vrot.lane.b32.xlu0 %v2974, 40
        %v3894 = vpop.permute.xlu0 %3893
        %3895 = vrot.lane.b32.xlu0 %v3733, 40
        %v3896 = vpop.permute.xlu0 %3895
        %3897 = vrot.lane.b32.xlu0 %v2980, 40
        %v3898 = vpop.permute.xlu0 %3897
        %3899 = vrot.lane.b32.xlu0 %v2983, 40
        %v3900 = vpop.permute.xlu0 %3899
        %3901 = vrot.lane.b32.xlu0 %v2986, 40
        %v3902 = vpop.permute.xlu0 %3901
        %3903 = vrot.lane.b32.xlu0 %v2989, 40
        %v3904 = vpop.permute.xlu0 %3903
        %3905 = vrot.lane.b32.xlu0 %v2992, 40
        %v3906 = vpop.permute.xlu0 %3905
        %3907 = vrot.lane.b32.xlu0 %v2995, 40
        %v3908 = vpop.permute.xlu0 %3907
        %3909 = vrot.lane.b32.xlu0 %v2998, 40
        %v3910 = vpop.permute.xlu0 %3909
        %3911 = vrot.lane.b32.xlu0 %v3001, 40
        %v3912 = vpop.permute.xlu0 %3911
        %3913 = vrot.lane.b32.xlu0 %v3004, 40
        %v3914 = vpop.permute.xlu0 %3913
        %3915 = vrot.lane.b32.xlu0 %v3007, 40
        %v3916 = vpop.permute.xlu0 %3915
        %3917 = vrot.lane.b32.xlu0 %v3010, 40
        %v3918 = vpop.permute.xlu0 %3917
        %3919 = vrot.lane.b32.xlu0 %v3013, 40
        %v3920 = vpop.permute.xlu0 %3919
        %3921 = vrot.lane.b32.xlu0 %v3016, 40
        %v3922 = vpop.permute.xlu0 %3921
        %3923 = vrot.lane.b32.xlu0 %v3019, 40
        %v3924 = vpop.permute.xlu0 %3923
        %3925 = vrot.lane.b32.xlu0 %v3022, 40
        %v3926 = vpop.permute.xlu0 %3925
        %3927 = vrot.lane.b32.xlu0 %v3736, 40
        %v3928 = vpop.permute.xlu0 %3927
        %v3941 = vunpack.c.l.b16 %v348
        %v3942 = vunpack.c.l.b16 %v349
        %v3943 = vunpack.c.l.b16 %v402
        %v3944 = vunpack.c.l.b16 %v403
        %v3945 = vunpack.c.l.b16 %v456
        %v3946 = vunpack.c.l.b16 %v457
        %v3947 = vunpack.c.l.b16 %v510
        %v3948 = vunpack.c.l.b16 %v511
        %v3949 = vunpack.c.l.b16 %v564
        %v3950 = vunpack.c.l.b16 %v565
        %v3951 = vunpack.c.l.b16 %v618
        %v3952 = vunpack.c.l.b16 %v619
        %v3953 = vpack.c.b16 %v3942, %v3941
        %v3954 = vpack.c.b16 %v3944, %v3943
        %v3955 = vpack.c.b16 %v3946, %v3945
        %v3956 = vpack.c.b16 %v3948, %v3947
        %v3957 = vpack.c.b16 %v3950, %v3949
        %v3958 = vpack.c.b16 %v3952, %v3951
        %3959 = vrot.lane.b32.xlu0 %v1007, 48
        %v3960 = vpop.permute.xlu0 %3959
        %3961 = vrot.lane.b32.xlu0 %v1008, 48
        %v3962 = vpop.permute.xlu0 %3961
        %3963 = vrot.lane.b32.xlu0 %v1009, 48
        %v3964 = vpop.permute.xlu0 %3963
        %3965 = vrot.lane.b32.xlu0 %v1010, 48
        %v3966 = vpop.permute.xlu0 %3965
        %3967 = vrot.lane.b32.xlu0 %v1011, 48
        %v3968 = vpop.permute.xlu0 %3967
        %3969 = vrot.lane.b32.xlu0 %v1012, 48
        %v3970 = vpop.permute.xlu0 %3969
        %3971 = vrot.lane.b32.xlu0 %v1013, 48
        %v3972 = vpop.permute.xlu0 %3971
        %3973 = vrot.lane.b32.xlu0 %v1014, 48
        %v3974 = vpop.permute.xlu0 %3973
        %3975 = vrot.lane.b32.xlu0 %v1015, 48
        %v3976 = vpop.permute.xlu0 %3975
        %3977 = vrot.lane.b32.xlu0 %v1016, 48
        %v3978 = vpop.permute.xlu0 %3977
        %3979 = vrot.lane.b32.xlu0 %v1017, 48
        %v3980 = vpop.permute.xlu0 %3979
        %3981 = vrot.lane.b32.xlu0 %v1018, 48
        %v3982 = vpop.permute.xlu0 %3981
        %3983 = vrot.lane.b32.xlu0 %v1019, 48
        %v3984 = vpop.permute.xlu0 %3983
        %3985 = vrot.lane.b32.xlu0 %v1020, 48
        %v3986 = vpop.permute.xlu0 %3985
        %3987 = vrot.lane.b32.xlu0 %v3239, 48
        %v3988 = vpop.permute.xlu0 %3987
        %3989 = vrot.lane.b32.xlu0 %v3953, 48
        %v3990 = vpop.permute.xlu0 %3989
        %3991 = vrot.lane.b32.xlu0 %v1023, 48
        %v3992 = vpop.permute.xlu0 %3991
        %3993 = vrot.lane.b32.xlu0 %v1024, 48
        %v3994 = vpop.permute.xlu0 %3993
        %3995 = vrot.lane.b32.xlu0 %v1025, 48
        %v3996 = vpop.permute.xlu0 %3995
        %3997 = vrot.lane.b32.xlu0 %v1026, 48
        %v3998 = vpop.permute.xlu0 %3997
        %3999 = vrot.lane.b32.xlu0 %v1027, 48
        %v4000 = vpop.permute.xlu0 %3999
        %4001 = vrot.lane.b32.xlu0 %v1028, 48
        %v4002 = vpop.permute.xlu0 %4001
        %4003 = vrot.lane.b32.xlu0 %v1029, 48
        %v4004 = vpop.permute.xlu0 %4003
        %4005 = vrot.lane.b32.xlu0 %v1030, 48
        %v4006 = vpop.permute.xlu0 %4005
        %4007 = vrot.lane.b32.xlu0 %v1031, 48
        %v4008 = vpop.permute.xlu0 %4007
        %4009 = vrot.lane.b32.xlu0 %v1032, 48
        %v4010 = vpop.permute.xlu0 %4009
        %4011 = vrot.lane.b32.xlu0 %v1033, 48
        %v4012 = vpop.permute.xlu0 %4011
        %4013 = vrot.lane.b32.xlu0 %v1034, 48
        %v4014 = vpop.permute.xlu0 %4013
        %4015 = vrot.lane.b32.xlu0 %v1035, 48
        %v4016 = vpop.permute.xlu0 %4015
        %4017 = vrot.lane.b32.xlu0 %v1036, 48
        %v4018 = vpop.permute.xlu0 %4017
        %4019 = vrot.lane.b32.xlu0 %v3240, 48
        %v4020 = vpop.permute.xlu0 %4019
        %4021 = vrot.lane.b32.xlu0 %v3954, 48
        %v4022 = vpop.permute.xlu0 %4021
        %4023 = vrot.lane.b32.xlu0 %v1039, 48
        %v4024 = vpop.permute.xlu0 %4023
        %4025 = vrot.lane.b32.xlu0 %v1040, 48
        %v4026 = vpop.permute.xlu0 %4025
        %4027 = vrot.lane.b32.xlu0 %v1041, 48
        %v4028 = vpop.permute.xlu0 %4027
        %4029 = vrot.lane.b32.xlu0 %v1042, 48
        %v4030 = vpop.permute.xlu0 %4029
        %4031 = vrot.lane.b32.xlu0 %v1043, 48
        %v4032 = vpop.permute.xlu0 %4031
        %4033 = vrot.lane.b32.xlu0 %v1044, 48
        %v4034 = vpop.permute.xlu0 %4033
        %4035 = vrot.lane.b32.xlu0 %v1045, 48
        %v4036 = vpop.permute.xlu0 %4035
        %4037 = vrot.lane.b32.xlu0 %v1046, 48
        %v4038 = vpop.permute.xlu0 %4037
        %4039 = vrot.lane.b32.xlu0 %v1047, 48
        %v4040 = vpop.permute.xlu0 %4039
        %4041 = vrot.lane.b32.xlu0 %v1048, 48
        %v4042 = vpop.permute.xlu0 %4041
        %4043 = vrot.lane.b32.xlu0 %v1049, 48
        %v4044 = vpop.permute.xlu0 %4043
        %4045 = vrot.lane.b32.xlu0 %v1050, 48
        %v4046 = vpop.permute.xlu0 %4045
        %4047 = vrot.lane.b32.xlu0 %v1051, 48
        %v4048 = vpop.permute.xlu0 %4047
        %4049 = vrot.lane.b32.xlu0 %v1052, 48
        %v4050 = vpop.permute.xlu0 %4049
        %4051 = vrot.lane.b32.xlu0 %v3241, 48
        %v4052 = vpop.permute.xlu0 %4051
        %4053 = vrot.lane.b32.xlu0 %v3955, 48
        %v4054 = vpop.permute.xlu0 %4053
        %4055 = vrot.lane.b32.xlu0 %v1055, 48
        %v4056 = vpop.permute.xlu0 %4055
        %4057 = vrot.lane.b32.xlu0 %v1056, 48
        %v4058 = vpop.permute.xlu0 %4057
        %4059 = vrot.lane.b32.xlu0 %v1057, 48
        %v4060 = vpop.permute.xlu0 %4059
        %4061 = vrot.lane.b32.xlu0 %v1058, 48
        %v4062 = vpop.permute.xlu0 %4061
        %4063 = vrot.lane.b32.xlu0 %v1059, 48
        %v4064 = vpop.permute.xlu0 %4063
        %4065 = vrot.lane.b32.xlu0 %v1060, 48
        %v4066 = vpop.permute.xlu0 %4065
        %4067 = vrot.lane.b32.xlu0 %v1061, 48
        %v4068 = vpop.permute.xlu0 %4067
        %4069 = vrot.lane.b32.xlu0 %v1062, 48
        %v4070 = vpop.permute.xlu0 %4069
        %4071 = vrot.lane.b32.xlu0 %v1063, 48
        %v4072 = vpop.permute.xlu0 %4071
        %4073 = vrot.lane.b32.xlu0 %v1064, 48
        %v4074 = vpop.permute.xlu0 %4073
        %4075 = vrot.lane.b32.xlu0 %v1065, 48
        %v4076 = vpop.permute.xlu0 %4075
        %4077 = vrot.lane.b32.xlu0 %v1066, 48
        %v4078 = vpop.permute.xlu0 %4077
        %4079 = vrot.lane.b32.xlu0 %v1067, 48
        %v4080 = vpop.permute.xlu0 %4079
        %4081 = vrot.lane.b32.xlu0 %v1068, 48
        %v4082 = vpop.permute.xlu0 %4081
        %4083 = vrot.lane.b32.xlu0 %v3242, 48
        %v4084 = vpop.permute.xlu0 %4083
        %4085 = vrot.lane.b32.xlu0 %v3956, 48
        %v4086 = vpop.permute.xlu0 %4085
        %4087 = vrot.lane.b32.xlu0 %v1071, 48
        %v4088 = vpop.permute.xlu0 %4087
        %4089 = vrot.lane.b32.xlu0 %v1072, 48
        %v4090 = vpop.permute.xlu0 %4089
        %4091 = vrot.lane.b32.xlu0 %v1073, 48
        %v4092 = vpop.permute.xlu0 %4091
        %4093 = vrot.lane.b32.xlu0 %v1074, 48
        %v4094 = vpop.permute.xlu0 %4093
        %4095 = vrot.lane.b32.xlu0 %v1075, 48
        %v4096 = vpop.permute.xlu0 %4095
        %4097 = vrot.lane.b32.xlu0 %v1076, 48
        %v4098 = vpop.permute.xlu0 %4097
        %4099 = vrot.lane.b32.xlu0 %v1077, 48
        %v4100 = vpop.permute.xlu0 %4099
        %4101 = vrot.lane.b32.xlu0 %v1078, 48
        %v4102 = vpop.permute.xlu0 %4101
        %4103 = vrot.lane.b32.xlu0 %v1079, 48
        %v4104 = vpop.permute.xlu0 %4103
        %4105 = vrot.lane.b32.xlu0 %v1080, 48
        %v4106 = vpop.permute.xlu0 %4105
        %4107 = vrot.lane.b32.xlu0 %v1081, 48
        %v4108 = vpop.permute.xlu0 %4107
        %4109 = vrot.lane.b32.xlu0 %v1082, 48
        %v4110 = vpop.permute.xlu0 %4109
        %4111 = vrot.lane.b32.xlu0 %v1083, 48
        %v4112 = vpop.permute.xlu0 %4111
        %4113 = vrot.lane.b32.xlu0 %v1084, 48
        %v4114 = vpop.permute.xlu0 %4113
        %4115 = vrot.lane.b32.xlu0 %v3243, 48
        %v4116 = vpop.permute.xlu0 %4115
        %4117 = vrot.lane.b32.xlu0 %v3957, 48
        %v4118 = vpop.permute.xlu0 %4117
        %4119 = vrot.lane.b32.xlu0 %v1087, 48
        %v4120 = vpop.permute.xlu0 %4119
        %4121 = vrot.lane.b32.xlu0 %v1088, 48
        %v4122 = vpop.permute.xlu0 %4121
        %4123 = vrot.lane.b32.xlu0 %v1089, 48
        %v4124 = vpop.permute.xlu0 %4123
        %4125 = vrot.lane.b32.xlu0 %v1090, 48
        %v4126 = vpop.permute.xlu0 %4125
        %4127 = vrot.lane.b32.xlu0 %v1091, 48
        %v4128 = vpop.permute.xlu0 %4127
        %4129 = vrot.lane.b32.xlu0 %v1092, 48
        %v4130 = vpop.permute.xlu0 %4129
        %4131 = vrot.lane.b32.xlu0 %v1093, 48
        %v4132 = vpop.permute.xlu0 %4131
        %4133 = vrot.lane.b32.xlu0 %v1094, 48
        %v4134 = vpop.permute.xlu0 %4133
        %4135 = vrot.lane.b32.xlu0 %v1095, 48
        %v4136 = vpop.permute.xlu0 %4135
        %4137 = vrot.lane.b32.xlu0 %v1096, 48
        %v4138 = vpop.permute.xlu0 %4137
        %4139 = vrot.lane.b32.xlu0 %v1097, 48
        %v4140 = vpop.permute.xlu0 %4139
        %4141 = vrot.lane.b32.xlu0 %v1098, 48
        %v4142 = vpop.permute.xlu0 %4141
        %4143 = vrot.lane.b32.xlu0 %v1099, 48
        %v4144 = vpop.permute.xlu0 %4143
        %4145 = vrot.lane.b32.xlu0 %v1100, 48
        %v4146 = vpop.permute.xlu0 %4145
        %4147 = vrot.lane.b32.xlu0 %v3244, 48
        %v4148 = vpop.permute.xlu0 %4147
        %4149 = vrot.lane.b32.xlu0 %v3958, 48
        %v4150 = vpop.permute.xlu0 %4149
        %v4157 = vunpack.c.l.b16 %v350
        %v4158 = vunpack.c.l.b16 %v404
        %v4159 = vunpack.c.l.b16 %v458
        %v4160 = vunpack.c.l.b16 %v512
        %v4161 = vunpack.c.l.b16 %v566
        %v4162 = vunpack.c.l.b16 %v620
        %v4163 = vpack.c.b16 %v4157, %v4157
        %v4164 = vpack.c.b16 %v4158, %v4158
        %v4165 = vpack.c.b16 %v4159, %v4159
        %v4166 = vpack.c.b16 %v4160, %v4160
        %v4167 = vpack.c.b16 %v4161, %v4161
        %v4168 = vpack.c.b16 %v4162, %v4162
        %v4170 = vshrl.u32 %v3953, 16
        %v4172 = vshll.u32 %v3953, 16
        %v4174 = vrot.slane %v4172, 1
        %v4175 = vor.u32 %v4170, %v4174
        %v4177 = vshll.u32 %v4163, 16
        %v4179 = vrot.slane %v4177, 1
        %v4180 = vsel %vm1389, %v4175, %v4179
        %v4182 = vshrl.u32 %v3954, 16
        %v4184 = vshll.u32 %v3954, 16
        %v4186 = vrot.slane %v4184, 1
        %v4187 = vor.u32 %v4182, %v4186
        %v4189 = vshll.u32 %v4164, 16
        %v4191 = vrot.slane %v4189, 1
        %v4192 = vsel %vm1389, %v4187, %v4191
        %v4194 = vshrl.u32 %v3955, 16
        %v4196 = vshll.u32 %v3955, 16
        %v4198 = vrot.slane %v4196, 1
        %v4199 = vor.u32 %v4194, %v4198
        %v4201 = vshll.u32 %v4165, 16
        %v4203 = vrot.slane %v4201, 1
        %v4204 = vsel %vm1389, %v4199, %v4203
        %v4206 = vshrl.u32 %v3956, 16
        %v4208 = vshll.u32 %v3956, 16
        %v4210 = vrot.slane %v4208, 1
        %v4211 = vor.u32 %v4206, %v4210
        %v4213 = vshll.u32 %v4166, 16
        %v4215 = vrot.slane %v4213, 1
        %v4216 = vsel %vm1389, %v4211, %v4215
        %v4218 = vshrl.u32 %v3957, 16
        %v4220 = vshll.u32 %v3957, 16
        %v4222 = vrot.slane %v4220, 1
        %v4223 = vor.u32 %v4218, %v4222
        %v4225 = vshll.u32 %v4167, 16
        %v4227 = vrot.slane %v4225, 1
        %v4228 = vsel %vm1389, %v4223, %v4227
        %v4230 = vshrl.u32 %v3958, 16
        %v4232 = vshll.u32 %v3958, 16
        %v4234 = vrot.slane %v4232, 1
        %v4235 = vor.u32 %v4230, %v4234
        %v4237 = vshll.u32 %v4168, 16
        %v4239 = vrot.slane %v4237, 1
        %v4240 = vsel %vm1389, %v4235, %v4239
        %4241 = vrot.lane.b32.xlu0 %v1425, 56
        %v4242 = vpop.permute.xlu0 %4241
        %4243 = vrot.lane.b32.xlu0 %v1437, 56
        %v4244 = vpop.permute.xlu0 %4243
        %4245 = vrot.lane.b32.xlu0 %v1449, 56
        %v4246 = vpop.permute.xlu0 %4245
        %4247 = vrot.lane.b32.xlu0 %v1461, 56
        %v4248 = vpop.permute.xlu0 %4247
        %4249 = vrot.lane.b32.xlu0 %v1473, 56
        %v4250 = vpop.permute.xlu0 %4249
        %4251 = vrot.lane.b32.xlu0 %v1485, 56
        %v4252 = vpop.permute.xlu0 %4251
        %4253 = vrot.lane.b32.xlu0 %v1497, 56
        %v4254 = vpop.permute.xlu0 %4253
        %4255 = vrot.lane.b32.xlu0 %v1509, 56
        %v4256 = vpop.permute.xlu0 %4255
        %4257 = vrot.lane.b32.xlu0 %v1521, 56
        %v4258 = vpop.permute.xlu0 %4257
        %4259 = vrot.lane.b32.xlu0 %v1533, 56
        %v4260 = vpop.permute.xlu0 %4259
        %4261 = vrot.lane.b32.xlu0 %v1545, 56
        %v4262 = vpop.permute.xlu0 %4261
        %4263 = vrot.lane.b32.xlu0 %v1557, 56
        %v4264 = vpop.permute.xlu0 %4263
        %4265 = vrot.lane.b32.xlu0 %v1569, 56
        %v4266 = vpop.permute.xlu0 %4265
        %4267 = vrot.lane.b32.xlu0 %v1581, 56
        %v4268 = vpop.permute.xlu0 %4267
        %4269 = vrot.lane.b32.xlu0 %v3466, 56
        %v4270 = vpop.permute.xlu0 %4269
        %4271 = vrot.lane.b32.xlu0 %v4180, 56
        %v4272 = vpop.permute.xlu0 %4271
        %4273 = vrot.lane.b32.xlu0 %v1617, 56
        %v4274 = vpop.permute.xlu0 %4273
        %4275 = vrot.lane.b32.xlu0 %v1629, 56
        %v4276 = vpop.permute.xlu0 %4275
        %4277 = vrot.lane.b32.xlu0 %v1641, 56
        %v4278 = vpop.permute.xlu0 %4277
        %4279 = vrot.lane.b32.xlu0 %v1653, 56
        %v4280 = vpop.permute.xlu0 %4279
        %4281 = vrot.lane.b32.xlu0 %v1665, 56
        %v4282 = vpop.permute.xlu0 %4281
        %4283 = vrot.lane.b32.xlu0 %v1677, 56
        %v4284 = vpop.permute.xlu0 %4283
        %4285 = vrot.lane.b32.xlu0 %v1689, 56
        %v4286 = vpop.permute.xlu0 %4285
        %4287 = vrot.lane.b32.xlu0 %v1701, 56
        %v4288 = vpop.permute.xlu0 %4287
        %4289 = vrot.lane.b32.xlu0 %v1713, 56
        %v4290 = vpop.permute.xlu0 %4289
        %4291 = vrot.lane.b32.xlu0 %v1725, 56
        %v4292 = vpop.permute.xlu0 %4291
        %4293 = vrot.lane.b32.xlu0 %v1737, 56
        %v4294 = vpop.permute.xlu0 %4293
        %4295 = vrot.lane.b32.xlu0 %v1749, 56
        %v4296 = vpop.permute.xlu0 %4295
        %4297 = vrot.lane.b32.xlu0 %v1761, 56
        %v4298 = vpop.permute.xlu0 %4297
        %4299 = vrot.lane.b32.xlu0 %v1773, 56
        %v4300 = vpop.permute.xlu0 %4299
        %4301 = vrot.lane.b32.xlu0 %v3478, 56
        %v4302 = vpop.permute.xlu0 %4301
        %4303 = vrot.lane.b32.xlu0 %v4192, 56
        %v4304 = vpop.permute.xlu0 %4303
        %4305 = vrot.lane.b32.xlu0 %v1809, 56
        %v4306 = vpop.permute.xlu0 %4305
        %4307 = vrot.lane.b32.xlu0 %v1821, 56
        %v4308 = vpop.permute.xlu0 %4307
        %4309 = vrot.lane.b32.xlu0 %v1833, 56
        %v4310 = vpop.permute.xlu0 %4309
        %4311 = vrot.lane.b32.xlu0 %v1845, 56
        %v4312 = vpop.permute.xlu0 %4311
        %4313 = vrot.lane.b32.xlu0 %v1857, 56
        %v4314 = vpop.permute.xlu0 %4313
        %4315 = vrot.lane.b32.xlu0 %v1869, 56
        %v4316 = vpop.permute.xlu0 %4315
        %4317 = vrot.lane.b32.xlu0 %v1881, 56
        %v4318 = vpop.permute.xlu0 %4317
        %4319 = vrot.lane.b32.xlu0 %v1893, 56
        %v4320 = vpop.permute.xlu0 %4319
        %4321 = vrot.lane.b32.xlu0 %v1905, 56
        %v4322 = vpop.permute.xlu0 %4321
        %4323 = vrot.lane.b32.xlu0 %v1917, 56
        %v4324 = vpop.permute.xlu0 %4323
        %4325 = vrot.lane.b32.xlu0 %v1929, 56
        %v4326 = vpop.permute.xlu0 %4325
        %4327 = vrot.lane.b32.xlu0 %v1941, 56
        %v4328 = vpop.permute.xlu0 %4327
        %4329 = vrot.lane.b32.xlu0 %v1953, 56
        %v4330 = vpop.permute.xlu0 %4329
        %4331 = vrot.lane.b32.xlu0 %v1965, 56
        %v4332 = vpop.permute.xlu0 %4331
        %4333 = vrot.lane.b32.xlu0 %v3490, 56
        %v4334 = vpop.permute.xlu0 %4333
        %4335 = vrot.lane.b32.xlu0 %v4204, 56
        %v4336 = vpop.permute.xlu0 %4335
        %4337 = vrot.lane.b32.xlu0 %v2001, 56
        %v4338 = vpop.permute.xlu0 %4337
        %4339 = vrot.lane.b32.xlu0 %v2013, 56
        %v4340 = vpop.permute.xlu0 %4339
        %4341 = vrot.lane.b32.xlu0 %v2025, 56
        %v4342 = vpop.permute.xlu0 %4341
        %4343 = vrot.lane.b32.xlu0 %v2037, 56
        %v4344 = vpop.permute.xlu0 %4343
        %4345 = vrot.lane.b32.xlu0 %v2049, 56
        %v4346 = vpop.permute.xlu0 %4345
        %4347 = vrot.lane.b32.xlu0 %v2061, 56
        %v4348 = vpop.permute.xlu0 %4347
        %4349 = vrot.lane.b32.xlu0 %v2073, 56
        %v4350 = vpop.permute.xlu0 %4349
        %4351 = vrot.lane.b32.xlu0 %v2085, 56
        %v4352 = vpop.permute.xlu0 %4351
        %4353 = vrot.lane.b32.xlu0 %v2097, 56
        %v4354 = vpop.permute.xlu0 %4353
        %4355 = vrot.lane.b32.xlu0 %v2109, 56
        %v4356 = vpop.permute.xlu0 %4355
        %4357 = vrot.lane.b32.xlu0 %v2121, 56
        %v4358 = vpop.permute.xlu0 %4357
        %4359 = vrot.lane.b32.xlu0 %v2133, 56
        %v4360 = vpop.permute.xlu0 %4359
        %4361 = vrot.lane.b32.xlu0 %v2145, 56
        %v4362 = vpop.permute.xlu0 %4361
        %4363 = vrot.lane.b32.xlu0 %v2157, 56
        %v4364 = vpop.permute.xlu0 %4363
        %4365 = vrot.lane.b32.xlu0 %v3502, 56
        %v4366 = vpop.permute.xlu0 %4365
        %4367 = vrot.lane.b32.xlu0 %v4216, 56
        %v4368 = vpop.permute.xlu0 %4367
        %4369 = vrot.lane.b32.xlu0 %v2193, 56
        %v4370 = vpop.permute.xlu0 %4369
        %4371 = vrot.lane.b32.xlu0 %v2205, 56
        %v4372 = vpop.permute.xlu0 %4371
        %4373 = vrot.lane.b32.xlu0 %v2217, 56
        %v4374 = vpop.permute.xlu0 %4373
        %4375 = vrot.lane.b32.xlu0 %v2229, 56
        %v4376 = vpop.permute.xlu0 %4375
        %4377 = vrot.lane.b32.xlu0 %v2241, 56
        %v4378 = vpop.permute.xlu0 %4377
        %4379 = vrot.lane.b32.xlu0 %v2253, 56
        %v4380 = vpop.permute.xlu0 %4379
        %4381 = vrot.lane.b32.xlu0 %v2265, 56
        %v4382 = vpop.permute.xlu0 %4381
        %4383 = vrot.lane.b32.xlu0 %v2277, 56
        %v4384 = vpop.permute.xlu0 %4383
        %4385 = vrot.lane.b32.xlu0 %v2289, 56
        %v4386 = vpop.permute.xlu0 %4385
        %4387 = vrot.lane.b32.xlu0 %v2301, 56
        %v4388 = vpop.permute.xlu0 %4387
        %4389 = vrot.lane.b32.xlu0 %v2313, 56
        %v4390 = vpop.permute.xlu0 %4389
        %4391 = vrot.lane.b32.xlu0 %v2325, 56
        %v4392 = vpop.permute.xlu0 %4391
        %4393 = vrot.lane.b32.xlu0 %v2337, 56
        %v4394 = vpop.permute.xlu0 %4393
        %4395 = vrot.lane.b32.xlu0 %v2349, 56
        %v4396 = vpop.permute.xlu0 %4395
        %4397 = vrot.lane.b32.xlu0 %v3514, 56
        %v4398 = vpop.permute.xlu0 %4397
        %4399 = vrot.lane.b32.xlu0 %v4228, 56
        %v4400 = vpop.permute.xlu0 %4399
        %4401 = vrot.lane.b32.xlu0 %v2385, 56
        %v4402 = vpop.permute.xlu0 %4401
        %4403 = vrot.lane.b32.xlu0 %v2397, 56
        %v4404 = vpop.permute.xlu0 %4403
        %4405 = vrot.lane.b32.xlu0 %v2409, 56
        %v4406 = vpop.permute.xlu0 %4405
        %4407 = vrot.lane.b32.xlu0 %v2421, 56
        %v4408 = vpop.permute.xlu0 %4407
        %4409 = vrot.lane.b32.xlu0 %v2433, 56
        %v4410 = vpop.permute.xlu0 %4409
        %4411 = vrot.lane.b32.xlu0 %v2445, 56
        %v4412 = vpop.permute.xlu0 %4411
        %4413 = vrot.lane.b32.xlu0 %v2457, 56
        %v4414 = vpop.permute.xlu0 %4413
        %4415 = vrot.lane.b32.xlu0 %v2469, 56
        %v4416 = vpop.permute.xlu0 %4415
        %4417 = vrot.lane.b32.xlu0 %v2481, 56
        %v4418 = vpop.permute.xlu0 %4417
        %4419 = vrot.lane.b32.xlu0 %v2493, 56
        %v4420 = vpop.permute.xlu0 %4419
        %4421 = vrot.lane.b32.xlu0 %v2505, 56
        %v4422 = vpop.permute.xlu0 %4421
        %4423 = vrot.lane.b32.xlu0 %v2517, 56
        %v4424 = vpop.permute.xlu0 %4423
        %4425 = vrot.lane.b32.xlu0 %v2529, 56
        %v4426 = vpop.permute.xlu0 %4425
        %4427 = vrot.lane.b32.xlu0 %v2541, 56
        %v4428 = vpop.permute.xlu0 %4427
        %4429 = vrot.lane.b32.xlu0 %v3526, 56
        %v4430 = vpop.permute.xlu0 %4429
        %4431 = vrot.lane.b32.xlu0 %v4240, 56
        %v4432 = vpop.permute.xlu0 %4431
        %v4433 = vrot.slane %v3953, 1
        %v4434 = vrot.slane %v4163, 1
        %v4435 = vsel %vm2734, %v4433, %v4434
        %v4436 = vrot.slane %v3954, 1
        %v4437 = vrot.slane %v4164, 1
        %v4438 = vsel %vm2734, %v4436, %v4437
        %v4439 = vrot.slane %v3955, 1
        %v4440 = vrot.slane %v4165, 1
        %v4441 = vsel %vm2734, %v4439, %v4440
        %v4442 = vrot.slane %v3956, 1
        %v4443 = vrot.slane %v4166, 1
        %v4444 = vsel %vm2734, %v4442, %v4443
        %v4445 = vrot.slane %v3957, 1
        %v4446 = vrot.slane %v4167, 1
        %v4447 = vsel %vm2734, %v4445, %v4446
        %v4448 = vrot.slane %v3958, 1
        %v4449 = vrot.slane %v4168, 1
        %v4450 = vsel %vm2734, %v4448, %v4449
        %4451 = vrot.lane.b32.xlu0 %v2743, 64
        %v4452 = vpop.permute.xlu0 %4451
        %4453 = vrot.lane.b32.xlu0 %v2746, 64
        %v4454 = vpop.permute.xlu0 %4453
        %4455 = vrot.lane.b32.xlu0 %v2749, 64
        %v4456 = vpop.permute.xlu0 %4455
        %4457 = vrot.lane.b32.xlu0 %v2752, 64
        %v4458 = vpop.permute.xlu0 %4457
        %4459 = vrot.lane.b32.xlu0 %v2755, 64
        %v4460 = vpop.permute.xlu0 %4459
        %4461 = vrot.lane.b32.xlu0 %v2758, 64
        %v4462 = vpop.permute.xlu0 %4461
        %4463 = vrot.lane.b32.xlu0 %v2761, 64
        %v4464 = vpop.permute.xlu0 %4463
        %4465 = vrot.lane.b32.xlu0 %v2764, 64
        %v4466 = vpop.permute.xlu0 %4465
        %4467 = vrot.lane.b32.xlu0 %v2767, 64
        %v4468 = vpop.permute.xlu0 %4467
        %4469 = vrot.lane.b32.xlu0 %v2770, 64
        %v4470 = vpop.permute.xlu0 %4469
        %4471 = vrot.lane.b32.xlu0 %v2773, 64
        %v4472 = vpop.permute.xlu0 %4471
        %4473 = vrot.lane.b32.xlu0 %v2776, 64
        %v4474 = vpop.permute.xlu0 %4473
        %4475 = vrot.lane.b32.xlu0 %v2779, 64
        %v4476 = vpop.permute.xlu0 %4475
        %4477 = vrot.lane.b32.xlu0 %v2782, 64
        %v4478 = vpop.permute.xlu0 %4477
        %4479 = vrot.lane.b32.xlu0 %v3721, 64
        %v4480 = vpop.permute.xlu0 %4479
        %4481 = vrot.lane.b32.xlu0 %v4435, 64
        %v4482 = vpop.permute.xlu0 %4481
        %4483 = vrot.lane.b32.xlu0 %v2791, 64
        %v4484 = vpop.permute.xlu0 %4483
        %4485 = vrot.lane.b32.xlu0 %v2794, 64
        %v4486 = vpop.permute.xlu0 %4485
        %4487 = vrot.lane.b32.xlu0 %v2797, 64
        %v4488 = vpop.permute.xlu0 %4487
        %4489 = vrot.lane.b32.xlu0 %v2800, 64
        %v4490 = vpop.permute.xlu0 %4489
        %4491 = vrot.lane.b32.xlu0 %v2803, 64
        %v4492 = vpop.permute.xlu0 %4491
        %4493 = vrot.lane.b32.xlu0 %v2806, 64
        %v4494 = vpop.permute.xlu0 %4493
        %4495 = vrot.lane.b32.xlu0 %v2809, 64
        %v4496 = vpop.permute.xlu0 %4495
        %4497 = vrot.lane.b32.xlu0 %v2812, 64
        %v4498 = vpop.permute.xlu0 %4497
        %4499 = vrot.lane.b32.xlu0 %v2815, 64
        %v4500 = vpop.permute.xlu0 %4499
        %4501 = vrot.lane.b32.xlu0 %v2818, 64
        %v4502 = vpop.permute.xlu0 %4501
        %4503 = vrot.lane.b32.xlu0 %v2821, 64
        %v4504 = vpop.permute.xlu0 %4503
        %4505 = vrot.lane.b32.xlu0 %v2824, 64
        %v4506 = vpop.permute.xlu0 %4505
        %4507 = vrot.lane.b32.xlu0 %v2827, 64
        %v4508 = vpop.permute.xlu0 %4507
        %4509 = vrot.lane.b32.xlu0 %v2830, 64
        %v4510 = vpop.permute.xlu0 %4509
        %4511 = vrot.lane.b32.xlu0 %v3724, 64
        %v4512 = vpop.permute.xlu0 %4511
        %4513 = vrot.lane.b32.xlu0 %v4438, 64
        %v4514 = vpop.permute.xlu0 %4513
        %4515 = vrot.lane.b32.xlu0 %v2839, 64
        %v4516 = vpop.permute.xlu0 %4515
        %4517 = vrot.lane.b32.xlu0 %v2842, 64
        %v4518 = vpop.permute.xlu0 %4517
        %4519 = vrot.lane.b32.xlu0 %v2845, 64
        %v4520 = vpop.permute.xlu0 %4519
        %4521 = vrot.lane.b32.xlu0 %v2848, 64
        %v4522 = vpop.permute.xlu0 %4521
        %4523 = vrot.lane.b32.xlu0 %v2851, 64
        %v4524 = vpop.permute.xlu0 %4523
        %4525 = vrot.lane.b32.xlu0 %v2854, 64
        %v4526 = vpop.permute.xlu0 %4525
        %4527 = vrot.lane.b32.xlu0 %v2857, 64
        %v4528 = vpop.permute.xlu0 %4527
        %4529 = vrot.lane.b32.xlu0 %v2860, 64
        %v4530 = vpop.permute.xlu0 %4529
        %4531 = vrot.lane.b32.xlu0 %v2863, 64
        %v4532 = vpop.permute.xlu0 %4531
        %4533 = vrot.lane.b32.xlu0 %v2866, 64
        %v4534 = vpop.permute.xlu0 %4533
        %4535 = vrot.lane.b32.xlu0 %v2869, 64
        %v4536 = vpop.permute.xlu0 %4535
        %4537 = vrot.lane.b32.xlu0 %v2872, 64
        %v4538 = vpop.permute.xlu0 %4537
        %4539 = vrot.lane.b32.xlu0 %v2875, 64
        %v4540 = vpop.permute.xlu0 %4539
        %4541 = vrot.lane.b32.xlu0 %v2878, 64
        %v4542 = vpop.permute.xlu0 %4541
        %4543 = vrot.lane.b32.xlu0 %v3727, 64
        %v4544 = vpop.permute.xlu0 %4543
        %4545 = vrot.lane.b32.xlu0 %v4441, 64
        %v4546 = vpop.permute.xlu0 %4545
        %4547 = vrot.lane.b32.xlu0 %v2887, 64
        %v4548 = vpop.permute.xlu0 %4547
        %4549 = vrot.lane.b32.xlu0 %v2890, 64
        %v4550 = vpop.permute.xlu0 %4549
        %4551 = vrot.lane.b32.xlu0 %v2893, 64
        %v4552 = vpop.permute.xlu0 %4551
        %4553 = vrot.lane.b32.xlu0 %v2896, 64
        %v4554 = vpop.permute.xlu0 %4553
        %4555 = vrot.lane.b32.xlu0 %v2899, 64
        %v4556 = vpop.permute.xlu0 %4555
        %4557 = vrot.lane.b32.xlu0 %v2902, 64
        %v4558 = vpop.permute.xlu0 %4557
        %4559 = vrot.lane.b32.xlu0 %v2905, 64
        %v4560 = vpop.permute.xlu0 %4559
        %4561 = vrot.lane.b32.xlu0 %v2908, 64
        %v4562 = vpop.permute.xlu0 %4561
        %4563 = vrot.lane.b32.xlu0 %v2911, 64
        %v4564 = vpop.permute.xlu0 %4563
        %4565 = vrot.lane.b32.xlu0 %v2914, 64
        %v4566 = vpop.permute.xlu0 %4565
        %4567 = vrot.lane.b32.xlu0 %v2917, 64
        %v4568 = vpop.permute.xlu0 %4567
        %4569 = vrot.lane.b32.xlu0 %v2920, 64
        %v4570 = vpop.permute.xlu0 %4569
        %4571 = vrot.lane.b32.xlu0 %v2923, 64
        %v4572 = vpop.permute.xlu0 %4571
        %4573 = vrot.lane.b32.xlu0 %v2926, 64
        %v4574 = vpop.permute.xlu0 %4573
        %4575 = vrot.lane.b32.xlu0 %v3730, 64
        %v4576 = vpop.permute.xlu0 %4575
        %4577 = vrot.lane.b32.xlu0 %v4444, 64
        %v4578 = vpop.permute.xlu0 %4577
        %4579 = vrot.lane.b32.xlu0 %v2935, 64
        %v4580 = vpop.permute.xlu0 %4579
        %4581 = vrot.lane.b32.xlu0 %v2938, 64
        %v4582 = vpop.permute.xlu0 %4581
        %4583 = vrot.lane.b32.xlu0 %v2941, 64
        %v4584 = vpop.permute.xlu0 %4583
        %4585 = vrot.lane.b32.xlu0 %v2944, 64
        %v4586 = vpop.permute.xlu0 %4585
        %4587 = vrot.lane.b32.xlu0 %v2947, 64
        %v4588 = vpop.permute.xlu0 %4587
        %4589 = vrot.lane.b32.xlu0 %v2950, 64
        %v4590 = vpop.permute.xlu0 %4589
        %4591 = vrot.lane.b32.xlu0 %v2953, 64
        %v4592 = vpop.permute.xlu0 %4591
        %4593 = vrot.lane.b32.xlu0 %v2956, 64
        %v4594 = vpop.permute.xlu0 %4593
        %4595 = vrot.lane.b32.xlu0 %v2959, 64
        %v4596 = vpop.permute.xlu0 %4595
        %4597 = vrot.lane.b32.xlu0 %v2962, 64
        %v4598 = vpop.permute.xlu0 %4597
        %4599 = vrot.lane.b32.xlu0 %v2965, 64
        %v4600 = vpop.permute.xlu0 %4599
        %4601 = vrot.lane.b32.xlu0 %v2968, 64
        %v4602 = vpop.permute.xlu0 %4601
        %4603 = vrot.lane.b32.xlu0 %v2971, 64
        %v4604 = vpop.permute.xlu0 %4603
        %4605 = vrot.lane.b32.xlu0 %v2974, 64
        %v4606 = vpop.permute.xlu0 %4605
        %4607 = vrot.lane.b32.xlu0 %v3733, 64
        %v4608 = vpop.permute.xlu0 %4607
        %4609 = vrot.lane.b32.xlu0 %v4447, 64
        %v4610 = vpop.permute.xlu0 %4609
        %4611 = vrot.lane.b32.xlu0 %v2983, 64
        %v4612 = vpop.permute.xlu0 %4611
        %4613 = vrot.lane.b32.xlu0 %v2986, 64
        %v4614 = vpop.permute.xlu0 %4613
        %4615 = vrot.lane.b32.xlu0 %v2989, 64
        %v4616 = vpop.permute.xlu0 %4615
        %4617 = vrot.lane.b32.xlu0 %v2992, 64
        %v4618 = vpop.permute.xlu0 %4617
        %4619 = vrot.lane.b32.xlu0 %v2995, 64
        %v4620 = vpop.permute.xlu0 %4619
        %4621 = vrot.lane.b32.xlu0 %v2998, 64
        %v4622 = vpop.permute.xlu0 %4621
        %4623 = vrot.lane.b32.xlu0 %v3001, 64
        %v4624 = vpop.permute.xlu0 %4623
        %4625 = vrot.lane.b32.xlu0 %v3004, 64
        %v4626 = vpop.permute.xlu0 %4625
        %4627 = vrot.lane.b32.xlu0 %v3007, 64
        %v4628 = vpop.permute.xlu0 %4627
        %4629 = vrot.lane.b32.xlu0 %v3010, 64
        %v4630 = vpop.permute.xlu0 %4629
        %4631 = vrot.lane.b32.xlu0 %v3013, 64
        %v4632 = vpop.permute.xlu0 %4631
        %4633 = vrot.lane.b32.xlu0 %v3016, 64
        %v4634 = vpop.permute.xlu0 %4633
        %4635 = vrot.lane.b32.xlu0 %v3019, 64
        %v4636 = vpop.permute.xlu0 %4635
        %4637 = vrot.lane.b32.xlu0 %v3022, 64
        %v4638 = vpop.permute.xlu0 %4637
        %4639 = vrot.lane.b32.xlu0 %v3736, 64
        %v4640 = vpop.permute.xlu0 %4639
        %4641 = vrot.lane.b32.xlu0 %v4450, 64
        %v4642 = vpop.permute.xlu0 %4641
        %vm4643 = vcmask 64512
        %v4645 = vsel %vm4643, %v1005, %v2543
        %v4647 = vsel %vm4643, %v1006, %v2545
        %v4649 = vsel %vm4643, %v1007, %v2547
        %v4651 = vsel %vm4643, %v1008, %v2549
        %v4653 = vsel %vm4643, %v1009, %v2551
        %v4655 = vsel %vm4643, %v1010, %v2553
        %v4657 = vsel %vm4643, %v1011, %v2555
        %v4659 = vsel %vm4643, %v1012, %v2557
        %v4661 = vsel %vm4643, %v1013, %v2559
        %v4663 = vsel %vm4643, %v1014, %v2561
        %v4665 = vsel %vm4643, %v1015, %v2563
        %v4667 = vsel %vm4643, %v1016, %v2565
        %v4669 = vsel %vm4643, %v1017, %v2567
        %v4671 = vsel %vm4643, %v1018, %v2569
        %v4673 = vsel %vm4643, %v1019, %v2571
        %v4675 = vsel %vm4643, %v1020, %v2573
        %v4677 = vsel %vm4643, %v1021, %v2575
        %v4679 = vsel %vm4643, %v1022, %v2577
        %v4681 = vsel %vm4643, %v1023, %v2579
        %v4683 = vsel %vm4643, %v1024, %v2581
        %v4685 = vsel %vm4643, %v1025, %v2583
        %v4687 = vsel %vm4643, %v1026, %v2585
        %v4689 = vsel %vm4643, %v1027, %v2587
        %v4691 = vsel %vm4643, %v1028, %v2589
        %v4693 = vsel %vm4643, %v1029, %v2591
        %v4695 = vsel %vm4643, %v1030, %v2593
        %v4697 = vsel %vm4643, %v1031, %v2595
        %v4699 = vsel %vm4643, %v1032, %v2597
        %v4701 = vsel %vm4643, %v1033, %v2599
        %v4703 = vsel %vm4643, %v1034, %v2601
        %v4705 = vsel %vm4643, %v1035, %v2603
        %v4707 = vsel %vm4643, %v1036, %v2605
        %v4709 = vsel %vm4643, %v1037, %v2607
        %v4711 = vsel %vm4643, %v1038, %v2609
        %v4713 = vsel %vm4643, %v1039, %v2611
        %v4715 = vsel %vm4643, %v1040, %v2613
        %v4717 = vsel %vm4643, %v1041, %v2615
        %v4719 = vsel %vm4643, %v1042, %v2617
        %v4721 = vsel %vm4643, %v1043, %v2619
        %v4723 = vsel %vm4643, %v1044, %v2621
        %v4725 = vsel %vm4643, %v1045, %v2623
        %v4727 = vsel %vm4643, %v1046, %v2625
        %v4729 = vsel %vm4643, %v1047, %v2627
        %v4731 = vsel %vm4643, %v1048, %v2629
        %v4733 = vsel %vm4643, %v1049, %v2631
        %v4735 = vsel %vm4643, %v1050, %v2633
        %v4737 = vsel %vm4643, %v1051, %v2635
        %v4739 = vsel %vm4643, %v1052, %v2637
        %v4741 = vsel %vm4643, %v1053, %v2639
        %v4743 = vsel %vm4643, %v1054, %v2641
        %v4745 = vsel %vm4643, %v1055, %v2643
        %v4747 = vsel %vm4643, %v1056, %v2645
        %v4749 = vsel %vm4643, %v1057, %v2647
        %v4751 = vsel %vm4643, %v1058, %v2649
        %v4753 = vsel %vm4643, %v1059, %v2651
        %v4755 = vsel %vm4643, %v1060, %v2653
        %v4757 = vsel %vm4643, %v1061, %v2655
        %v4759 = vsel %vm4643, %v1062, %v2657
        %v4761 = vsel %vm4643, %v1063, %v2659
        %v4763 = vsel %vm4643, %v1064, %v2661
        %v4765 = vsel %vm4643, %v1065, %v2663
        %v4767 = vsel %vm4643, %v1066, %v2665
        %v4769 = vsel %vm4643, %v1067, %v2667
        %v4771 = vsel %vm4643, %v1068, %v2669
        %v4773 = vsel %vm4643, %v1069, %v2671
        %v4775 = vsel %vm4643, %v1070, %v2673
        %v4777 = vsel %vm4643, %v1071, %v2675
        %v4779 = vsel %vm4643, %v1072, %v2677
        %v4781 = vsel %vm4643, %v1073, %v2679
        %v4783 = vsel %vm4643, %v1074, %v2681
        %v4785 = vsel %vm4643, %v1075, %v2683
        %v4787 = vsel %vm4643, %v1076, %v2685
        %v4789 = vsel %vm4643, %v1077, %v2687
        %v4791 = vsel %vm4643, %v1078, %v2689
        %v4793 = vsel %vm4643, %v1079, %v2691
        %v4795 = vsel %vm4643, %v1080, %v2693
        %v4797 = vsel %vm4643, %v1081, %v2695
        %v4799 = vsel %vm4643, %v1082, %v2697
        %v4801 = vsel %vm4643, %v1083, %v2699
        %v4803 = vsel %vm4643, %v1084, %v2701
        %v4805 = vsel %vm4643, %v1085, %v2703
        %v4807 = vsel %vm4643, %v1086, %v2705
        %v4809 = vsel %vm4643, %v1087, %v2707
        %v4811 = vsel %vm4643, %v1088, %v2709
        %v4813 = vsel %vm4643, %v1089, %v2711
        %v4815 = vsel %vm4643, %v1090, %v2713
        %v4817 = vsel %vm4643, %v1091, %v2715
        %v4819 = vsel %vm4643, %v1092, %v2717
        %v4821 = vsel %vm4643, %v1093, %v2719
        %v4823 = vsel %vm4643, %v1094, %v2721
        %v4825 = vsel %vm4643, %v1095, %v2723
        %v4827 = vsel %vm4643, %v1096, %v2725
        %v4829 = vsel %vm4643, %v1097, %v2727
        %v4831 = vsel %vm4643, %v1098, %v2729
        %v4833 = vsel %vm4643, %v1099, %v2731
        %v4835 = vsel %vm4643, %v1100, %v2733
        %vm4836 = vcmask 130048
        %v4838 = vsel %vm4836, %v4645, %v3024
        %v4840 = vsel %vm4836, %v4647, %v3026
        %v4842 = vsel %vm4836, %v4649, %v3028
        %v4844 = vsel %vm4836, %v4651, %v3030
        %v4846 = vsel %vm4836, %v4653, %v3032
        %v4848 = vsel %vm4836, %v4655, %v3034
        %v4850 = vsel %vm4836, %v4657, %v3036
        %v4852 = vsel %vm4836, %v4659, %v3038
        %v4854 = vsel %vm4836, %v4661, %v3040
        %v4856 = vsel %vm4836, %v4663, %v3042
        %v4858 = vsel %vm4836, %v4665, %v3044
        %v4860 = vsel %vm4836, %v4667, %v3046
        %v4862 = vsel %vm4836, %v4669, %v3048
        %v4864 = vsel %vm4836, %v4671, %v3050
        %v4866 = vsel %vm4836, %v4673, %v3052
        %v4868 = vsel %vm4836, %v4675, %v3054
        %v4870 = vsel %vm4836, %v4677, %v3056
        %v4872 = vsel %vm4836, %v4679, %v3058
        %v4874 = vsel %vm4836, %v4681, %v3060
        %v4876 = vsel %vm4836, %v4683, %v3062
        %v4878 = vsel %vm4836, %v4685, %v3064
        %v4880 = vsel %vm4836, %v4687, %v3066
        %v4882 = vsel %vm4836, %v4689, %v3068
        %v4884 = vsel %vm4836, %v4691, %v3070
        %v4886 = vsel %vm4836, %v4693, %v3072
        %v4888 = vsel %vm4836, %v4695, %v3074
        %v4890 = vsel %vm4836, %v4697, %v3076
        %v4892 = vsel %vm4836, %v4699, %v3078
        %v4894 = vsel %vm4836, %v4701, %v3080
        %v4896 = vsel %vm4836, %v4703, %v3082
        %v4898 = vsel %vm4836, %v4705, %v3084
        %v4900 = vsel %vm4836, %v4707, %v3086
        %v4902 = vsel %vm4836, %v4709, %v3088
        %v4904 = vsel %vm4836, %v4711, %v3090
        %v4906 = vsel %vm4836, %v4713, %v3092
        %v4908 = vsel %vm4836, %v4715, %v3094
        %v4910 = vsel %vm4836, %v4717, %v3096
        %v4912 = vsel %vm4836, %v4719, %v3098
        %v4914 = vsel %vm4836, %v4721, %v3100
        %v4916 = vsel %vm4836, %v4723, %v3102
        %v4918 = vsel %vm4836, %v4725, %v3104
        %v4920 = vsel %vm4836, %v4727, %v3106
        %v4922 = vsel %vm4836, %v4729, %v3108
        %v4924 = vsel %vm4836, %v4731, %v3110
        %v4926 = vsel %vm4836, %v4733, %v3112
        %v4928 = vsel %vm4836, %v4735, %v3114
        %v4930 = vsel %vm4836, %v4737, %v3116
        %v4932 = vsel %vm4836, %v4739, %v3118
        %v4934 = vsel %vm4836, %v4741, %v3120
        %v4936 = vsel %vm4836, %v4743, %v3122
        %v4938 = vsel %vm4836, %v4745, %v3124
        %v4940 = vsel %vm4836, %v4747, %v3126
        %v4942 = vsel %vm4836, %v4749, %v3128
        %v4944 = vsel %vm4836, %v4751, %v3130
        %v4946 = vsel %vm4836, %v4753, %v3132
        %v4948 = vsel %vm4836, %v4755, %v3134
        %v4950 = vsel %vm4836, %v4757, %v3136
        %v4952 = vsel %vm4836, %v4759, %v3138
        %v4954 = vsel %vm4836, %v4761, %v3140
        %v4956 = vsel %vm4836, %v4763, %v3142
        %v4958 = vsel %vm4836, %v4765, %v3144
        %v4960 = vsel %vm4836, %v4767, %v3146
        %v4962 = vsel %vm4836, %v4769, %v3148
        %v4964 = vsel %vm4836, %v4771, %v3150
        %v4966 = vsel %vm4836, %v4773, %v3152
        %v4968 = vsel %vm4836, %v4775, %v3154
        %v4970 = vsel %vm4836, %v4777, %v3156
        %v4972 = vsel %vm4836, %v4779, %v3158
        %v4974 = vsel %vm4836, %v4781, %v3160
        %v4976 = vsel %vm4836, %v4783, %v3162
        %v4978 = vsel %vm4836, %v4785, %v3164
        %v4980 = vsel %vm4836, %v4787, %v3166
        %v4982 = vsel %vm4836, %v4789, %v3168
        %v4984 = vsel %vm4836, %v4791, %v3170
        %v4986 = vsel %vm4836, %v4793, %v3172
        %v4988 = vsel %vm4836, %v4795, %v3174
        %v4990 = vsel %vm4836, %v4797, %v3176
        %v4992 = vsel %vm4836, %v4799, %v3178
        %v4994 = vsel %vm4836, %v4801, %v3180
        %v4996 = vsel %vm4836, %v4803, %v3182
        %v4998 = vsel %vm4836, %v4805, %v3184
        %v5000 = vsel %vm4836, %v4807, %v3186
        %v5002 = vsel %vm4836, %v4809, %v3188
        %v5004 = vsel %vm4836, %v4811, %v3190
        %v5006 = vsel %vm4836, %v4813, %v3192
        %v5008 = vsel %vm4836, %v4815, %v3194
        %v5010 = vsel %vm4836, %v4817, %v3196
        %v5012 = vsel %vm4836, %v4819, %v3198
        %v5014 = vsel %vm4836, %v4821, %v3200
        %v5016 = vsel %vm4836, %v4823, %v3202
        %v5018 = vsel %vm4836, %v4825, %v3204
        %v5020 = vsel %vm4836, %v4827, %v3206
        %v5022 = vsel %vm4836, %v4829, %v3208
        %v5024 = vsel %vm4836, %v4831, %v3210
        %v5026 = vsel %vm4836, %v4833, %v3212
        %v5028 = vsel %vm4836, %v4835, %v3214
        %vm5029 = vcmask 195584
        %v5031 = vsel %vm5029, %v4838, %v3246
        %v5033 = vsel %vm5029, %v4840, %v3248
        %v5035 = vsel %vm5029, %v4842, %v3250
        %v5037 = vsel %vm5029, %v4844, %v3252
        %v5039 = vsel %vm5029, %v4846, %v3254
        %v5041 = vsel %vm5029, %v4848, %v3256
        %v5043 = vsel %vm5029, %v4850, %v3258
        %v5045 = vsel %vm5029, %v4852, %v3260
        %v5047 = vsel %vm5029, %v4854, %v3262
        %v5049 = vsel %vm5029, %v4856, %v3264
        %v5051 = vsel %vm5029, %v4858, %v3266
        %v5053 = vsel %vm5029, %v4860, %v3268
        %v5055 = vsel %vm5029, %v4862, %v3270
        %v5057 = vsel %vm5029, %v4864, %v3272
        %v5059 = vsel %vm5029, %v4866, %v3274
        %v5061 = vsel %vm5029, %v4868, %v3276
        %v5063 = vsel %vm5029, %v4870, %v3278
        %v5065 = vsel %vm5029, %v4872, %v3280
        %v5067 = vsel %vm5029, %v4874, %v3282
        %v5069 = vsel %vm5029, %v4876, %v3284
        %v5071 = vsel %vm5029, %v4878, %v3286
        %v5073 = vsel %vm5029, %v4880, %v3288
        %v5075 = vsel %vm5029, %v4882, %v3290
        %v5077 = vsel %vm5029, %v4884, %v3292
        %v5079 = vsel %vm5029, %v4886, %v3294
        %v5081 = vsel %vm5029, %v4888, %v3296
        %v5083 = vsel %vm5029, %v4890, %v3298
        %v5085 = vsel %vm5029, %v4892, %v3300
        %v5087 = vsel %vm5029, %v4894, %v3302
        %v5089 = vsel %vm5029, %v4896, %v3304
        %v5091 = vsel %vm5029, %v4898, %v3306
        %v5093 = vsel %vm5029, %v4900, %v3308
        %v5095 = vsel %vm5029, %v4902, %v3310
        %v5097 = vsel %vm5029, %v4904, %v3312
        %v5099 = vsel %vm5029, %v4906, %v3314
        %v5101 = vsel %vm5029, %v4908, %v3316
        %v5103 = vsel %vm5029, %v4910, %v3318
        %v5105 = vsel %vm5029, %v4912, %v3320
        %v5107 = vsel %vm5029, %v4914, %v3322
        %v5109 = vsel %vm5029, %v4916, %v3324
        %v5111 = vsel %vm5029, %v4918, %v3326
        %v5113 = vsel %vm5029, %v4920, %v3328
        %v5115 = vsel %vm5029, %v4922, %v3330
        %v5117 = vsel %vm5029, %v4924, %v3332
        %v5119 = vsel %vm5029, %v4926, %v3334
        %v5121 = vsel %vm5029, %v4928, %v3336
        %v5123 = vsel %vm5029, %v4930, %v3338
        %v5125 = vsel %vm5029, %v4932, %v3340
        %v5127 = vsel %vm5029, %v4934, %v3342
        %v5129 = vsel %vm5029, %v4936, %v3344
        %v5131 = vsel %vm5029, %v4938, %v3346
        %v5133 = vsel %vm5029, %v4940, %v3348
        %v5135 = vsel %vm5029, %v4942, %v3350
        %v5137 = vsel %vm5029, %v4944, %v3352
        %v5139 = vsel %vm5029, %v4946, %v3354
        %v5141 = vsel %vm5029, %v4948, %v3356
        %v5143 = vsel %vm5029, %v4950, %v3358
        %v5145 = vsel %vm5029, %v4952, %v3360
        %v5147 = vsel %vm5029, %v4954, %v3362
        %v5149 = vsel %vm5029, %v4956, %v3364
        %v5151 = vsel %vm5029, %v4958, %v3366
        %v5153 = vsel %vm5029, %v4960, %v3368
        %v5155 = vsel %vm5029, %v4962, %v3370
        %v5157 = vsel %vm5029, %v4964, %v3372
        %v5159 = vsel %vm5029, %v4966, %v3374
        %v5161 = vsel %vm5029, %v4968, %v3376
        %v5163 = vsel %vm5029, %v4970, %v3378
        %v5165 = vsel %vm5029, %v4972, %v3380
        %v5167 = vsel %vm5029, %v4974, %v3382
        %v5169 = vsel %vm5029, %v4976, %v3384
        %v5171 = vsel %vm5029, %v4978, %v3386
        %v5173 = vsel %vm5029, %v4980, %v3388
        %v5175 = vsel %vm5029, %v4982, %v3390
        %v5177 = vsel %vm5029, %v4984, %v3392
        %v5179 = vsel %vm5029, %v4986, %v3394
        %v5181 = vsel %vm5029, %v4988, %v3396
        %v5183 = vsel %vm5029, %v4990, %v3398
        %v5185 = vsel %vm5029, %v4992, %v3400
        %v5187 = vsel %vm5029, %v4994, %v3402
        %v5189 = vsel %vm5029, %v4996, %v3404
        %v5191 = vsel %vm5029, %v4998, %v3406
        %v5193 = vsel %vm5029, %v5000, %v3408
        %v5195 = vsel %vm5029, %v5002, %v3410
        %v5197 = vsel %vm5029, %v5004, %v3412
        %v5199 = vsel %vm5029, %v5006, %v3414
        %v5201 = vsel %vm5029, %v5008, %v3416
        %v5203 = vsel %vm5029, %v5010, %v3418
        %v5205 = vsel %vm5029, %v5012, %v3420
        %v5207 = vsel %vm5029, %v5014, %v3422
        %v5209 = vsel %vm5029, %v5016, %v3424
        %v5211 = vsel %vm5029, %v5018, %v3426
        %v5213 = vsel %vm5029, %v5020, %v3428
        %v5215 = vsel %vm5029, %v5022, %v3430
        %v5217 = vsel %vm5029, %v5024, %v3432
        %v5219 = vsel %vm5029, %v5026, %v3434
        %v5221 = vsel %vm5029, %v5028, %v3436
        %vm5222 = vcmask 261120
        %v5224 = vsel %vm5222, %v5031, %v3528
        %v5226 = vsel %vm5222, %v5033, %v3530
        %v5228 = vsel %vm5222, %v5035, %v3532
        %v5230 = vsel %vm5222, %v5037, %v3534
        %v5232 = vsel %vm5222, %v5039, %v3536
        %v5234 = vsel %vm5222, %v5041, %v3538
        %v5236 = vsel %vm5222, %v5043, %v3540
        %v5238 = vsel %vm5222, %v5045, %v3542
        %v5240 = vsel %vm5222, %v5047, %v3544
        %v5242 = vsel %vm5222, %v5049, %v3546
        %v5244 = vsel %vm5222, %v5051, %v3548
        %v5246 = vsel %vm5222, %v5053, %v3550
        %v5248 = vsel %vm5222, %v5055, %v3552
        %v5250 = vsel %vm5222, %v5057, %v3554
        %v5252 = vsel %vm5222, %v5059, %v3556
        %v5254 = vsel %vm5222, %v5061, %v3558
        %v5256 = vsel %vm5222, %v5063, %v3560
        %v5258 = vsel %vm5222, %v5065, %v3562
        %v5260 = vsel %vm5222, %v5067, %v3564
        %v5262 = vsel %vm5222, %v5069, %v3566
        %v5264 = vsel %vm5222, %v5071, %v3568
        %v5266 = vsel %vm5222, %v5073, %v3570
        %v5268 = vsel %vm5222, %v5075, %v3572
        %v5270 = vsel %vm5222, %v5077, %v3574
        %v5272 = vsel %vm5222, %v5079, %v3576
        %v5274 = vsel %vm5222, %v5081, %v3578
        %v5276 = vsel %vm5222, %v5083, %v3580
        %v5278 = vsel %vm5222, %v5085, %v3582
        %v5280 = vsel %vm5222, %v5087, %v3584
        %v5282 = vsel %vm5222, %v5089, %v3586
        %v5284 = vsel %vm5222, %v5091, %v3588
        %v5286 = vsel %vm5222, %v5093, %v3590
        %v5288 = vsel %vm5222, %v5095, %v3592
        %v5290 = vsel %vm5222, %v5097, %v3594
        %v5292 = vsel %vm5222, %v5099, %v3596
        %v5294 = vsel %vm5222, %v5101, %v3598
        %v5296 = vsel %vm5222, %v5103, %v3600
        %v5298 = vsel %vm5222, %v5105, %v3602
        %v5300 = vsel %vm5222, %v5107, %v3604
        %v5302 = vsel %vm5222, %v5109, %v3606
        %v5304 = vsel %vm5222, %v5111, %v3608
        %v5306 = vsel %vm5222, %v5113, %v3610
        %v5308 = vsel %vm5222, %v5115, %v3612
        %v5310 = vsel %vm5222, %v5117, %v3614
        %v5312 = vsel %vm5222, %v5119, %v3616
        %v5314 = vsel %vm5222, %v5121, %v3618
        %v5316 = vsel %vm5222, %v5123, %v3620
        %v5318 = vsel %vm5222, %v5125, %v3622
        %v5320 = vsel %vm5222, %v5127, %v3624
        %v5322 = vsel %vm5222, %v5129, %v3626
        %v5324 = vsel %vm5222, %v5131, %v3628
        %v5326 = vsel %vm5222, %v5133, %v3630
        %v5328 = vsel %vm5222, %v5135, %v3632
        %v5330 = vsel %vm5222, %v5137, %v3634
        %v5332 = vsel %vm5222, %v5139, %v3636
        %v5334 = vsel %vm5222, %v5141, %v3638
        %v5336 = vsel %vm5222, %v5143, %v3640
        %v5338 = vsel %vm5222, %v5145, %v3642
        %v5340 = vsel %vm5222, %v5147, %v3644
        %v5342 = vsel %vm5222, %v5149, %v3646
        %v5344 = vsel %vm5222, %v5151, %v3648
        %v5346 = vsel %vm5222, %v5153, %v3650
        %v5348 = vsel %vm5222, %v5155, %v3652
        %v5350 = vsel %vm5222, %v5157, %v3654
        %v5352 = vsel %vm5222, %v5159, %v3656
        %v5354 = vsel %vm5222, %v5161, %v3658
        %v5356 = vsel %vm5222, %v5163, %v3660
        %v5358 = vsel %vm5222, %v5165, %v3662
        %v5360 = vsel %vm5222, %v5167, %v3664
        %v5362 = vsel %vm5222, %v5169, %v3666
        %v5364 = vsel %vm5222, %v5171, %v3668
        %v5366 = vsel %vm5222, %v5173, %v3670
        %v5368 = vsel %vm5222, %v5175, %v3672
        %v5370 = vsel %vm5222, %v5177, %v3674
        %v5372 = vsel %vm5222, %v5179, %v3676
        %v5374 = vsel %vm5222, %v5181, %v3678
        %v5376 = vsel %vm5222, %v5183, %v3680
        %v5378 = vsel %vm5222, %v5185, %v3682
        %v5380 = vsel %vm5222, %v5187, %v3684
        %v5382 = vsel %vm5222, %v5189, %v3686
        %v5384 = vsel %vm5222, %v5191, %v3688
        %v5386 = vsel %vm5222, %v5193, %v3690
        %v5388 = vsel %vm5222, %v5195, %v3692
        %v5390 = vsel %vm5222, %v5197, %v3694
        %v5392 = vsel %vm5222, %v5199, %v3696
        %v5394 = vsel %vm5222, %v5201, %v3698
        %v5396 = vsel %vm5222, %v5203, %v3700
        %v5398 = vsel %vm5222, %v5205, %v3702
        %v5400 = vsel %vm5222, %v5207, %v3704
        %v5402 = vsel %vm5222, %v5209, %v3706
        %v5404 = vsel %vm5222, %v5211, %v3708
        %v5406 = vsel %vm5222, %v5213, %v3710
        %v5408 = vsel %vm5222, %v5215, %v3712
        %v5410 = vsel %vm5222, %v5217, %v3714
        %v5412 = vsel %vm5222, %v5219, %v3716
        %v5414 = vsel %vm5222, %v5221, %v3718
        %vm5415 = vcmask 326656
        %v5417 = vsel %vm5415, %v5224, %v3738
        %v5419 = vsel %vm5415, %v5226, %v3740
        %v5421 = vsel %vm5415, %v5228, %v3742
        %v5423 = vsel %vm5415, %v5230, %v3744
        %v5425 = vsel %vm5415, %v5232, %v3746
        %v5427 = vsel %vm5415, %v5234, %v3748
        %v5429 = vsel %vm5415, %v5236, %v3750
        %v5431 = vsel %vm5415, %v5238, %v3752
        %v5433 = vsel %vm5415, %v5240, %v3754
        %v5435 = vsel %vm5415, %v5242, %v3756
        %v5437 = vsel %vm5415, %v5244, %v3758
        %v5439 = vsel %vm5415, %v5246, %v3760
        %v5441 = vsel %vm5415, %v5248, %v3762
        %v5443 = vsel %vm5415, %v5250, %v3764
        %v5445 = vsel %vm5415, %v5252, %v3766
        %v5447 = vsel %vm5415, %v5254, %v3768
        %v5449 = vsel %vm5415, %v5256, %v3770
        %v5451 = vsel %vm5415, %v5258, %v3772
        %v5453 = vsel %vm5415, %v5260, %v3774
        %v5455 = vsel %vm5415, %v5262, %v3776
        %v5457 = vsel %vm5415, %v5264, %v3778
        %v5459 = vsel %vm5415, %v5266, %v3780
        %v5461 = vsel %vm5415, %v5268, %v3782
        %v5463 = vsel %vm5415, %v5270, %v3784
        %v5465 = vsel %vm5415, %v5272, %v3786
        %v5467 = vsel %vm5415, %v5274, %v3788
        %v5469 = vsel %vm5415, %v5276, %v3790
        %v5471 = vsel %vm5415, %v5278, %v3792
        %v5473 = vsel %vm5415, %v5280, %v3794
        %v5475 = vsel %vm5415, %v5282, %v3796
        %v5477 = vsel %vm5415, %v5284, %v3798
        %v5479 = vsel %vm5415, %v5286, %v3800
        %v5481 = vsel %vm5415, %v5288, %v3802
        %v5483 = vsel %vm5415, %v5290, %v3804
        %v5485 = vsel %vm5415, %v5292, %v3806
        %v5487 = vsel %vm5415, %v5294, %v3808
        %v5489 = vsel %vm5415, %v5296, %v3810
        %v5491 = vsel %vm5415, %v5298, %v3812
        %v5493 = vsel %vm5415, %v5300, %v3814
        %v5495 = vsel %vm5415, %v5302, %v3816
        %v5497 = vsel %vm5415, %v5304, %v3818
        %v5499 = vsel %vm5415, %v5306, %v3820
        %v5501 = vsel %vm5415, %v5308, %v3822
        %v5503 = vsel %vm5415, %v5310, %v3824
        %v5505 = vsel %vm5415, %v5312, %v3826
        %v5507 = vsel %vm5415, %v5314, %v3828
        %v5509 = vsel %vm5415, %v5316, %v3830
        %v5511 = vsel %vm5415, %v5318, %v3832
        %v5513 = vsel %vm5415, %v5320, %v3834
        %v5515 = vsel %vm5415, %v5322, %v3836
        %v5517 = vsel %vm5415, %v5324, %v3838
        %v5519 = vsel %vm5415, %v5326, %v3840
        %v5521 = vsel %vm5415, %v5328, %v3842
        %v5523 = vsel %vm5415, %v5330, %v3844
        %v5525 = vsel %vm5415, %v5332, %v3846
        %v5527 = vsel %vm5415, %v5334, %v3848
        %v5529 = vsel %vm5415, %v5336, %v3850
        %v5531 = vsel %vm5415, %v5338, %v3852
        %v5533 = vsel %vm5415, %v5340, %v3854
        %v5535 = vsel %vm5415, %v5342, %v3856
        %v5537 = vsel %vm5415, %v5344, %v3858
        %v5539 = vsel %vm5415, %v5346, %v3860
        %v5541 = vsel %vm5415, %v5348, %v3862
        %v5543 = vsel %vm5415, %v5350, %v3864
        %v5545 = vsel %vm5415, %v5352, %v3866
        %v5547 = vsel %vm5415, %v5354, %v3868
        %v5549 = vsel %vm5415, %v5356, %v3870
        %v5551 = vsel %vm5415, %v5358, %v3872
        %v5553 = vsel %vm5415, %v5360, %v3874
        %v5555 = vsel %vm5415, %v5362, %v3876
        %v5557 = vsel %vm5415, %v5364, %v3878
        %v5559 = vsel %vm5415, %v5366, %v3880
        %v5561 = vsel %vm5415, %v5368, %v3882
        %v5563 = vsel %vm5415, %v5370, %v3884
        %v5565 = vsel %vm5415, %v5372, %v3886
        %v5567 = vsel %vm5415, %v5374, %v3888
        %v5569 = vsel %vm5415, %v5376, %v3890
        %v5571 = vsel %vm5415, %v5378, %v3892
        %v5573 = vsel %vm5415, %v5380, %v3894
        %v5575 = vsel %vm5415, %v5382, %v3896
        %v5577 = vsel %vm5415, %v5384, %v3898
        %v5579 = vsel %vm5415, %v5386, %v3900
        %v5581 = vsel %vm5415, %v5388, %v3902
        %v5583 = vsel %vm5415, %v5390, %v3904
        %v5585 = vsel %vm5415, %v5392, %v3906
        %v5587 = vsel %vm5415, %v5394, %v3908
        %v5589 = vsel %vm5415, %v5396, %v3910
        %v5591 = vsel %vm5415, %v5398, %v3912
        %v5593 = vsel %vm5415, %v5400, %v3914
        %v5595 = vsel %vm5415, %v5402, %v3916
        %v5597 = vsel %vm5415, %v5404, %v3918
        %v5599 = vsel %vm5415, %v5406, %v3920
        %v5601 = vsel %vm5415, %v5408, %v3922
        %v5603 = vsel %vm5415, %v5410, %v3924
        %v5605 = vsel %vm5415, %v5412, %v3926
        %v5607 = vsel %vm5415, %v5414, %v3928
        %vm5608 = vcmask 392192
        %v5610 = vsel %vm5608, %v5417, %v3960
        %v5612 = vsel %vm5608, %v5419, %v3962
        %v5614 = vsel %vm5608, %v5421, %v3964
        %v5616 = vsel %vm5608, %v5423, %v3966
        %v5618 = vsel %vm5608, %v5425, %v3968
        %v5620 = vsel %vm5608, %v5427, %v3970
        %v5622 = vsel %vm5608, %v5429, %v3972
        %v5624 = vsel %vm5608, %v5431, %v3974
        %v5626 = vsel %vm5608, %v5433, %v3976
        %v5628 = vsel %vm5608, %v5435, %v3978
        %v5630 = vsel %vm5608, %v5437, %v3980
        %v5632 = vsel %vm5608, %v5439, %v3982
        %v5634 = vsel %vm5608, %v5441, %v3984
        %v5636 = vsel %vm5608, %v5443, %v3986
        %v5638 = vsel %vm5608, %v5445, %v3988
        %v5640 = vsel %vm5608, %v5447, %v3990
        %v5642 = vsel %vm5608, %v5449, %v3992
        %v5644 = vsel %vm5608, %v5451, %v3994
        %v5646 = vsel %vm5608, %v5453, %v3996
        %v5648 = vsel %vm5608, %v5455, %v3998
        %v5650 = vsel %vm5608, %v5457, %v4000
        %v5652 = vsel %vm5608, %v5459, %v4002
        %v5654 = vsel %vm5608, %v5461, %v4004
        %v5656 = vsel %vm5608, %v5463, %v4006
        %v5658 = vsel %vm5608, %v5465, %v4008
        %v5660 = vsel %vm5608, %v5467, %v4010
        %v5662 = vsel %vm5608, %v5469, %v4012
        %v5664 = vsel %vm5608, %v5471, %v4014
        %v5666 = vsel %vm5608, %v5473, %v4016
        %v5668 = vsel %vm5608, %v5475, %v4018
        %v5670 = vsel %vm5608, %v5477, %v4020
        %v5672 = vsel %vm5608, %v5479, %v4022
        %v5674 = vsel %vm5608, %v5481, %v4024
        %v5676 = vsel %vm5608, %v5483, %v4026
        %v5678 = vsel %vm5608, %v5485, %v4028
        %v5680 = vsel %vm5608, %v5487, %v4030
        %v5682 = vsel %vm5608, %v5489, %v4032
        %v5684 = vsel %vm5608, %v5491, %v4034
        %v5686 = vsel %vm5608, %v5493, %v4036
        %v5688 = vsel %vm5608, %v5495, %v4038
        %v5690 = vsel %vm5608, %v5497, %v4040
        %v5692 = vsel %vm5608, %v5499, %v4042
        %v5694 = vsel %vm5608, %v5501, %v4044
        %v5696 = vsel %vm5608, %v5503, %v4046
        %v5698 = vsel %vm5608, %v5505, %v4048
        %v5700 = vsel %vm5608, %v5507, %v4050
        %v5702 = vsel %vm5608, %v5509, %v4052
        %v5704 = vsel %vm5608, %v5511, %v4054
        %v5706 = vsel %vm5608, %v5513, %v4056
        %v5708 = vsel %vm5608, %v5515, %v4058
        %v5710 = vsel %vm5608, %v5517, %v4060
        %v5712 = vsel %vm5608, %v5519, %v4062
        %v5714 = vsel %vm5608, %v5521, %v4064
        %v5716 = vsel %vm5608, %v5523, %v4066
        %v5718 = vsel %vm5608, %v5525, %v4068
        %v5720 = vsel %vm5608, %v5527, %v4070
        %v5722 = vsel %vm5608, %v5529, %v4072
        %v5724 = vsel %vm5608, %v5531, %v4074
        %v5726 = vsel %vm5608, %v5533, %v4076
        %v5728 = vsel %vm5608, %v5535, %v4078
        %v5730 = vsel %vm5608, %v5537, %v4080
        %v5732 = vsel %vm5608, %v5539, %v4082
        %v5734 = vsel %vm5608, %v5541, %v4084
        %v5736 = vsel %vm5608, %v5543, %v4086
        %v5738 = vsel %vm5608, %v5545, %v4088
        %v5740 = vsel %vm5608, %v5547, %v4090
        %v5742 = vsel %vm5608, %v5549, %v4092
        %v5744 = vsel %vm5608, %v5551, %v4094
        %v5746 = vsel %vm5608, %v5553, %v4096
        %v5748 = vsel %vm5608, %v5555, %v4098
        %v5750 = vsel %vm5608, %v5557, %v4100
        %v5752 = vsel %vm5608, %v5559, %v4102
        %v5754 = vsel %vm5608, %v5561, %v4104
        %v5756 = vsel %vm5608, %v5563, %v4106
        %v5758 = vsel %vm5608, %v5565, %v4108
        %v5760 = vsel %vm5608, %v5567, %v4110
        %v5762 = vsel %vm5608, %v5569, %v4112
        %v5764 = vsel %vm5608, %v5571, %v4114
        %v5766 = vsel %vm5608, %v5573, %v4116
        %v5768 = vsel %vm5608, %v5575, %v4118
        %v5770 = vsel %vm5608, %v5577, %v4120
        %v5772 = vsel %vm5608, %v5579, %v4122
        %v5774 = vsel %vm5608, %v5581, %v4124
        %v5776 = vsel %vm5608, %v5583, %v4126
        %v5778 = vsel %vm5608, %v5585, %v4128
        %v5780 = vsel %vm5608, %v5587, %v4130
        %v5782 = vsel %vm5608, %v5589, %v4132
        %v5784 = vsel %vm5608, %v5591, %v4134
        %v5786 = vsel %vm5608, %v5593, %v4136
        %v5788 = vsel %vm5608, %v5595, %v4138
        %v5790 = vsel %vm5608, %v5597, %v4140
        %v5792 = vsel %vm5608, %v5599, %v4142
        %v5794 = vsel %vm5608, %v5601, %v4144
        %v5796 = vsel %vm5608, %v5603, %v4146
        %v5798 = vsel %vm5608, %v5605, %v4148
        %v5800 = vsel %vm5608, %v5607, %v4150
        %vm5801 = vcmask 457728
        %v5803 = vsel %vm5801, %v5610, %v4242
        %v5805 = vsel %vm5801, %v5612, %v4244
        %v5807 = vsel %vm5801, %v5614, %v4246
        %v5809 = vsel %vm5801, %v5616, %v4248
        %v5811 = vsel %vm5801, %v5618, %v4250
        %v5813 = vsel %vm5801, %v5620, %v4252
        %v5815 = vsel %vm5801, %v5622, %v4254
        %v5817 = vsel %vm5801, %v5624, %v4256
        %v5819 = vsel %vm5801, %v5626, %v4258
        %v5821 = vsel %vm5801, %v5628, %v4260
        %v5823 = vsel %vm5801, %v5630, %v4262
        %v5825 = vsel %vm5801, %v5632, %v4264
        %v5827 = vsel %vm5801, %v5634, %v4266
        %v5829 = vsel %vm5801, %v5636, %v4268
        %v5831 = vsel %vm5801, %v5638, %v4270
        %v5833 = vsel %vm5801, %v5640, %v4272
        %v5835 = vsel %vm5801, %v5642, %v4274
        %v5837 = vsel %vm5801, %v5644, %v4276
        %v5839 = vsel %vm5801, %v5646, %v4278
        %v5841 = vsel %vm5801, %v5648, %v4280
        %v5843 = vsel %vm5801, %v5650, %v4282
        %v5845 = vsel %vm5801, %v5652, %v4284
        %v5847 = vsel %vm5801, %v5654, %v4286
        %v5849 = vsel %vm5801, %v5656, %v4288
        %v5851 = vsel %vm5801, %v5658, %v4290
        %v5853 = vsel %vm5801, %v5660, %v4292
        %v5855 = vsel %vm5801, %v5662, %v4294
        %v5857 = vsel %vm5801, %v5664, %v4296
        %v5859 = vsel %vm5801, %v5666, %v4298
        %v5861 = vsel %vm5801, %v5668, %v4300
        %v5863 = vsel %vm5801, %v5670, %v4302
        %v5865 = vsel %vm5801, %v5672, %v4304
        %v5867 = vsel %vm5801, %v5674, %v4306
        %v5869 = vsel %vm5801, %v5676, %v4308
        %v5871 = vsel %vm5801, %v5678, %v4310
        %v5873 = vsel %vm5801, %v5680, %v4312
        %v5875 = vsel %vm5801, %v5682, %v4314
        %v5877 = vsel %vm5801, %v5684, %v4316
        %v5879 = vsel %vm5801, %v5686, %v4318
        %v5881 = vsel %vm5801, %v5688, %v4320
        %v5883 = vsel %vm5801, %v5690, %v4322
        %v5885 = vsel %vm5801, %v5692, %v4324
        %v5887 = vsel %vm5801, %v5694, %v4326
        %v5889 = vsel %vm5801, %v5696, %v4328
        %v5891 = vsel %vm5801, %v5698, %v4330
        %v5893 = vsel %vm5801, %v5700, %v4332
        %v5895 = vsel %vm5801, %v5702, %v4334
        %v5897 = vsel %vm5801, %v5704, %v4336
        %v5899 = vsel %vm5801, %v5706, %v4338
        %v5901 = vsel %vm5801, %v5708, %v4340
        %v5903 = vsel %vm5801, %v5710, %v4342
        %v5905 = vsel %vm5801, %v5712, %v4344
        %v5907 = vsel %vm5801, %v5714, %v4346
        %v5909 = vsel %vm5801, %v5716, %v4348
        %v5911 = vsel %vm5801, %v5718, %v4350
        %v5913 = vsel %vm5801, %v5720, %v4352
        %v5915 = vsel %vm5801, %v5722, %v4354
        %v5917 = vsel %vm5801, %v5724, %v4356
        %v5919 = vsel %vm5801, %v5726, %v4358
        %v5921 = vsel %vm5801, %v5728, %v4360
        %v5923 = vsel %vm5801, %v5730, %v4362
        %v5925 = vsel %vm5801, %v5732, %v4364
        %v5927 = vsel %vm5801, %v5734, %v4366
        %v5929 = vsel %vm5801, %v5736, %v4368
        %v5931 = vsel %vm5801, %v5738, %v4370
        %v5933 = vsel %vm5801, %v5740, %v4372
        %v5935 = vsel %vm5801, %v5742, %v4374
        %v5937 = vsel %vm5801, %v5744, %v4376
        %v5939 = vsel %vm5801, %v5746, %v4378
        %v5941 = vsel %vm5801, %v5748, %v4380
        %v5943 = vsel %vm5801, %v5750, %v4382
        %v5945 = vsel %vm5801, %v5752, %v4384
        %v5947 = vsel %vm5801, %v5754, %v4386
        %v5949 = vsel %vm5801, %v5756, %v4388
        %v5951 = vsel %vm5801, %v5758, %v4390
        %v5953 = vsel %vm5801, %v5760, %v4392
        %v5955 = vsel %vm5801, %v5762, %v4394
        %v5957 = vsel %vm5801, %v5764, %v4396
        %v5959 = vsel %vm5801, %v5766, %v4398
        %v5961 = vsel %vm5801, %v5768, %v4400
        %v5963 = vsel %vm5801, %v5770, %v4402
        %v5965 = vsel %vm5801, %v5772, %v4404
        %v5967 = vsel %vm5801, %v5774, %v4406
        %v5969 = vsel %vm5801, %v5776, %v4408
        %v5971 = vsel %vm5801, %v5778, %v4410
        %v5973 = vsel %vm5801, %v5780, %v4412
        %v5975 = vsel %vm5801, %v5782, %v4414
        %v5977 = vsel %vm5801, %v5784, %v4416
        %v5979 = vsel %vm5801, %v5786, %v4418
        %v5981 = vsel %vm5801, %v5788, %v4420
        %v5983 = vsel %vm5801, %v5790, %v4422
        %v5985 = vsel %vm5801, %v5792, %v4424
        %v5987 = vsel %vm5801, %v5794, %v4426
        %v5989 = vsel %vm5801, %v5796, %v4428
        %v5991 = vsel %vm5801, %v5798, %v4430
        %v5993 = vsel %vm5801, %v5800, %v4432
        %vm5994 = vcmask 523264
        %v5996 = vsel %vm5994, %v5803, %v4452
        %v5998 = vsel %vm5994, %v5805, %v4454
        %v6000 = vsel %vm5994, %v5807, %v4456
        %v6002 = vsel %vm5994, %v5809, %v4458
        %v6004 = vsel %vm5994, %v5811, %v4460
        %v6006 = vsel %vm5994, %v5813, %v4462
        %v6008 = vsel %vm5994, %v5815, %v4464
        %v6010 = vsel %vm5994, %v5817, %v4466
        %v6012 = vsel %vm5994, %v5819, %v4468
        %v6014 = vsel %vm5994, %v5821, %v4470
        %v6016 = vsel %vm5994, %v5823, %v4472
        %v6018 = vsel %vm5994, %v5825, %v4474
        %v6020 = vsel %vm5994, %v5827, %v4476
        %v6022 = vsel %vm5994, %v5829, %v4478
        %v6024 = vsel %vm5994, %v5831, %v4480
        %v6026 = vsel %vm5994, %v5833, %v4482
        %v6028 = vsel %vm5994, %v5835, %v4484
        %v6030 = vsel %vm5994, %v5837, %v4486
        %v6032 = vsel %vm5994, %v5839, %v4488
        %v6034 = vsel %vm5994, %v5841, %v4490
        %v6036 = vsel %vm5994, %v5843, %v4492
        %v6038 = vsel %vm5994, %v5845, %v4494
        %v6040 = vsel %vm5994, %v5847, %v4496
        %v6042 = vsel %vm5994, %v5849, %v4498
        %v6044 = vsel %vm5994, %v5851, %v4500
        %v6046 = vsel %vm5994, %v5853, %v4502
        %v6048 = vsel %vm5994, %v5855, %v4504
        %v6050 = vsel %vm5994, %v5857, %v4506
        %v6052 = vsel %vm5994, %v5859, %v4508
        %v6054 = vsel %vm5994, %v5861, %v4510
        %v6056 = vsel %vm5994, %v5863, %v4512
        %v6058 = vsel %vm5994, %v5865, %v4514
        %v6060 = vsel %vm5994, %v5867, %v4516
        %v6062 = vsel %vm5994, %v5869, %v4518
        %v6064 = vsel %vm5994, %v5871, %v4520
        %v6066 = vsel %vm5994, %v5873, %v4522
        %v6068 = vsel %vm5994, %v5875, %v4524
        %v6070 = vsel %vm5994, %v5877, %v4526
        %v6072 = vsel %vm5994, %v5879, %v4528
        %v6074 = vsel %vm5994, %v5881, %v4530
        %v6076 = vsel %vm5994, %v5883, %v4532
        %v6078 = vsel %vm5994, %v5885, %v4534
        %v6080 = vsel %vm5994, %v5887, %v4536
        %v6082 = vsel %vm5994, %v5889, %v4538
        %v6084 = vsel %vm5994, %v5891, %v4540
        %v6086 = vsel %vm5994, %v5893, %v4542
        %v6088 = vsel %vm5994, %v5895, %v4544
        %v6090 = vsel %vm5994, %v5897, %v4546
        %v6092 = vsel %vm5994, %v5899, %v4548
        %v6094 = vsel %vm5994, %v5901, %v4550
        %v6096 = vsel %vm5994, %v5903, %v4552
        %v6098 = vsel %vm5994, %v5905, %v4554
        %v6100 = vsel %vm5994, %v5907, %v4556
        %v6102 = vsel %vm5994, %v5909, %v4558
        %v6104 = vsel %vm5994, %v5911, %v4560
        %v6106 = vsel %vm5994, %v5913, %v4562
        %v6108 = vsel %vm5994, %v5915, %v4564
        %v6110 = vsel %vm5994, %v5917, %v4566
        %v6112 = vsel %vm5994, %v5919, %v4568
        %v6114 = vsel %vm5994, %v5921, %v4570
        %v6116 = vsel %vm5994, %v5923, %v4572
        %v6118 = vsel %vm5994, %v5925, %v4574
        %v6120 = vsel %vm5994, %v5927, %v4576
        %v6122 = vsel %vm5994, %v5929, %v4578
        %v6124 = vsel %vm5994, %v5931, %v4580
        %v6126 = vsel %vm5994, %v5933, %v4582
        %v6128 = vsel %vm5994, %v5935, %v4584
        %v6130 = vsel %vm5994, %v5937, %v4586
        %v6132 = vsel %vm5994, %v5939, %v4588
        %v6134 = vsel %vm5994, %v5941, %v4590
        %v6136 = vsel %vm5994, %v5943, %v4592
        %v6138 = vsel %vm5994, %v5945, %v4594
        %v6140 = vsel %vm5994, %v5947, %v4596
        %v6142 = vsel %vm5994, %v5949, %v4598
        %v6144 = vsel %vm5994, %v5951, %v4600
        %v6146 = vsel %vm5994, %v5953, %v4602
        %v6148 = vsel %vm5994, %v5955, %v4604
        %v6150 = vsel %vm5994, %v5957, %v4606
        %v6152 = vsel %vm5994, %v5959, %v4608
        %v6154 = vsel %vm5994, %v5961, %v4610
        %v6156 = vsel %vm5994, %v5963, %v4612
        %v6158 = vsel %vm5994, %v5965, %v4614
        %v6160 = vsel %vm5994, %v5967, %v4616
        %v6162 = vsel %vm5994, %v5969, %v4618
        %v6164 = vsel %vm5994, %v5971, %v4620
        %v6166 = vsel %vm5994, %v5973, %v4622
        %v6168 = vsel %vm5994, %v5975, %v4624
        %v6170 = vsel %vm5994, %v5977, %v4626
        %v6172 = vsel %vm5994, %v5979, %v4628
        %v6174 = vsel %vm5994, %v5981, %v4630
        %v6176 = vsel %vm5994, %v5983, %v4632
        %v6178 = vsel %vm5994, %v5985, %v4634
        %v6180 = vsel %vm5994, %v5987, %v4636
        %v6182 = vsel %vm5994, %v5989, %v4638
        %v6184 = vsel %vm5994, %v5991, %v4640
        %v6186 = vsel %vm5994, %v5993, %v4642
        %v6187 = vld [vmem:[%s1] sm:$0xf]
        %v6188 = vld [vmem:[%s1 + $0x4] sm:$0xf]
        %v6189 = vld [vmem:[%s1 + $0x8] sm:$0xf]
        %v6190 = vld [vmem:[%s1 + $0xc] sm:$0xf]
        %v6191 = vld [vmem:[%s1 + $0x10] sm:$0xf]
        %v6192 = vld [vmem:[%s1 + $0x14] sm:$0xf]
        %v6193 = vld [vmem:[%s1 + $0x18] sm:$0xf]
        %v6194 = vld [vmem:[%s1 + $0x1c] sm:$0xf]
        %v6195 = vld [vmem:[%s1 + $0x20] sm:$0xf]
        %v6205 = vunpack.c.l.b16 %v6187
        %v6206 = vunpack.c.l.b16 %v6188
        %v6207 = vunpack.c.l.b16 %v6189
        %v6208 = vunpack.c.l.b16 %v6190
        %v6209 = vunpack.c.l.b16 %v6191
        %v6210 = vunpack.c.l.b16 %v6192
        %v6211 = vunpack.c.l.b16 %v6193
        %v6212 = vunpack.c.l.b16 %v6194
        %v6213 = vunpack.c.l.b16 %v6195
        %v6214 = vpack.c.b16 %v6206, %v6205
        %v6215 = vpack.c.b16 %v6208, %v6207
        %v6216 = vpack.c.b16 %v6210, %v6209
        %v6217 = vpack.c.b16 %v6212, %v6211
        %v6218 = vpack.c.b16 %v6213, %v6213
        %vm6223 = vcmask 588800
        %v6224 = vsel %vm6223, %v5996, 0
        %v6226 = vsel %vm6223, %v5998, 0
        %v6228 = vsel %vm6223, %v6000, 0
        %v6230 = vsel %vm6223, %v6002, 0
        %v6232 = vsel %vm6223, %v6004, 0
        %v6234 = vsel %vm6223, %v6006, 0
        %v6236 = vsel %vm6223, %v6008, 0
        %v6238 = vsel %vm6223, %v6010, 0
        %v6240 = vsel %vm6223, %v6012, 0
        %v6242 = vsel %vm6223, %v6014, 0
        %v6244 = vsel %vm6223, %v6016, 0
        %v6246 = vsel %vm6223, %v6018, 0
        %v6248 = vsel %vm6223, %v6020, 0
        %v6250 = vsel %vm6223, %v6022, 0
        %v6252 = vsel %vm6223, %v6024, 0
        %v6254 = vsel %vm6223, %v6026, 0
        %v6256 = vsel %vm6223, %v6028, 0
        %v6258 = vsel %vm6223, %v6030, 0
        %v6260 = vsel %vm6223, %v6032, 0
        %v6262 = vsel %vm6223, %v6034, 0
        %v6264 = vsel %vm6223, %v6036, 0
        %v6266 = vsel %vm6223, %v6038, 0
        %v6268 = vsel %vm6223, %v6040, 0
        %v6270 = vsel %vm6223, %v6042, 0
        %v6272 = vsel %vm6223, %v6044, 0
        %v6274 = vsel %vm6223, %v6046, 0
        %v6276 = vsel %vm6223, %v6048, 0
        %v6278 = vsel %vm6223, %v6050, 0
        %v6280 = vsel %vm6223, %v6052, 0
        %v6282 = vsel %vm6223, %v6054, 0
        %v6284 = vsel %vm6223, %v6056, 0
        %v6286 = vsel %vm6223, %v6058, 0
        %v6288 = vsel %vm6223, %v6060, 0
        %v6290 = vsel %vm6223, %v6062, 0
        %v6292 = vsel %vm6223, %v6064, 0
        %v6294 = vsel %vm6223, %v6066, 0
        %v6296 = vsel %vm6223, %v6068, 0
        %v6298 = vsel %vm6223, %v6070, 0
        %v6300 = vsel %vm6223, %v6072, 0
        %v6302 = vsel %vm6223, %v6074, 0
        %v6304 = vsel %vm6223, %v6076, 0
        %v6306 = vsel %vm6223, %v6078, 0
        %v6308 = vsel %vm6223, %v6080, 0
        %v6310 = vsel %vm6223, %v6082, 0
        %v6312 = vsel %vm6223, %v6084, 0
        %v6314 = vsel %vm6223, %v6086, 0
        %v6316 = vsel %vm6223, %v6088, 0
        %v6318 = vsel %vm6223, %v6090, 0
        %v6320 = vsel %vm6223, %v6092, 0
        %v6322 = vsel %vm6223, %v6094, 0
        %v6324 = vsel %vm6223, %v6096, 0
        %v6326 = vsel %vm6223, %v6098, 0
        %v6328 = vsel %vm6223, %v6100, 0
        %v6330 = vsel %vm6223, %v6102, 0
        %v6332 = vsel %vm6223, %v6104, 0
        %v6334 = vsel %vm6223, %v6106, 0
        %v6336 = vsel %vm6223, %v6108, 0
        %v6338 = vsel %vm6223, %v6110, 0
        %v6340 = vsel %vm6223, %v6112, 0
        %v6342 = vsel %vm6223, %v6114, 0
        %v6344 = vsel %vm6223, %v6116, 0
        %v6346 = vsel %vm6223, %v6118, 0
        %v6348 = vsel %vm6223, %v6120, 0
        %v6350 = vsel %vm6223, %v6122, 0
        %v6352 = vsel %vm6223, %v6124, 0
        %v6354 = vsel %vm6223, %v6126, 0
        %v6356 = vsel %vm6223, %v6128, 0
        %v6358 = vsel %vm6223, %v6130, 0
        %v6360 = vsel %vm6223, %v6132, 0
        %v6362 = vsel %vm6223, %v6134, 0
        %v6364 = vsel %vm6223, %v6136, 0
        %v6366 = vsel %vm6223, %v6138, 0
        %v6368 = vsel %vm6223, %v6140, 0
        %v6370 = vsel %vm6223, %v6142, 0
        %v6372 = vsel %vm6223, %v6144, 0
        %v6374 = vsel %vm6223, %v6146, 0
        %v6376 = vsel %vm6223, %v6148, 0
        %v6378 = vsel %vm6223, %v6150, 0
        %v6380 = vsel %vm6223, %v6152, 0
        %v6382 = vsel %vm6223, %v6154, 0
        %v6384 = vsel %vm6223, %v6156, 0
        %v6386 = vsel %vm6223, %v6158, 0
        %v6388 = vsel %vm6223, %v6160, 0
        %v6390 = vsel %vm6223, %v6162, 0
        %v6392 = vsel %vm6223, %v6164, 0
        %v6394 = vsel %vm6223, %v6166, 0
        %v6396 = vsel %vm6223, %v6168, 0
        %v6398 = vsel %vm6223, %v6170, 0
        %v6400 = vsel %vm6223, %v6172, 0
        %v6402 = vsel %vm6223, %v6174, 0
        %v6404 = vsel %vm6223, %v6176, 0
        %v6406 = vsel %vm6223, %v6178, 0
        %v6408 = vsel %vm6223, %v6180, 0
        %v6410 = vsel %vm6223, %v6182, 0
        %v6412 = vsel %vm6223, %v6184, 0
        %v6414 = vsel %vm6223, %v6186, 0
        %vm6416 = vcmask 1043456
        %v6418 = vsel %vm6416, %v6218, 0
        %6420 = vmatprep.subr.bf16.mxu0 0
        %6421 = vmatpush1.bf16.msra.mxu0 %v6214
        %6422 = vmatprep.subr.bf16.mxu0 0
        %6423 = vmatpush1.bf16.msra.mxu0 %v6215
        %6424 = vmatprep.subr.bf16.mxu0 0
        %6425 = vmatpush1.bf16.msra.mxu0 %v6216
        %6426 = vmatprep.subr.bf16.mxu0 0
        %6427 = vmatpush1.bf16.msra.mxu0 %v6217
        %6428 = vmatprep.subr.bf16.mxu0 0
        %6429 = vmatpush1.bf16.msra.mxu0 %v6418
        %6430 = vmatprep.subr.bf16.mxu0 0
        %6431 = vmatpush1.bf16.msra.mxu0 0
        %6432 = vmatprep.subr.bf16.mxu0 0
        %6433 = vmatpush1.bf16.msra.mxu0 0
        %6434 = vmatprep.subr.bf16.mxu0 0
        %6435 = vmatpush1.bf16.msra.mxu0 0
        %6436 = vmatprep.subr.bf16.mxu0 0
        %6437 = vmatpush1.bf16.msra.mxu0 0
        %6438 = vmatprep.subr.bf16.mxu0 0
        %6439 = vmatpush1.bf16.msra.mxu0 0
        %6440 = vmatprep.subr.bf16.mxu0 0
        %6441 = vmatpush1.bf16.msra.mxu0 0
        %6442 = vmatprep.subr.bf16.mxu0 0
        %6443 = vmatpush1.bf16.msra.mxu0 0
        %6444 = vmatprep.subr.bf16.mxu0 0
        %6445 = vmatpush1.bf16.msra.mxu0 0
        %6446 = vmatprep.subr.bf16.mxu0 0
        %6447 = vmatpush1.bf16.msra.mxu0 0
        %6448 = vmatprep.subr.bf16.mxu0 0
        %6449 = vmatpush1.bf16.msra.mxu0 0
        %6450 = vmatprep.subr.bf16.mxu0 0
        %6451 = vmatpush1.bf16.msra.mxu0 0
        %6452 = vmatprep.mubr.bf16.mxu0 0
        %6453 = vmatmul.mubr.bf16.gmra.mrb[0].mxu0 %v6224
        %v6454 = vpop.f32.mrb[0].mxu0
        %v6455 = vadd.f32 0.0, %v6454
        %v6456 = vpop.f32.mrb[0].mxu0
        %v6457 = vpop.f32.mrb[0].mxu0
        %v6458 = vadd.f32 0.0, %v6457
        %v6459 = vpop.f32.mrb[0].mxu0
        %6460 = vmatprep.mubr.bf16.mxu0 0
        %6461 = vmatmul.mubr.bf16.gmra.mrb[0].mxu0 %v6226
        %v6462 = vpop.f32.mrb[0].mxu0
        %v6463 = vadd.f32 0.0, %v6462
        %v6464 = vpop.f32.mrb[0].mxu0
        %v6465 = vpop.f32.mrb[0].mxu0
        %v6466 = vadd.f32 0.0, %v6465
        %v6467 = vpop.f32.mrb[0].mxu0
        %6468 = vmatprep.mubr.bf16.mxu0 0
        %6469 = vmatmul.mubr.bf16.gmra.mrb[0].mxu0 %v6228
        %v6470 = vpop.f32.mrb[0].mxu0
        %v6471 = vadd.f32 0.0, %v6470
        %v6472 = vpop.f32.mrb[0].mxu0
        %v6473 = vpop.f32.mrb[0].mxu0
        %v6474 = vadd.f32 0.0, %v6473
        %v6475 = vpop.f32.mrb[0].mxu0
        %6476 = vmatprep.mubr.bf16.mxu0 0
        %6477 = vmatmul.mubr.bf16.gmra.mrb[0].mxu0 %v6230
        %v6478 = vpop.f32.mrb[0].mxu0
        %v6479 = vadd.f32 0.0, %v6478
        %v6480 = vpop.f32.mrb[0].mxu0
        %v6481 = vpop.f32.mrb[0].mxu0
        %v6482 = vadd.f32 0.0, %v6481
        %v6483 = vpop.f32.mrb[0].mxu0
        %6484 = vmatprep.mubr.bf16.mxu0 0
        %6485 = vmatmul.mubr.bf16.gmra.mrb[0].mxu0 %v6232
        %v6486 = vpop.f32.mrb[0].mxu0
        %v6487 = vadd.f32 0.0, %v6486
        %v6488 = vpop.f32.mrb[0].mxu0
        %v6489 = vpop.f32.mrb[0].mxu0
        %v6490 = vadd.f32 0.0, %v6489
        %v6491 = vpop.f32.mrb[0].mxu0
        %6492 = vmatprep.mubr.bf16.mxu0 0
        %6493 = vmatmul.mubr.bf16.gmra.mrb[0].mxu0 %v6234
        %v6494 = vpop.f32.mrb[0].mxu0
        %v6495 = vadd.f32 0.0, %v6494
        %v6496 = vpop.f32.mrb[0].mxu0
        %v6497 = vpop.f32.mrb[0].mxu0
        %v6498 = vadd.f32 0.0, %v6497
        %v6499 = vpop.f32.mrb[0].mxu0
        %6500 = vmatprep.mubr.bf16.mxu0 0
        %6501 = vmatmul.mubr.bf16.gmra.mrb[0].mxu0 %v6236
        %v6502 = vpop.f32.mrb[0].mxu0
        %v6503 = vadd.f32 0.0, %v6502
        %v6504 = vpop.f32.mrb[0].mxu0
        %v6505 = vpop.f32.mrb[0].mxu0
        %v6506 = vadd.f32 0.0, %v6505
        %v6507 = vpop.f32.mrb[0].mxu0
        %6508 = vmatprep.mubr.bf16.mxu0 0
        %6509 = vmatmul.mubr.bf16.gmra.mrb[0].mxu0 %v6238
        %v6510 = vpop.f32.mrb[0].mxu0
        %v6511 = vadd.f32 0.0, %v6510
        %v6512 = vpop.f32.mrb[0].mxu0
        %v6513 = vpop.f32.mrb[0].mxu0
        %v6514 = vadd.f32 0.0, %v6513
        %v6515 = vpop.f32.mrb[0].mxu0
        %6516 = vmatprep.mubr.bf16.mxu0 0
        %6517 = vmatmul.mubr.bf16.gmra.mrb[0].mxu0 %v6240
        %v6518 = vpop.f32.mrb[0].mxu0
        %v6519 = vadd.f32 0.0, %v6518
        %v6520 = vpop.f32.mrb[0].mxu0
        %v6521 = vpop.f32.mrb[0].mxu0
        %v6522 = vadd.f32 0.0, %v6521
        %v6523 = vpop.f32.mrb[0].mxu0
        %6524 = vmatprep.mubr.bf16.mxu0 0
        %6525 = vmatmul.mubr.bf16.gmra.mrb[0].mxu0 %v6242
        %v6526 = vpop.f32.mrb[0].mxu0
        %v6527 = vadd.f32 0.0, %v6526
        %v6528 = vpop.f32.mrb[0].mxu0
        %v6529 = vpop.f32.mrb[0].mxu0
        %v6530 = vadd.f32 0.0, %v6529
        %v6531 = vpop.f32.mrb[0].mxu0
        %6532 = vmatprep.mubr.bf16.mxu0 0
        %6533 = vmatmul.mubr.bf16.gmra.mrb[0].mxu0 %v6244
        %v6534 = vpop.f32.mrb[0].mxu0
        %v6535 = vadd.f32 0.0, %v6534
        %v6536 = vpop.f32.mrb[0].mxu0
        %v6537 = vpop.f32.mrb[0].mxu0
        %v6538 = vadd.f32 0.0, %v6537
        %v6539 = vpop.f32.mrb[0].mxu0
        %6540 = vmatprep.mubr.bf16.mxu0 0
        %6541 = vmatmul.mubr.bf16.gmra.mrb[0].mxu0 %v6246
        %v6542 = vpop.f32.mrb[0].mxu0
        %v6543 = vadd.f32 0.0, %v6542
        %v6544 = vpop.f32.mrb[0].mxu0
        %v6545 = vpop.f32.mrb[0].mxu0
        %v6546 = vadd.f32 0.0, %v6545
        %v6547 = vpop.f32.mrb[0].mxu0
        %6548 = vmatprep.mubr.bf16.mxu0 0
        %6549 = vmatmul.mubr.bf16.gmra.mrb[0].mxu0 %v6248
        %v6550 = vpop.f32.mrb[0].mxu0
        %v6551 = vadd.f32 0.0, %v6550
        %v6552 = vpop.f32.mrb[0].mxu0
        %v6553 = vpop.f32.mrb[0].mxu0
        %v6554 = vadd.f32 0.0, %v6553
        %v6555 = vpop.f32.mrb[0].mxu0
        %6556 = vmatprep.mubr.bf16.mxu0 0
        %6557 = vmatmul.mubr.bf16.gmra.mrb[0].mxu0 %v6250
        %v6558 = vpop.f32.mrb[0].mxu0
        %v6559 = vadd.f32 0.0, %v6558
        %v6560 = vpop.f32.mrb[0].mxu0
        %v6561 = vpop.f32.mrb[0].mxu0
        %v6562 = vadd.f32 0.0, %v6561
        %v6563 = vpop.f32.mrb[0].mxu0
        %6564 = vmatprep.mubr.bf16.mxu0 0
        %6565 = vmatmul.mubr.bf16.gmra.mrb[0].mxu0 %v6252
        %v6566 = vpop.f32.mrb[0].mxu0
        %v6567 = vadd.f32 0.0, %v6566
        %v6568 = vpop.f32.mrb[0].mxu0
        %v6569 = vpop.f32.mrb[0].mxu0
        %v6570 = vadd.f32 0.0, %v6569
        %v6571 = vpop.f32.mrb[0].mxu0
        %6572 = vmatprep.mubr.bf16.mxu0 0
        %6573 = vmatmul.mubr.bf16.gmra.mrb[0].mxu0 %v6254
        %v6574 = vpop.f32.mrb[0].mxu0
        %v6575 = vadd.f32 0.0, %v6574
        %v6576 = vpop.f32.mrb[0].mxu0
        %v6577 = vpop.f32.mrb[0].mxu0
        %v6578 = vadd.f32 0.0, %v6577
        %v6579 = vpop.f32.mrb[0].mxu0
        %6580 = vmatprep.mubr.bf16.mxu0 0
        %6581 = vmatmul.mubr.bf16.gmra.mrb[0].mxu0 %v6256
        %v6582 = vpop.f32.mrb[0].mxu0
        %v6583 = vadd.f32 0.0, %v6582
        %v6584 = vpop.f32.mrb[0].mxu0
        %v6585 = vpop.f32.mrb[0].mxu0
        %v6586 = vadd.f32 0.0, %v6585
        %v6587 = vpop.f32.mrb[0].mxu0
        %6588 = vmatprep.mubr.bf16.mxu0 0
        %6589 = vmatmul.mubr.bf16.gmra.mrb[0].mxu0 %v6258
        %v6590 = vpop.f32.mrb[0].mxu0
        %v6591 = vadd.f32 0.0, %v6590
        %v6592 = vpop.f32.mrb[0].mxu0
        %v6593 = vpop.f32.mrb[0].mxu0
        %v6594 = vadd.f32 0.0, %v6593
        %v6595 = vpop.f32.mrb[0].mxu0
        %6596 = vmatprep.mubr.bf16.mxu0 0
        %6597 = vmatmul.mubr.bf16.gmra.mrb[0].mxu0 %v6260
        %v6598 = vpop.f32.mrb[0].mxu0
        %v6599 = vadd.f32 0.0, %v6598
        %v6600 = vpop.f32.mrb[0].mxu0
        %v6601 = vpop.f32.mrb[0].mxu0
        %v6602 = vadd.f32 0.0, %v6601
        %v6603 = vpop.f32.mrb[0].mxu0
        %6604 = vmatprep.mubr.bf16.mxu0 0
        %6605 = vmatmul.mubr.bf16.gmra.mrb[0].mxu0 %v6262
        %v6606 = vpop.f32.mrb[0].mxu0
        %v6607 = vadd.f32 0.0, %v6606
        %v6608 = vpop.f32.mrb[0].mxu0
        %v6609 = vpop.f32.mrb[0].mxu0
        %v6610 = vadd.f32 0.0, %v6609
        %v6611 = vpop.f32.mrb[0].mxu0
        %6612 = vmatprep.mubr.bf16.mxu0 0
        %6613 = vmatmul.mubr.bf16.gmra.mrb[0].mxu0 %v6264
        %v6614 = vpop.f32.mrb[0].mxu0
        %v6615 = vadd.f32 0.0, %v6614
        %v6616 = vpop.f32.mrb[0].mxu0
        %v6617 = vpop.f32.mrb[0].mxu0
        %v6618 = vadd.f32 0.0, %v6617
        %v6619 = vpop.f32.mrb[0].mxu0
        %6620 = vmatprep.mubr.bf16.mxu0 0
        %6621 = vmatmul.mubr.bf16.gmra.mrb[0].mxu0 %v6266
        %v6622 = vpop.f32.mrb[0].mxu0
        %v6623 = vadd.f32 0.0, %v6622
        %v6624 = vpop.f32.mrb[0].mxu0
        %v6625 = vpop.f32.mrb[0].mxu0
        %v6626 = vadd.f32 0.0, %v6625
        %v6627 = vpop.f32.mrb[0].mxu0
        %6628 = vmatprep.mubr.bf16.mxu0 0
        %6629 = vmatmul.mubr.bf16.gmra.mrb[0].mxu0 %v6268
        %v6630 = vpop.f32.mrb[0].mxu0
        %v6631 = vadd.f32 0.0, %v6630
        %v6632 = vpop.f32.mrb[0].mxu0
        %v6633 = vpop.f32.mrb[0].mxu0
        %v6634 = vadd.f32 0.0, %v6633
        %v6635 = vpop.f32.mrb[0].mxu0
        %6636 = vmatprep.mubr.bf16.mxu0 0
        %6637 = vmatmul.mubr.bf16.gmra.mrb[0].mxu0 %v6270
        %v6638 = vpop.f32.mrb[0].mxu0
        %v6639 = vadd.f32 0.0, %v6638
        %v6640 = vpop.f32.mrb[0].mxu0
        %v6641 = vpop.f32.mrb[0].mxu0
        %v6642 = vadd.f32 0.0, %v6641
        %v6643 = vpop.f32.mrb[0].mxu0
        %6644 = vmatprep.mubr.bf16.mxu0 0
        %6645 = vmatmul.mubr.bf16.gmra.mrb[0].mxu0 %v6272
        %v6646 = vpop.f32.mrb[0].mxu0
        %v6647 = vadd.f32 0.0, %v6646
        %v6648 = vpop.f32.mrb[0].mxu0
        %v6649 = vpop.f32.mrb[0].mxu0
        %v6650 = vadd.f32 0.0, %v6649
        %v6651 = vpop.f32.mrb[0].mxu0
        %6652 = vmatprep.mubr.bf16.mxu0 0
        %6653 = vmatmul.mubr.bf16.gmra.mrb[0].mxu0 %v6274
        %v6654 = vpop.f32.mrb[0].mxu0
        %v6655 = vadd.f32 0.0, %v6654
        %v6656 = vpop.f32.mrb[0].mxu0
        %v6657 = vpop.f32.mrb[0].mxu0
        %v6658 = vadd.f32 0.0, %v6657
        %v6659 = vpop.f32.mrb[0].mxu0
        %6660 = vmatprep.mubr.bf16.mxu0 0
        %6661 = vmatmul.mubr.bf16.gmra.mrb[0].mxu0 %v6276
        %v6662 = vpop.f32.mrb[0].mxu0
        %v6663 = vadd.f32 0.0, %v6662
        %v6664 = vpop.f32.mrb[0].mxu0
        %v6665 = vpop.f32.mrb[0].mxu0
        %v6666 = vadd.f32 0.0, %v6665
        %v6667 = vpop.f32.mrb[0].mxu0
        %6668 = vmatprep.mubr.bf16.mxu0 0
        %6669 = vmatmul.mubr.bf16.gmra.mrb[0].mxu0 %v6278
        %v6670 = vpop.f32.mrb[0].mxu0
        %v6671 = vadd.f32 0.0, %v6670
        %v6672 = vpop.f32.mrb[0].mxu0
        %v6673 = vpop.f32.mrb[0].mxu0
        %v6674 = vadd.f32 0.0, %v6673
        %v6675 = vpop.f32.mrb[0].mxu0
        %6676 = vmatprep.mubr.bf16.mxu0 0
        %6677 = vmatmul.mubr.bf16.gmra.mrb[0].mxu0 %v6280
        %v6678 = vpop.f32.mrb[0].mxu0
        %v6679 = vadd.f32 0.0, %v6678
        %v6680 = vpop.f32.mrb[0].mxu0
        %v6681 = vpop.f32.mrb[0].mxu0
        %v6682 = vadd.f32 0.0, %v6681
        %v6683 = vpop.f32.mrb[0].mxu0
        %6684 = vmatprep.mubr.bf16.mxu0 0
        %6685 = vmatmul.mubr.bf16.gmra.mrb[0].mxu0 %v6282
        %v6686 = vpop.f32.mrb[0].mxu0
        %v6687 = vadd.f32 0.0, %v6686
        %v6688 = vpop.f32.mrb[0].mxu0
        %v6689 = vpop.f32.mrb[0].mxu0
        %v6690 = vadd.f32 0.0, %v6689
        %v6691 = vpop.f32.mrb[0].mxu0
        %6692 = vmatprep.mubr.bf16.mxu0 0
        %6693 = vmatmul.mubr.bf16.gmra.mrb[0].mxu0 %v6284
        %v6694 = vpop.f32.mrb[0].mxu0
        %v6695 = vadd.f32 0.0, %v6694
        %v6696 = vpop.f32.mrb[0].mxu0
        %v6697 = vpop.f32.mrb[0].mxu0
        %v6698 = vadd.f32 0.0, %v6697
        %v6699 = vpop.f32.mrb[0].mxu0
        %6700 = vmatprep.mubr.bf16.mxu0 0
        %6701 = vmatmul.mubr.bf16.gmra.mrb[0].mxu0 %v6286
        %v6702 = vpop.f32.mrb[0].mxu0
        %v6703 = vadd.f32 0.0, %v6702
        %v6704 = vpop.f32.mrb[0].mxu0
        %v6705 = vpop.f32.mrb[0].mxu0
        %v6706 = vadd.f32 0.0, %v6705
        %v6707 = vpop.f32.mrb[0].mxu0
        %6708 = vmatprep.mubr.bf16.mxu0 0
        %6709 = vmatmul.mubr.bf16.gmra.mrb[0].mxu0 %v6288
        %v6710 = vpop.f32.mrb[0].mxu0
        %v6711 = vadd.f32 0.0, %v6710
        %v6712 = vpop.f32.mrb[0].mxu0
        %v6713 = vpop.f32.mrb[0].mxu0
        %v6714 = vadd.f32 0.0, %v6713
        %v6715 = vpop.f32.mrb[0].mxu0
        %6716 = vmatprep.mubr.bf16.mxu0 0
        %6717 = vmatmul.mubr.bf16.gmra.mrb[0].mxu0 %v6290
        %v6718 = vpop.f32.mrb[0].mxu0
        %v6719 = vadd.f32 0.0, %v6718
        %v6720 = vpop.f32.mrb[0].mxu0
        %v6721 = vpop.f32.mrb[0].mxu0
        %v6722 = vadd.f32 0.0, %v6721
        %v6723 = vpop.f32.mrb[0].mxu0
        %6724 = vmatprep.mubr.bf16.mxu0 0
        %6725 = vmatmul.mubr.bf16.gmra.mrb[0].mxu0 %v6292
        %v6726 = vpop.f32.mrb[0].mxu0
        %v6727 = vadd.f32 0.0, %v6726
        %v6728 = vpop.f32.mrb[0].mxu0
        %v6729 = vpop.f32.mrb[0].mxu0
        %v6730 = vadd.f32 0.0, %v6729
        %v6731 = vpop.f32.mrb[0].mxu0
        %6732 = vmatprep.mubr.bf16.mxu0 0
        %6733 = vmatmul.mubr.bf16.gmra.mrb[0].mxu0 %v6294
        %v6734 = vpop.f32.mrb[0].mxu0
        %v6735 = vadd.f32 0.0, %v6734
        %v6736 = vpop.f32.mrb[0].mxu0
        %v6737 = vpop.f32.mrb[0].mxu0
        %v6738 = vadd.f32 0.0, %v6737
        %v6739 = vpop.f32.mrb[0].mxu0
        %6740 = vmatprep.mubr.bf16.mxu0 0
        %6741 = vmatmul.mubr.bf16.gmra.mrb[0].mxu0 %v6296
        %v6742 = vpop.f32.mrb[0].mxu0
        %v6743 = vadd.f32 0.0, %v6742
        %v6744 = vpop.f32.mrb[0].mxu0
        %v6745 = vpop.f32.mrb[0].mxu0
        %v6746 = vadd.f32 0.0, %v6745
        %v6747 = vpop.f32.mrb[0].mxu0
        %6748 = vmatprep.mubr.bf16.mxu0 0
        %6749 = vmatmul.mubr.bf16.gmra.mrb[0].mxu0 %v6298
        %v6750 = vpop.f32.mrb[0].mxu0
        %v6751 = vadd.f32 0.0, %v6750
        %v6752 = vpop.f32.mrb[0].mxu0
        %v6753 = vpop.f32.mrb[0].mxu0
        %v6754 = vadd.f32 0.0, %v6753
        %v6755 = vpop.f32.mrb[0].mxu0
        %6756 = vmatprep.mubr.bf16.mxu0 0
        %6757 = vmatmul.mubr.bf16.gmra.mrb[0].mxu0 %v6300
        %v6758 = vpop.f32.mrb[0].mxu0
        %v6759 = vadd.f32 0.0, %v6758
        %v6760 = vpop.f32.mrb[0].mxu0
        %v6761 = vpop.f32.mrb[0].mxu0
        %v6762 = vadd.f32 0.0, %v6761
        %v6763 = vpop.f32.mrb[0].mxu0
        %6764 = vmatprep.mubr.bf16.mxu0 0
        %6765 = vmatmul.mubr.bf16.gmra.mrb[0].mxu0 %v6302
        %v6766 = vpop.f32.mrb[0].mxu0
        %v6767 = vadd.f32 0.0, %v6766
        %v6768 = vpop.f32.mrb[0].mxu0
        %v6769 = vpop.f32.mrb[0].mxu0
        %v6770 = vadd.f32 0.0, %v6769
        %v6771 = vpop.f32.mrb[0].mxu0
        %6772 = vmatprep.mubr.bf16.mxu0 0
        %6773 = vmatmul.mubr.bf16.gmra.mrb[0].mxu0 %v6304
        %v6774 = vpop.f32.mrb[0].mxu0
        %v6775 = vadd.f32 0.0, %v6774
        %v6776 = vpop.f32.mrb[0].mxu0
        %v6777 = vpop.f32.mrb[0].mxu0
        %v6778 = vadd.f32 0.0, %v6777
        %v6779 = vpop.f32.mrb[0].mxu0
        %6780 = vmatprep.mubr.bf16.mxu0 0
        %6781 = vmatmul.mubr.bf16.gmra.mrb[0].mxu0 %v6306
        %v6782 = vpop.f32.mrb[0].mxu0
        %v6783 = vadd.f32 0.0, %v6782
        %v6784 = vpop.f32.mrb[0].mxu0
        %v6785 = vpop.f32.mrb[0].mxu0
        %v6786 = vadd.f32 0.0, %v6785
        %v6787 = vpop.f32.mrb[0].mxu0
        %6788 = vmatprep.mubr.bf16.mxu0 0
        %6789 = vmatmul.mubr.bf16.gmra.mrb[0].mxu0 %v6308
        %v6790 = vpop.f32.mrb[0].mxu0
        %v6791 = vadd.f32 0.0, %v6790
        %v6792 = vpop.f32.mrb[0].mxu0
        %v6793 = vpop.f32.mrb[0].mxu0
        %v6794 = vadd.f32 0.0, %v6793
        %v6795 = vpop.f32.mrb[0].mxu0
        %6796 = vmatprep.mubr.bf16.mxu0 0
        %6797 = vmatmul.mubr.bf16.gmra.mrb[0].mxu0 %v6310
        %v6798 = vpop.f32.mrb[0].mxu0
        %v6799 = vadd.f32 0.0, %v6798
        %v6800 = vpop.f32.mrb[0].mxu0
        %v6801 = vpop.f32.mrb[0].mxu0
        %v6802 = vadd.f32 0.0, %v6801
        %v6803 = vpop.f32.mrb[0].mxu0
        %6804 = vmatprep.mubr.bf16.mxu0 0
        %6805 = vmatmul.mubr.bf16.gmra.mrb[0].mxu0 %v6312
        %v6806 = vpop.f32.mrb[0].mxu0
        %v6807 = vadd.f32 0.0, %v6806
        %v6808 = vpop.f32.mrb[0].mxu0
        %v6809 = vpop.f32.mrb[0].mxu0
        %v6810 = vadd.f32 0.0, %v6809
        %v6811 = vpop.f32.mrb[0].mxu0
        %6812 = vmatprep.mubr.bf16.mxu0 0
        %6813 = vmatmul.mubr.bf16.gmra.mrb[0].mxu0 %v6314
        %v6814 = vpop.f32.mrb[0].mxu0
        %v6815 = vadd.f32 0.0, %v6814
        %v6816 = vpop.f32.mrb[0].mxu0
        %v6817 = vpop.f32.mrb[0].mxu0
        %v6818 = vadd.f32 0.0, %v6817
        %v6819 = vpop.f32.mrb[0].mxu0
        %6820 = vmatprep.mubr.bf16.mxu0 0
        %6821 = vmatmul.mubr.bf16.gmra.mrb[0].mxu0 %v6316
        %v6822 = vpop.f32.mrb[0].mxu0
        %v6823 = vadd.f32 0.0, %v6822
        %v6824 = vpop.f32.mrb[0].mxu0
        %v6825 = vpop.f32.mrb[0].mxu0
        %v6826 = vadd.f32 0.0, %v6825
        %v6827 = vpop.f32.mrb[0].mxu0
        %6828 = vmatprep.mubr.bf16.mxu0 0
        %6829 = vmatmul.mubr.bf16.gmra.mrb[0].mxu0 %v6318
        %v6830 = vpop.f32.mrb[0].mxu0
        %v6831 = vadd.f32 0.0, %v6830
        %v6832 = vpop.f32.mrb[0].mxu0
        %v6833 = vpop.f32.mrb[0].mxu0
        %v6834 = vadd.f32 0.0, %v6833
        %v6835 = vpop.f32.mrb[0].mxu0
        %6836 = vmatprep.mubr.bf16.mxu0 0
        %6837 = vmatmul.mubr.bf16.gmra.mrb[0].mxu0 %v6320
        %v6838 = vpop.f32.mrb[0].mxu0
        %v6839 = vadd.f32 0.0, %v6838
        %v6840 = vpop.f32.mrb[0].mxu0
        %v6841 = vpop.f32.mrb[0].mxu0
        %v6842 = vadd.f32 0.0, %v6841
        %v6843 = vpop.f32.mrb[0].mxu0
        %6844 = vmatprep.mubr.bf16.mxu0 0
        %6845 = vmatmul.mubr.bf16.gmra.mrb[0].mxu0 %v6322
        %v6846 = vpop.f32.mrb[0].mxu0
        %v6847 = vadd.f32 0.0, %v6846
        %v6848 = vpop.f32.mrb[0].mxu0
        %v6849 = vpop.f32.mrb[0].mxu0
        %v6850 = vadd.f32 0.0, %v6849
        %v6851 = vpop.f32.mrb[0].mxu0
        %6852 = vmatprep.mubr.bf16.mxu0 0
        %6853 = vmatmul.mubr.bf16.gmra.mrb[0].mxu0 %v6324
        %v6854 = vpop.f32.mrb[0].mxu0
        %v6855 = vadd.f32 0.0, %v6854
        %v6856 = vpop.f32.mrb[0].mxu0
        %v6857 = vpop.f32.mrb[0].mxu0
        %v6858 = vadd.f32 0.0, %v6857
        %v6859 = vpop.f32.mrb[0].mxu0
        %6860 = vmatprep.mubr.bf16.mxu0 0
        %6861 = vmatmul.mubr.bf16.gmra.mrb[0].mxu0 %v6326
        %v6862 = vpop.f32.mrb[0].mxu0
        %v6863 = vadd.f32 0.0, %v6862
        %v6864 = vpop.f32.mrb[0].mxu0
        %v6865 = vpop.f32.mrb[0].mxu0
        %v6866 = vadd.f32 0.0, %v6865
        %v6867 = vpop.f32.mrb[0].mxu0
        %6868 = vmatprep.mubr.bf16.mxu0 0
        %6869 = vmatmul.mubr.bf16.gmra.mrb[0].mxu0 %v6328
        %v6870 = vpop.f32.mrb[0].mxu0
        %v6871 = vadd.f32 0.0, %v6870
        %v6872 = vpop.f32.mrb[0].mxu0
        %v6873 = vpop.f32.mrb[0].mxu0
        %v6874 = vadd.f32 0.0, %v6873
        %v6875 = vpop.f32.mrb[0].mxu0
        %6876 = vmatprep.mubr.bf16.mxu0 0
        %6877 = vmatmul.mubr.bf16.gmra.mrb[0].mxu0 %v6330
        %v6878 = vpop.f32.mrb[0].mxu0
        %v6879 = vadd.f32 0.0, %v6878
        %v6880 = vpop.f32.mrb[0].mxu0
        %v6881 = vpop.f32.mrb[0].mxu0
        %v6882 = vadd.f32 0.0, %v6881
        %v6883 = vpop.f32.mrb[0].mxu0
        %6884 = vmatprep.mubr.bf16.mxu0 0
        %6885 = vmatmul.mubr.bf16.gmra.mrb[0].mxu0 %v6332
        %v6886 = vpop.f32.mrb[0].mxu0
        %v6887 = vadd.f32 0.0, %v6886
        %v6888 = vpop.f32.mrb[0].mxu0
        %v6889 = vpop.f32.mrb[0].mxu0
        %v6890 = vadd.f32 0.0, %v6889
        %v6891 = vpop.f32.mrb[0].mxu0
        %6892 = vmatprep.mubr.bf16.mxu0 0
        %6893 = vmatmul.mubr.bf16.gmra.mrb[0].mxu0 %v6334
        %v6894 = vpop.f32.mrb[0].mxu0
        %v6895 = vadd.f32 0.0, %v6894
        %v6896 = vpop.f32.mrb[0].mxu0
        %v6897 = vpop.f32.mrb[0].mxu0
        %v6898 = vadd.f32 0.0, %v6897
        %v6899 = vpop.f32.mrb[0].mxu0
        %6900 = vmatprep.mubr.bf16.mxu0 0
        %6901 = vmatmul.mubr.bf16.gmra.mrb[0].mxu0 %v6336
        %v6902 = vpop.f32.mrb[0].mxu0
        %v6903 = vadd.f32 0.0, %v6902
        %v6904 = vpop.f32.mrb[0].mxu0
        %v6905 = vpop.f32.mrb[0].mxu0
        %v6906 = vadd.f32 0.0, %v6905
        %v6907 = vpop.f32.mrb[0].mxu0
        %6908 = vmatprep.mubr.bf16.mxu0 0
        %6909 = vmatmul.mubr.bf16.gmra.mrb[0].mxu0 %v6338
        %v6910 = vpop.f32.mrb[0].mxu0
        %v6911 = vadd.f32 0.0, %v6910
        %v6912 = vpop.f32.mrb[0].mxu0
        %v6913 = vpop.f32.mrb[0].mxu0
        %v6914 = vadd.f32 0.0, %v6913
        %v6915 = vpop.f32.mrb[0].mxu0
        %6916 = vmatprep.mubr.bf16.mxu0 0
        %6917 = vmatmul.mubr.bf16.gmra.mrb[0].mxu0 %v6340
        %v6918 = vpop.f32.mrb[0].mxu0
        %v6919 = vadd.f32 0.0, %v6918
        %v6920 = vpop.f32.mrb[0].mxu0
        %v6921 = vpop.f32.mrb[0].mxu0
        %v6922 = vadd.f32 0.0, %v6921
        %v6923 = vpop.f32.mrb[0].mxu0
        %6924 = vmatprep.mubr.bf16.mxu0 0
        %6925 = vmatmul.mubr.bf16.gmra.mrb[0].mxu0 %v6342
        %v6926 = vpop.f32.mrb[0].mxu0
        %v6927 = vadd.f32 0.0, %v6926
        %v6928 = vpop.f32.mrb[0].mxu0
        %v6929 = vpop.f32.mrb[0].mxu0
        %v6930 = vadd.f32 0.0, %v6929
        %v6931 = vpop.f32.mrb[0].mxu0
        %6932 = vmatprep.mubr.bf16.mxu0 0
        %6933 = vmatmul.mubr.bf16.gmra.mrb[0].mxu0 %v6344
        %v6934 = vpop.f32.mrb[0].mxu0
        %v6935 = vadd.f32 0.0, %v6934
        %v6936 = vpop.f32.mrb[0].mxu0
        %v6937 = vpop.f32.mrb[0].mxu0
        %v6938 = vadd.f32 0.0, %v6937
        %v6939 = vpop.f32.mrb[0].mxu0
        %6940 = vmatprep.mubr.bf16.mxu0 0
        %6941 = vmatmul.mubr.bf16.gmra.mrb[0].mxu0 %v6346
        %v6942 = vpop.f32.mrb[0].mxu0
        %v6943 = vadd.f32 0.0, %v6942
        %v6944 = vpop.f32.mrb[0].mxu0
        %v6945 = vpop.f32.mrb[0].mxu0
        %v6946 = vadd.f32 0.0, %v6945
        %v6947 = vpop.f32.mrb[0].mxu0
        %6948 = vmatprep.mubr.bf16.mxu0 0
        %6949 = vmatmul.mubr.bf16.gmra.mrb[0].mxu0 %v6348
        %v6950 = vpop.f32.mrb[0].mxu0
        %v6951 = vadd.f32 0.0, %v6950
        %v6952 = vpop.f32.mrb[0].mxu0
        %v6953 = vpop.f32.mrb[0].mxu0
        %v6954 = vadd.f32 0.0, %v6953
        %v6955 = vpop.f32.mrb[0].mxu0
        %6956 = vmatprep.mubr.bf16.mxu0 0
        %6957 = vmatmul.mubr.bf16.gmra.mrb[0].mxu0 %v6350
        %v6958 = vpop.f32.mrb[0].mxu0
        %v6959 = vadd.f32 0.0, %v6958
        %v6960 = vpop.f32.mrb[0].mxu0
        %v6961 = vpop.f32.mrb[0].mxu0
        %v6962 = vadd.f32 0.0, %v6961
        %v6963 = vpop.f32.mrb[0].mxu0
        %6964 = vmatprep.mubr.bf16.mxu0 0
        %6965 = vmatmul.mubr.bf16.gmra.mrb[0].mxu0 %v6352
        %v6966 = vpop.f32.mrb[0].mxu0
        %v6967 = vadd.f32 0.0, %v6966
        %v6968 = vpop.f32.mrb[0].mxu0
        %v6969 = vpop.f32.mrb[0].mxu0
        %v6970 = vadd.f32 0.0, %v6969
        %v6971 = vpop.f32.mrb[0].mxu0
        %6972 = vmatprep.mubr.bf16.mxu0 0
        %6973 = vmatmul.mubr.bf16.gmra.mrb[0].mxu0 %v6354
        %v6974 = vpop.f32.mrb[0].mxu0
        %v6975 = vadd.f32 0.0, %v6974
        %v6976 = vpop.f32.mrb[0].mxu0
        %v6977 = vpop.f32.mrb[0].mxu0
        %v6978 = vadd.f32 0.0, %v6977
        %v6979 = vpop.f32.mrb[0].mxu0
        %6980 = vmatprep.mubr.bf16.mxu0 0
        %6981 = vmatmul.mubr.bf16.gmra.mrb[0].mxu0 %v6356
        %v6982 = vpop.f32.mrb[0].mxu0
        %v6983 = vadd.f32 0.0, %v6982
        %v6984 = vpop.f32.mrb[0].mxu0
        %v6985 = vpop.f32.mrb[0].mxu0
        %v6986 = vadd.f32 0.0, %v6985
        %v6987 = vpop.f32.mrb[0].mxu0
        %6988 = vmatprep.mubr.bf16.mxu0 0
        %6989 = vmatmul.mubr.bf16.gmra.mrb[0].mxu0 %v6358
        %v6990 = vpop.f32.mrb[0].mxu0
        %v6991 = vadd.f32 0.0, %v6990
        %v6992 = vpop.f32.mrb[0].mxu0
        %v6993 = vpop.f32.mrb[0].mxu0
        %v6994 = vadd.f32 0.0, %v6993
        %v6995 = vpop.f32.mrb[0].mxu0
        %6996 = vmatprep.mubr.bf16.mxu0 0
        %6997 = vmatmul.mubr.bf16.gmra.mrb[0].mxu0 %v6360
        %v6998 = vpop.f32.mrb[0].mxu0
        %v6999 = vadd.f32 0.0, %v6998
        %v7000 = vpop.f32.mrb[0].mxu0
        %v7001 = vpop.f32.mrb[0].mxu0
        %v7002 = vadd.f32 0.0, %v7001
        %v7003 = vpop.f32.mrb[0].mxu0
        %7004 = vmatprep.mubr.bf16.mxu0 0
        %7005 = vmatmul.mubr.bf16.gmra.mrb[0].mxu0 %v6362
        %v7006 = vpop.f32.mrb[0].mxu0
        %v7007 = vadd.f32 0.0, %v7006
        %v7008 = vpop.f32.mrb[0].mxu0
        %v7009 = vpop.f32.mrb[0].mxu0
        %v7010 = vadd.f32 0.0, %v7009
        %v7011 = vpop.f32.mrb[0].mxu0
        %7012 = vmatprep.mubr.bf16.mxu0 0
        %7013 = vmatmul.mubr.bf16.gmra.mrb[0].mxu0 %v6364
        %v7014 = vpop.f32.mrb[0].mxu0
        %v7015 = vadd.f32 0.0, %v7014
        %v7016 = vpop.f32.mrb[0].mxu0
        %v7017 = vpop.f32.mrb[0].mxu0
        %v7018 = vadd.f32 0.0, %v7017
        %v7019 = vpop.f32.mrb[0].mxu0
        %7020 = vmatprep.mubr.bf16.mxu0 0
        %7021 = vmatmul.mubr.bf16.gmra.mrb[0].mxu0 %v6366
        %v7022 = vpop.f32.mrb[0].mxu0
        %v7023 = vadd.f32 0.0, %v7022
        %v7024 = vpop.f32.mrb[0].mxu0
        %v7025 = vpop.f32.mrb[0].mxu0
        %v7026 = vadd.f32 0.0, %v7025
        %v7027 = vpop.f32.mrb[0].mxu0
        %7028 = vmatprep.mubr.bf16.mxu0 0
        %7029 = vmatmul.mubr.bf16.gmra.mrb[0].mxu0 %v6368
        %v7030 = vpop.f32.mrb[0].mxu0
        %v7031 = vadd.f32 0.0, %v7030
        %v7032 = vpop.f32.mrb[0].mxu0
        %v7033 = vpop.f32.mrb[0].mxu0
        %v7034 = vadd.f32 0.0, %v7033
        %v7035 = vpop.f32.mrb[0].mxu0
        %7036 = vmatprep.mubr.bf16.mxu0 0
        %7037 = vmatmul.mubr.bf16.gmra.mrb[0].mxu0 %v6370
        %v7038 = vpop.f32.mrb[0].mxu0
        %v7039 = vadd.f32 0.0, %v7038
        %v7040 = vpop.f32.mrb[0].mxu0
        %v7041 = vpop.f32.mrb[0].mxu0
        %v7042 = vadd.f32 0.0, %v7041
        %v7043 = vpop.f32.mrb[0].mxu0
        %7044 = vmatprep.mubr.bf16.mxu0 0
        %7045 = vmatmul.mubr.bf16.gmra.mrb[0].mxu0 %v6372
        %v7046 = vpop.f32.mrb[0].mxu0
        %v7047 = vadd.f32 0.0, %v7046
        %v7048 = vpop.f32.mrb[0].mxu0
        %v7049 = vpop.f32.mrb[0].mxu0
        %v7050 = vadd.f32 0.0, %v7049
        %v7051 = vpop.f32.mrb[0].mxu0
        %7052 = vmatprep.mubr.bf16.mxu0 0
        %7053 = vmatmul.mubr.bf16.gmra.mrb[0].mxu0 %v6374
        %v7054 = vpop.f32.mrb[0].mxu0
        %v7055 = vadd.f32 0.0, %v7054
        %v7056 = vpop.f32.mrb[0].mxu0
        %v7057 = vpop.f32.mrb[0].mxu0
        %v7058 = vadd.f32 0.0, %v7057
        %v7059 = vpop.f32.mrb[0].mxu0
        %7060 = vmatprep.mubr.bf16.mxu0 0
        %7061 = vmatmul.mubr.bf16.gmra.mrb[0].mxu0 %v6376
        %v7062 = vpop.f32.mrb[0].mxu0
        %v7063 = vadd.f32 0.0, %v7062
        %v7064 = vpop.f32.mrb[0].mxu0
        %v7065 = vpop.f32.mrb[0].mxu0
        %v7066 = vadd.f32 0.0, %v7065
        %v7067 = vpop.f32.mrb[0].mxu0
        %7068 = vmatprep.mubr.bf16.mxu0 0
        %7069 = vmatmul.mubr.bf16.gmra.mrb[0].mxu0 %v6378
        %v7070 = vpop.f32.mrb[0].mxu0
        %v7071 = vadd.f32 0.0, %v7070
        %v7072 = vpop.f32.mrb[0].mxu0
        %v7073 = vpop.f32.mrb[0].mxu0
        %v7074 = vadd.f32 0.0, %v7073
        %v7075 = vpop.f32.mrb[0].mxu0
        %7076 = vmatprep.mubr.bf16.mxu0 0
        %7077 = vmatmul.mubr.bf16.gmra.mrb[0].mxu0 %v6380
        %v7078 = vpop.f32.mrb[0].mxu0
        %v7079 = vadd.f32 0.0, %v7078
        %v7080 = vpop.f32.mrb[0].mxu0
        %v7081 = vpop.f32.mrb[0].mxu0
        %v7082 = vadd.f32 0.0, %v7081
        %v7083 = vpop.f32.mrb[0].mxu0
        %7084 = vmatprep.mubr.bf16.mxu0 0
        %7085 = vmatmul.mubr.bf16.gmra.mrb[0].mxu0 %v6382
        %v7086 = vpop.f32.mrb[0].mxu0
        %v7087 = vadd.f32 0.0, %v7086
        %v7088 = vpop.f32.mrb[0].mxu0
        %v7089 = vpop.f32.mrb[0].mxu0
        %v7090 = vadd.f32 0.0, %v7089
        %v7091 = vpop.f32.mrb[0].mxu0
        %7092 = vmatprep.mubr.bf16.mxu0 0
        %7093 = vmatmul.mubr.bf16.gmra.mrb[0].mxu0 %v6384
        %v7094 = vpop.f32.mrb[0].mxu0
        %v7095 = vadd.f32 0.0, %v7094
        %v7096 = vpop.f32.mrb[0].mxu0
        %v7097 = vpop.f32.mrb[0].mxu0
        %v7098 = vadd.f32 0.0, %v7097
        %v7099 = vpop.f32.mrb[0].mxu0
        %7100 = vmatprep.mubr.bf16.mxu0 0
        %7101 = vmatmul.mubr.bf16.gmra.mrb[0].mxu0 %v6386
        %v7102 = vpop.f32.mrb[0].mxu0
        %v7103 = vadd.f32 0.0, %v7102
        %v7104 = vpop.f32.mrb[0].mxu0
        %v7105 = vpop.f32.mrb[0].mxu0
        %v7106 = vadd.f32 0.0, %v7105
        %v7107 = vpop.f32.mrb[0].mxu0
        %7108 = vmatprep.mubr.bf16.mxu0 0
        %7109 = vmatmul.mubr.bf16.gmra.mrb[0].mxu0 %v6388
        %v7110 = vpop.f32.mrb[0].mxu0
        %v7111 = vadd.f32 0.0, %v7110
        %v7112 = vpop.f32.mrb[0].mxu0
        %v7113 = vpop.f32.mrb[0].mxu0
        %v7114 = vadd.f32 0.0, %v7113
        %v7115 = vpop.f32.mrb[0].mxu0
        %7116 = vmatprep.mubr.bf16.mxu0 0
        %7117 = vmatmul.mubr.bf16.gmra.mrb[0].mxu0 %v6390
        %v7118 = vpop.f32.mrb[0].mxu0
        %v7119 = vadd.f32 0.0, %v7118
        %v7120 = vpop.f32.mrb[0].mxu0
        %v7121 = vpop.f32.mrb[0].mxu0
        %v7122 = vadd.f32 0.0, %v7121
        %v7123 = vpop.f32.mrb[0].mxu0
        %7124 = vmatprep.mubr.bf16.mxu0 0
        %7125 = vmatmul.mubr.bf16.gmra.mrb[0].mxu0 %v6392
        %v7126 = vpop.f32.mrb[0].mxu0
        %v7127 = vadd.f32 0.0, %v7126
        %v7128 = vpop.f32.mrb[0].mxu0
        %v7129 = vpop.f32.mrb[0].mxu0
        %v7130 = vadd.f32 0.0, %v7129
        %v7131 = vpop.f32.mrb[0].mxu0
        %7132 = vmatprep.mubr.bf16.mxu0 0
        %7133 = vmatmul.mubr.bf16.gmra.mrb[0].mxu0 %v6394
        %v7134 = vpop.f32.mrb[0].mxu0
        %v7135 = vadd.f32 0.0, %v7134
        %v7136 = vpop.f32.mrb[0].mxu0
        %v7137 = vpop.f32.mrb[0].mxu0
        %v7138 = vadd.f32 0.0, %v7137
        %v7139 = vpop.f32.mrb[0].mxu0
        %7140 = vmatprep.mubr.bf16.mxu0 0
        %7141 = vmatmul.mubr.bf16.gmra.mrb[0].mxu0 %v6396
        %v7142 = vpop.f32.mrb[0].mxu0
        %v7143 = vadd.f32 0.0, %v7142
        %v7144 = vpop.f32.mrb[0].mxu0
        %v7145 = vpop.f32.mrb[0].mxu0
        %v7146 = vadd.f32 0.0, %v7145
        %v7147 = vpop.f32.mrb[0].mxu0
        %7148 = vmatprep.mubr.bf16.mxu0 0
        %7149 = vmatmul.mubr.bf16.gmra.mrb[0].mxu0 %v6398
        %v7150 = vpop.f32.mrb[0].mxu0
        %v7151 = vadd.f32 0.0, %v7150
        %v7152 = vpop.f32.mrb[0].mxu0
        %v7153 = vpop.f32.mrb[0].mxu0
        %v7154 = vadd.f32 0.0, %v7153
        %v7155 = vpop.f32.mrb[0].mxu0
        %7156 = vmatprep.mubr.bf16.mxu0 0
        %7157 = vmatmul.mubr.bf16.gmra.mrb[0].mxu0 %v6400
        %v7158 = vpop.f32.mrb[0].mxu0
        %v7159 = vadd.f32 0.0, %v7158
        %v7160 = vpop.f32.mrb[0].mxu0
        %v7161 = vpop.f32.mrb[0].mxu0
        %v7162 = vadd.f32 0.0, %v7161
        %v7163 = vpop.f32.mrb[0].mxu0
        %7164 = vmatprep.mubr.bf16.mxu0 0
        %7165 = vmatmul.mubr.bf16.gmra.mrb[0].mxu0 %v6402
        %v7166 = vpop.f32.mrb[0].mxu0
        %v7167 = vadd.f32 0.0, %v7166
        %v7168 = vpop.f32.mrb[0].mxu0
        %v7169 = vpop.f32.mrb[0].mxu0
        %v7170 = vadd.f32 0.0, %v7169
        %v7171 = vpop.f32.mrb[0].mxu0
        %7172 = vmatprep.mubr.bf16.mxu0 0
        %7173 = vmatmul.mubr.bf16.gmra.mrb[0].mxu0 %v6404
        %v7174 = vpop.f32.mrb[0].mxu0
        %v7175 = vadd.f32 0.0, %v7174
        %v7176 = vpop.f32.mrb[0].mxu0
        %v7177 = vpop.f32.mrb[0].mxu0
        %v7178 = vadd.f32 0.0, %v7177
        %v7179 = vpop.f32.mrb[0].mxu0
        %7180 = vmatprep.mubr.bf16.mxu0 0
        %7181 = vmatmul.mubr.bf16.gmra.mrb[0].mxu0 %v6406
        %v7182 = vpop.f32.mrb[0].mxu0
        %v7183 = vadd.f32 0.0, %v7182
        %v7184 = vpop.f32.mrb[0].mxu0
        %v7185 = vpop.f32.mrb[0].mxu0
        %v7186 = vadd.f32 0.0, %v7185
        %v7187 = vpop.f32.mrb[0].mxu0
        %7188 = vmatprep.mubr.bf16.mxu0 0
        %7189 = vmatmul.mubr.bf16.gmra.mrb[0].mxu0 %v6408
        %v7190 = vpop.f32.mrb[0].mxu0
        %v7191 = vadd.f32 0.0, %v7190
        %v7192 = vpop.f32.mrb[0].mxu0
        %v7193 = vpop.f32.mrb[0].mxu0
        %v7194 = vadd.f32 0.0, %v7193
        %v7195 = vpop.f32.mrb[0].mxu0
        %7196 = vmatprep.mubr.bf16.mxu0 0
        %7197 = vmatmul.mubr.bf16.gmra.mrb[0].mxu0 %v6410
        %v7198 = vpop.f32.mrb[0].mxu0
        %v7199 = vadd.f32 0.0, %v7198
        %v7200 = vpop.f32.mrb[0].mxu0
        %v7201 = vpop.f32.mrb[0].mxu0
        %v7202 = vadd.f32 0.0, %v7201
        %v7203 = vpop.f32.mrb[0].mxu0
        %7204 = vmatprep.mubr.bf16.mxu0 0
        %7205 = vmatmul.mubr.bf16.gmra.mrb[0].mxu0 %v6412
        %v7206 = vpop.f32.mrb[0].mxu0
        %v7207 = vadd.f32 0.0, %v7206
        %v7208 = vpop.f32.mrb[0].mxu0
        %v7209 = vpop.f32.mrb[0].mxu0
        %v7210 = vadd.f32 0.0, %v7209
        %v7211 = vpop.f32.mrb[0].mxu0
        %7212 = vmatprep.mubr.bf16.mxu0 0
        %7213 = vmatmul.mubr.bf16.gmra.mrb[0].mxu0 %v6414
        %v7214 = vpop.f32.mrb[0].mxu0
        %v7215 = vadd.f32 0.0, %v7214
        %v7216 = vpop.f32.mrb[0].mxu0
        %v7217 = vpop.f32.mrb[0].mxu0
        %v7218 = vadd.f32 0.0, %v7217
        %v7219 = vpop.f32.mrb[0].mxu0
        %7220 = vdwg.mxu0
        %v7221 = vld [vmem:[%s2] sm:$0x1]
        %v7223 = vlaneseq
        %v7224 = vshrl.u32 %v7223, 7
        %v7225 = vsub.s32 0, %v7224
        %v7226 = vrot.slane %v7221, %v7225
        %v7228 = vmul.f32 %v6455, %v7226
        %v7229 = vmul.f32 %v6458, %v7226
        %v7230 = vmul.f32 %v6463, %v7226
        %v7231 = vmul.f32 %v6466, %v7226
        %v7232 = vmul.f32 %v6471, %v7226
        %v7233 = vmul.f32 %v6474, %v7226
        %v7234 = vmul.f32 %v6479, %v7226
        %v7235 = vmul.f32 %v6482, %v7226
        %v7236 = vmul.f32 %v6487, %v7226
        %v7237 = vmul.f32 %v6490, %v7226
        %v7238 = vmul.f32 %v6495, %v7226
        %v7239 = vmul.f32 %v6498, %v7226
        %v7240 = vmul.f32 %v6503, %v7226
        %v7241 = vmul.f32 %v6506, %v7226
        %v7242 = vmul.f32 %v6511, %v7226
        %v7243 = vmul.f32 %v6514, %v7226
        %v7244 = vmul.f32 %v6519, %v7226
        %v7245 = vmul.f32 %v6522, %v7226
        %v7246 = vmul.f32 %v6527, %v7226
        %v7247 = vmul.f32 %v6530, %v7226
        %v7248 = vmul.f32 %v6535, %v7226
        %v7249 = vmul.f32 %v6538, %v7226
        %v7250 = vmul.f32 %v6543, %v7226
        %v7251 = vmul.f32 %v6546, %v7226
        %v7252 = vmul.f32 %v6551, %v7226
        %v7253 = vmul.f32 %v6554, %v7226
        %v7254 = vmul.f32 %v6559, %v7226
        %v7255 = vmul.f32 %v6562, %v7226
        %v7256 = vmul.f32 %v6567, %v7226
        %v7257 = vmul.f32 %v6570, %v7226
        %v7258 = vmul.f32 %v6575, %v7226
        %v7259 = vmul.f32 %v6578, %v7226
        %v7260 = vmul.f32 %v6583, %v7226
        %v7261 = vmul.f32 %v6586, %v7226
        %v7262 = vmul.f32 %v6591, %v7226
        %v7263 = vmul.f32 %v6594, %v7226
        %v7264 = vmul.f32 %v6599, %v7226
        %v7265 = vmul.f32 %v6602, %v7226
        %v7266 = vmul.f32 %v6607, %v7226
        %v7267 = vmul.f32 %v6610, %v7226
        %v7268 = vmul.f32 %v6615, %v7226
        %v7269 = vmul.f32 %v6618, %v7226
        %v7270 = vmul.f32 %v6623, %v7226
        %v7271 = vmul.f32 %v6626, %v7226
        %v7272 = vmul.f32 %v6631, %v7226
        %v7273 = vmul.f32 %v6634, %v7226
        %v7274 = vmul.f32 %v6639, %v7226
        %v7275 = vmul.f32 %v6642, %v7226
        %v7276 = vmul.f32 %v6647, %v7226
        %v7277 = vmul.f32 %v6650, %v7226
        %v7278 = vmul.f32 %v6655, %v7226
        %v7279 = vmul.f32 %v6658, %v7226
        %v7280 = vmul.f32 %v6663, %v7226
        %v7281 = vmul.f32 %v6666, %v7226
        %v7282 = vmul.f32 %v6671, %v7226
        %v7283 = vmul.f32 %v6674, %v7226
        %v7284 = vmul.f32 %v6679, %v7226
        %v7285 = vmul.f32 %v6682, %v7226
        %v7286 = vmul.f32 %v6687, %v7226
        %v7287 = vmul.f32 %v6690, %v7226
        %v7288 = vmul.f32 %v6695, %v7226
        %v7289 = vmul.f32 %v6698, %v7226
        %v7290 = vmul.f32 %v6703, %v7226
        %v7291 = vmul.f32 %v6706, %v7226
        %v7292 = vmul.f32 %v6711, %v7226
        %v7293 = vmul.f32 %v6714, %v7226
        %v7294 = vmul.f32 %v6719, %v7226
        %v7295 = vmul.f32 %v6722, %v7226
        %v7296 = vmul.f32 %v6727, %v7226
        %v7297 = vmul.f32 %v6730, %v7226
        %v7298 = vmul.f32 %v6735, %v7226
        %v7299 = vmul.f32 %v6738, %v7226
        %v7300 = vmul.f32 %v6743, %v7226
        %v7301 = vmul.f32 %v6746, %v7226
        %v7302 = vmul.f32 %v6751, %v7226
        %v7303 = vmul.f32 %v6754, %v7226
        %v7304 = vmul.f32 %v6759, %v7226
        %v7305 = vmul.f32 %v6762, %v7226
        %v7306 = vmul.f32 %v6767, %v7226
        %v7307 = vmul.f32 %v6770, %v7226
        %v7308 = vmul.f32 %v6775, %v7226
        %v7309 = vmul.f32 %v6778, %v7226
        %v7310 = vmul.f32 %v6783, %v7226
        %v7311 = vmul.f32 %v6786, %v7226
        %v7312 = vmul.f32 %v6791, %v7226
        %v7313 = vmul.f32 %v6794, %v7226
        %v7314 = vmul.f32 %v6799, %v7226
        %v7315 = vmul.f32 %v6802, %v7226
        %v7316 = vmul.f32 %v6807, %v7226
        %v7317 = vmul.f32 %v6810, %v7226
        %v7318 = vmul.f32 %v6815, %v7226
        %v7319 = vmul.f32 %v6818, %v7226
        %v7320 = vmul.f32 %v6823, %v7226
        %v7321 = vmul.f32 %v6826, %v7226
        %v7322 = vmul.f32 %v6831, %v7226
        %v7323 = vmul.f32 %v6834, %v7226
        %v7324 = vmul.f32 %v6839, %v7226
        %v7325 = vmul.f32 %v6842, %v7226
        %v7326 = vmul.f32 %v6847, %v7226
        %v7327 = vmul.f32 %v6850, %v7226
        %v7328 = vmul.f32 %v6855, %v7226
        %v7329 = vmul.f32 %v6858, %v7226
        %v7330 = vmul.f32 %v6863, %v7226
        %v7331 = vmul.f32 %v6866, %v7226
        %v7332 = vmul.f32 %v6871, %v7226
        %v7333 = vmul.f32 %v6874, %v7226
        %v7334 = vmul.f32 %v6879, %v7226
        %v7335 = vmul.f32 %v6882, %v7226
        %v7336 = vmul.f32 %v6887, %v7226
        %v7337 = vmul.f32 %v6890, %v7226
        %v7338 = vmul.f32 %v6895, %v7226
        %v7339 = vmul.f32 %v6898, %v7226
        %v7340 = vmul.f32 %v6903, %v7226
        %v7341 = vmul.f32 %v6906, %v7226
        %v7342 = vmul.f32 %v6911, %v7226
        %v7343 = vmul.f32 %v6914, %v7226
        %v7344 = vmul.f32 %v6919, %v7226
        %v7345 = vmul.f32 %v6922, %v7226
        %v7346 = vmul.f32 %v6927, %v7226
        %v7347 = vmul.f32 %v6930, %v7226
        %v7348 = vmul.f32 %v6935, %v7226
        %v7349 = vmul.f32 %v6938, %v7226
        %v7350 = vmul.f32 %v6943, %v7226
        %v7351 = vmul.f32 %v6946, %v7226
        %v7352 = vmul.f32 %v6951, %v7226
        %v7353 = vmul.f32 %v6954, %v7226
        %v7354 = vmul.f32 %v6959, %v7226
        %v7355 = vmul.f32 %v6962, %v7226
        %v7356 = vmul.f32 %v6967, %v7226
        %v7357 = vmul.f32 %v6970, %v7226
        %v7358 = vmul.f32 %v6975, %v7226
        %v7359 = vmul.f32 %v6978, %v7226
        %v7360 = vmul.f32 %v6983, %v7226
        %v7361 = vmul.f32 %v6986, %v7226
        %v7362 = vmul.f32 %v6991, %v7226
        %v7363 = vmul.f32 %v6994, %v7226
        %v7364 = vmul.f32 %v6999, %v7226
        %v7365 = vmul.f32 %v7002, %v7226
        %v7366 = vmul.f32 %v7007, %v7226
        %v7367 = vmul.f32 %v7010, %v7226
        %v7368 = vmul.f32 %v7015, %v7226
        %v7369 = vmul.f32 %v7018, %v7226
        %v7370 = vmul.f32 %v7023, %v7226
        %v7371 = vmul.f32 %v7026, %v7226
        %v7372 = vmul.f32 %v7031, %v7226
        %v7373 = vmul.f32 %v7034, %v7226
        %v7374 = vmul.f32 %v7039, %v7226
        %v7375 = vmul.f32 %v7042, %v7226
        %v7376 = vmul.f32 %v7047, %v7226
        %v7377 = vmul.f32 %v7050, %v7226
        %v7378 = vmul.f32 %v7055, %v7226
        %v7379 = vmul.f32 %v7058, %v7226
        %v7380 = vmul.f32 %v7063, %v7226
        %v7381 = vmul.f32 %v7066, %v7226
        %v7382 = vmul.f32 %v7071, %v7226
        %v7383 = vmul.f32 %v7074, %v7226
        %v7384 = vmul.f32 %v7079, %v7226
        %v7385 = vmul.f32 %v7082, %v7226
        %v7386 = vmul.f32 %v7087, %v7226
        %v7387 = vmul.f32 %v7090, %v7226
        %v7388 = vmul.f32 %v7095, %v7226
        %v7389 = vmul.f32 %v7098, %v7226
        %v7390 = vmul.f32 %v7103, %v7226
        %v7391 = vmul.f32 %v7106, %v7226
        %v7392 = vmul.f32 %v7111, %v7226
        %v7393 = vmul.f32 %v7114, %v7226
        %v7394 = vmul.f32 %v7119, %v7226
        %v7395 = vmul.f32 %v7122, %v7226
        %v7396 = vmul.f32 %v7127, %v7226
        %v7397 = vmul.f32 %v7130, %v7226
        %v7398 = vmul.f32 %v7135, %v7226
        %v7399 = vmul.f32 %v7138, %v7226
        %v7400 = vmul.f32 %v7143, %v7226
        %v7401 = vmul.f32 %v7146, %v7226
        %v7402 = vmul.f32 %v7151, %v7226
        %v7403 = vmul.f32 %v7154, %v7226
        %v7404 = vmul.f32 %v7159, %v7226
        %v7405 = vmul.f32 %v7162, %v7226
        %v7406 = vmul.f32 %v7167, %v7226
        %v7407 = vmul.f32 %v7170, %v7226
        %v7408 = vmul.f32 %v7175, %v7226
        %v7409 = vmul.f32 %v7178, %v7226
        %v7410 = vmul.f32 %v7183, %v7226
        %v7411 = vmul.f32 %v7186, %v7226
        %v7412 = vmul.f32 %v7191, %v7226
        %v7413 = vmul.f32 %v7194, %v7226
        %v7414 = vmul.f32 %v7199, %v7226
        %v7415 = vmul.f32 %v7202, %v7226
        %v7416 = vmul.f32 %v7207, %v7226
        %v7417 = vmul.f32 %v7210, %v7226
        %v7418 = vmul.f32 %v7215, %v7226
        %v7419 = vmul.f32 %v7218, %v7226
        %v7420 = vld [vmem:[%s3] sm:$0x1]
        %v7422 = vlaneseq
        %v7423 = vshrl.u32 %v7422, 7
        %v7424 = vsub.s32 0, %v7423
        %v7425 = vrot.slane %v7420, %v7424
        %v7427 = vadd.f32 %v7228, %v7425
        %v7428 = vadd.f32 %v7229, %v7425
        %v7429 = vadd.f32 %v7230, %v7425
        %v7430 = vadd.f32 %v7231, %v7425
        %v7431 = vadd.f32 %v7232, %v7425
        %v7432 = vadd.f32 %v7233, %v7425
        %v7433 = vadd.f32 %v7234, %v7425
        %v7434 = vadd.f32 %v7235, %v7425
        %v7435 = vadd.f32 %v7236, %v7425
        %v7436 = vadd.f32 %v7237, %v7425
        %v7437 = vadd.f32 %v7238, %v7425
        %v7438 = vadd.f32 %v7239, %v7425
        %v7439 = vadd.f32 %v7240, %v7425
        %v7440 = vadd.f32 %v7241, %v7425
        %v7441 = vadd.f32 %v7242, %v7425
        %v7442 = vadd.f32 %v7243, %v7425
        %v7443 = vadd.f32 %v7244, %v7425
        %v7444 = vadd.f32 %v7245, %v7425
        %v7445 = vadd.f32 %v7246, %v7425
        %v7446 = vadd.f32 %v7247, %v7425
        %v7447 = vadd.f32 %v7248, %v7425
        %v7448 = vadd.f32 %v7249, %v7425
        %v7449 = vadd.f32 %v7250, %v7425
        %v7450 = vadd.f32 %v7251, %v7425
        %v7451 = vadd.f32 %v7252, %v7425
        %v7452 = vadd.f32 %v7253, %v7425
        %v7453 = vadd.f32 %v7254, %v7425
        %v7454 = vadd.f32 %v7255, %v7425
        %v7455 = vadd.f32 %v7256, %v7425
        %v7456 = vadd.f32 %v7257, %v7425
        %v7457 = vadd.f32 %v7258, %v7425
        %v7458 = vadd.f32 %v7259, %v7425
        %v7459 = vadd.f32 %v7260, %v7425
        %v7460 = vadd.f32 %v7261, %v7425
        %v7461 = vadd.f32 %v7262, %v7425
        %v7462 = vadd.f32 %v7263, %v7425
        %v7463 = vadd.f32 %v7264, %v7425
        %v7464 = vadd.f32 %v7265, %v7425
        %v7465 = vadd.f32 %v7266, %v7425
        %v7466 = vadd.f32 %v7267, %v7425
        %v7467 = vadd.f32 %v7268, %v7425
        %v7468 = vadd.f32 %v7269, %v7425
        %v7469 = vadd.f32 %v7270, %v7425
        %v7470 = vadd.f32 %v7271, %v7425
        %v7471 = vadd.f32 %v7272, %v7425
        %v7472 = vadd.f32 %v7273, %v7425
        %v7473 = vadd.f32 %v7274, %v7425
        %v7474 = vadd.f32 %v7275, %v7425
        %v7475 = vadd.f32 %v7276, %v7425
        %v7476 = vadd.f32 %v7277, %v7425
        %v7477 = vadd.f32 %v7278, %v7425
        %v7478 = vadd.f32 %v7279, %v7425
        %v7479 = vadd.f32 %v7280, %v7425
        %v7480 = vadd.f32 %v7281, %v7425
        %v7481 = vadd.f32 %v7282, %v7425
        %v7482 = vadd.f32 %v7283, %v7425
        %v7483 = vadd.f32 %v7284, %v7425
        %v7484 = vadd.f32 %v7285, %v7425
        %v7485 = vadd.f32 %v7286, %v7425
        %v7486 = vadd.f32 %v7287, %v7425
        %v7487 = vadd.f32 %v7288, %v7425
        %v7488 = vadd.f32 %v7289, %v7425
        %v7489 = vadd.f32 %v7290, %v7425
        %v7490 = vadd.f32 %v7291, %v7425
        %v7491 = vadd.f32 %v7292, %v7425
        %v7492 = vadd.f32 %v7293, %v7425
        %v7493 = vadd.f32 %v7294, %v7425
        %v7494 = vadd.f32 %v7295, %v7425
        %v7495 = vadd.f32 %v7296, %v7425
        %v7496 = vadd.f32 %v7297, %v7425
        %v7497 = vadd.f32 %v7298, %v7425
        %v7498 = vadd.f32 %v7299, %v7425
        %v7499 = vadd.f32 %v7300, %v7425
        %v7500 = vadd.f32 %v7301, %v7425
        %v7501 = vadd.f32 %v7302, %v7425
        %v7502 = vadd.f32 %v7303, %v7425
        %v7503 = vadd.f32 %v7304, %v7425
        %v7504 = vadd.f32 %v7305, %v7425
        %v7505 = vadd.f32 %v7306, %v7425
        %v7506 = vadd.f32 %v7307, %v7425
        %v7507 = vadd.f32 %v7308, %v7425
        %v7508 = vadd.f32 %v7309, %v7425
        %v7509 = vadd.f32 %v7310, %v7425
        %v7510 = vadd.f32 %v7311, %v7425
        %v7511 = vadd.f32 %v7312, %v7425
        %v7512 = vadd.f32 %v7313, %v7425
        %v7513 = vadd.f32 %v7314, %v7425
        %v7514 = vadd.f32 %v7315, %v7425
        %v7515 = vadd.f32 %v7316, %v7425
        %v7516 = vadd.f32 %v7317, %v7425
        %v7517 = vadd.f32 %v7318, %v7425
        %v7518 = vadd.f32 %v7319, %v7425
        %v7519 = vadd.f32 %v7320, %v7425
        %v7520 = vadd.f32 %v7321, %v7425
        %v7521 = vadd.f32 %v7322, %v7425
        %v7522 = vadd.f32 %v7323, %v7425
        %v7523 = vadd.f32 %v7324, %v7425
        %v7524 = vadd.f32 %v7325, %v7425
        %v7525 = vadd.f32 %v7326, %v7425
        %v7526 = vadd.f32 %v7327, %v7425
        %v7527 = vadd.f32 %v7328, %v7425
        %v7528 = vadd.f32 %v7329, %v7425
        %v7529 = vadd.f32 %v7330, %v7425
        %v7530 = vadd.f32 %v7331, %v7425
        %v7531 = vadd.f32 %v7332, %v7425
        %v7532 = vadd.f32 %v7333, %v7425
        %v7533 = vadd.f32 %v7334, %v7425
        %v7534 = vadd.f32 %v7335, %v7425
        %v7535 = vadd.f32 %v7336, %v7425
        %v7536 = vadd.f32 %v7337, %v7425
        %v7537 = vadd.f32 %v7338, %v7425
        %v7538 = vadd.f32 %v7339, %v7425
        %v7539 = vadd.f32 %v7340, %v7425
        %v7540 = vadd.f32 %v7341, %v7425
        %v7541 = vadd.f32 %v7342, %v7425
        %v7542 = vadd.f32 %v7343, %v7425
        %v7543 = vadd.f32 %v7344, %v7425
        %v7544 = vadd.f32 %v7345, %v7425
        %v7545 = vadd.f32 %v7346, %v7425
        %v7546 = vadd.f32 %v7347, %v7425
        %v7547 = vadd.f32 %v7348, %v7425
        %v7548 = vadd.f32 %v7349, %v7425
        %v7549 = vadd.f32 %v7350, %v7425
        %v7550 = vadd.f32 %v7351, %v7425
        %v7551 = vadd.f32 %v7352, %v7425
        %v7552 = vadd.f32 %v7353, %v7425
        %v7553 = vadd.f32 %v7354, %v7425
        %v7554 = vadd.f32 %v7355, %v7425
        %v7555 = vadd.f32 %v7356, %v7425
        %v7556 = vadd.f32 %v7357, %v7425
        %v7557 = vadd.f32 %v7358, %v7425
        %v7558 = vadd.f32 %v7359, %v7425
        %v7559 = vadd.f32 %v7360, %v7425
        %v7560 = vadd.f32 %v7361, %v7425
        %v7561 = vadd.f32 %v7362, %v7425
        %v7562 = vadd.f32 %v7363, %v7425
        %v7563 = vadd.f32 %v7364, %v7425
        %v7564 = vadd.f32 %v7365, %v7425
        %v7565 = vadd.f32 %v7366, %v7425
        %v7566 = vadd.f32 %v7367, %v7425
        %v7567 = vadd.f32 %v7368, %v7425
        %v7568 = vadd.f32 %v7369, %v7425
        %v7569 = vadd.f32 %v7370, %v7425
        %v7570 = vadd.f32 %v7371, %v7425
        %v7571 = vadd.f32 %v7372, %v7425
        %v7572 = vadd.f32 %v7373, %v7425
        %v7573 = vadd.f32 %v7374, %v7425
        %v7574 = vadd.f32 %v7375, %v7425
        %v7575 = vadd.f32 %v7376, %v7425
        %v7576 = vadd.f32 %v7377, %v7425
        %v7577 = vadd.f32 %v7378, %v7425
        %v7578 = vadd.f32 %v7379, %v7425
        %v7579 = vadd.f32 %v7380, %v7425
        %v7580 = vadd.f32 %v7381, %v7425
        %v7581 = vadd.f32 %v7382, %v7425
        %v7582 = vadd.f32 %v7383, %v7425
        %v7583 = vadd.f32 %v7384, %v7425
        %v7584 = vadd.f32 %v7385, %v7425
        %v7585 = vadd.f32 %v7386, %v7425
        %v7586 = vadd.f32 %v7387, %v7425
        %v7587 = vadd.f32 %v7388, %v7425
        %v7588 = vadd.f32 %v7389, %v7425
        %v7589 = vadd.f32 %v7390, %v7425
        %v7590 = vadd.f32 %v7391, %v7425
        %v7591 = vadd.f32 %v7392, %v7425
        %v7592 = vadd.f32 %v7393, %v7425
        %v7593 = vadd.f32 %v7394, %v7425
        %v7594 = vadd.f32 %v7395, %v7425
        %v7595 = vadd.f32 %v7396, %v7425
        %v7596 = vadd.f32 %v7397, %v7425
        %v7597 = vadd.f32 %v7398, %v7425
        %v7598 = vadd.f32 %v7399, %v7425
        %v7599 = vadd.f32 %v7400, %v7425
        %v7600 = vadd.f32 %v7401, %v7425
        %v7601 = vadd.f32 %v7402, %v7425
        %v7602 = vadd.f32 %v7403, %v7425
        %v7603 = vadd.f32 %v7404, %v7425
        %v7604 = vadd.f32 %v7405, %v7425
        %v7605 = vadd.f32 %v7406, %v7425
        %v7606 = vadd.f32 %v7407, %v7425
        %v7607 = vadd.f32 %v7408, %v7425
        %v7608 = vadd.f32 %v7409, %v7425
        %v7609 = vadd.f32 %v7410, %v7425
        %v7610 = vadd.f32 %v7411, %v7425
        %v7611 = vadd.f32 %v7412, %v7425
        %v7612 = vadd.f32 %v7413, %v7425
        %v7613 = vadd.f32 %v7414, %v7425
        %v7614 = vadd.f32 %v7415, %v7425
        %v7615 = vadd.f32 %v7416, %v7425
        %v7616 = vadd.f32 %v7417, %v7425
        %v7617 = vadd.f32 %v7418, %v7425
        %v7618 = vadd.f32 %v7419, %v7425
        %v7619 = vmax.f32 %v7427, 0.0
        %v7620 = vmax.f32 %v7428, 0.0
        %v7621 = vmax.f32 %v7429, 0.0
        %v7622 = vmax.f32 %v7430, 0.0
        %v7623 = vmax.f32 %v7431, 0.0
        %v7624 = vmax.f32 %v7432, 0.0
        %v7625 = vmax.f32 %v7433, 0.0
        %v7626 = vmax.f32 %v7434, 0.0
        %v7627 = vmax.f32 %v7435, 0.0
        %v7628 = vmax.f32 %v7436, 0.0
        %v7629 = vmax.f32 %v7437, 0.0
        %v7630 = vmax.f32 %v7438, 0.0
        %v7631 = vmax.f32 %v7439, 0.0
        %v7632 = vmax.f32 %v7440, 0.0
        %v7633 = vmax.f32 %v7441, 0.0
        %v7634 = vmax.f32 %v7442, 0.0
        %v7635 = vmax.f32 %v7443, 0.0
        %v7636 = vmax.f32 %v7444, 0.0
        %v7637 = vmax.f32 %v7445, 0.0
        %v7638 = vmax.f32 %v7446, 0.0
        %v7639 = vmax.f32 %v7447, 0.0
        %v7640 = vmax.f32 %v7448, 0.0
        %v7641 = vmax.f32 %v7449, 0.0
        %v7642 = vmax.f32 %v7450, 0.0
        %v7643 = vmax.f32 %v7451, 0.0
        %v7644 = vmax.f32 %v7452, 0.0
        %v7645 = vmax.f32 %v7453, 0.0
        %v7646 = vmax.f32 %v7454, 0.0
        %v7647 = vmax.f32 %v7455, 0.0
        %v7648 = vmax.f32 %v7456, 0.0
        %v7649 = vmax.f32 %v7457, 0.0
        %v7650 = vmax.f32 %v7458, 0.0
        %v7651 = vmax.f32 %v7459, 0.0
        %v7652 = vmax.f32 %v7460, 0.0
        %v7653 = vmax.f32 %v7461, 0.0
        %v7654 = vmax.f32 %v7462, 0.0
        %v7655 = vmax.f32 %v7463, 0.0
        %v7656 = vmax.f32 %v7464, 0.0
        %v7657 = vmax.f32 %v7465, 0.0
        %v7658 = vmax.f32 %v7466, 0.0
        %v7659 = vmax.f32 %v7467, 0.0
        %v7660 = vmax.f32 %v7468, 0.0
        %v7661 = vmax.f32 %v7469, 0.0
        %v7662 = vmax.f32 %v7470, 0.0
        %v7663 = vmax.f32 %v7471, 0.0
        %v7664 = vmax.f32 %v7472, 0.0
        %v7665 = vmax.f32 %v7473, 0.0
        %v7666 = vmax.f32 %v7474, 0.0
        %v7667 = vmax.f32 %v7475, 0.0
        %v7668 = vmax.f32 %v7476, 0.0
        %v7669 = vmax.f32 %v7477, 0.0
        %v7670 = vmax.f32 %v7478, 0.0
        %v7671 = vmax.f32 %v7479, 0.0
        %v7672 = vmax.f32 %v7480, 0.0
        %v7673 = vmax.f32 %v7481, 0.0
        %v7674 = vmax.f32 %v7482, 0.0
        %v7675 = vmax.f32 %v7483, 0.0
        %v7676 = vmax.f32 %v7484, 0.0
        %v7677 = vmax.f32 %v7485, 0.0
        %v7678 = vmax.f32 %v7486, 0.0
        %v7679 = vmax.f32 %v7487, 0.0
        %v7680 = vmax.f32 %v7488, 0.0
        %v7681 = vmax.f32 %v7489, 0.0
        %v7682 = vmax.f32 %v7490, 0.0
        %v7683 = vmax.f32 %v7491, 0.0
        %v7684 = vmax.f32 %v7492, 0.0
        %v7685 = vmax.f32 %v7493, 0.0
        %v7686 = vmax.f32 %v7494, 0.0
        %v7687 = vmax.f32 %v7495, 0.0
        %v7688 = vmax.f32 %v7496, 0.0
        %v7689 = vmax.f32 %v7497, 0.0
        %v7690 = vmax.f32 %v7498, 0.0
        %v7691 = vmax.f32 %v7499, 0.0
        %v7692 = vmax.f32 %v7500, 0.0
        %v7693 = vmax.f32 %v7501, 0.0
        %v7694 = vmax.f32 %v7502, 0.0
        %v7695 = vmax.f32 %v7503, 0.0
        %v7696 = vmax.f32 %v7504, 0.0
        %v7697 = vmax.f32 %v7505, 0.0
        %v7698 = vmax.f32 %v7506, 0.0
        %v7699 = vmax.f32 %v7507, 0.0
        %v7700 = vmax.f32 %v7508, 0.0
        %v7701 = vmax.f32 %v7509, 0.0
        %v7702 = vmax.f32 %v7510, 0.0
        %v7703 = vmax.f32 %v7511, 0.0
        %v7704 = vmax.f32 %v7512, 0.0
        %v7705 = vmax.f32 %v7513, 0.0
        %v7706 = vmax.f32 %v7514, 0.0
        %v7707 = vmax.f32 %v7515, 0.0
        %v7708 = vmax.f32 %v7516, 0.0
        %v7709 = vmax.f32 %v7517, 0.0
        %v7710 = vmax.f32 %v7518, 0.0
        %v7711 = vmax.f32 %v7519, 0.0
        %v7712 = vmax.f32 %v7520, 0.0
        %v7713 = vmax.f32 %v7521, 0.0
        %v7714 = vmax.f32 %v7522, 0.0
        %v7715 = vmax.f32 %v7523, 0.0
        %v7716 = vmax.f32 %v7524, 0.0
        %v7717 = vmax.f32 %v7525, 0.0
        %v7718 = vmax.f32 %v7526, 0.0
        %v7719 = vmax.f32 %v7527, 0.0
        %v7720 = vmax.f32 %v7528, 0.0
        %v7721 = vmax.f32 %v7529, 0.0
        %v7722 = vmax.f32 %v7530, 0.0
        %v7723 = vmax.f32 %v7531, 0.0
        %v7724 = vmax.f32 %v7532, 0.0
        %v7725 = vmax.f32 %v7533, 0.0
        %v7726 = vmax.f32 %v7534, 0.0
        %v7727 = vmax.f32 %v7535, 0.0
        %v7728 = vmax.f32 %v7536, 0.0
        %v7729 = vmax.f32 %v7537, 0.0
        %v7730 = vmax.f32 %v7538, 0.0
        %v7731 = vmax.f32 %v7539, 0.0
        %v7732 = vmax.f32 %v7540, 0.0
        %v7733 = vmax.f32 %v7541, 0.0
        %v7734 = vmax.f32 %v7542, 0.0
        %v7735 = vmax.f32 %v7543, 0.0
        %v7736 = vmax.f32 %v7544, 0.0
        %v7737 = vmax.f32 %v7545, 0.0
        %v7738 = vmax.f32 %v7546, 0.0
        %v7739 = vmax.f32 %v7547, 0.0
        %v7740 = vmax.f32 %v7548, 0.0
        %v7741 = vmax.f32 %v7549, 0.0
        %v7742 = vmax.f32 %v7550, 0.0
        %v7743 = vmax.f32 %v7551, 0.0
        %v7744 = vmax.f32 %v7552, 0.0
        %v7745 = vmax.f32 %v7553, 0.0
        %v7746 = vmax.f32 %v7554, 0.0
        %v7747 = vmax.f32 %v7555, 0.0
        %v7748 = vmax.f32 %v7556, 0.0
        %v7749 = vmax.f32 %v7557, 0.0
        %v7750 = vmax.f32 %v7558, 0.0
        %v7751 = vmax.f32 %v7559, 0.0
        %v7752 = vmax.f32 %v7560, 0.0
        %v7753 = vmax.f32 %v7561, 0.0
        %v7754 = vmax.f32 %v7562, 0.0
        %v7755 = vmax.f32 %v7563, 0.0
        %v7756 = vmax.f32 %v7564, 0.0
        %v7757 = vmax.f32 %v7565, 0.0
        %v7758 = vmax.f32 %v7566, 0.0
        %v7759 = vmax.f32 %v7567, 0.0
        %v7760 = vmax.f32 %v7568, 0.0
        %v7761 = vmax.f32 %v7569, 0.0
        %v7762 = vmax.f32 %v7570, 0.0
        %v7763 = vmax.f32 %v7571, 0.0
        %v7764 = vmax.f32 %v7572, 0.0
        %v7765 = vmax.f32 %v7573, 0.0
        %v7766 = vmax.f32 %v7574, 0.0
        %v7767 = vmax.f32 %v7575, 0.0
        %v7768 = vmax.f32 %v7576, 0.0
        %v7769 = vmax.f32 %v7577, 0.0
        %v7770 = vmax.f32 %v7578, 0.0
        %v7771 = vmax.f32 %v7579, 0.0
        %v7772 = vmax.f32 %v7580, 0.0
        %v7773 = vmax.f32 %v7581, 0.0
        %v7774 = vmax.f32 %v7582, 0.0
        %v7775 = vmax.f32 %v7583, 0.0
        %v7776 = vmax.f32 %v7584, 0.0
        %v7777 = vmax.f32 %v7585, 0.0
        %v7778 = vmax.f32 %v7586, 0.0
        %v7779 = vmax.f32 %v7587, 0.0
        %v7780 = vmax.f32 %v7588, 0.0
        %v7781 = vmax.f32 %v7589, 0.0
        %v7782 = vmax.f32 %v7590, 0.0
        %v7783 = vmax.f32 %v7591, 0.0
        %v7784 = vmax.f32 %v7592, 0.0
        %v7785 = vmax.f32 %v7593, 0.0
        %v7786 = vmax.f32 %v7594, 0.0
        %v7787 = vmax.f32 %v7595, 0.0
        %v7788 = vmax.f32 %v7596, 0.0
        %v7789 = vmax.f32 %v7597, 0.0
        %v7790 = vmax.f32 %v7598, 0.0
        %v7791 = vmax.f32 %v7599, 0.0
        %v7792 = vmax.f32 %v7600, 0.0
        %v7793 = vmax.f32 %v7601, 0.0
        %v7794 = vmax.f32 %v7602, 0.0
        %v7795 = vmax.f32 %v7603, 0.0
        %v7796 = vmax.f32 %v7604, 0.0
        %v7797 = vmax.f32 %v7605, 0.0
        %v7798 = vmax.f32 %v7606, 0.0
        %v7799 = vmax.f32 %v7607, 0.0
        %v7800 = vmax.f32 %v7608, 0.0
        %v7801 = vmax.f32 %v7609, 0.0
        %v7802 = vmax.f32 %v7610, 0.0
        %v7803 = vmax.f32 %v7611, 0.0
        %v7804 = vmax.f32 %v7612, 0.0
        %v7805 = vmax.f32 %v7613, 0.0
        %v7806 = vmax.f32 %v7614, 0.0
        %v7807 = vmax.f32 %v7615, 0.0
        %v7808 = vmax.f32 %v7616, 0.0
        %v7809 = vmax.f32 %v7617, 0.0
        %v7810 = vmax.f32 %v7618, 0.0
        %v7811 = vstv %s293
        %v7812 = vadd.s32 %v7811, 1
        %v7813 = vadd.s32 %v7811, 2
        %v7814 = vadd.s32 %v7811, 3
        %v7815 = vadd.s32 %v7811, 4
        %v7816 = vadd.s32 %v7811, 5
        %vm7817 = vcmp.ge.s32.totalorder %v7811, 1
        %vm7818 = vcmp.ge.s32.totalorder %v7812, 1
        %vm7819 = vcmp.ge.s32.totalorder %v7813, 1
        %vm7820 = vcmp.ge.s32.totalorder %v7814, 1
        %vm7821 = vcmp.ge.s32.totalorder %v7815, 1
        %vm7822 = vcmp.ge.s32.totalorder %v7816, 1
        %vm7823 = vcmp.lt.s32.totalorder %v7811, 9
        %vm7824 = vcmp.lt.s32.totalorder %v7812, 9
        %vm7825 = vcmp.lt.s32.totalorder %v7813, 9
        %vm7826 = vcmp.lt.s32.totalorder %v7814, 9
        %vm7827 = vcmp.lt.s32.totalorder %v7815, 9
        %vm7828 = vcmp.lt.s32.totalorder %v7816, 9
        %vm7829 = vmand %vm7817, %vm7823
        %vm7830 = vmand %vm7818, %vm7824
        %vm7831 = vmand %vm7819, %vm7825
        %vm7832 = vmand %vm7820, %vm7826
        %vm7833 = vmand %vm7821, %vm7827
        %vm7834 = vmand %vm7822, %vm7828
        %v7835 = vsel %vm7829, 1, 0
        %v7836 = vsel %vm7830, 1, 0
        %v7837 = vsel %vm7831, 1, 0
        %v7838 = vsel %vm7832, 1, 0
        %v7839 = vsel %vm7833, 1, 0
        %v7840 = vsel %vm7834, 1, 0
        %vm7841 = vcmp.eq.s32.totalorder %v7835, 1
        %vm7842 = vcmp.eq.s32.totalorder %v7836, 1
        %vm7843 = vcmp.eq.s32.totalorder %v7837, 1
        %vm7844 = vcmp.eq.s32.totalorder %v7838, 1
        %vm7845 = vcmp.eq.s32.totalorder %v7839, 1
        %vm7846 = vcmp.eq.s32.totalorder %v7840, 1
        %v7847 = vsel %vm7841, %v7619, 0.0
        %v7848 = vsel %vm7841, %v7620, 0.0
        %v7849 = vsel %vm7841, %v7621, 0.0
        %v7850 = vsel %vm7841, %v7622, 0.0
        %v7851 = vsel %vm7841, %v7623, 0.0
        %v7852 = vsel %vm7841, %v7624, 0.0
        %v7853 = vsel %vm7841, %v7625, 0.0
        %v7854 = vsel %vm7841, %v7626, 0.0
        %v7855 = vsel %vm7841, %v7627, 0.0
        %v7856 = vsel %vm7841, %v7628, 0.0
        %v7857 = vsel %vm7841, %v7629, 0.0
        %v7858 = vsel %vm7841, %v7630, 0.0
        %v7859 = vsel %vm7841, %v7631, 0.0
        %v7860 = vsel %vm7841, %v7632, 0.0
        %v7861 = vsel %vm7841, %v7633, 0.0
        %v7862 = vsel %vm7841, %v7634, 0.0
        %v7863 = vsel %vm7841, %v7635, 0.0
        %v7864 = vsel %vm7841, %v7636, 0.0
        %v7865 = vsel %vm7841, %v7637, 0.0
        %v7866 = vsel %vm7841, %v7638, 0.0
        %v7867 = vsel %vm7841, %v7639, 0.0
        %v7868 = vsel %vm7841, %v7640, 0.0
        %v7869 = vsel %vm7841, %v7641, 0.0
        %v7870 = vsel %vm7841, %v7642, 0.0
        %v7871 = vsel %vm7841, %v7643, 0.0
        %v7872 = vsel %vm7841, %v7644, 0.0
        %v7873 = vsel %vm7841, %v7645, 0.0
        %v7874 = vsel %vm7841, %v7646, 0.0
        %v7875 = vsel %vm7841, %v7647, 0.0
        %v7876 = vsel %vm7841, %v7648, 0.0
        %v7877 = vsel %vm7841, %v7649, 0.0
        %v7878 = vsel %vm7841, %v7650, 0.0
        %v7879 = vsel %vm7842, %v7651, 0.0
        %v7880 = vsel %vm7842, %v7652, 0.0
        %v7881 = vsel %vm7842, %v7653, 0.0
        %v7882 = vsel %vm7842, %v7654, 0.0
        %v7883 = vsel %vm7842, %v7655, 0.0
        %v7884 = vsel %vm7842, %v7656, 0.0
        %v7885 = vsel %vm7842, %v7657, 0.0
        %v7886 = vsel %vm7842, %v7658, 0.0
        %v7887 = vsel %vm7842, %v7659, 0.0
        %v7888 = vsel %vm7842, %v7660, 0.0
        %v7889 = vsel %vm7842, %v7661, 0.0
        %v7890 = vsel %vm7842, %v7662, 0.0
        %v7891 = vsel %vm7842, %v7663, 0.0
        %v7892 = vsel %vm7842, %v7664, 0.0
        %v7893 = vsel %vm7842, %v7665, 0.0
        %v7894 = vsel %vm7842, %v7666, 0.0
        %v7895 = vsel %vm7842, %v7667, 0.0
        %v7896 = vsel %vm7842, %v7668, 0.0
        %v7897 = vsel %vm7842, %v7669, 0.0
        %v7898 = vsel %vm7842, %v7670, 0.0
        %v7899 = vsel %vm7842, %v7671, 0.0
        %v7900 = vsel %vm7842, %v7672, 0.0
        %v7901 = vsel %vm7842, %v7673, 0.0
        %v7902 = vsel %vm7842, %v7674, 0.0
        %v7903 = vsel %vm7842, %v7675, 0.0
        %v7904 = vsel %vm7842, %v7676, 0.0
        %v7905 = vsel %vm7842, %v7677, 0.0
        %v7906 = vsel %vm7842, %v7678, 0.0
        %v7907 = vsel %vm7842, %v7679, 0.0
        %v7908 = vsel %vm7842, %v7680, 0.0
        %v7909 = vsel %vm7842, %v7681, 0.0
        %v7910 = vsel %vm7842, %v7682, 0.0
        %v7911 = vsel %vm7843, %v7683, 0.0
        %v7912 = vsel %vm7843, %v7684, 0.0
        %v7913 = vsel %vm7843, %v7685, 0.0
        %v7914 = vsel %vm7843, %v7686, 0.0
        %v7915 = vsel %vm7843, %v7687, 0.0
        %v7916 = vsel %vm7843, %v7688, 0.0
        %v7917 = vsel %vm7843, %v7689, 0.0
        %v7918 = vsel %vm7843, %v7690, 0.0
        %v7919 = vsel %vm7843, %v7691, 0.0
        %v7920 = vsel %vm7843, %v7692, 0.0
        %v7921 = vsel %vm7843, %v7693, 0.0
        %v7922 = vsel %vm7843, %v7694, 0.0
        %v7923 = vsel %vm7843, %v7695, 0.0
        %v7924 = vsel %vm7843, %v7696, 0.0
        %v7925 = vsel %vm7843, %v7697, 0.0
        %v7926 = vsel %vm7843, %v7698, 0.0
        %v7927 = vsel %vm7843, %v7699, 0.0
        %v7928 = vsel %vm7843, %v7700, 0.0
        %v7929 = vsel %vm7843, %v7701, 0.0
        %v7930 = vsel %vm7843, %v7702, 0.0
        %v7931 = vsel %vm7843, %v7703, 0.0
        %v7932 = vsel %vm7843, %v7704, 0.0
        %v7933 = vsel %vm7843, %v7705, 0.0
        %v7934 = vsel %vm7843, %v7706, 0.0
        %v7935 = vsel %vm7843, %v7707, 0.0
        %v7936 = vsel %vm7843, %v7708, 0.0
        %v7937 = vsel %vm7843, %v7709, 0.0
        %v7938 = vsel %vm7843, %v7710, 0.0
        %v7939 = vsel %vm7843, %v7711, 0.0
        %v7940 = vsel %vm7843, %v7712, 0.0
        %v7941 = vsel %vm7843, %v7713, 0.0
        %v7942 = vsel %vm7843, %v7714, 0.0
        %v7943 = vsel %vm7844, %v7715, 0.0
        %v7944 = vsel %vm7844, %v7716, 0.0
        %v7945 = vsel %vm7844, %v7717, 0.0
        %v7946 = vsel %vm7844, %v7718, 0.0
        %v7947 = vsel %vm7844, %v7719, 0.0
        %v7948 = vsel %vm7844, %v7720, 0.0
        %v7949 = vsel %vm7844, %v7721, 0.0
        %v7950 = vsel %vm7844, %v7722, 0.0
        %v7951 = vsel %vm7844, %v7723, 0.0
        %v7952 = vsel %vm7844, %v7724, 0.0
        %v7953 = vsel %vm7844, %v7725, 0.0
        %v7954 = vsel %vm7844, %v7726, 0.0
        %v7955 = vsel %vm7844, %v7727, 0.0
        %v7956 = vsel %vm7844, %v7728, 0.0
        %v7957 = vsel %vm7844, %v7729, 0.0
        %v7958 = vsel %vm7844, %v7730, 0.0
        %v7959 = vsel %vm7844, %v7731, 0.0
        %v7960 = vsel %vm7844, %v7732, 0.0
        %v7961 = vsel %vm7844, %v7733, 0.0
        %v7962 = vsel %vm7844, %v7734, 0.0
        %v7963 = vsel %vm7844, %v7735, 0.0
        %v7964 = vsel %vm7844, %v7736, 0.0
        %v7965 = vsel %vm7844, %v7737, 0.0
        %v7966 = vsel %vm7844, %v7738, 0.0
        %v7967 = vsel %vm7844, %v7739, 0.0
        %v7968 = vsel %vm7844, %v7740, 0.0
        %v7969 = vsel %vm7844, %v7741, 0.0
        %v7970 = vsel %vm7844, %v7742, 0.0
        %v7971 = vsel %vm7844, %v7743, 0.0
        %v7972 = vsel %vm7844, %v7744, 0.0
        %v7973 = vsel %vm7844, %v7745, 0.0
        %v7974 = vsel %vm7844, %v7746, 0.0
        %v7975 = vsel %vm7845, %v7747, 0.0
        %v7976 = vsel %vm7845, %v7748, 0.0
        %v7977 = vsel %vm7845, %v7749, 0.0
        %v7978 = vsel %vm7845, %v7750, 0.0
        %v7979 = vsel %vm7845, %v7751, 0.0
        %v7980 = vsel %vm7845, %v7752, 0.0
        %v7981 = vsel %vm7845, %v7753, 0.0
        %v7982 = vsel %vm7845, %v7754, 0.0
        %v7983 = vsel %vm7845, %v7755, 0.0
        %v7984 = vsel %vm7845, %v7756, 0.0
        %v7985 = vsel %vm7845, %v7757, 0.0
        %v7986 = vsel %vm7845, %v7758, 0.0
        %v7987 = vsel %vm7845, %v7759, 0.0
        %v7988 = vsel %vm7845, %v7760, 0.0
        %v7989 = vsel %vm7845, %v7761, 0.0
        %v7990 = vsel %vm7845, %v7762, 0.0
        %v7991 = vsel %vm7845, %v7763, 0.0
        %v7992 = vsel %vm7845, %v7764, 0.0
        %v7993 = vsel %vm7845, %v7765, 0.0
        %v7994 = vsel %vm7845, %v7766, 0.0
        %v7995 = vsel %vm7845, %v7767, 0.0
        %v7996 = vsel %vm7845, %v7768, 0.0
        %v7997 = vsel %vm7845, %v7769, 0.0
        %v7998 = vsel %vm7845, %v7770, 0.0
        %v7999 = vsel %vm7845, %v7771, 0.0
        %v8000 = vsel %vm7845, %v7772, 0.0
        %v8001 = vsel %vm7845, %v7773, 0.0
        %v8002 = vsel %vm7845, %v7774, 0.0
        %v8003 = vsel %vm7845, %v7775, 0.0
        %v8004 = vsel %vm7845, %v7776, 0.0
        %v8005 = vsel %vm7845, %v7777, 0.0
        %v8006 = vsel %vm7845, %v7778, 0.0
        %v8007 = vsel %vm7846, %v7779, 0.0
        %v8008 = vsel %vm7846, %v7780, 0.0
        %v8009 = vsel %vm7846, %v7781, 0.0
        %v8010 = vsel %vm7846, %v7782, 0.0
        %v8011 = vsel %vm7846, %v7783, 0.0
        %v8012 = vsel %vm7846, %v7784, 0.0
        %v8013 = vsel %vm7846, %v7785, 0.0
        %v8014 = vsel %vm7846, %v7786, 0.0
        %v8015 = vsel %vm7846, %v7787, 0.0
        %v8016 = vsel %vm7846, %v7788, 0.0
        %v8017 = vsel %vm7846, %v7789, 0.0
        %v8018 = vsel %vm7846, %v7790, 0.0
        %v8019 = vsel %vm7846, %v7791, 0.0
        %v8020 = vsel %vm7846, %v7792, 0.0
        %v8021 = vsel %vm7846, %v7793, 0.0
        %v8022 = vsel %vm7846, %v7794, 0.0
        %v8023 = vsel %vm7846, %v7795, 0.0
        %v8024 = vsel %vm7846, %v7796, 0.0
        %v8025 = vsel %vm7846, %v7797, 0.0
        %v8026 = vsel %vm7846, %v7798, 0.0
        %v8027 = vsel %vm7846, %v7799, 0.0
        %v8028 = vsel %vm7846, %v7800, 0.0
        %v8029 = vsel %vm7846, %v7801, 0.0
        %v8030 = vsel %vm7846, %v7802, 0.0
        %v8031 = vsel %vm7846, %v7803, 0.0
        %v8032 = vsel %vm7846, %v7804, 0.0
        %v8033 = vsel %vm7846, %v7805, 0.0
        %v8034 = vsel %vm7846, %v7806, 0.0
        %v8035 = vsel %vm7846, %v7807, 0.0
        %v8036 = vsel %vm7846, %v7808, 0.0
        %v8037 = vsel %vm7846, %v7809, 0.0
        %v8038 = vsel %vm7846, %v7810, 0.0
        %v8039 = vpack.c.bf16 %v7848, %v7847
        %v8040 = vpack.c.bf16 %v7850, %v7849
        %v8041 = vpack.c.bf16 %v7852, %v7851
        %v8042 = vpack.c.bf16 %v7854, %v7853
        %v8043 = vpack.c.bf16 %v7856, %v7855
        %v8044 = vpack.c.bf16 %v7858, %v7857
        %v8045 = vpack.c.bf16 %v7860, %v7859
        %v8046 = vpack.c.bf16 %v7862, %v7861
        %v8047 = vpack.c.bf16 %v7864, %v7863
        %v8048 = vpack.c.bf16 %v7866, %v7865
        %v8049 = vpack.c.bf16 %v7868, %v7867
        %v8050 = vpack.c.bf16 %v7870, %v7869
        %v8051 = vpack.c.bf16 %v7872, %v7871
        %v8052 = vpack.c.bf16 %v7874, %v7873
        %v8053 = vpack.c.bf16 %v7876, %v7875
        %v8054 = vpack.c.bf16 %v7878, %v7877
        %v8055 = vpack.c.bf16 %v7880, %v7879
        %v8056 = vpack.c.bf16 %v7882, %v7881
        %v8057 = vpack.c.bf16 %v7884, %v7883
        %v8058 = vpack.c.bf16 %v7886, %v7885
        %v8059 = vpack.c.bf16 %v7888, %v7887
        %v8060 = vpack.c.bf16 %v7890, %v7889
        %v8061 = vpack.c.bf16 %v7892, %v7891
        %v8062 = vpack.c.bf16 %v7894, %v7893
        %v8063 = vpack.c.bf16 %v7896, %v7895
        %v8064 = vpack.c.bf16 %v7898, %v7897
        %v8065 = vpack.c.bf16 %v7900, %v7899
        %v8066 = vpack.c.bf16 %v7902, %v7901
        %v8067 = vpack.c.bf16 %v7904, %v7903
        %v8068 = vpack.c.bf16 %v7906, %v7905
        %v8069 = vpack.c.bf16 %v7908, %v7907
        %v8070 = vpack.c.bf16 %v7910, %v7909
        %v8071 = vpack.c.bf16 %v7912, %v7911
        %v8072 = vpack.c.bf16 %v7914, %v7913
        %v8073 = vpack.c.bf16 %v7916, %v7915
        %v8074 = vpack.c.bf16 %v7918, %v7917
        %v8075 = vpack.c.bf16 %v7920, %v7919
        %v8076 = vpack.c.bf16 %v7922, %v7921
        %v8077 = vpack.c.bf16 %v7924, %v7923
        %v8078 = vpack.c.bf16 %v7926, %v7925
        %v8079 = vpack.c.bf16 %v7928, %v7927
        %v8080 = vpack.c.bf16 %v7930, %v7929
        %v8081 = vpack.c.bf16 %v7932, %v7931
        %v8082 = vpack.c.bf16 %v7934, %v7933
        %v8083 = vpack.c.bf16 %v7936, %v7935
        %v8084 = vpack.c.bf16 %v7938, %v7937
        %v8085 = vpack.c.bf16 %v7940, %v7939
        %v8086 = vpack.c.bf16 %v7942, %v7941
        %v8087 = vpack.c.bf16 %v7944, %v7943
        %v8088 = vpack.c.bf16 %v7946, %v7945
        %v8089 = vpack.c.bf16 %v7948, %v7947
        %v8090 = vpack.c.bf16 %v7950, %v7949
        %v8091 = vpack.c.bf16 %v7952, %v7951
        %v8092 = vpack.c.bf16 %v7954, %v7953
        %v8093 = vpack.c.bf16 %v7956, %v7955
        %v8094 = vpack.c.bf16 %v7958, %v7957
        %v8095 = vpack.c.bf16 %v7960, %v7959
        %v8096 = vpack.c.bf16 %v7962, %v7961
        %v8097 = vpack.c.bf16 %v7964, %v7963
        %v8098 = vpack.c.bf16 %v7966, %v7965
        %v8099 = vpack.c.bf16 %v7968, %v7967
        %v8100 = vpack.c.bf16 %v7970, %v7969
        %v8101 = vpack.c.bf16 %v7972, %v7971
        %v8102 = vpack.c.bf16 %v7974, %v7973
        %v8103 = vpack.c.bf16 %v7976, %v7975
        %v8104 = vpack.c.bf16 %v7978, %v7977
        %v8105 = vpack.c.bf16 %v7980, %v7979
        %v8106 = vpack.c.bf16 %v7982, %v7981
        %v8107 = vpack.c.bf16 %v7984, %v7983
        %v8108 = vpack.c.bf16 %v7986, %v7985
        %v8109 = vpack.c.bf16 %v7988, %v7987
        %v8110 = vpack.c.bf16 %v7990, %v7989
        %v8111 = vpack.c.bf16 %v7992, %v7991
        %v8112 = vpack.c.bf16 %v7994, %v7993
        %v8113 = vpack.c.bf16 %v7996, %v7995
        %v8114 = vpack.c.bf16 %v7998, %v7997
        %v8115 = vpack.c.bf16 %v8000, %v7999
        %v8116 = vpack.c.bf16 %v8002, %v8001
        %v8117 = vpack.c.bf16 %v8004, %v8003
        %v8118 = vpack.c.bf16 %v8006, %v8005
        %v8119 = vpack.c.bf16 %v8008, %v8007
        %v8120 = vpack.c.bf16 %v8010, %v8009
        %v8121 = vpack.c.bf16 %v8012, %v8011
        %v8122 = vpack.c.bf16 %v8014, %v8013
        %v8123 = vpack.c.bf16 %v8016, %v8015
        %v8124 = vpack.c.bf16 %v8018, %v8017
        %v8125 = vpack.c.bf16 %v8020, %v8019
        %v8126 = vpack.c.bf16 %v8022, %v8021
        %v8127 = vpack.c.bf16 %v8024, %v8023
        %v8128 = vpack.c.bf16 %v8026, %v8025
        %v8129 = vpack.c.bf16 %v8028, %v8027
        %v8130 = vpack.c.bf16 %v8030, %v8029
        %v8131 = vpack.c.bf16 %v8032, %v8031
        %v8132 = vpack.c.bf16 %v8034, %v8033
        %v8133 = vpack.c.bf16 %v8036, %v8035
        %v8134 = vpack.c.bf16 %v8038, %v8037
        %8135 = vst.msk [vmem:[#allocation2] sm:$0xff] %vm4836, %v8039
        %8136 = vst.msk [vmem:[#allocation2 + $0x8] sm:$0xff] %vm4836, %v8040
        %8137 = vst.msk [vmem:[#allocation2 + $0x10] sm:$0xff] %vm4836, %v8041
        %8138 = vst.msk [vmem:[#allocation2 + $0x18] sm:$0xff] %vm4836, %v8042
        %8139 = vst.msk [vmem:[#allocation2 + $0x20] sm:$0xff] %vm4836, %v8043
        %8140 = vst.msk [vmem:[#allocation2 + $0x28] sm:$0xff] %vm4836, %v8044
        %8141 = vst.msk [vmem:[#allocation2 + $0x30] sm:$0xff] %vm4836, %v8045
        %8142 = vst.msk [vmem:[#allocation2 + $0x38] sm:$0xff] %vm4836, %v8046
        %8143 = vst.msk [vmem:[#allocation2 + $0x40] sm:$0xff] %vm4836, %v8047
        %8144 = vst.msk [vmem:[#allocation2 + $0x48] sm:$0xff] %vm4836, %v8048
        %8145 = vst.msk [vmem:[#allocation2 + $0x50] sm:$0xff] %vm4836, %v8049
        %8146 = vst.msk [vmem:[#allocation2 + $0x58] sm:$0xff] %vm4836, %v8050
        %8147 = vst.msk [vmem:[#allocation2 + $0x60] sm:$0xff] %vm4836, %v8051
        %8148 = vst.msk [vmem:[#allocation2 + $0x68] sm:$0xff] %vm4836, %v8052
        %8149 = vst.msk [vmem:[#allocation2 + $0x70] sm:$0xff] %vm4836, %v8053
        %8150 = vst.msk [vmem:[#allocation2 + $0x78] sm:$0xff] %vm4836, %v8054
        %8151 = vst.msk [vmem:[#allocation2 + $0x80] sm:$0xff] %vm4836, %v8055
        %8152 = vst.msk [vmem:[#allocation2 + $0x88] sm:$0xff] %vm4836, %v8056
        %8153 = vst.msk [vmem:[#allocation2 + $0x90] sm:$0xff] %vm4836, %v8057
        %8154 = vst.msk [vmem:[#allocation2 + $0x98] sm:$0xff] %vm4836, %v8058
        %8155 = vst.msk [vmem:[#allocation2 + $0xa0] sm:$0xff] %vm4836, %v8059
        %8156 = vst.msk [vmem:[#allocation2 + $0xa8] sm:$0xff] %vm4836, %v8060
        %8157 = vst.msk [vmem:[#allocation2 + $0xb0] sm:$0xff] %vm4836, %v8061
        %8158 = vst.msk [vmem:[#allocation2 + $0xb8] sm:$0xff] %vm4836, %v8062
        %8159 = vst.msk [vmem:[#allocation2 + $0xc0] sm:$0xff] %vm4836, %v8063
        %8160 = vst.msk [vmem:[#allocation2 + $0xc8] sm:$0xff] %vm4836, %v8064
        %8161 = vst.msk [vmem:[#allocation2 + $0xd0] sm:$0xff] %vm4836, %v8065
        %8162 = vst.msk [vmem:[#allocation2 + $0xd8] sm:$0xff] %vm4836, %v8066
        %8163 = vst.msk [vmem:[#allocation2 + $0xe0] sm:$0xff] %vm4836, %v8067
        %8164 = vst.msk [vmem:[#allocation2 + $0xe8] sm:$0xff] %vm4836, %v8068
        %8165 = vst.msk [vmem:[#allocation2 + $0xf0] sm:$0xff] %vm4836, %v8069
        %8166 = vst.msk [vmem:[#allocation2 + $0xf8] sm:$0xff] %vm4836, %v8070
        %8167 = vst.msk [vmem:[#allocation2 + $0x100] sm:$0xff] %vm4836, %v8071
        %8168 = vst.msk [vmem:[#allocation2 + $0x108] sm:$0xff] %vm4836, %v8072
        %8169 = vst.msk [vmem:[#allocation2 + $0x110] sm:$0xff] %vm4836, %v8073
        %8170 = vst.msk [vmem:[#allocation2 + $0x118] sm:$0xff] %vm4836, %v8074
        %8171 = vst.msk [vmem:[#allocation2 + $0x120] sm:$0xff] %vm4836, %v8075
        %8172 = vst.msk [vmem:[#allocation2 + $0x128] sm:$0xff] %vm4836, %v8076
        %8173 = vst.msk [vmem:[#allocation2 + $0x130] sm:$0xff] %vm4836, %v8077
        %8174 = vst.msk [vmem:[#allocation2 + $0x138] sm:$0xff] %vm4836, %v8078
        %8175 = vst.msk [vmem:[#allocation2 + $0x140] sm:$0xff] %vm4836, %v8079
        %8176 = vst.msk [vmem:[#allocation2 + $0x148] sm:$0xff] %vm4836, %v8080
        %8177 = vst.msk [vmem:[#allocation2 + $0x150] sm:$0xff] %vm4836, %v8081
        %8178 = vst.msk [vmem:[#allocation2 + $0x158] sm:$0xff] %vm4836, %v8082
        %8179 = vst.msk [vmem:[#allocation2 + $0x160] sm:$0xff] %vm4836, %v8083
        %8180 = vst.msk [vmem:[#allocation2 + $0x168] sm:$0xff] %vm4836, %v8084
        %8181 = vst.msk [vmem:[#allocation2 + $0x170] sm:$0xff] %vm4836, %v8085
        %8182 = vst.msk [vmem:[#allocation2 + $0x178] sm:$0xff] %vm4836, %v8086
        %8183 = vst.msk [vmem:[#allocation2 + $0x180] sm:$0xff] %vm4836, %v8087
        %8184 = vst.msk [vmem:[#allocation2 + $0x188] sm:$0xff] %vm4836, %v8088
        %8185 = vst.msk [vmem:[#allocation2 + $0x190] sm:$0xff] %vm4836, %v8089
        %8186 = vst.msk [vmem:[#allocation2 + $0x198] sm:$0xff] %vm4836, %v8090
        %8187 = vst.msk [vmem:[#allocation2 + $0x1a0] sm:$0xff] %vm4836, %v8091
        %8188 = vst.msk [vmem:[#allocation2 + $0x1a8] sm:$0xff] %vm4836, %v8092
        %8189 = vst.msk [vmem:[#allocation2 + $0x1b0] sm:$0xff] %vm4836, %v8093
        %8190 = vst.msk [vmem:[#allocation2 + $0x1b8] sm:$0xff] %vm4836, %v8094
        %8191 = vst.msk [vmem:[#allocation2 + $0x1c0] sm:$0xff] %vm4836, %v8095
        %8192 = vst.msk [vmem:[#allocation2 + $0x1c8] sm:$0xff] %vm4836, %v8096
        %8193 = vst.msk [vmem:[#allocation2 + $0x1d0] sm:$0xff] %vm4836, %v8097
        %8194 = vst.msk [vmem:[#allocation2 + $0x1d8] sm:$0xff] %vm4836, %v8098
        %8195 = vst.msk [vmem:[#allocation2 + $0x1e0] sm:$0xff] %vm4836, %v8099
        %8196 = vst.msk [vmem:[#allocation2 + $0x1e8] sm:$0xff] %vm4836, %v8100
        %8197 = vst.msk [vmem:[#allocation2 + $0x1f0] sm:$0xff] %vm4836, %v8101
        %8198 = vst.msk [vmem:[#allocation2 + $0x1f8] sm:$0xff] %vm4836, %v8102
        %8199 = vst.msk [vmem:[#allocation2 + $0x200] sm:$0xff] %vm4836, %v8103
        %8200 = vst.msk [vmem:[#allocation2 + $0x208] sm:$0xff] %vm4836, %v8104
        %8201 = vst.msk [vmem:[#allocation2 + $0x210] sm:$0xff] %vm4836, %v8105
        %8202 = vst.msk [vmem:[#allocation2 + $0x218] sm:$0xff] %vm4836, %v8106
        %8203 = vst.msk [vmem:[#allocation2 + $0x220] sm:$0xff] %vm4836, %v8107
        %8204 = vst.msk [vmem:[#allocation2 + $0x228] sm:$0xff] %vm4836, %v8108
        %8205 = vst.msk [vmem:[#allocation2 + $0x230] sm:$0xff] %vm4836, %v8109
        %8206 = vst.msk [vmem:[#allocation2 + $0x238] sm:$0xff] %vm4836, %v8110
        %8207 = vst.msk [vmem:[#allocation2 + $0x240] sm:$0xff] %vm4836, %v8111
        %8208 = vst.msk [vmem:[#allocation2 + $0x248] sm:$0xff] %vm4836, %v8112
        %8209 = vst.msk [vmem:[#allocation2 + $0x250] sm:$0xff] %vm4836, %v8113
        %8210 = vst.msk [vmem:[#allocation2 + $0x258] sm:$0xff] %vm4836, %v8114
        %8211 = vst.msk [vmem:[#allocation2 + $0x260] sm:$0xff] %vm4836, %v8115
        %8212 = vst.msk [vmem:[#allocation2 + $0x268] sm:$0xff] %vm4836, %v8116
        %8213 = vst.msk [vmem:[#allocation2 + $0x270] sm:$0xff] %vm4836, %v8117
        %8214 = vst.msk [vmem:[#allocation2 + $0x278] sm:$0xff] %vm4836, %v8118
        %8215 = vst.msk [vmem:[#allocation2 + $0x280] sm:$0xff] %vm4836, %v8119
        %8216 = vst.msk [vmem:[#allocation2 + $0x288] sm:$0xff] %vm4836, %v8120
        %8217 = vst.msk [vmem:[#allocation2 + $0x290] sm:$0xff] %vm4836, %v8121
        %8218 = vst.msk [vmem:[#allocation2 + $0x298] sm:$0xff] %vm4836, %v8122
        %8219 = vst.msk [vmem:[#allocation2 + $0x2a0] sm:$0xff] %vm4836, %v8123
        %8220 = vst.msk [vmem:[#allocation2 + $0x2a8] sm:$0xff] %vm4836, %v8124
        %8221 = vst.msk [vmem:[#allocation2 + $0x2b0] sm:$0xff] %vm4836, %v8125
        %8222 = vst.msk [vmem:[#allocation2 + $0x2b8] sm:$0xff] %vm4836, %v8126
        %8223 = vst.msk [vmem:[#allocation2 + $0x2c0] sm:$0xff] %vm4836, %v8127
        %8224 = vst.msk [vmem:[#allocation2 + $0x2c8] sm:$0xff] %vm4836, %v8128
        %8225 = vst.msk [vmem:[#allocation2 + $0x2d0] sm:$0xff] %vm4836, %v8129
        %8226 = vst.msk [vmem:[#allocation2 + $0x2d8] sm:$0xff] %vm4836, %v8130
        %8227 = vst.msk [vmem:[#allocation2 + $0x2e0] sm:$0xff] %vm4836, %v8131
        %8228 = vst.msk [vmem:[#allocation2 + $0x2e8] sm:$0xff] %vm4836, %v8132
        %8229 = vst.msk [vmem:[#allocation2 + $0x2f0] sm:$0xff] %vm4836, %v8133
        %8230 = vst.msk [vmem:[#allocation2 + $0x2f8] sm:$0xff] %vm4836, %v8134
        %v8231 = vld [vmem:[#allocation2] sm:$0xff]
        %v8232 = vld [vmem:[#allocation2 + $0x8] sm:$0xff]
        %v8233 = vld [vmem:[#allocation2 + $0x10] sm:$0xff]
        %v8234 = vld [vmem:[#allocation2 + $0x18] sm:$0xff]
        %v8235 = vld [vmem:[#allocation2 + $0x20] sm:$0xff]
        %v8236 = vld [vmem:[#allocation2 + $0x28] sm:$0xff]
        %v8237 = vld [vmem:[#allocation2 + $0x30] sm:$0xff]
        %v8238 = vld [vmem:[#allocation2 + $0x38] sm:$0xff]
        %v8239 = vld [vmem:[#allocation2 + $0x40] sm:$0xff]
        %v8240 = vld [vmem:[#allocation2 + $0x48] sm:$0xff]
        %v8241 = vld [vmem:[#allocation2 + $0x50] sm:$0xff]
        %v8242 = vld [vmem:[#allocation2 + $0x58] sm:$0xff]
        %v8243 = vld [vmem:[#allocation2 + $0x60] sm:$0xff]
        %v8244 = vld [vmem:[#allocation2 + $0x68] sm:$0xff]
        %v8245 = vld [vmem:[#allocation2 + $0x70] sm:$0xff]
        %v8246 = vld [vmem:[#allocation2 + $0x78] sm:$0xff]
        %v8247 = vld [vmem:[#allocation2 + $0x80] sm:$0xff]
        %v8248 = vld [vmem:[#allocation2 + $0x88] sm:$0xff]
        %v8249 = vld [vmem:[#allocation2 + $0x90] sm:$0xff]
        %v8250 = vld [vmem:[#allocation2 + $0x98] sm:$0xff]
        %v8251 = vld [vmem:[#allocation2 + $0xa0] sm:$0xff]
        %v8252 = vld [vmem:[#allocation2 + $0xa8] sm:$0xff]
        %v8253 = vld [vmem:[#allocation2 + $0xb0] sm:$0xff]
        %v8254 = vld [vmem:[#allocation2 + $0xb8] sm:$0xff]
        %v8255 = vld [vmem:[#allocation2 + $0xc0] sm:$0xff]
        %v8256 = vld [vmem:[#allocation2 + $0xc8] sm:$0xff]
        %v8257 = vld [vmem:[#allocation2 + $0xd0] sm:$0xff]
        %v8258 = vld [vmem:[#allocation2 + $0xd8] sm:$0xff]
        %v8259 = vld [vmem:[#allocation2 + $0xe0] sm:$0xff]
        %v8260 = vld [vmem:[#allocation2 + $0xe8] sm:$0xff]
        %v8261 = vld [vmem:[#allocation2 + $0xf0] sm:$0xff]
        %v8262 = vld [vmem:[#allocation2 + $0xf8] sm:$0xff]
        %v8263 = vld [vmem:[#allocation2 + $0x100] sm:$0xff]
        %v8264 = vld [vmem:[#allocation2 + $0x108] sm:$0xff]
        %v8265 = vld [vmem:[#allocation2 + $0x110] sm:$0xff]
        %v8266 = vld [vmem:[#allocation2 + $0x118] sm:$0xff]
        %v8267 = vld [vmem:[#allocation2 + $0x120] sm:$0xff]
        %v8268 = vld [vmem:[#allocation2 + $0x128] sm:$0xff]
        %v8269 = vld [vmem:[#allocation2 + $0x130] sm:$0xff]
        %v8270 = vld [vmem:[#allocation2 + $0x138] sm:$0xff]
        %v8271 = vld [vmem:[#allocation2 + $0x140] sm:$0xff]
        %v8272 = vld [vmem:[#allocation2 + $0x148] sm:$0xff]
        %v8273 = vld [vmem:[#allocation2 + $0x150] sm:$0xff]
        %v8274 = vld [vmem:[#allocation2 + $0x158] sm:$0xff]
        %v8275 = vld [vmem:[#allocation2 + $0x160] sm:$0xff]
        %v8276 = vld [vmem:[#allocation2 + $0x168] sm:$0xff]
        %v8277 = vld [vmem:[#allocation2 + $0x170] sm:$0xff]
        %v8278 = vld [vmem:[#allocation2 + $0x178] sm:$0xff]
        %v8279 = vld [vmem:[#allocation2 + $0x180] sm:$0xff]
        %v8280 = vld [vmem:[#allocation2 + $0x188] sm:$0xff]
        %v8281 = vld [vmem:[#allocation2 + $0x190] sm:$0xff]
        %v8282 = vld [vmem:[#allocation2 + $0x198] sm:$0xff]
        %v8283 = vld [vmem:[#allocation2 + $0x1a0] sm:$0xff]
        %v8284 = vld [vmem:[#allocation2 + $0x1a8] sm:$0xff]
        %v8285 = vld [vmem:[#allocation2 + $0x1b0] sm:$0xff]
        %v8286 = vld [vmem:[#allocation2 + $0x1b8] sm:$0xff]
        %v8287 = vld [vmem:[#allocation2 + $0x1c0] sm:$0xff]
        %v8288 = vld [vmem:[#allocation2 + $0x1c8] sm:$0xff]
        %v8289 = vld [vmem:[#allocation2 + $0x1d0] sm:$0xff]
        %v8290 = vld [vmem:[#allocation2 + $0x1d8] sm:$0xff]
        %v8291 = vld [vmem:[#allocation2 + $0x1e0] sm:$0xff]
        %v8292 = vld [vmem:[#allocation2 + $0x1e8] sm:$0xff]
        %v8293 = vld [vmem:[#allocation2 + $0x1f0] sm:$0xff]
        %v8294 = vld [vmem:[#allocation2 + $0x1f8] sm:$0xff]
        %v8295 = vld [vmem:[#allocation2 + $0x200] sm:$0xff]
        %v8296 = vld [vmem:[#allocation2 + $0x208] sm:$0xff]
        %v8297 = vld [vmem:[#allocation2 + $0x210] sm:$0xff]
        %v8298 = vld [vmem:[#allocation2 + $0x218] sm:$0xff]
        %v8299 = vld [vmem:[#allocation2 + $0x220] sm:$0xff]
        %v8300 = vld [vmem:[#allocation2 + $0x228] sm:$0xff]
        %v8301 = vld [vmem:[#allocation2 + $0x230] sm:$0xff]
        %v8302 = vld [vmem:[#allocation2 + $0x238] sm:$0xff]
        %v8303 = vld [vmem:[#allocation2 + $0x240] sm:$0xff]
        %v8304 = vld [vmem:[#allocation2 + $0x248] sm:$0xff]
        %v8305 = vld [vmem:[#allocation2 + $0x250] sm:$0xff]
        %v8306 = vld [vmem:[#allocation2 + $0x258] sm:$0xff]
        %v8307 = vld [vmem:[#allocation2 + $0x260] sm:$0xff]
        %v8308 = vld [vmem:[#allocation2 + $0x268] sm:$0xff]
        %v8309 = vld [vmem:[#allocation2 + $0x270] sm:$0xff]
        %v8310 = vld [vmem:[#allocation2 + $0x278] sm:$0xff]
        %v8311 = vld [vmem:[#allocation2 + $0x280] sm:$0xff]
        %v8312 = vld [vmem:[#allocation2 + $0x288] sm:$0xff]
        %v8313 = vld [vmem:[#allocation2 + $0x290] sm:$0xff]
        %v8314 = vld [vmem:[#allocation2 + $0x298] sm:$0xff]
        %v8315 = vld [vmem:[#allocation2 + $0x2a0] sm:$0xff]
        %v8316 = vld [vmem:[#allocation2 + $0x2a8] sm:$0xff]
        %v8317 = vld [vmem:[#allocation2 + $0x2b0] sm:$0xff]
        %v8318 = vld [vmem:[#allocation2 + $0x2b8] sm:$0xff]
        %v8319 = vld [vmem:[#allocation2 + $0x2c0] sm:$0xff]
        %v8320 = vld [vmem:[#allocation2 + $0x2c8] sm:$0xff]
        %v8321 = vld [vmem:[#allocation2 + $0x2d0] sm:$0xff]
        %v8322 = vld [vmem:[#allocation2 + $0x2d8] sm:$0xff]
        %v8323 = vld [vmem:[#allocation2 + $0x2e0] sm:$0xff]
        %v8324 = vld [vmem:[#allocation2 + $0x2e8] sm:$0xff]
        %v8325 = vld [vmem:[#allocation2 + $0x2f0] sm:$0xff]
        %v8326 = vld [vmem:[#allocation2 + $0x2f8] sm:$0xff]
        %v8327 = vld [vmem:[%s4] sm:$0xf]
        %v8328 = vld [vmem:[%s4 + $0x4] sm:$0xf]
        %s8329 = scalar_lea.vmem %s4, 8
        %v8330 = vld [vmem:[%s8329] sm:$0xf]
        %v8331 = vld [vmem:[%s8329 + $0x4] sm:$0xf]
        %v8334 = vunpack.c.l.b16 %v8330
        %v8335 = vunpack.c.l.b16 %v8331
        %v8336 = vpack.c.b16 %v8335, %v8334
        %v8339 = vsel %vm4836, %v8247, 0
        %v8342 = vsel %vm4836, %v8248, 0
        %v8345 = vsel %vm4836, %v8249, 0
        %v8348 = vsel %vm4836, %v8250, 0
        %v8351 = vsel %vm4836, %v8251, 0
        %v8354 = vsel %vm4836, %v8252, 0
        %v8357 = vsel %vm4836, %v8253, 0
        %v8360 = vsel %vm4836, %v8254, 0
        %v8363 = vsel %vm4836, %v8255, 0
        %v8366 = vsel %vm4836, %v8256, 0
        %v8369 = vsel %vm4836, %v8257, 0
        %v8372 = vsel %vm4836, %v8258, 0
        %v8375 = vsel %vm4836, %v8259, 0
        %v8378 = vsel %vm4836, %v8260, 0
        %v8381 = vsel %vm4836, %v8261, 0
        %v8384 = vsel %vm4836, %v8262, 0
        %v8387 = vsel %vm4836, %v8263, 0
        %v8390 = vsel %vm4836, %v8264, 0
        %v8393 = vsel %vm4836, %v8265, 0
        %v8396 = vsel %vm4836, %v8266, 0
        %v8399 = vsel %vm4836, %v8267, 0
        %v8402 = vsel %vm4836, %v8268, 0
        %v8405 = vsel %vm4836, %v8269, 0
        %v8408 = vsel %vm4836, %v8270, 0
        %v8411 = vsel %vm4836, %v8271, 0
        %v8414 = vsel %vm4836, %v8272, 0
        %v8417 = vsel %vm4836, %v8273, 0
        %v8420 = vsel %vm4836, %v8274, 0
        %v8423 = vsel %vm4836, %v8275, 0
        %v8426 = vsel %vm4836, %v8276, 0
        %v8429 = vsel %vm4836, %v8277, 0
        %v8432 = vsel %vm4836, %v8278, 0
        %v8435 = vsel %vm4836, %v8279, 0
        %v8438 = vsel %vm4836, %v8280, 0
        %v8441 = vsel %vm4836, %v8281, 0
        %v8444 = vsel %vm4836, %v8282, 0
        %v8447 = vsel %vm4836, %v8283, 0
        %v8450 = vsel %vm4836, %v8284, 0
        %v8453 = vsel %vm4836, %v8285, 0
        %v8456 = vsel %vm4836, %v8286, 0
        %v8459 = vsel %vm4836, %v8287, 0
        %v8462 = vsel %vm4836, %v8288, 0
        %v8465 = vsel %vm4836, %v8289, 0
        %v8468 = vsel %vm4836, %v8290, 0
        %v8471 = vsel %vm4836, %v8291, 0
        %v8474 = vsel %vm4836, %v8292, 0
        %v8477 = vsel %vm4836, %v8293, 0
        %v8480 = vsel %vm4836, %v8294, 0
        %v8483 = vsel %vm4836, %v8295, 0
        %v8486 = vsel %vm4836, %v8296, 0
        %v8489 = vsel %vm4836, %v8297, 0
        %v8492 = vsel %vm4836, %v8298, 0
        %v8495 = vsel %vm4836, %v8299, 0
        %v8498 = vsel %vm4836, %v8300, 0
        %v8501 = vsel %vm4836, %v8301, 0
        %v8504 = vsel %vm4836, %v8302, 0
        %v8507 = vsel %vm4836, %v8303, 0
        %v8510 = vsel %vm4836, %v8304, 0
        %v8513 = vsel %vm4836, %v8305, 0
        %v8516 = vsel %vm4836, %v8306, 0
        %v8519 = vsel %vm4836, %v8307, 0
        %v8522 = vsel %vm4836, %v8308, 0
        %v8525 = vsel %vm4836, %v8309, 0
        %v8528 = vsel %vm4836, %v8310, 0
        %8530 = vmatprep.subr.bf16.mxu0 0
        %8531 = vmatpush1.bf16.msra.mxu0 %v8336
        %8532 = vmatprep.subr.bf16.mxu0 0
        %8533 = vmatpush1.bf16.msra.mxu0 0
        %8534 = vmatprep.subr.bf16.mxu0 0
        %8535 = vmatpush1.bf16.msra.mxu0 0
        %8536 = vmatprep.subr.bf16.mxu0 0
        %8537 = vmatpush1.bf16.msra.mxu0 0
        %8538 = vmatprep.subr.bf16.mxu0 0
        %8539 = vmatpush1.bf16.msra.mxu0 0
        %8540 = vmatprep.subr.bf16.mxu0 0
        %8541 = vmatpush1.bf16.msra.mxu0 0
        %8542 = vmatprep.subr.bf16.mxu0 0
        %8543 = vmatpush1.bf16.msra.mxu0 0
        %8544 = vmatprep.subr.bf16.mxu0 0
        %8545 = vmatpush1.bf16.msra.mxu0 0
        %8546 = vmatprep.subr.bf16.mxu0 0
        %8547 = vmatpush1.bf16.msra.mxu0 0
        %8548 = vmatprep.subr.bf16.mxu0 0
        %8549 = vmatpush1.bf16.msra.mxu0 0
        %8550 = vmatprep.subr.bf16.mxu0 0
        %8551 = vmatpush1.bf16.msra.mxu0 0
        %8552 = vmatprep.subr.bf16.mxu0 0
        %8553 = vmatpush1.bf16.msra.mxu0 0
        %8554 = vmatprep.subr.bf16.mxu0 0
        %8555 = vmatpush1.bf16.msra.mxu0 0
        %8556 = vmatprep.subr.bf16.mxu0 0
        %8557 = vmatpush1.bf16.msra.mxu0 0
        %8558 = vmatprep.subr.bf16.mxu0 0
        %8559 = vmatpush1.bf16.msra.mxu0 0
        %8560 = vmatprep.subr.bf16.mxu0 0
        %8561 = vmatpush1.bf16.msra.mxu0 0
        %8562 = vmatprep.mubr.bf16.mxu0 0
        %8563 = vmatmul.mubr.bf16.gmra.mrb[0].mxu0 %v8339
        %v8564 = vpop.f32.mrb[0].mxu0
        %v8565 = vadd.f32 0.0, %v8564
        %v8566 = vpop.f32.mrb[0].mxu0
        %v8567 = vpop.f32.mrb[0].mxu0
        %v8568 = vadd.f32 0.0, %v8567
        %v8569 = vpop.f32.mrb[0].mxu0
        %8570 = vmatprep.mubr.bf16.mxu0 0
        %8571 = vmatmul.mubr.bf16.gmra.mrb[0].mxu0 %v8342
        %v8572 = vpop.f32.mrb[0].mxu0
        %v8573 = vadd.f32 0.0, %v8572
        %v8574 = vpop.f32.mrb[0].mxu0
        %v8575 = vpop.f32.mrb[0].mxu0
        %v8576 = vadd.f32 0.0, %v8575
        %v8577 = vpop.f32.mrb[0].mxu0
        %8578 = vmatprep.mubr.bf16.mxu0 0
        %8579 = vmatmul.mubr.bf16.gmra.mrb[0].mxu0 %v8345
        %v8580 = vpop.f32.mrb[0].mxu0
        %v8581 = vadd.f32 0.0, %v8580
        %v8582 = vpop.f32.mrb[0].mxu0
        %v8583 = vpop.f32.mrb[0].mxu0
        %v8584 = vadd.f32 0.0, %v8583
        %v8585 = vpop.f32.mrb[0].mxu0
        %8586 = vmatprep.mubr.bf16.mxu0 0
        %8587 = vmatmul.mubr.bf16.gmra.mrb[0].mxu0 %v8348
        %v8588 = vpop.f32.mrb[0].mxu0
        %v8589 = vadd.f32 0.0, %v8588
        %v8590 = vpop.f32.mrb[0].mxu0
        %v8591 = vpop.f32.mrb[0].mxu0
        %v8592 = vadd.f32 0.0, %v8591
        %v8593 = vpop.f32.mrb[0].mxu0
        %8594 = vmatprep.mubr.bf16.mxu0 0
        %8595 = vmatmul.mubr.bf16.gmra.mrb[0].mxu0 %v8351
        %v8596 = vpop.f32.mrb[0].mxu0
        %v8597 = vadd.f32 0.0, %v8596
        %v8598 = vpop.f32.mrb[0].mxu0
        %v8599 = vpop.f32.mrb[0].mxu0
        %v8600 = vadd.f32 0.0, %v8599
        %v8601 = vpop.f32.mrb[0].mxu0
        %8602 = vmatprep.mubr.bf16.mxu0 0
        %8603 = vmatmul.mubr.bf16.gmra.mrb[0].mxu0 %v8354
        %v8604 = vpop.f32.mrb[0].mxu0
        %v8605 = vadd.f32 0.0, %v8604
        %v8606 = vpop.f32.mrb[0].mxu0
        %v8607 = vpop.f32.mrb[0].mxu0
        %v8608 = vadd.f32 0.0, %v8607
        %v8609 = vpop.f32.mrb[0].mxu0
        %8610 = vmatprep.mubr.bf16.mxu0 0
        %8611 = vmatmul.mubr.bf16.gmra.mrb[0].mxu0 %v8357
        %v8612 = vpop.f32.mrb[0].mxu0
        %v8613 = vadd.f32 0.0, %v8612
        %v8614 = vpop.f32.mrb[0].mxu0
        %v8615 = vpop.f32.mrb[0].mxu0
        %v8616 = vadd.f32 0.0, %v8615
        %v8617 = vpop.f32.mrb[0].mxu0
        %8618 = vmatprep.mubr.bf16.mxu0 0
        %8619 = vmatmul.mubr.bf16.gmra.mrb[0].mxu0 %v8360
        %v8620 = vpop.f32.mrb[0].mxu0
        %v8621 = vadd.f32 0.0, %v8620
        %v8622 = vpop.f32.mrb[0].mxu0
        %v8623 = vpop.f32.mrb[0].mxu0
        %v8624 = vadd.f32 0.0, %v8623
        %v8625 = vpop.f32.mrb[0].mxu0
        %8626 = vmatprep.mubr.bf16.mxu0 0
        %8627 = vmatmul.mubr.bf16.gmra.mrb[0].mxu0 %v8363
        %v8628 = vpop.f32.mrb[0].mxu0
        %v8629 = vadd.f32 0.0, %v8628
        %v8630 = vpop.f32.mrb[0].mxu0
        %v8631 = vpop.f32.mrb[0].mxu0
        %v8632 = vadd.f32 0.0, %v8631
        %v8633 = vpop.f32.mrb[0].mxu0
        %8634 = vmatprep.mubr.bf16.mxu0 0
        %8635 = vmatmul.mubr.bf16.gmra.mrb[0].mxu0 %v8366
        %v8636 = vpop.f32.mrb[0].mxu0
        %v8637 = vadd.f32 0.0, %v8636
        %v8638 = vpop.f32.mrb[0].mxu0
        %v8639 = vpop.f32.mrb[0].mxu0
        %v8640 = vadd.f32 0.0, %v8639
        %v8641 = vpop.f32.mrb[0].mxu0
        %8642 = vmatprep.mubr.bf16.mxu0 0
        %8643 = vmatmul.mubr.bf16.gmra.mrb[0].mxu0 %v8369
        %v8644 = vpop.f32.mrb[0].mxu0
        %v8645 = vadd.f32 0.0, %v8644
        %v8646 = vpop.f32.mrb[0].mxu0
        %v8647 = vpop.f32.mrb[0].mxu0
        %v8648 = vadd.f32 0.0, %v8647
        %v8649 = vpop.f32.mrb[0].mxu0
        %8650 = vmatprep.mubr.bf16.mxu0 0
        %8651 = vmatmul.mubr.bf16.gmra.mrb[0].mxu0 %v8372
        %v8652 = vpop.f32.mrb[0].mxu0
        %v8653 = vadd.f32 0.0, %v8652
        %v8654 = vpop.f32.mrb[0].mxu0
        %v8655 = vpop.f32.mrb[0].mxu0
        %v8656 = vadd.f32 0.0, %v8655
        %v8657 = vpop.f32.mrb[0].mxu0
        %8658 = vmatprep.mubr.bf16.mxu0 0
        %8659 = vmatmul.mubr.bf16.gmra.mrb[0].mxu0 %v8375
        %v8660 = vpop.f32.mrb[0].mxu0
        %v8661 = vadd.f32 0.0, %v8660
        %v8662 = vpop.f32.mrb[0].mxu0
        %v8663 = vpop.f32.mrb[0].mxu0
        %v8664 = vadd.f32 0.0, %v8663
        %v8665 = vpop.f32.mrb[0].mxu0
        %8666 = vmatprep.mubr.bf16.mxu0 0
        %8667 = vmatmul.mubr.bf16.gmra.mrb[0].mxu0 %v8378
        %v8668 = vpop.f32.mrb[0].mxu0
        %v8669 = vadd.f32 0.0, %v8668
        %v8670 = vpop.f32.mrb[0].mxu0
        %v8671 = vpop.f32.mrb[0].mxu0
        %v8672 = vadd.f32 0.0, %v8671
        %v8673 = vpop.f32.mrb[0].mxu0
        %8674 = vmatprep.mubr.bf16.mxu0 0
        %8675 = vmatmul.mubr.bf16.gmra.mrb[0].mxu0 %v8381
        %v8676 = vpop.f32.mrb[0].mxu0
        %v8677 = vadd.f32 0.0, %v8676
        %v8678 = vpop.f32.mrb[0].mxu0
        %v8679 = vpop.f32.mrb[0].mxu0
        %v8680 = vadd.f32 0.0, %v8679
        %v8681 = vpop.f32.mrb[0].mxu0
        %8682 = vmatprep.mubr.bf16.mxu0 0
        %8683 = vmatmul.mubr.bf16.gmra.mrb[0].mxu0 %v8384
        %v8684 = vpop.f32.mrb[0].mxu0
        %v8685 = vadd.f32 0.0, %v8684
        %v8686 = vpop.f32.mrb[0].mxu0
        %v8687 = vpop.f32.mrb[0].mxu0
        %v8688 = vadd.f32 0.0, %v8687
        %v8689 = vpop.f32.mrb[0].mxu0
        %8690 = vmatprep.mubr.bf16.mxu0 0
        %8691 = vmatmul.mubr.bf16.gmra.mrb[0].mxu0 %v8387
        %v8692 = vpop.f32.mrb[0].mxu0
        %v8693 = vadd.f32 0.0, %v8692
        %v8694 = vpop.f32.mrb[0].mxu0
        %v8695 = vpop.f32.mrb[0].mxu0
        %v8696 = vadd.f32 0.0, %v8695
        %v8697 = vpop.f32.mrb[0].mxu0
        %8698 = vmatprep.mubr.bf16.mxu0 0
        %8699 = vmatmul.mubr.bf16.gmra.mrb[0].mxu0 %v8390
        %v8700 = vpop.f32.mrb[0].mxu0
        %v8701 = vadd.f32 0.0, %v8700
        %v8702 = vpop.f32.mrb[0].mxu0
        %v8703 = vpop.f32.mrb[0].mxu0
        %v8704 = vadd.f32 0.0, %v8703
        %v8705 = vpop.f32.mrb[0].mxu0
        %8706 = vmatprep.mubr.bf16.mxu0 0
        %8707 = vmatmul.mubr.bf16.gmra.mrb[0].mxu0 %v8393
        %v8708 = vpop.f32.mrb[0].mxu0
        %v8709 = vadd.f32 0.0, %v8708
        %v8710 = vpop.f32.mrb[0].mxu0
        %v8711 = vpop.f32.mrb[0].mxu0
        %v8712 = vadd.f32 0.0, %v8711
        %v8713 = vpop.f32.mrb[0].mxu0
        %8714 = vmatprep.mubr.bf16.mxu0 0
        %8715 = vmatmul.mubr.bf16.gmra.mrb[0].mxu0 %v8396
        %v8716 = vpop.f32.mrb[0].mxu0
        %v8717 = vadd.f32 0.0, %v8716
        %v8718 = vpop.f32.mrb[0].mxu0
        %v8719 = vpop.f32.mrb[0].mxu0
        %v8720 = vadd.f32 0.0, %v8719
        %v8721 = vpop.f32.mrb[0].mxu0
        %8722 = vmatprep.mubr.bf16.mxu0 0
        %8723 = vmatmul.mubr.bf16.gmra.mrb[0].mxu0 %v8399
        %v8724 = vpop.f32.mrb[0].mxu0
        %v8725 = vadd.f32 0.0, %v8724
        %v8726 = vpop.f32.mrb[0].mxu0
        %v8727 = vpop.f32.mrb[0].mxu0
        %v8728 = vadd.f32 0.0, %v8727
        %v8729 = vpop.f32.mrb[0].mxu0
        %8730 = vmatprep.mubr.bf16.mxu0 0
        %8731 = vmatmul.mubr.bf16.gmra.mrb[0].mxu0 %v8402
        %v8732 = vpop.f32.mrb[0].mxu0
        %v8733 = vadd.f32 0.0, %v8732
        %v8734 = vpop.f32.mrb[0].mxu0
        %v8735 = vpop.f32.mrb[0].mxu0
        %v8736 = vadd.f32 0.0, %v8735
        %v8737 = vpop.f32.mrb[0].mxu0
        %8738 = vmatprep.mubr.bf16.mxu0 0
        %8739 = vmatmul.mubr.bf16.gmra.mrb[0].mxu0 %v8405
        %v8740 = vpop.f32.mrb[0].mxu0
        %v8741 = vadd.f32 0.0, %v8740
        %v8742 = vpop.f32.mrb[0].mxu0
        %v8743 = vpop.f32.mrb[0].mxu0
        %v8744 = vadd.f32 0.0, %v8743
        %v8745 = vpop.f32.mrb[0].mxu0
        %8746 = vmatprep.mubr.bf16.mxu0 0
        %8747 = vmatmul.mubr.bf16.gmra.mrb[0].mxu0 %v8408
        %v8748 = vpop.f32.mrb[0].mxu0
        %v8749 = vadd.f32 0.0, %v8748
        %v8750 = vpop.f32.mrb[0].mxu0
        %v8751 = vpop.f32.mrb[0].mxu0
        %v8752 = vadd.f32 0.0, %v8751
        %v8753 = vpop.f32.mrb[0].mxu0
        %8754 = vmatprep.mubr.bf16.mxu0 0
        %8755 = vmatmul.mubr.bf16.gmra.mrb[0].mxu0 %v8411
        %v8756 = vpop.f32.mrb[0].mxu0
        %v8757 = vadd.f32 0.0, %v8756
        %v8758 = vpop.f32.mrb[0].mxu0
        %v8759 = vpop.f32.mrb[0].mxu0
        %v8760 = vadd.f32 0.0, %v8759
        %v8761 = vpop.f32.mrb[0].mxu0
        %8762 = vmatprep.mubr.bf16.mxu0 0
        %8763 = vmatmul.mubr.bf16.gmra.mrb[0].mxu0 %v8414
        %v8764 = vpop.f32.mrb[0].mxu0
        %v8765 = vadd.f32 0.0, %v8764
        %v8766 = vpop.f32.mrb[0].mxu0
        %v8767 = vpop.f32.mrb[0].mxu0
        %v8768 = vadd.f32 0.0, %v8767
        %v8769 = vpop.f32.mrb[0].mxu0
        %8770 = vmatprep.mubr.bf16.mxu0 0
        %8771 = vmatmul.mubr.bf16.gmra.mrb[0].mxu0 %v8417
        %v8772 = vpop.f32.mrb[0].mxu0
        %v8773 = vadd.f32 0.0, %v8772
        %v8774 = vpop.f32.mrb[0].mxu0
        %v8775 = vpop.f32.mrb[0].mxu0
        %v8776 = vadd.f32 0.0, %v8775
        %v8777 = vpop.f32.mrb[0].mxu0
        %8778 = vmatprep.mubr.bf16.mxu0 0
        %8779 = vmatmul.mubr.bf16.gmra.mrb[0].mxu0 %v8420
        %v8780 = vpop.f32.mrb[0].mxu0
        %v8781 = vadd.f32 0.0, %v8780
        %v8782 = vpop.f32.mrb[0].mxu0
        %v8783 = vpop.f32.mrb[0].mxu0
        %v8784 = vadd.f32 0.0, %v8783
        %v8785 = vpop.f32.mrb[0].mxu0
        %8786 = vmatprep.mubr.bf16.mxu0 0
        %8787 = vmatmul.mubr.bf16.gmra.mrb[0].mxu0 %v8423
        %v8788 = vpop.f32.mrb[0].mxu0
        %v8789 = vadd.f32 0.0, %v8788
        %v8790 = vpop.f32.mrb[0].mxu0
        %v8791 = vpop.f32.mrb[0].mxu0
        %v8792 = vadd.f32 0.0, %v8791
        %v8793 = vpop.f32.mrb[0].mxu0
        %8794 = vmatprep.mubr.bf16.mxu0 0
        %8795 = vmatmul.mubr.bf16.gmra.mrb[0].mxu0 %v8426
        %v8796 = vpop.f32.mrb[0].mxu0
        %v8797 = vadd.f32 0.0, %v8796
        %v8798 = vpop.f32.mrb[0].mxu0
        %v8799 = vpop.f32.mrb[0].mxu0
        %v8800 = vadd.f32 0.0, %v8799
        %v8801 = vpop.f32.mrb[0].mxu0
        %8802 = vmatprep.mubr.bf16.mxu0 0
        %8803 = vmatmul.mubr.bf16.gmra.mrb[0].mxu0 %v8429
        %v8804 = vpop.f32.mrb[0].mxu0
        %v8805 = vadd.f32 0.0, %v8804
        %v8806 = vpop.f32.mrb[0].mxu0
        %v8807 = vpop.f32.mrb[0].mxu0
        %v8808 = vadd.f32 0.0, %v8807
        %v8809 = vpop.f32.mrb[0].mxu0
        %8810 = vmatprep.mubr.bf16.mxu0 0
        %8811 = vmatmul.mubr.bf16.gmra.mrb[0].mxu0 %v8432
        %v8812 = vpop.f32.mrb[0].mxu0
        %v8813 = vadd.f32 0.0, %v8812
        %v8814 = vpop.f32.mrb[0].mxu0
        %v8815 = vpop.f32.mrb[0].mxu0
        %v8816 = vadd.f32 0.0, %v8815
        %v8817 = vpop.f32.mrb[0].mxu0
        %8818 = vmatprep.mubr.bf16.mxu0 0
        %8819 = vmatmul.mubr.bf16.gmra.mrb[0].mxu0 %v8435
        %v8820 = vpop.f32.mrb[0].mxu0
        %v8821 = vadd.f32 0.0, %v8820
        %v8822 = vpop.f32.mrb[0].mxu0
        %v8823 = vpop.f32.mrb[0].mxu0
        %v8824 = vadd.f32 0.0, %v8823
        %v8825 = vpop.f32.mrb[0].mxu0
        %8826 = vmatprep.mubr.bf16.mxu0 0
        %8827 = vmatmul.mubr.bf16.gmra.mrb[0].mxu0 %v8438
        %v8828 = vpop.f32.mrb[0].mxu0
        %v8829 = vadd.f32 0.0, %v8828
        %v8830 = vpop.f32.mrb[0].mxu0
        %v8831 = vpop.f32.mrb[0].mxu0
        %v8832 = vadd.f32 0.0, %v8831
        %v8833 = vpop.f32.mrb[0].mxu0
        %8834 = vmatprep.mubr.bf16.mxu0 0
        %8835 = vmatmul.mubr.bf16.gmra.mrb[0].mxu0 %v8441
        %v8836 = vpop.f32.mrb[0].mxu0
        %v8837 = vadd.f32 0.0, %v8836
        %v8838 = vpop.f32.mrb[0].mxu0
        %v8839 = vpop.f32.mrb[0].mxu0
        %v8840 = vadd.f32 0.0, %v8839
        %v8841 = vpop.f32.mrb[0].mxu0
        %8842 = vmatprep.mubr.bf16.mxu0 0
        %8843 = vmatmul.mubr.bf16.gmra.mrb[0].mxu0 %v8444
        %v8844 = vpop.f32.mrb[0].mxu0
        %v8845 = vadd.f32 0.0, %v8844
        %v8846 = vpop.f32.mrb[0].mxu0
        %v8847 = vpop.f32.mrb[0].mxu0
        %v8848 = vadd.f32 0.0, %v8847
        %v8849 = vpop.f32.mrb[0].mxu0
        %8850 = vmatprep.mubr.bf16.mxu0 0
        %8851 = vmatmul.mubr.bf16.gmra.mrb[0].mxu0 %v8447
        %v8852 = vpop.f32.mrb[0].mxu0
        %v8853 = vadd.f32 0.0, %v8852
        %v8854 = vpop.f32.mrb[0].mxu0
        %v8855 = vpop.f32.mrb[0].mxu0
        %v8856 = vadd.f32 0.0, %v8855
        %v8857 = vpop.f32.mrb[0].mxu0
        %8858 = vmatprep.mubr.bf16.mxu0 0
        %8859 = vmatmul.mubr.bf16.gmra.mrb[0].mxu0 %v8450
        %v8860 = vpop.f32.mrb[0].mxu0
        %v8861 = vadd.f32 0.0, %v8860
        %v8862 = vpop.f32.mrb[0].mxu0
        %v8863 = vpop.f32.mrb[0].mxu0
        %v8864 = vadd.f32 0.0, %v8863
        %v8865 = vpop.f32.mrb[0].mxu0
        %8866 = vmatprep.mubr.bf16.mxu0 0
        %8867 = vmatmul.mubr.bf16.gmra.mrb[0].mxu0 %v8453
        %v8868 = vpop.f32.mrb[0].mxu0
        %v8869 = vadd.f32 0.0, %v8868
        %v8870 = vpop.f32.mrb[0].mxu0
        %v8871 = vpop.f32.mrb[0].mxu0
        %v8872 = vadd.f32 0.0, %v8871
        %v8873 = vpop.f32.mrb[0].mxu0
        %8874 = vmatprep.mubr.bf16.mxu0 0
        %8875 = vmatmul.mubr.bf16.gmra.mrb[0].mxu0 %v8456
        %v8876 = vpop.f32.mrb[0].mxu0
        %v8877 = vadd.f32 0.0, %v8876
        %v8878 = vpop.f32.mrb[0].mxu0
        %v8879 = vpop.f32.mrb[0].mxu0
        %v8880 = vadd.f32 0.0, %v8879
        %v8881 = vpop.f32.mrb[0].mxu0
        %8882 = vmatprep.mubr.bf16.mxu0 0
        %8883 = vmatmul.mubr.bf16.gmra.mrb[0].mxu0 %v8459
        %v8884 = vpop.f32.mrb[0].mxu0
        %v8885 = vadd.f32 0.0, %v8884
        %v8886 = vpop.f32.mrb[0].mxu0
        %v8887 = vpop.f32.mrb[0].mxu0
        %v8888 = vadd.f32 0.0, %v8887
        %v8889 = vpop.f32.mrb[0].mxu0
        %8890 = vmatprep.mubr.bf16.mxu0 0
        %8891 = vmatmul.mubr.bf16.gmra.mrb[0].mxu0 %v8462
        %v8892 = vpop.f32.mrb[0].mxu0
        %v8893 = vadd.f32 0.0, %v8892
        %v8894 = vpop.f32.mrb[0].mxu0
        %v8895 = vpop.f32.mrb[0].mxu0
        %v8896 = vadd.f32 0.0, %v8895
        %v8897 = vpop.f32.mrb[0].mxu0
        %8898 = vmatprep.mubr.bf16.mxu0 0
        %8899 = vmatmul.mubr.bf16.gmra.mrb[0].mxu0 %v8465
        %v8900 = vpop.f32.mrb[0].mxu0
        %v8901 = vadd.f32 0.0, %v8900
        %v8902 = vpop.f32.mrb[0].mxu0
        %v8903 = vpop.f32.mrb[0].mxu0
        %v8904 = vadd.f32 0.0, %v8903
        %v8905 = vpop.f32.mrb[0].mxu0
        %8906 = vmatprep.mubr.bf16.mxu0 0
        %8907 = vmatmul.mubr.bf16.gmra.mrb[0].mxu0 %v8468
        %v8908 = vpop.f32.mrb[0].mxu0
        %v8909 = vadd.f32 0.0, %v8908
        %v8910 = vpop.f32.mrb[0].mxu0
        %v8911 = vpop.f32.mrb[0].mxu0
        %v8912 = vadd.f32 0.0, %v8911
        %v8913 = vpop.f32.mrb[0].mxu0
        %8914 = vmatprep.mubr.bf16.mxu0 0
        %8915 = vmatmul.mubr.bf16.gmra.mrb[0].mxu0 %v8471
        %v8916 = vpop.f32.mrb[0].mxu0
        %v8917 = vadd.f32 0.0, %v8916
        %v8918 = vpop.f32.mrb[0].mxu0
        %v8919 = vpop.f32.mrb[0].mxu0
        %v8920 = vadd.f32 0.0, %v8919
        %v8921 = vpop.f32.mrb[0].mxu0
        %8922 = vmatprep.mubr.bf16.mxu0 0
        %8923 = vmatmul.mubr.bf16.gmra.mrb[0].mxu0 %v8474
        %v8924 = vpop.f32.mrb[0].mxu0
        %v8925 = vadd.f32 0.0, %v8924
        %v8926 = vpop.f32.mrb[0].mxu0
        %v8927 = vpop.f32.mrb[0].mxu0
        %v8928 = vadd.f32 0.0, %v8927
        %v8929 = vpop.f32.mrb[0].mxu0
        %8930 = vmatprep.mubr.bf16.mxu0 0
        %8931 = vmatmul.mubr.bf16.gmra.mrb[0].mxu0 %v8477
        %v8932 = vpop.f32.mrb[0].mxu0
        %v8933 = vadd.f32 0.0, %v8932
        %v8934 = vpop.f32.mrb[0].mxu0
        %v8935 = vpop.f32.mrb[0].mxu0
        %v8936 = vadd.f32 0.0, %v8935
        %v8937 = vpop.f32.mrb[0].mxu0
        %8938 = vmatprep.mubr.bf16.mxu0 0
        %8939 = vmatmul.mubr.bf16.gmra.mrb[0].mxu0 %v8480
        %v8940 = vpop.f32.mrb[0].mxu0
        %v8941 = vadd.f32 0.0, %v8940
        %v8942 = vpop.f32.mrb[0].mxu0
        %v8943 = vpop.f32.mrb[0].mxu0
        %v8944 = vadd.f32 0.0, %v8943
        %v8945 = vpop.f32.mrb[0].mxu0
        %8946 = vmatprep.mubr.bf16.mxu0 0
        %8947 = vmatmul.mubr.bf16.gmra.mrb[0].mxu0 %v8483
        %v8948 = vpop.f32.mrb[0].mxu0
        %v8949 = vadd.f32 0.0, %v8948
        %v8950 = vpop.f32.mrb[0].mxu0
        %v8951 = vpop.f32.mrb[0].mxu0
        %v8952 = vadd.f32 0.0, %v8951
        %v8953 = vpop.f32.mrb[0].mxu0
        %8954 = vmatprep.mubr.bf16.mxu0 0
        %8955 = vmatmul.mubr.bf16.gmra.mrb[0].mxu0 %v8486
        %v8956 = vpop.f32.mrb[0].mxu0
        %v8957 = vadd.f32 0.0, %v8956
        %v8958 = vpop.f32.mrb[0].mxu0
        %v8959 = vpop.f32.mrb[0].mxu0
        %v8960 = vadd.f32 0.0, %v8959
        %v8961 = vpop.f32.mrb[0].mxu0
        %8962 = vmatprep.mubr.bf16.mxu0 0
        %8963 = vmatmul.mubr.bf16.gmra.mrb[0].mxu0 %v8489
        %v8964 = vpop.f32.mrb[0].mxu0
        %v8965 = vadd.f32 0.0, %v8964
        %v8966 = vpop.f32.mrb[0].mxu0
        %v8967 = vpop.f32.mrb[0].mxu0
        %v8968 = vadd.f32 0.0, %v8967
        %v8969 = vpop.f32.mrb[0].mxu0
        %8970 = vmatprep.mubr.bf16.mxu0 0
        %8971 = vmatmul.mubr.bf16.gmra.mrb[0].mxu0 %v8492
        %v8972 = vpop.f32.mrb[0].mxu0
        %v8973 = vadd.f32 0.0, %v8972
        %v8974 = vpop.f32.mrb[0].mxu0
        %v8975 = vpop.f32.mrb[0].mxu0
        %v8976 = vadd.f32 0.0, %v8975
        %v8977 = vpop.f32.mrb[0].mxu0
        %8978 = vmatprep.mubr.bf16.mxu0 0
        %8979 = vmatmul.mubr.bf16.gmra.mrb[0].mxu0 %v8495
        %v8980 = vpop.f32.mrb[0].mxu0
        %v8981 = vadd.f32 0.0, %v8980
        %v8982 = vpop.f32.mrb[0].mxu0
        %v8983 = vpop.f32.mrb[0].mxu0
        %v8984 = vadd.f32 0.0, %v8983
        %v8985 = vpop.f32.mrb[0].mxu0
        %8986 = vmatprep.mubr.bf16.mxu0 0
        %8987 = vmatmul.mubr.bf16.gmra.mrb[0].mxu0 %v8498
        %v8988 = vpop.f32.mrb[0].mxu0
        %v8989 = vadd.f32 0.0, %v8988
        %v8990 = vpop.f32.mrb[0].mxu0
        %v8991 = vpop.f32.mrb[0].mxu0
        %v8992 = vadd.f32 0.0, %v8991
        %v8993 = vpop.f32.mrb[0].mxu0
        %8994 = vmatprep.mubr.bf16.mxu0 0
        %8995 = vmatmul.mubr.bf16.gmra.mrb[0].mxu0 %v8501
        %v8996 = vpop.f32.mrb[0].mxu0
        %v8997 = vadd.f32 0.0, %v8996
        %v8998 = vpop.f32.mrb[0].mxu0
        %v8999 = vpop.f32.mrb[0].mxu0
        %v9000 = vadd.f32 0.0, %v8999
        %v9001 = vpop.f32.mrb[0].mxu0
        %9002 = vmatprep.mubr.bf16.mxu0 0
        %9003 = vmatmul.mubr.bf16.gmra.mrb[0].mxu0 %v8504
        %v9004 = vpop.f32.mrb[0].mxu0
        %v9005 = vadd.f32 0.0, %v9004
        %v9006 = vpop.f32.mrb[0].mxu0
        %v9007 = vpop.f32.mrb[0].mxu0
        %v9008 = vadd.f32 0.0, %v9007
        %v9009 = vpop.f32.mrb[0].mxu0
        %9010 = vmatprep.mubr.bf16.mxu0 0
        %9011 = vmatmul.mubr.bf16.gmra.mrb[0].mxu0 %v8507
        %v9012 = vpop.f32.mrb[0].mxu0
        %v9013 = vadd.f32 0.0, %v9012
        %v9014 = vpop.f32.mrb[0].mxu0
        %v9015 = vpop.f32.mrb[0].mxu0
        %v9016 = vadd.f32 0.0, %v9015
        %v9017 = vpop.f32.mrb[0].mxu0
        %9018 = vmatprep.mubr.bf16.mxu0 0
        %9019 = vmatmul.mubr.bf16.gmra.mrb[0].mxu0 %v8510
        %v9020 = vpop.f32.mrb[0].mxu0
        %v9021 = vadd.f32 0.0, %v9020
        %v9022 = vpop.f32.mrb[0].mxu0
        %v9023 = vpop.f32.mrb[0].mxu0
        %v9024 = vadd.f32 0.0, %v9023
        %v9025 = vpop.f32.mrb[0].mxu0
        %9026 = vmatprep.mubr.bf16.mxu0 0
        %9027 = vmatmul.mubr.bf16.gmra.mrb[0].mxu0 %v8513
        %v9028 = vpop.f32.mrb[0].mxu0
        %v9029 = vadd.f32 0.0, %v9028
        %v9030 = vpop.f32.mrb[0].mxu0
        %v9031 = vpop.f32.mrb[0].mxu0
        %v9032 = vadd.f32 0.0, %v9031
        %v9033 = vpop.f32.mrb[0].mxu0
        %9034 = vmatprep.mubr.bf16.mxu0 0
        %9035 = vmatmul.mubr.bf16.gmra.mrb[0].mxu0 %v8516
        %v9036 = vpop.f32.mrb[0].mxu0
        %v9037 = vadd.f32 0.0, %v9036
        %v9038 = vpop.f32.mrb[0].mxu0
        %v9039 = vpop.f32.mrb[0].mxu0
        %v9040 = vadd.f32 0.0, %v9039
        %v9041 = vpop.f32.mrb[0].mxu0
        %9042 = vmatprep.mubr.bf16.mxu0 0
        %9043 = vmatmul.mubr.bf16.gmra.mrb[0].mxu0 %v8519
        %v9044 = vpop.f32.mrb[0].mxu0
        %v9045 = vadd.f32 0.0, %v9044
        %v9046 = vpop.f32.mrb[0].mxu0
        %v9047 = vpop.f32.mrb[0].mxu0
        %v9048 = vadd.f32 0.0, %v9047
        %v9049 = vpop.f32.mrb[0].mxu0
        %9050 = vmatprep.mubr.bf16.mxu0 0
        %9051 = vmatmul.mubr.bf16.gmra.mrb[0].mxu0 %v8522
        %v9052 = vpop.f32.mrb[0].mxu0
        %v9053 = vadd.f32 0.0, %v9052
        %v9054 = vpop.f32.mrb[0].mxu0
        %v9055 = vpop.f32.mrb[0].mxu0
        %v9056 = vadd.f32 0.0, %v9055
        %v9057 = vpop.f32.mrb[0].mxu0
        %9058 = vmatprep.mubr.bf16.mxu0 0
        %9059 = vmatmul.mubr.bf16.gmra.mrb[0].mxu0 %v8525
        %v9060 = vpop.f32.mrb[0].mxu0
        %v9061 = vadd.f32 0.0, %v9060
        %v9062 = vpop.f32.mrb[0].mxu0
        %v9063 = vpop.f32.mrb[0].mxu0
        %v9064 = vadd.f32 0.0, %v9063
        %v9065 = vpop.f32.mrb[0].mxu0
        %9066 = vmatprep.mubr.bf16.mxu0 0
        %9067 = vmatmul.mubr.bf16.gmra.mrb[0].mxu0 %v8528
        %v9068 = vpop.f32.mrb[0].mxu0
        %v9069 = vadd.f32 0.0, %v9068
        %v9070 = vpop.f32.mrb[0].mxu0
        %v9071 = vpop.f32.mrb[0].mxu0
        %v9072 = vadd.f32 0.0, %v9071
        %v9073 = vpop.f32.mrb[0].mxu0
        %9074 = vdwg.mxu0
        %v9077 = vunpack.c.l.b16 %v8327
        %v9078 = vunpack.c.l.b16 %v8328
        %v9079 = vpack.c.b16 %v9078, %v9077
        %v9082 = vsel %vm4836, %v8231, 0
        %v9085 = vsel %vm4836, %v8232, 0
        %v9088 = vsel %vm4836, %v8233, 0
        %v9091 = vsel %vm4836, %v8234, 0
        %v9094 = vsel %vm4836, %v8235, 0
        %v9097 = vsel %vm4836, %v8236, 0
        %v9100 = vsel %vm4836, %v8237, 0
        %v9103 = vsel %vm4836, %v8238, 0
        %v9106 = vsel %vm4836, %v8239, 0
        %v9109 = vsel %vm4836, %v8240, 0
        %v9112 = vsel %vm4836, %v8241, 0
        %v9115 = vsel %vm4836, %v8242, 0
        %v9118 = vsel %vm4836, %v8243, 0
        %v9121 = vsel %vm4836, %v8244, 0
        %v9124 = vsel %vm4836, %v8245, 0
        %v9127 = vsel %vm4836, %v8246, 0
        %9129 = vmatprep.subr.bf16.mxu0 0
        %9130 = vmatpush1.bf16.msra.mxu0 %v9079
        %9131 = vmatprep.subr.bf16.mxu0 0
        %9132 = vmatpush1.bf16.msra.mxu0 0
        %9133 = vmatprep.subr.bf16.mxu0 0
        %9134 = vmatpush1.bf16.msra.mxu0 0
        %9135 = vmatprep.subr.bf16.mxu0 0
        %9136 = vmatpush1.bf16.msra.mxu0 0
        %9137 = vmatprep.subr.bf16.mxu0 0
        %9138 = vmatpush1.bf16.msra.mxu0 0
        %9139 = vmatprep.subr.bf16.mxu0 0
        %9140 = vmatpush1.bf16.msra.mxu0 0
        %9141 = vmatprep.subr.bf16.mxu0 0
        %9142 = vmatpush1.bf16.msra.mxu0 0
        %9143 = vmatprep.subr.bf16.mxu0 0
        %9144 = vmatpush1.bf16.msra.mxu0 0
        %9145 = vmatprep.subr.bf16.mxu0 0
        %9146 = vmatpush1.bf16.msra.mxu0 0
        %9147 = vmatprep.subr.bf16.mxu0 0
        %9148 = vmatpush1.bf16.msra.mxu0 0
        %9149 = vmatprep.subr.bf16.mxu0 0
        %9150 = vmatpush1.bf16.msra.mxu0 0
        %9151 = vmatprep.subr.bf16.mxu0 0
        %9152 = vmatpush1.bf16.msra.mxu0 0
        %9153 = vmatprep.subr.bf16.mxu0 0
        %9154 = vmatpush1.bf16.msra.mxu0 0
        %9155 = vmatprep.subr.bf16.mxu0 0
        %9156 = vmatpush1.bf16.msra.mxu0 0
        %9157 = vmatprep.subr.bf16.mxu0 0
        %9158 = vmatpush1.bf16.msra.mxu0 0
        %9159 = vmatprep.subr.bf16.mxu0 0
        %9160 = vmatpush1.bf16.msra.mxu0 0
        %9161 = vmatprep.mubr.bf16.mxu0 0
        %9162 = vmatmul.mubr.bf16.gmra.mrb[0].mxu0 %v9082
        %v9163 = vpop.f32.mrb[0].mxu0
        %v9164 = vadd.f32 %v8565, %v9163
        %v9165 = vpop.f32.mrb[0].mxu0
        %v9166 = vpop.f32.mrb[0].mxu0
        %v9167 = vadd.f32 %v8568, %v9166
        %v9168 = vpop.f32.mrb[0].mxu0
        %9169 = vmatprep.mubr.bf16.mxu0 0
        %9170 = vmatmul.mubr.bf16.gmra.mrb[0].mxu0 %v9085
        %v9171 = vpop.f32.mrb[0].mxu0
        %v9172 = vadd.f32 %v8573, %v9171
        %v9173 = vpop.f32.mrb[0].mxu0
        %v9174 = vpop.f32.mrb[0].mxu0
        %v9175 = vadd.f32 %v8576, %v9174
        %v9176 = vpop.f32.mrb[0].mxu0
        %9177 = vmatprep.mubr.bf16.mxu0 0
        %9178 = vmatmul.mubr.bf16.gmra.mrb[0].mxu0 %v9088
        %v9179 = vpop.f32.mrb[0].mxu0
        %v9180 = vadd.f32 %v8581, %v9179
        %v9181 = vpop.f32.mrb[0].mxu0
        %v9182 = vpop.f32.mrb[0].mxu0
        %v9183 = vadd.f32 %v8584, %v9182
        %v9184 = vpop.f32.mrb[0].mxu0
        %9185 = vmatprep.mubr.bf16.mxu0 0
        %9186 = vmatmul.mubr.bf16.gmra.mrb[0].mxu0 %v9091
        %v9187 = vpop.f32.mrb[0].mxu0
        %v9188 = vadd.f32 %v8589, %v9187
        %v9189 = vpop.f32.mrb[0].mxu0
        %v9190 = vpop.f32.mrb[0].mxu0
        %v9191 = vadd.f32 %v8592, %v9190
        %v9192 = vpop.f32.mrb[0].mxu0
        %9193 = vmatprep.mubr.bf16.mxu0 0
        %9194 = vmatmul.mubr.bf16.gmra.mrb[0].mxu0 %v9094
        %v9195 = vpop.f32.mrb[0].mxu0
        %v9196 = vadd.f32 %v8597, %v9195
        %v9197 = vpop.f32.mrb[0].mxu0
        %v9198 = vpop.f32.mrb[0].mxu0
        %v9199 = vadd.f32 %v8600, %v9198
        %v9200 = vpop.f32.mrb[0].mxu0
        %9201 = vmatprep.mubr.bf16.mxu0 0
        %9202 = vmatmul.mubr.bf16.gmra.mrb[0].mxu0 %v9097
        %v9203 = vpop.f32.mrb[0].mxu0
        %v9204 = vadd.f32 %v8605, %v9203
        %v9205 = vpop.f32.mrb[0].mxu0
        %v9206 = vpop.f32.mrb[0].mxu0
        %v9207 = vadd.f32 %v8608, %v9206
        %v9208 = vpop.f32.mrb[0].mxu0
        %9209 = vmatprep.mubr.bf16.mxu0 0
        %9210 = vmatmul.mubr.bf16.gmra.mrb[0].mxu0 %v9100
        %v9211 = vpop.f32.mrb[0].mxu0
        %v9212 = vadd.f32 %v8613, %v9211
        %v9213 = vpop.f32.mrb[0].mxu0
        %v9214 = vpop.f32.mrb[0].mxu0
        %v9215 = vadd.f32 %v8616, %v9214
        %v9216 = vpop.f32.mrb[0].mxu0
        %9217 = vmatprep.mubr.bf16.mxu0 0
        %9218 = vmatmul.mubr.bf16.gmra.mrb[0].mxu0 %v9103
        %v9219 = vpop.f32.mrb[0].mxu0
        %v9220 = vadd.f32 %v8621, %v9219
        %v9221 = vpop.f32.mrb[0].mxu0
        %v9222 = vpop.f32.mrb[0].mxu0
        %v9223 = vadd.f32 %v8624, %v9222
        %v9224 = vpop.f32.mrb[0].mxu0
        %9225 = vmatprep.mubr.bf16.mxu0 0
        %9226 = vmatmul.mubr.bf16.gmra.mrb[0].mxu0 %v9106
        %v9227 = vpop.f32.mrb[0].mxu0
        %v9228 = vadd.f32 %v8629, %v9227
        %v9229 = vpop.f32.mrb[0].mxu0
        %v9230 = vpop.f32.mrb[0].mxu0
        %v9231 = vadd.f32 %v8632, %v9230
        %v9232 = vpop.f32.mrb[0].mxu0
        %9233 = vmatprep.mubr.bf16.mxu0 0
        %9234 = vmatmul.mubr.bf16.gmra.mrb[0].mxu0 %v9109
        %v9235 = vpop.f32.mrb[0].mxu0
        %v9236 = vadd.f32 %v8637, %v9235
        %v9237 = vpop.f32.mrb[0].mxu0
        %v9238 = vpop.f32.mrb[0].mxu0
        %v9239 = vadd.f32 %v8640, %v9238
        %v9240 = vpop.f32.mrb[0].mxu0
        %9241 = vmatprep.mubr.bf16.mxu0 0
        %9242 = vmatmul.mubr.bf16.gmra.mrb[0].mxu0 %v9112
        %v9243 = vpop.f32.mrb[0].mxu0
        %v9244 = vadd.f32 %v8645, %v9243
        %v9245 = vpop.f32.mrb[0].mxu0
        %v9246 = vpop.f32.mrb[0].mxu0
        %v9247 = vadd.f32 %v8648, %v9246
        %v9248 = vpop.f32.mrb[0].mxu0
        %9249 = vmatprep.mubr.bf16.mxu0 0
        %9250 = vmatmul.mubr.bf16.gmra.mrb[0].mxu0 %v9115
        %v9251 = vpop.f32.mrb[0].mxu0
        %v9252 = vadd.f32 %v8653, %v9251
        %v9253 = vpop.f32.mrb[0].mxu0
        %v9254 = vpop.f32.mrb[0].mxu0
        %v9255 = vadd.f32 %v8656, %v9254
        %v9256 = vpop.f32.mrb[0].mxu0
        %9257 = vmatprep.mubr.bf16.mxu0 0
        %9258 = vmatmul.mubr.bf16.gmra.mrb[0].mxu0 %v9118
        %v9259 = vpop.f32.mrb[0].mxu0
        %v9260 = vadd.f32 %v8661, %v9259
        %v9261 = vpop.f32.mrb[0].mxu0
        %v9262 = vpop.f32.mrb[0].mxu0
        %v9263 = vadd.f32 %v8664, %v9262
        %v9264 = vpop.f32.mrb[0].mxu0
        %9265 = vmatprep.mubr.bf16.mxu0 0
        %9266 = vmatmul.mubr.bf16.gmra.mrb[0].mxu0 %v9121
        %v9267 = vpop.f32.mrb[0].mxu0
        %v9268 = vadd.f32 %v8669, %v9267
        %v9269 = vpop.f32.mrb[0].mxu0
        %v9270 = vpop.f32.mrb[0].mxu0
        %v9271 = vadd.f32 %v8672, %v9270
        %v9272 = vpop.f32.mrb[0].mxu0
        %9273 = vmatprep.mubr.bf16.mxu0 0
        %9274 = vmatmul.mubr.bf16.gmra.mrb[0].mxu0 %v9124
        %v9275 = vpop.f32.mrb[0].mxu0
        %v9276 = vadd.f32 %v8677, %v9275
        %v9277 = vpop.f32.mrb[0].mxu0
        %v9278 = vpop.f32.mrb[0].mxu0
        %v9279 = vadd.f32 %v8680, %v9278
        %v9280 = vpop.f32.mrb[0].mxu0
        %9281 = vmatprep.mubr.bf16.mxu0 0
        %9282 = vmatmul.mubr.bf16.gmra.mrb[0].mxu0 %v9127
        %v9283 = vpop.f32.mrb[0].mxu0
        %v9284 = vadd.f32 %v8685, %v9283
        %v9285 = vpop.f32.mrb[0].mxu0
        %v9286 = vpop.f32.mrb[0].mxu0
        %v9287 = vadd.f32 %v8688, %v9286
        %v9288 = vpop.f32.mrb[0].mxu0
        %9289 = vmatprep.mubr.bf16.mxu0 0
        %9290 = vmatmul.mubr.bf16.gmra.mrb[0].mxu0 %v8339
        %v9291 = vpop.f32.mrb[0].mxu0
        %v9292 = vadd.f32 %v8693, %v9291
        %v9293 = vpop.f32.mrb[0].mxu0
        %v9294 = vpop.f32.mrb[0].mxu0
        %v9295 = vadd.f32 %v8696, %v9294
        %v9296 = vpop.f32.mrb[0].mxu0
        %9297 = vmatprep.mubr.bf16.mxu0 0
        %9298 = vmatmul.mubr.bf16.gmra.mrb[0].mxu0 %v8342
        %v9299 = vpop.f32.mrb[0].mxu0
        %v9300 = vadd.f32 %v8701, %v9299
        %v9301 = vpop.f32.mrb[0].mxu0
        %v9302 = vpop.f32.mrb[0].mxu0
        %v9303 = vadd.f32 %v8704, %v9302
        %v9304 = vpop.f32.mrb[0].mxu0
        %9305 = vmatprep.mubr.bf16.mxu0 0
        %9306 = vmatmul.mubr.bf16.gmra.mrb[0].mxu0 %v8345
        %v9307 = vpop.f32.mrb[0].mxu0
        %v9308 = vadd.f32 %v8709, %v9307
        %v9309 = vpop.f32.mrb[0].mxu0
        %v9310 = vpop.f32.mrb[0].mxu0
        %v9311 = vadd.f32 %v8712, %v9310
        %v9312 = vpop.f32.mrb[0].mxu0
        %9313 = vmatprep.mubr.bf16.mxu0 0
        %9314 = vmatmul.mubr.bf16.gmra.mrb[0].mxu0 %v8348
        %v9315 = vpop.f32.mrb[0].mxu0
        %v9316 = vadd.f32 %v8717, %v9315
        %v9317 = vpop.f32.mrb[0].mxu0
        %v9318 = vpop.f32.mrb[0].mxu0
        %v9319 = vadd.f32 %v8720, %v9318
        %v9320 = vpop.f32.mrb[0].mxu0
        %9321 = vmatprep.mubr.bf16.mxu0 0
        %9322 = vmatmul.mubr.bf16.gmra.mrb[0].mxu0 %v8351
        %v9323 = vpop.f32.mrb[0].mxu0
        %v9324 = vadd.f32 %v8725, %v9323
        %v9325 = vpop.f32.mrb[0].mxu0
        %v9326 = vpop.f32.mrb[0].mxu0
        %v9327 = vadd.f32 %v8728, %v9326
        %v9328 = vpop.f32.mrb[0].mxu0
        %9329 = vmatprep.mubr.bf16.mxu0 0
        %9330 = vmatmul.mubr.bf16.gmra.mrb[0].mxu0 %v8354
        %v9331 = vpop.f32.mrb[0].mxu0
        %v9332 = vadd.f32 %v8733, %v9331
        %v9333 = vpop.f32.mrb[0].mxu0
        %v9334 = vpop.f32.mrb[0].mxu0
        %v9335 = vadd.f32 %v8736, %v9334
        %v9336 = vpop.f32.mrb[0].mxu0
        %9337 = vmatprep.mubr.bf16.mxu0 0
        %9338 = vmatmul.mubr.bf16.gmra.mrb[0].mxu0 %v8357
        %v9339 = vpop.f32.mrb[0].mxu0
        %v9340 = vadd.f32 %v8741, %v9339
        %v9341 = vpop.f32.mrb[0].mxu0
        %v9342 = vpop.f32.mrb[0].mxu0
        %v9343 = vadd.f32 %v8744, %v9342
        %v9344 = vpop.f32.mrb[0].mxu0
        %9345 = vmatprep.mubr.bf16.mxu0 0
        %9346 = vmatmul.mubr.bf16.gmra.mrb[0].mxu0 %v8360
        %v9347 = vpop.f32.mrb[0].mxu0
        %v9348 = vadd.f32 %v8749, %v9347
        %v9349 = vpop.f32.mrb[0].mxu0
        %v9350 = vpop.f32.mrb[0].mxu0
        %v9351 = vadd.f32 %v8752, %v9350
        %v9352 = vpop.f32.mrb[0].mxu0
        %9353 = vmatprep.mubr.bf16.mxu0 0
        %9354 = vmatmul.mubr.bf16.gmra.mrb[0].mxu0 %v8363
        %v9355 = vpop.f32.mrb[0].mxu0
        %v9356 = vadd.f32 %v8757, %v9355
        %v9357 = vpop.f32.mrb[0].mxu0
        %v9358 = vpop.f32.mrb[0].mxu0
        %v9359 = vadd.f32 %v8760, %v9358
        %v9360 = vpop.f32.mrb[0].mxu0
        %9361 = vmatprep.mubr.bf16.mxu0 0
        %9362 = vmatmul.mubr.bf16.gmra.mrb[0].mxu0 %v8366
        %v9363 = vpop.f32.mrb[0].mxu0
        %v9364 = vadd.f32 %v8765, %v9363
        %v9365 = vpop.f32.mrb[0].mxu0
        %v9366 = vpop.f32.mrb[0].mxu0
        %v9367 = vadd.f32 %v8768, %v9366
        %v9368 = vpop.f32.mrb[0].mxu0
        %9369 = vmatprep.mubr.bf16.mxu0 0
        %9370 = vmatmul.mubr.bf16.gmra.mrb[0].mxu0 %v8369
        %v9371 = vpop.f32.mrb[0].mxu0
        %v9372 = vadd.f32 %v8773, %v9371
        %v9373 = vpop.f32.mrb[0].mxu0
        %v9374 = vpop.f32.mrb[0].mxu0
        %v9375 = vadd.f32 %v8776, %v9374
        %v9376 = vpop.f32.mrb[0].mxu0
        %9377 = vmatprep.mubr.bf16.mxu0 0
        %9378 = vmatmul.mubr.bf16.gmra.mrb[0].mxu0 %v8372
        %v9379 = vpop.f32.mrb[0].mxu0
        %v9380 = vadd.f32 %v8781, %v9379
        %v9381 = vpop.f32.mrb[0].mxu0
        %v9382 = vpop.f32.mrb[0].mxu0
        %v9383 = vadd.f32 %v8784, %v9382
        %v9384 = vpop.f32.mrb[0].mxu0
        %9385 = vmatprep.mubr.bf16.mxu0 0
        %9386 = vmatmul.mubr.bf16.gmra.mrb[0].mxu0 %v8375
        %v9387 = vpop.f32.mrb[0].mxu0
        %v9388 = vadd.f32 %v8789, %v9387
        %v9389 = vpop.f32.mrb[0].mxu0
        %v9390 = vpop.f32.mrb[0].mxu0
        %v9391 = vadd.f32 %v8792, %v9390
        %v9392 = vpop.f32.mrb[0].mxu0
        %9393 = vmatprep.mubr.bf16.mxu0 0
        %9394 = vmatmul.mubr.bf16.gmra.mrb[0].mxu0 %v8378
        %v9395 = vpop.f32.mrb[0].mxu0
        %v9396 = vadd.f32 %v8797, %v9395
        %v9397 = vpop.f32.mrb[0].mxu0
        %v9398 = vpop.f32.mrb[0].mxu0
        %v9399 = vadd.f32 %v8800, %v9398
        %v9400 = vpop.f32.mrb[0].mxu0
        %9401 = vmatprep.mubr.bf16.mxu0 0
        %9402 = vmatmul.mubr.bf16.gmra.mrb[0].mxu0 %v8381
        %v9403 = vpop.f32.mrb[0].mxu0
        %v9404 = vadd.f32 %v8805, %v9403
        %v9405 = vpop.f32.mrb[0].mxu0
        %v9406 = vpop.f32.mrb[0].mxu0
        %v9407 = vadd.f32 %v8808, %v9406
        %v9408 = vpop.f32.mrb[0].mxu0
        %9409 = vmatprep.mubr.bf16.mxu0 0
        %9410 = vmatmul.mubr.bf16.gmra.mrb[0].mxu0 %v8384
        %v9411 = vpop.f32.mrb[0].mxu0
        %v9412 = vadd.f32 %v8813, %v9411
        %v9413 = vpop.f32.mrb[0].mxu0
        %v9414 = vpop.f32.mrb[0].mxu0
        %v9415 = vadd.f32 %v8816, %v9414
        %v9416 = vpop.f32.mrb[0].mxu0
        %9417 = vmatprep.mubr.bf16.mxu0 0
        %9418 = vmatmul.mubr.bf16.gmra.mrb[0].mxu0 %v8387
        %v9419 = vpop.f32.mrb[0].mxu0
        %v9420 = vadd.f32 %v8821, %v9419
        %v9421 = vpop.f32.mrb[0].mxu0
        %v9422 = vpop.f32.mrb[0].mxu0
        %v9423 = vadd.f32 %v8824, %v9422
        %v9424 = vpop.f32.mrb[0].mxu0
        %9425 = vmatprep.mubr.bf16.mxu0 0
        %9426 = vmatmul.mubr.bf16.gmra.mrb[0].mxu0 %v8390
        %v9427 = vpop.f32.mrb[0].mxu0
        %v9428 = vadd.f32 %v8829, %v9427
        %v9429 = vpop.f32.mrb[0].mxu0
        %v9430 = vpop.f32.mrb[0].mxu0
        %v9431 = vadd.f32 %v8832, %v9430
        %v9432 = vpop.f32.mrb[0].mxu0
        %9433 = vmatprep.mubr.bf16.mxu0 0
        %9434 = vmatmul.mubr.bf16.gmra.mrb[0].mxu0 %v8393
        %v9435 = vpop.f32.mrb[0].mxu0
        %v9436 = vadd.f32 %v8837, %v9435
        %v9437 = vpop.f32.mrb[0].mxu0
        %v9438 = vpop.f32.mrb[0].mxu0
        %v9439 = vadd.f32 %v8840, %v9438
        %v9440 = vpop.f32.mrb[0].mxu0
        %9441 = vmatprep.mubr.bf16.mxu0 0
        %9442 = vmatmul.mubr.bf16.gmra.mrb[0].mxu0 %v8396
        %v9443 = vpop.f32.mrb[0].mxu0
        %v9444 = vadd.f32 %v8845, %v9443
        %v9445 = vpop.f32.mrb[0].mxu0
        %v9446 = vpop.f32.mrb[0].mxu0
        %v9447 = vadd.f32 %v8848, %v9446
        %v9448 = vpop.f32.mrb[0].mxu0
        %9449 = vmatprep.mubr.bf16.mxu0 0
        %9450 = vmatmul.mubr.bf16.gmra.mrb[0].mxu0 %v8399
        %v9451 = vpop.f32.mrb[0].mxu0
        %v9452 = vadd.f32 %v8853, %v9451
        %v9453 = vpop.f32.mrb[0].mxu0
        %v9454 = vpop.f32.mrb[0].mxu0
        %v9455 = vadd.f32 %v8856, %v9454
        %v9456 = vpop.f32.mrb[0].mxu0
        %9457 = vmatprep.mubr.bf16.mxu0 0
        %9458 = vmatmul.mubr.bf16.gmra.mrb[0].mxu0 %v8402
        %v9459 = vpop.f32.mrb[0].mxu0
        %v9460 = vadd.f32 %v8861, %v9459
        %v9461 = vpop.f32.mrb[0].mxu0
        %v9462 = vpop.f32.mrb[0].mxu0
        %v9463 = vadd.f32 %v8864, %v9462
        %v9464 = vpop.f32.mrb[0].mxu0
        %9465 = vmatprep.mubr.bf16.mxu0 0
        %9466 = vmatmul.mubr.bf16.gmra.mrb[0].mxu0 %v8405
        %v9467 = vpop.f32.mrb[0].mxu0
        %v9468 = vadd.f32 %v8869, %v9467
        %v9469 = vpop.f32.mrb[0].mxu0
        %v9470 = vpop.f32.mrb[0].mxu0
        %v9471 = vadd.f32 %v8872, %v9470
        %v9472 = vpop.f32.mrb[0].mxu0
        %9473 = vmatprep.mubr.bf16.mxu0 0
        %9474 = vmatmul.mubr.bf16.gmra.mrb[0].mxu0 %v8408
        %v9475 = vpop.f32.mrb[0].mxu0
        %v9476 = vadd.f32 %v8877, %v9475
        %v9477 = vpop.f32.mrb[0].mxu0
        %v9478 = vpop.f32.mrb[0].mxu0
        %v9479 = vadd.f32 %v8880, %v9478
        %v9480 = vpop.f32.mrb[0].mxu0
        %9481 = vmatprep.mubr.bf16.mxu0 0
        %9482 = vmatmul.mubr.bf16.gmra.mrb[0].mxu0 %v8411
        %v9483 = vpop.f32.mrb[0].mxu0
        %v9484 = vadd.f32 %v8885, %v9483
        %v9485 = vpop.f32.mrb[0].mxu0
        %v9486 = vpop.f32.mrb[0].mxu0
        %v9487 = vadd.f32 %v8888, %v9486
        %v9488 = vpop.f32.mrb[0].mxu0
        %9489 = vmatprep.mubr.bf16.mxu0 0
        %9490 = vmatmul.mubr.bf16.gmra.mrb[0].mxu0 %v8414
        %v9491 = vpop.f32.mrb[0].mxu0
        %v9492 = vadd.f32 %v8893, %v9491
        %v9493 = vpop.f32.mrb[0].mxu0
        %v9494 = vpop.f32.mrb[0].mxu0
        %v9495 = vadd.f32 %v8896, %v9494
        %v9496 = vpop.f32.mrb[0].mxu0
        %9497 = vmatprep.mubr.bf16.mxu0 0
        %9498 = vmatmul.mubr.bf16.gmra.mrb[0].mxu0 %v8417
        %v9499 = vpop.f32.mrb[0].mxu0
        %v9500 = vadd.f32 %v8901, %v9499
        %v9501 = vpop.f32.mrb[0].mxu0
        %v9502 = vpop.f32.mrb[0].mxu0
        %v9503 = vadd.f32 %v8904, %v9502
        %v9504 = vpop.f32.mrb[0].mxu0
        %9505 = vmatprep.mubr.bf16.mxu0 0
        %9506 = vmatmul.mubr.bf16.gmra.mrb[0].mxu0 %v8420
        %v9507 = vpop.f32.mrb[0].mxu0
        %v9508 = vadd.f32 %v8909, %v9507
        %v9509 = vpop.f32.mrb[0].mxu0
        %v9510 = vpop.f32.mrb[0].mxu0
        %v9511 = vadd.f32 %v8912, %v9510
        %v9512 = vpop.f32.mrb[0].mxu0
        %9513 = vmatprep.mubr.bf16.mxu0 0
        %9514 = vmatmul.mubr.bf16.gmra.mrb[0].mxu0 %v8423
        %v9515 = vpop.f32.mrb[0].mxu0
        %v9516 = vadd.f32 %v8917, %v9515
        %v9517 = vpop.f32.mrb[0].mxu0
        %v9518 = vpop.f32.mrb[0].mxu0
        %v9519 = vadd.f32 %v8920, %v9518
        %v9520 = vpop.f32.mrb[0].mxu0
        %9521 = vmatprep.mubr.bf16.mxu0 0
        %9522 = vmatmul.mubr.bf16.gmra.mrb[0].mxu0 %v8426
        %v9523 = vpop.f32.mrb[0].mxu0
        %v9524 = vadd.f32 %v8925, %v9523
        %v9525 = vpop.f32.mrb[0].mxu0
        %v9526 = vpop.f32.mrb[0].mxu0
        %v9527 = vadd.f32 %v8928, %v9526
        %v9528 = vpop.f32.mrb[0].mxu0
        %9529 = vmatprep.mubr.bf16.mxu0 0
        %9530 = vmatmul.mubr.bf16.gmra.mrb[0].mxu0 %v8429
        %v9531 = vpop.f32.mrb[0].mxu0
        %v9532 = vadd.f32 %v8933, %v9531
        %v9533 = vpop.f32.mrb[0].mxu0
        %v9534 = vpop.f32.mrb[0].mxu0
        %v9535 = vadd.f32 %v8936, %v9534
        %v9536 = vpop.f32.mrb[0].mxu0
        %9537 = vmatprep.mubr.bf16.mxu0 0
        %9538 = vmatmul.mubr.bf16.gmra.mrb[0].mxu0 %v8432
        %v9539 = vpop.f32.mrb[0].mxu0
        %v9540 = vadd.f32 %v8941, %v9539
        %v9541 = vpop.f32.mrb[0].mxu0
        %v9542 = vpop.f32.mrb[0].mxu0
        %v9543 = vadd.f32 %v8944, %v9542
        %v9544 = vpop.f32.mrb[0].mxu0
        %9545 = vmatprep.mubr.bf16.mxu0 0
        %9546 = vmatmul.mubr.bf16.gmra.mrb[0].mxu0 %v8435
        %v9547 = vpop.f32.mrb[0].mxu0
        %v9548 = vadd.f32 %v8949, %v9547
        %v9549 = vpop.f32.mrb[0].mxu0
        %v9550 = vpop.f32.mrb[0].mxu0
        %v9551 = vadd.f32 %v8952, %v9550
        %v9552 = vpop.f32.mrb[0].mxu0
        %9553 = vmatprep.mubr.bf16.mxu0 0
        %9554 = vmatmul.mubr.bf16.gmra.mrb[0].mxu0 %v8438
        %v9555 = vpop.f32.mrb[0].mxu0
        %v9556 = vadd.f32 %v8957, %v9555
        %v9557 = vpop.f32.mrb[0].mxu0
        %v9558 = vpop.f32.mrb[0].mxu0
        %v9559 = vadd.f32 %v8960, %v9558
        %v9560 = vpop.f32.mrb[0].mxu0
        %9561 = vmatprep.mubr.bf16.mxu0 0
        %9562 = vmatmul.mubr.bf16.gmra.mrb[0].mxu0 %v8441
        %v9563 = vpop.f32.mrb[0].mxu0
        %v9564 = vadd.f32 %v8965, %v9563
        %v9565 = vpop.f32.mrb[0].mxu0
        %v9566 = vpop.f32.mrb[0].mxu0
        %v9567 = vadd.f32 %v8968, %v9566
        %v9568 = vpop.f32.mrb[0].mxu0
        %9569 = vmatprep.mubr.bf16.mxu0 0
        %9570 = vmatmul.mubr.bf16.gmra.mrb[0].mxu0 %v8444
        %v9571 = vpop.f32.mrb[0].mxu0
        %v9572 = vadd.f32 %v8973, %v9571
        %v9573 = vpop.f32.mrb[0].mxu0
        %v9574 = vpop.f32.mrb[0].mxu0
        %v9575 = vadd.f32 %v8976, %v9574
        %v9576 = vpop.f32.mrb[0].mxu0
        %9577 = vmatprep.mubr.bf16.mxu0 0
        %9578 = vmatmul.mubr.bf16.gmra.mrb[0].mxu0 %v8447
        %v9579 = vpop.f32.mrb[0].mxu0
        %v9580 = vadd.f32 %v8981, %v9579
        %v9581 = vpop.f32.mrb[0].mxu0
        %v9582 = vpop.f32.mrb[0].mxu0
        %v9583 = vadd.f32 %v8984, %v9582
        %v9584 = vpop.f32.mrb[0].mxu0
        %9585 = vmatprep.mubr.bf16.mxu0 0
        %9586 = vmatmul.mubr.bf16.gmra.mrb[0].mxu0 %v8450
        %v9587 = vpop.f32.mrb[0].mxu0
        %v9588 = vadd.f32 %v8989, %v9587
        %v9589 = vpop.f32.mrb[0].mxu0
        %v9590 = vpop.f32.mrb[0].mxu0
        %v9591 = vadd.f32 %v8992, %v9590
        %v9592 = vpop.f32.mrb[0].mxu0
        %9593 = vmatprep.mubr.bf16.mxu0 0
        %9594 = vmatmul.mubr.bf16.gmra.mrb[0].mxu0 %v8453
        %v9595 = vpop.f32.mrb[0].mxu0
        %v9596 = vadd.f32 %v8997, %v9595
        %v9597 = vpop.f32.mrb[0].mxu0
        %v9598 = vpop.f32.mrb[0].mxu0
        %v9599 = vadd.f32 %v9000, %v9598
        %v9600 = vpop.f32.mrb[0].mxu0
        %9601 = vmatprep.mubr.bf16.mxu0 0
        %9602 = vmatmul.mubr.bf16.gmra.mrb[0].mxu0 %v8456
        %v9603 = vpop.f32.mrb[0].mxu0
        %v9604 = vadd.f32 %v9005, %v9603
        %v9605 = vpop.f32.mrb[0].mxu0
        %v9606 = vpop.f32.mrb[0].mxu0
        %v9607 = vadd.f32 %v9008, %v9606
        %v9608 = vpop.f32.mrb[0].mxu0
        %9609 = vmatprep.mubr.bf16.mxu0 0
        %9610 = vmatmul.mubr.bf16.gmra.mrb[0].mxu0 %v8459
        %v9611 = vpop.f32.mrb[0].mxu0
        %v9612 = vadd.f32 %v9013, %v9611
        %v9613 = vpop.f32.mrb[0].mxu0
        %v9614 = vpop.f32.mrb[0].mxu0
        %v9615 = vadd.f32 %v9016, %v9614
        %v9616 = vpop.f32.mrb[0].mxu0
        %9617 = vmatprep.mubr.bf16.mxu0 0
        %9618 = vmatmul.mubr.bf16.gmra.mrb[0].mxu0 %v8462
        %v9619 = vpop.f32.mrb[0].mxu0
        %v9620 = vadd.f32 %v9021, %v9619
        %v9621 = vpop.f32.mrb[0].mxu0
        %v9622 = vpop.f32.mrb[0].mxu0
        %v9623 = vadd.f32 %v9024, %v9622
        %v9624 = vpop.f32.mrb[0].mxu0
        %9625 = vmatprep.mubr.bf16.mxu0 0
        %9626 = vmatmul.mubr.bf16.gmra.mrb[0].mxu0 %v8465
        %v9627 = vpop.f32.mrb[0].mxu0
        %v9628 = vadd.f32 %v9029, %v9627
        %v9629 = vpop.f32.mrb[0].mxu0
        %v9630 = vpop.f32.mrb[0].mxu0
        %v9631 = vadd.f32 %v9032, %v9630
        %v9632 = vpop.f32.mrb[0].mxu0
        %9633 = vmatprep.mubr.bf16.mxu0 0
        %9634 = vmatmul.mubr.bf16.gmra.mrb[0].mxu0 %v8468
        %v9635 = vpop.f32.mrb[0].mxu0
        %v9636 = vadd.f32 %v9037, %v9635
        %v9637 = vpop.f32.mrb[0].mxu0
        %v9638 = vpop.f32.mrb[0].mxu0
        %v9639 = vadd.f32 %v9040, %v9638
        %v9640 = vpop.f32.mrb[0].mxu0
        %9641 = vmatprep.mubr.bf16.mxu0 0
        %9642 = vmatmul.mubr.bf16.gmra.mrb[0].mxu0 %v8471
        %v9643 = vpop.f32.mrb[0].mxu0
        %v9644 = vadd.f32 %v9045, %v9643
        %v9645 = vpop.f32.mrb[0].mxu0
        %v9646 = vpop.f32.mrb[0].mxu0
        %v9647 = vadd.f32 %v9048, %v9646
        %v9648 = vpop.f32.mrb[0].mxu0
        %9649 = vmatprep.mubr.bf16.mxu0 0
        %9650 = vmatmul.mubr.bf16.gmra.mrb[0].mxu0 %v8474
        %v9651 = vpop.f32.mrb[0].mxu0
        %v9652 = vadd.f32 %v9053, %v9651
        %v9653 = vpop.f32.mrb[0].mxu0
        %v9654 = vpop.f32.mrb[0].mxu0
        %v9655 = vadd.f32 %v9056, %v9654
        %v9656 = vpop.f32.mrb[0].mxu0
        %9657 = vmatprep.mubr.bf16.mxu0 0
        %9658 = vmatmul.mubr.bf16.gmra.mrb[0].mxu0 %v8477
        %v9659 = vpop.f32.mrb[0].mxu0
        %v9660 = vadd.f32 %v9061, %v9659
        %v9661 = vpop.f32.mrb[0].mxu0
        %v9662 = vpop.f32.mrb[0].mxu0
        %v9663 = vadd.f32 %v9064, %v9662
        %v9664 = vpop.f32.mrb[0].mxu0
        %9665 = vmatprep.mubr.bf16.mxu0 0
        %9666 = vmatmul.mubr.bf16.gmra.mrb[0].mxu0 %v8480
        %v9667 = vpop.f32.mrb[0].mxu0
        %v9668 = vadd.f32 %v9069, %v9667
        %v9669 = vpop.f32.mrb[0].mxu0
        %v9670 = vpop.f32.mrb[0].mxu0
        %v9671 = vadd.f32 %v9072, %v9670
        %v9672 = vpop.f32.mrb[0].mxu0
        %9673 = vdwg.mxu0
        %s9674 = scalar_lea.vmem %s4, 16
        %v9675 = vld [vmem:[%s9674] sm:$0xf]
        %v9676 = vld [vmem:[%s9674 + $0x4] sm:$0xf]
        %v9679 = vunpack.c.l.b16 %v9675
        %v9680 = vunpack.c.l.b16 %v9676
        %v9681 = vpack.c.b16 %v9680, %v9679
        %v9684 = vsel %vm4836, %v8311, 0
        %v9687 = vsel %vm4836, %v8312, 0
        %v9690 = vsel %vm4836, %v8313, 0
        %v9693 = vsel %vm4836, %v8314, 0
        %v9696 = vsel %vm4836, %v8315, 0
        %v9699 = vsel %vm4836, %v8316, 0
        %v9702 = vsel %vm4836, %v8317, 0
        %v9705 = vsel %vm4836, %v8318, 0
        %v9708 = vsel %vm4836, %v8319, 0
        %v9711 = vsel %vm4836, %v8320, 0
        %v9714 = vsel %vm4836, %v8321, 0
        %v9717 = vsel %vm4836, %v8322, 0
        %v9720 = vsel %vm4836, %v8323, 0
        %v9723 = vsel %vm4836, %v8324, 0
        %v9726 = vsel %vm4836, %v8325, 0
        %v9729 = vsel %vm4836, %v8326, 0
        %9731 = vmatprep.subr.bf16.mxu0 0
        %9732 = vmatpush1.bf16.msra.mxu0 %v9681
        %9733 = vmatprep.subr.bf16.mxu0 0
        %9734 = vmatpush1.bf16.msra.mxu0 0
        %9735 = vmatprep.subr.bf16.mxu0 0
        %9736 = vmatpush1.bf16.msra.mxu0 0
        %9737 = vmatprep.subr.bf16.mxu0 0
        %9738 = vmatpush1.bf16.msra.mxu0 0
        %9739 = vmatprep.subr.bf16.mxu0 0
        %9740 = vmatpush1.bf16.msra.mxu0 0
        %9741 = vmatprep.subr.bf16.mxu0 0
        %9742 = vmatpush1.bf16.msra.mxu0 0
        %9743 = vmatprep.subr.bf16.mxu0 0
        %9744 = vmatpush1.bf16.msra.mxu0 0
        %9745 = vmatprep.subr.bf16.mxu0 0
        %9746 = vmatpush1.bf16.msra.mxu0 0
        %9747 = vmatprep.subr.bf16.mxu0 0
        %9748 = vmatpush1.bf16.msra.mxu0 0
        %9749 = vmatprep.subr.bf16.mxu0 0
        %9750 = vmatpush1.bf16.msra.mxu0 0
        %9751 = vmatprep.subr.bf16.mxu0 0
        %9752 = vmatpush1.bf16.msra.mxu0 0
        %9753 = vmatprep.subr.bf16.mxu0 0
        %9754 = vmatpush1.bf16.msra.mxu0 0
        %9755 = vmatprep.subr.bf16.mxu0 0
        %9756 = vmatpush1.bf16.msra.mxu0 0
        %9757 = vmatprep.subr.bf16.mxu0 0
        %9758 = vmatpush1.bf16.msra.mxu0 0
        %9759 = vmatprep.subr.bf16.mxu0 0
        %9760 = vmatpush1.bf16.msra.mxu0 0
        %9761 = vmatprep.subr.bf16.mxu0 0
        %9762 = vmatpush1.bf16.msra.mxu0 0
        %9763 = vmatprep.mubr.bf16.mxu0 0
        %9764 = vmatmul.mubr.bf16.gmra.mrb[0].mxu0 %v8387
        %v9765 = vpop.f32.mrb[0].mxu0
        %v9766 = vadd.f32 0.0, %v9765
        %v9767 = vpop.f32.mrb[0].mxu0
        %v9768 = vpop.f32.mrb[0].mxu0
        %v9769 = vadd.f32 0.0, %v9768
        %v9770 = vpop.f32.mrb[0].mxu0
        %9771 = vmatprep.mubr.bf16.mxu0 0
        %9772 = vmatmul.mubr.bf16.gmra.mrb[0].mxu0 %v8390
        %v9773 = vpop.f32.mrb[0].mxu0
        %v9774 = vadd.f32 0.0, %v9773
        %v9775 = vpop.f32.mrb[0].mxu0
        %v9776 = vpop.f32.mrb[0].mxu0
        %v9777 = vadd.f32 0.0, %v9776
        %v9778 = vpop.f32.mrb[0].mxu0
        %9779 = vmatprep.mubr.bf16.mxu0 0
        %9780 = vmatmul.mubr.bf16.gmra.mrb[0].mxu0 %v8393
        %v9781 = vpop.f32.mrb[0].mxu0
        %v9782 = vadd.f32 0.0, %v9781
        %v9783 = vpop.f32.mrb[0].mxu0
        %v9784 = vpop.f32.mrb[0].mxu0
        %v9785 = vadd.f32 0.0, %v9784
        %v9786 = vpop.f32.mrb[0].mxu0
        %9787 = vmatprep.mubr.bf16.mxu0 0
        %9788 = vmatmul.mubr.bf16.gmra.mrb[0].mxu0 %v8396
        %v9789 = vpop.f32.mrb[0].mxu0
        %v9790 = vadd.f32 0.0, %v9789
        %v9791 = vpop.f32.mrb[0].mxu0
        %v9792 = vpop.f32.mrb[0].mxu0
        %v9793 = vadd.f32 0.0, %v9792
        %v9794 = vpop.f32.mrb[0].mxu0
        %9795 = vmatprep.mubr.bf16.mxu0 0
        %9796 = vmatmul.mubr.bf16.gmra.mrb[0].mxu0 %v8399
        %v9797 = vpop.f32.mrb[0].mxu0
        %v9798 = vadd.f32 0.0, %v9797
        %v9799 = vpop.f32.mrb[0].mxu0
        %v9800 = vpop.f32.mrb[0].mxu0
        %v9801 = vadd.f32 0.0, %v9800
        %v9802 = vpop.f32.mrb[0].mxu0
        %9803 = vmatprep.mubr.bf16.mxu0 0
        %9804 = vmatmul.mubr.bf16.gmra.mrb[0].mxu0 %v8402
        %v9805 = vpop.f32.mrb[0].mxu0
        %v9806 = vadd.f32 0.0, %v9805
        %v9807 = vpop.f32.mrb[0].mxu0
        %v9808 = vpop.f32.mrb[0].mxu0
        %v9809 = vadd.f32 0.0, %v9808
        %v9810 = vpop.f32.mrb[0].mxu0
        %9811 = vmatprep.mubr.bf16.mxu0 0
        %9812 = vmatmul.mubr.bf16.gmra.mrb[0].mxu0 %v8405
        %v9813 = vpop.f32.mrb[0].mxu0
        %v9814 = vadd.f32 0.0, %v9813
        %v9815 = vpop.f32.mrb[0].mxu0
        %v9816 = vpop.f32.mrb[0].mxu0
        %v9817 = vadd.f32 0.0, %v9816
        %v9818 = vpop.f32.mrb[0].mxu0
        %9819 = vmatprep.mubr.bf16.mxu0 0
        %9820 = vmatmul.mubr.bf16.gmra.mrb[0].mxu0 %v8408
        %v9821 = vpop.f32.mrb[0].mxu0
        %v9822 = vadd.f32 0.0, %v9821
        %v9823 = vpop.f32.mrb[0].mxu0
        %v9824 = vpop.f32.mrb[0].mxu0
        %v9825 = vadd.f32 0.0, %v9824
        %v9826 = vpop.f32.mrb[0].mxu0
        %9827 = vmatprep.mubr.bf16.mxu0 0
        %9828 = vmatmul.mubr.bf16.gmra.mrb[0].mxu0 %v8411
        %v9829 = vpop.f32.mrb[0].mxu0
        %v9830 = vadd.f32 0.0, %v9829
        %v9831 = vpop.f32.mrb[0].mxu0
        %v9832 = vpop.f32.mrb[0].mxu0
        %v9833 = vadd.f32 0.0, %v9832
        %v9834 = vpop.f32.mrb[0].mxu0
        %9835 = vmatprep.mubr.bf16.mxu0 0
        %9836 = vmatmul.mubr.bf16.gmra.mrb[0].mxu0 %v8414
        %v9837 = vpop.f32.mrb[0].mxu0
        %v9838 = vadd.f32 0.0, %v9837
        %v9839 = vpop.f32.mrb[0].mxu0
        %v9840 = vpop.f32.mrb[0].mxu0
        %v9841 = vadd.f32 0.0, %v9840
        %v9842 = vpop.f32.mrb[0].mxu0
        %9843 = vmatprep.mubr.bf16.mxu0 0
        %9844 = vmatmul.mubr.bf16.gmra.mrb[0].mxu0 %v8417
        %v9845 = vpop.f32.mrb[0].mxu0
        %v9846 = vadd.f32 0.0, %v9845
        %v9847 = vpop.f32.mrb[0].mxu0
        %v9848 = vpop.f32.mrb[0].mxu0
        %v9849 = vadd.f32 0.0, %v9848
        %v9850 = vpop.f32.mrb[0].mxu0
        %9851 = vmatprep.mubr.bf16.mxu0 0
        %9852 = vmatmul.mubr.bf16.gmra.mrb[0].mxu0 %v8420
        %v9853 = vpop.f32.mrb[0].mxu0
        %v9854 = vadd.f32 0.0, %v9853
        %v9855 = vpop.f32.mrb[0].mxu0
        %v9856 = vpop.f32.mrb[0].mxu0
        %v9857 = vadd.f32 0.0, %v9856
        %v9858 = vpop.f32.mrb[0].mxu0
        %9859 = vmatprep.mubr.bf16.mxu0 0
        %9860 = vmatmul.mubr.bf16.gmra.mrb[0].mxu0 %v8423
        %v9861 = vpop.f32.mrb[0].mxu0
        %v9862 = vadd.f32 0.0, %v9861
        %v9863 = vpop.f32.mrb[0].mxu0
        %v9864 = vpop.f32.mrb[0].mxu0
        %v9865 = vadd.f32 0.0, %v9864
        %v9866 = vpop.f32.mrb[0].mxu0
        %9867 = vmatprep.mubr.bf16.mxu0 0
        %9868 = vmatmul.mubr.bf16.gmra.mrb[0].mxu0 %v8426
        %v9869 = vpop.f32.mrb[0].mxu0
        %v9870 = vadd.f32 0.0, %v9869
        %v9871 = vpop.f32.mrb[0].mxu0
        %v9872 = vpop.f32.mrb[0].mxu0
        %v9873 = vadd.f32 0.0, %v9872
        %v9874 = vpop.f32.mrb[0].mxu0
        %9875 = vmatprep.mubr.bf16.mxu0 0
        %9876 = vmatmul.mubr.bf16.gmra.mrb[0].mxu0 %v8429
        %v9877 = vpop.f32.mrb[0].mxu0
        %v9878 = vadd.f32 0.0, %v9877
        %v9879 = vpop.f32.mrb[0].mxu0
        %v9880 = vpop.f32.mrb[0].mxu0
        %v9881 = vadd.f32 0.0, %v9880
        %v9882 = vpop.f32.mrb[0].mxu0
        %9883 = vmatprep.mubr.bf16.mxu0 0
        %9884 = vmatmul.mubr.bf16.gmra.mrb[0].mxu0 %v8432
        %v9885 = vpop.f32.mrb[0].mxu0
        %v9886 = vadd.f32 0.0, %v9885
        %v9887 = vpop.f32.mrb[0].mxu0
        %v9888 = vpop.f32.mrb[0].mxu0
        %v9889 = vadd.f32 0.0, %v9888
        %v9890 = vpop.f32.mrb[0].mxu0
        %9891 = vmatprep.mubr.bf16.mxu0 0
        %9892 = vmatmul.mubr.bf16.gmra.mrb[0].mxu0 %v8435
        %v9893 = vpop.f32.mrb[0].mxu0
        %v9894 = vadd.f32 0.0, %v9893
        %v9895 = vpop.f32.mrb[0].mxu0
        %v9896 = vpop.f32.mrb[0].mxu0
        %v9897 = vadd.f32 0.0, %v9896
        %v9898 = vpop.f32.mrb[0].mxu0
        %9899 = vmatprep.mubr.bf16.mxu0 0
        %9900 = vmatmul.mubr.bf16.gmra.mrb[0].mxu0 %v8438
        %v9901 = vpop.f32.mrb[0].mxu0
        %v9902 = vadd.f32 0.0, %v9901
        %v9903 = vpop.f32.mrb[0].mxu0
        %v9904 = vpop.f32.mrb[0].mxu0
        %v9905 = vadd.f32 0.0, %v9904
        %v9906 = vpop.f32.mrb[0].mxu0
        %9907 = vmatprep.mubr.bf16.mxu0 0
        %9908 = vmatmul.mubr.bf16.gmra.mrb[0].mxu0 %v8441
        %v9909 = vpop.f32.mrb[0].mxu0
        %v9910 = vadd.f32 0.0, %v9909
        %v9911 = vpop.f32.mrb[0].mxu0
        %v9912 = vpop.f32.mrb[0].mxu0
        %v9913 = vadd.f32 0.0, %v9912
        %v9914 = vpop.f32.mrb[0].mxu0
        %9915 = vmatprep.mubr.bf16.mxu0 0
        %9916 = vmatmul.mubr.bf16.gmra.mrb[0].mxu0 %v8444
        %v9917 = vpop.f32.mrb[0].mxu0
        %v9918 = vadd.f32 0.0, %v9917
        %v9919 = vpop.f32.mrb[0].mxu0
        %v9920 = vpop.f32.mrb[0].mxu0
        %v9921 = vadd.f32 0.0, %v9920
        %v9922 = vpop.f32.mrb[0].mxu0
        %9923 = vmatprep.mubr.bf16.mxu0 0
        %9924 = vmatmul.mubr.bf16.gmra.mrb[0].mxu0 %v8447
        %v9925 = vpop.f32.mrb[0].mxu0
        %v9926 = vadd.f32 0.0, %v9925
        %v9927 = vpop.f32.mrb[0].mxu0
        %v9928 = vpop.f32.mrb[0].mxu0
        %v9929 = vadd.f32 0.0, %v9928
        %v9930 = vpop.f32.mrb[0].mxu0
        %9931 = vmatprep.mubr.bf16.mxu0 0
        %9932 = vmatmul.mubr.bf16.gmra.mrb[0].mxu0 %v8450
        %v9933 = vpop.f32.mrb[0].mxu0
        %v9934 = vadd.f32 0.0, %v9933
        %v9935 = vpop.f32.mrb[0].mxu0
        %v9936 = vpop.f32.mrb[0].mxu0
        %v9937 = vadd.f32 0.0, %v9936
        %v9938 = vpop.f32.mrb[0].mxu0
        %9939 = vmatprep.mubr.bf16.mxu0 0
        %9940 = vmatmul.mubr.bf16.gmra.mrb[0].mxu0 %v8453
        %v9941 = vpop.f32.mrb[0].mxu0
        %v9942 = vadd.f32 0.0, %v9941
        %v9943 = vpop.f32.mrb[0].mxu0
        %v9944 = vpop.f32.mrb[0].mxu0
        %v9945 = vadd.f32 0.0, %v9944
        %v9946 = vpop.f32.mrb[0].mxu0
        %9947 = vmatprep.mubr.bf16.mxu0 0
        %9948 = vmatmul.mubr.bf16.gmra.mrb[0].mxu0 %v8456
        %v9949 = vpop.f32.mrb[0].mxu0
        %v9950 = vadd.f32 0.0, %v9949
        %v9951 = vpop.f32.mrb[0].mxu0
        %v9952 = vpop.f32.mrb[0].mxu0
        %v9953 = vadd.f32 0.0, %v9952
        %v9954 = vpop.f32.mrb[0].mxu0
        %9955 = vmatprep.mubr.bf16.mxu0 0
        %9956 = vmatmul.mubr.bf16.gmra.mrb[0].mxu0 %v8459
        %v9957 = vpop.f32.mrb[0].mxu0
        %v9958 = vadd.f32 0.0, %v9957
        %v9959 = vpop.f32.mrb[0].mxu0
        %v9960 = vpop.f32.mrb[0].mxu0
        %v9961 = vadd.f32 0.0, %v9960
        %v9962 = vpop.f32.mrb[0].mxu0
        %9963 = vmatprep.mubr.bf16.mxu0 0
        %9964 = vmatmul.mubr.bf16.gmra.mrb[0].mxu0 %v8462
        %v9965 = vpop.f32.mrb[0].mxu0
        %v9966 = vadd.f32 0.0, %v9965
        %v9967 = vpop.f32.mrb[0].mxu0
        %v9968 = vpop.f32.mrb[0].mxu0
        %v9969 = vadd.f32 0.0, %v9968
        %v9970 = vpop.f32.mrb[0].mxu0
        %9971 = vmatprep.mubr.bf16.mxu0 0
        %9972 = vmatmul.mubr.bf16.gmra.mrb[0].mxu0 %v8465
        %v9973 = vpop.f32.mrb[0].mxu0
        %v9974 = vadd.f32 0.0, %v9973
        %v9975 = vpop.f32.mrb[0].mxu0
        %v9976 = vpop.f32.mrb[0].mxu0
        %v9977 = vadd.f32 0.0, %v9976
        %v9978 = vpop.f32.mrb[0].mxu0
        %9979 = vmatprep.mubr.bf16.mxu0 0
        %9980 = vmatmul.mubr.bf16.gmra.mrb[0].mxu0 %v8468
        %v9981 = vpop.f32.mrb[0].mxu0
        %v9982 = vadd.f32 0.0, %v9981
        %v9983 = vpop.f32.mrb[0].mxu0
        %v9984 = vpop.f32.mrb[0].mxu0
        %v9985 = vadd.f32 0.0, %v9984
        %v9986 = vpop.f32.mrb[0].mxu0
        %9987 = vmatprep.mubr.bf16.mxu0 0
        %9988 = vmatmul.mubr.bf16.gmra.mrb[0].mxu0 %v8471
        %v9989 = vpop.f32.mrb[0].mxu0
        %v9990 = vadd.f32 0.0, %v9989
        %v9991 = vpop.f32.mrb[0].mxu0
        %v9992 = vpop.f32.mrb[0].mxu0
        %v9993 = vadd.f32 0.0, %v9992
        %v9994 = vpop.f32.mrb[0].mxu0
        %9995 = vmatprep.mubr.bf16.mxu0 0
        %9996 = vmatmul.mubr.bf16.gmra.mrb[0].mxu0 %v8474
        %v9997 = vpop.f32.mrb[0].mxu0
        %v9998 = vadd.f32 0.0, %v9997
        %v9999 = vpop.f32.mrb[0].mxu0
        %v10000 = vpop.f32.mrb[0].mxu0
        %v10001 = vadd.f32 0.0, %v10000
        %v10002 = vpop.f32.mrb[0].mxu0
        %10003 = vmatprep.mubr.bf16.mxu0 0
        %10004 = vmatmul.mubr.bf16.gmra.mrb[0].mxu0 %v8477
        %v10005 = vpop.f32.mrb[0].mxu0
        %v10006 = vadd.f32 0.0, %v10005
        %v10007 = vpop.f32.mrb[0].mxu0
        %v10008 = vpop.f32.mrb[0].mxu0
        %v10009 = vadd.f32 0.0, %v10008
        %v10010 = vpop.f32.mrb[0].mxu0
        %10011 = vmatprep.mubr.bf16.mxu0 0
        %10012 = vmatmul.mubr.bf16.gmra.mrb[0].mxu0 %v8480
        %v10013 = vpop.f32.mrb[0].mxu0
        %v10014 = vadd.f32 0.0, %v10013
        %v10015 = vpop.f32.mrb[0].mxu0
        %v10016 = vpop.f32.mrb[0].mxu0
        %v10017 = vadd.f32 0.0, %v10016
        %v10018 = vpop.f32.mrb[0].mxu0
        %10019 = vmatprep.mubr.bf16.mxu0 0
        %10020 = vmatmul.mubr.bf16.gmra.mrb[0].mxu0 %v8483
        %v10021 = vpop.f32.mrb[0].mxu0
        %v10022 = vadd.f32 0.0, %v10021
        %v10023 = vpop.f32.mrb[0].mxu0
        %v10024 = vpop.f32.mrb[0].mxu0
        %v10025 = vadd.f32 0.0, %v10024
        %v10026 = vpop.f32.mrb[0].mxu0
        %10027 = vmatprep.mubr.bf16.mxu0 0
        %10028 = vmatmul.mubr.bf16.gmra.mrb[0].mxu0 %v8486
        %v10029 = vpop.f32.mrb[0].mxu0
        %v10030 = vadd.f32 0.0, %v10029
        %v10031 = vpop.f32.mrb[0].mxu0
        %v10032 = vpop.f32.mrb[0].mxu0
        %v10033 = vadd.f32 0.0, %v10032
        %v10034 = vpop.f32.mrb[0].mxu0
        %10035 = vmatprep.mubr.bf16.mxu0 0
        %10036 = vmatmul.mubr.bf16.gmra.mrb[0].mxu0 %v8489
        %v10037 = vpop.f32.mrb[0].mxu0
        %v10038 = vadd.f32 0.0, %v10037
        %v10039 = vpop.f32.mrb[0].mxu0
        %v10040 = vpop.f32.mrb[0].mxu0
        %v10041 = vadd.f32 0.0, %v10040
        %v10042 = vpop.f32.mrb[0].mxu0
        %10043 = vmatprep.mubr.bf16.mxu0 0
        %10044 = vmatmul.mubr.bf16.gmra.mrb[0].mxu0 %v8492
        %v10045 = vpop.f32.mrb[0].mxu0
        %v10046 = vadd.f32 0.0, %v10045
        %v10047 = vpop.f32.mrb[0].mxu0
        %v10048 = vpop.f32.mrb[0].mxu0
        %v10049 = vadd.f32 0.0, %v10048
        %v10050 = vpop.f32.mrb[0].mxu0
        %10051 = vmatprep.mubr.bf16.mxu0 0
        %10052 = vmatmul.mubr.bf16.gmra.mrb[0].mxu0 %v8495
        %v10053 = vpop.f32.mrb[0].mxu0
        %v10054 = vadd.f32 0.0, %v10053
        %v10055 = vpop.f32.mrb[0].mxu0
        %v10056 = vpop.f32.mrb[0].mxu0
        %v10057 = vadd.f32 0.0, %v10056
        %v10058 = vpop.f32.mrb[0].mxu0
        %10059 = vmatprep.mubr.bf16.mxu0 0
        %10060 = vmatmul.mubr.bf16.gmra.mrb[0].mxu0 %v8498
        %v10061 = vpop.f32.mrb[0].mxu0
        %v10062 = vadd.f32 0.0, %v10061
        %v10063 = vpop.f32.mrb[0].mxu0
        %v10064 = vpop.f32.mrb[0].mxu0
        %v10065 = vadd.f32 0.0, %v10064
        %v10066 = vpop.f32.mrb[0].mxu0
        %10067 = vmatprep.mubr.bf16.mxu0 0
        %10068 = vmatmul.mubr.bf16.gmra.mrb[0].mxu0 %v8501
        %v10069 = vpop.f32.mrb[0].mxu0
        %v10070 = vadd.f32 0.0, %v10069
        %v10071 = vpop.f32.mrb[0].mxu0
        %v10072 = vpop.f32.mrb[0].mxu0
        %v10073 = vadd.f32 0.0, %v10072
        %v10074 = vpop.f32.mrb[0].mxu0
        %10075 = vmatprep.mubr.bf16.mxu0 0
        %10076 = vmatmul.mubr.bf16.gmra.mrb[0].mxu0 %v8504
        %v10077 = vpop.f32.mrb[0].mxu0
        %v10078 = vadd.f32 0.0, %v10077
        %v10079 = vpop.f32.mrb[0].mxu0
        %v10080 = vpop.f32.mrb[0].mxu0
        %v10081 = vadd.f32 0.0, %v10080
        %v10082 = vpop.f32.mrb[0].mxu0
        %10083 = vmatprep.mubr.bf16.mxu0 0
        %10084 = vmatmul.mubr.bf16.gmra.mrb[0].mxu0 %v8507
        %v10085 = vpop.f32.mrb[0].mxu0
        %v10086 = vadd.f32 0.0, %v10085
        %v10087 = vpop.f32.mrb[0].mxu0
        %v10088 = vpop.f32.mrb[0].mxu0
        %v10089 = vadd.f32 0.0, %v10088
        %v10090 = vpop.f32.mrb[0].mxu0
        %10091 = vmatprep.mubr.bf16.mxu0 0
        %10092 = vmatmul.mubr.bf16.gmra.mrb[0].mxu0 %v8510
        %v10093 = vpop.f32.mrb[0].mxu0
        %v10094 = vadd.f32 0.0, %v10093
        %v10095 = vpop.f32.mrb[0].mxu0
        %v10096 = vpop.f32.mrb[0].mxu0
        %v10097 = vadd.f32 0.0, %v10096
        %v10098 = vpop.f32.mrb[0].mxu0
        %10099 = vmatprep.mubr.bf16.mxu0 0
        %10100 = vmatmul.mubr.bf16.gmra.mrb[0].mxu0 %v8513
        %v10101 = vpop.f32.mrb[0].mxu0
        %v10102 = vadd.f32 0.0, %v10101
        %v10103 = vpop.f32.mrb[0].mxu0
        %v10104 = vpop.f32.mrb[0].mxu0
        %v10105 = vadd.f32 0.0, %v10104
        %v10106 = vpop.f32.mrb[0].mxu0
        %10107 = vmatprep.mubr.bf16.mxu0 0
        %10108 = vmatmul.mubr.bf16.gmra.mrb[0].mxu0 %v8516
        %v10109 = vpop.f32.mrb[0].mxu0
        %v10110 = vadd.f32 0.0, %v10109
        %v10111 = vpop.f32.mrb[0].mxu0
        %v10112 = vpop.f32.mrb[0].mxu0
        %v10113 = vadd.f32 0.0, %v10112
        %v10114 = vpop.f32.mrb[0].mxu0
        %10115 = vmatprep.mubr.bf16.mxu0 0
        %10116 = vmatmul.mubr.bf16.gmra.mrb[0].mxu0 %v8519
        %v10117 = vpop.f32.mrb[0].mxu0
        %v10118 = vadd.f32 0.0, %v10117
        %v10119 = vpop.f32.mrb[0].mxu0
        %v10120 = vpop.f32.mrb[0].mxu0
        %v10121 = vadd.f32 0.0, %v10120
        %v10122 = vpop.f32.mrb[0].mxu0
        %10123 = vmatprep.mubr.bf16.mxu0 0
        %10124 = vmatmul.mubr.bf16.gmra.mrb[0].mxu0 %v8522
        %v10125 = vpop.f32.mrb[0].mxu0
        %v10126 = vadd.f32 0.0, %v10125
        %v10127 = vpop.f32.mrb[0].mxu0
        %v10128 = vpop.f32.mrb[0].mxu0
        %v10129 = vadd.f32 0.0, %v10128
        %v10130 = vpop.f32.mrb[0].mxu0
        %10131 = vmatprep.mubr.bf16.mxu0 0
        %10132 = vmatmul.mubr.bf16.gmra.mrb[0].mxu0 %v8525
        %v10133 = vpop.f32.mrb[0].mxu0
        %v10134 = vadd.f32 0.0, %v10133
        %v10135 = vpop.f32.mrb[0].mxu0
        %v10136 = vpop.f32.mrb[0].mxu0
        %v10137 = vadd.f32 0.0, %v10136
        %v10138 = vpop.f32.mrb[0].mxu0
        %10139 = vmatprep.mubr.bf16.mxu0 0
        %10140 = vmatmul.mubr.bf16.gmra.mrb[0].mxu0 %v8528
        %v10141 = vpop.f32.mrb[0].mxu0
        %v10142 = vadd.f32 0.0, %v10141
        %v10143 = vpop.f32.mrb[0].mxu0
        %v10144 = vpop.f32.mrb[0].mxu0
        %v10145 = vadd.f32 0.0, %v10144
        %v10146 = vpop.f32.mrb[0].mxu0
        %10147 = vmatprep.mubr.bf16.mxu0 0
        %10148 = vmatmul.mubr.bf16.gmra.mrb[0].mxu0 %v9684
        %v10149 = vpop.f32.mrb[0].mxu0
        %v10150 = vadd.f32 0.0, %v10149
        %v10151 = vpop.f32.mrb[0].mxu0
        %v10152 = vpop.f32.mrb[0].mxu0
        %v10153 = vadd.f32 0.0, %v10152
        %v10154 = vpop.f32.mrb[0].mxu0
        %10155 = vmatprep.mubr.bf16.mxu0 0
        %10156 = vmatmul.mubr.bf16.gmra.mrb[0].mxu0 %v9687
        %v10157 = vpop.f32.mrb[0].mxu0
        %v10158 = vadd.f32 0.0, %v10157
        %v10159 = vpop.f32.mrb[0].mxu0
        %v10160 = vpop.f32.mrb[0].mxu0
        %v10161 = vadd.f32 0.0, %v10160
        %v10162 = vpop.f32.mrb[0].mxu0
        %10163 = vmatprep.mubr.bf16.mxu0 0
        %10164 = vmatmul.mubr.bf16.gmra.mrb[0].mxu0 %v9690
        %v10165 = vpop.f32.mrb[0].mxu0
        %v10166 = vadd.f32 0.0, %v10165
        %v10167 = vpop.f32.mrb[0].mxu0
        %v10168 = vpop.f32.mrb[0].mxu0
        %v10169 = vadd.f32 0.0, %v10168
        %v10170 = vpop.f32.mrb[0].mxu0
        %10171 = vmatprep.mubr.bf16.mxu0 0
        %10172 = vmatmul.mubr.bf16.gmra.mrb[0].mxu0 %v9693
        %v10173 = vpop.f32.mrb[0].mxu0
        %v10174 = vadd.f32 0.0, %v10173
        %v10175 = vpop.f32.mrb[0].mxu0
        %v10176 = vpop.f32.mrb[0].mxu0
        %v10177 = vadd.f32 0.0, %v10176
        %v10178 = vpop.f32.mrb[0].mxu0
        %10179 = vmatprep.mubr.bf16.mxu0 0
        %10180 = vmatmul.mubr.bf16.gmra.mrb[0].mxu0 %v9696
        %v10181 = vpop.f32.mrb[0].mxu0
        %v10182 = vadd.f32 0.0, %v10181
        %v10183 = vpop.f32.mrb[0].mxu0
        %v10184 = vpop.f32.mrb[0].mxu0
        %v10185 = vadd.f32 0.0, %v10184
        %v10186 = vpop.f32.mrb[0].mxu0
        %10187 = vmatprep.mubr.bf16.mxu0 0
        %10188 = vmatmul.mubr.bf16.gmra.mrb[0].mxu0 %v9699
        %v10189 = vpop.f32.mrb[0].mxu0
        %v10190 = vadd.f32 0.0, %v10189
        %v10191 = vpop.f32.mrb[0].mxu0
        %v10192 = vpop.f32.mrb[0].mxu0
        %v10193 = vadd.f32 0.0, %v10192
        %v10194 = vpop.f32.mrb[0].mxu0
        %10195 = vmatprep.mubr.bf16.mxu0 0
        %10196 = vmatmul.mubr.bf16.gmra.mrb[0].mxu0 %v9702
        %v10197 = vpop.f32.mrb[0].mxu0
        %v10198 = vadd.f32 0.0, %v10197
        %v10199 = vpop.f32.mrb[0].mxu0
        %v10200 = vpop.f32.mrb[0].mxu0
        %v10201 = vadd.f32 0.0, %v10200
        %v10202 = vpop.f32.mrb[0].mxu0
        %10203 = vmatprep.mubr.bf16.mxu0 0
        %10204 = vmatmul.mubr.bf16.gmra.mrb[0].mxu0 %v9705
        %v10205 = vpop.f32.mrb[0].mxu0
        %v10206 = vadd.f32 0.0, %v10205
        %v10207 = vpop.f32.mrb[0].mxu0
        %v10208 = vpop.f32.mrb[0].mxu0
        %v10209 = vadd.f32 0.0, %v10208
        %v10210 = vpop.f32.mrb[0].mxu0
        %10211 = vmatprep.mubr.bf16.mxu0 0
        %10212 = vmatmul.mubr.bf16.gmra.mrb[0].mxu0 %v9708
        %v10213 = vpop.f32.mrb[0].mxu0
        %v10214 = vadd.f32 0.0, %v10213
        %v10215 = vpop.f32.mrb[0].mxu0
        %v10216 = vpop.f32.mrb[0].mxu0
        %v10217 = vadd.f32 0.0, %v10216
        %v10218 = vpop.f32.mrb[0].mxu0
        %10219 = vmatprep.mubr.bf16.mxu0 0
        %10220 = vmatmul.mubr.bf16.gmra.mrb[0].mxu0 %v9711
        %v10221 = vpop.f32.mrb[0].mxu0
        %v10222 = vadd.f32 0.0, %v10221
        %v10223 = vpop.f32.mrb[0].mxu0
        %v10224 = vpop.f32.mrb[0].mxu0
        %v10225 = vadd.f32 0.0, %v10224
        %v10226 = vpop.f32.mrb[0].mxu0
        %10227 = vmatprep.mubr.bf16.mxu0 0
        %10228 = vmatmul.mubr.bf16.gmra.mrb[0].mxu0 %v9714
        %v10229 = vpop.f32.mrb[0].mxu0
        %v10230 = vadd.f32 0.0, %v10229
        %v10231 = vpop.f32.mrb[0].mxu0
        %v10232 = vpop.f32.mrb[0].mxu0
        %v10233 = vadd.f32 0.0, %v10232
        %v10234 = vpop.f32.mrb[0].mxu0
        %10235 = vmatprep.mubr.bf16.mxu0 0
        %10236 = vmatmul.mubr.bf16.gmra.mrb[0].mxu0 %v9717
        %v10237 = vpop.f32.mrb[0].mxu0
        %v10238 = vadd.f32 0.0, %v10237
        %v10239 = vpop.f32.mrb[0].mxu0
        %v10240 = vpop.f32.mrb[0].mxu0
        %v10241 = vadd.f32 0.0, %v10240
        %v10242 = vpop.f32.mrb[0].mxu0
        %10243 = vmatprep.mubr.bf16.mxu0 0
        %10244 = vmatmul.mubr.bf16.gmra.mrb[0].mxu0 %v9720
        %v10245 = vpop.f32.mrb[0].mxu0
        %v10246 = vadd.f32 0.0, %v10245
        %v10247 = vpop.f32.mrb[0].mxu0
        %v10248 = vpop.f32.mrb[0].mxu0
        %v10249 = vadd.f32 0.0, %v10248
        %v10250 = vpop.f32.mrb[0].mxu0
        %10251 = vmatprep.mubr.bf16.mxu0 0
        %10252 = vmatmul.mubr.bf16.gmra.mrb[0].mxu0 %v9723
        %v10253 = vpop.f32.mrb[0].mxu0
        %v10254 = vadd.f32 0.0, %v10253
        %v10255 = vpop.f32.mrb[0].mxu0
        %v10256 = vpop.f32.mrb[0].mxu0
        %v10257 = vadd.f32 0.0, %v10256
        %v10258 = vpop.f32.mrb[0].mxu0
        %10259 = vmatprep.mubr.bf16.mxu0 0
        %10260 = vmatmul.mubr.bf16.gmra.mrb[0].mxu0 %v9726
        %v10261 = vpop.f32.mrb[0].mxu0
        %v10262 = vadd.f32 0.0, %v10261
        %v10263 = vpop.f32.mrb[0].mxu0
        %v10264 = vpop.f32.mrb[0].mxu0
        %v10265 = vadd.f32 0.0, %v10264
        %v10266 = vpop.f32.mrb[0].mxu0
        %10267 = vmatprep.mubr.bf16.mxu0 0
        %10268 = vmatmul.mubr.bf16.gmra.mrb[0].mxu0 %v9729
        %v10269 = vpop.f32.mrb[0].mxu0
        %v10270 = vadd.f32 0.0, %v10269
        %v10271 = vpop.f32.mrb[0].mxu0
        %v10272 = vpop.f32.mrb[0].mxu0
        %v10273 = vadd.f32 0.0, %v10272
        %v10274 = vpop.f32.mrb[0].mxu0
        %10275 = vdwg.mxu0
        %v10276 = vadd.f32 %v9164, %v9766
        %v10277 = vadd.f32 %v9167, %v9769
        %v10278 = vadd.f32 %v9172, %v9774
        %v10279 = vadd.f32 %v9175, %v9777
        %v10280 = vadd.f32 %v9180, %v9782
        %v10281 = vadd.f32 %v9183, %v9785
        %v10282 = vadd.f32 %v9188, %v9790
        %v10283 = vadd.f32 %v9191, %v9793
        %v10284 = vadd.f32 %v9196, %v9798
        %v10285 = vadd.f32 %v9199, %v9801
        %v10286 = vadd.f32 %v9204, %v9806
        %v10287 = vadd.f32 %v9207, %v9809
        %v10288 = vadd.f32 %v9212, %v9814
        %v10289 = vadd.f32 %v9215, %v9817
        %v10290 = vadd.f32 %v9220, %v9822
        %v10291 = vadd.f32 %v9223, %v9825
        %v10292 = vadd.f32 %v9228, %v9830
        %v10293 = vadd.f32 %v9231, %v9833
        %v10294 = vadd.f32 %v9236, %v9838
        %v10295 = vadd.f32 %v9239, %v9841
        %v10296 = vadd.f32 %v9244, %v9846
        %v10297 = vadd.f32 %v9247, %v9849
        %v10298 = vadd.f32 %v9252, %v9854
        %v10299 = vadd.f32 %v9255, %v9857
        %v10300 = vadd.f32 %v9260, %v9862
        %v10301 = vadd.f32 %v9263, %v9865
        %v10302 = vadd.f32 %v9268, %v9870
        %v10303 = vadd.f32 %v9271, %v9873
        %v10304 = vadd.f32 %v9276, %v9878
        %v10305 = vadd.f32 %v9279, %v9881
        %v10306 = vadd.f32 %v9284, %v9886
        %v10307 = vadd.f32 %v9287, %v9889
        %v10308 = vadd.f32 %v9292, %v9894
        %v10309 = vadd.f32 %v9295, %v9897
        %v10310 = vadd.f32 %v9300, %v9902
        %v10311 = vadd.f32 %v9303, %v9905
        %v10312 = vadd.f32 %v9308, %v9910
        %v10313 = vadd.f32 %v9311, %v9913
        %v10314 = vadd.f32 %v9316, %v9918
        %v10315 = vadd.f32 %v9319, %v9921
        %v10316 = vadd.f32 %v9324, %v9926
        %v10317 = vadd.f32 %v9327, %v9929
        %v10318 = vadd.f32 %v9332, %v9934
        %v10319 = vadd.f32 %v9335, %v9937
        %v10320 = vadd.f32 %v9340, %v9942
        %v10321 = vadd.f32 %v9343, %v9945
        %v10322 = vadd.f32 %v9348, %v9950
        %v10323 = vadd.f32 %v9351, %v9953
        %v10324 = vadd.f32 %v9356, %v9958
        %v10325 = vadd.f32 %v9359, %v9961
        %v10326 = vadd.f32 %v9364, %v9966
        %v10327 = vadd.f32 %v9367, %v9969
        %v10328 = vadd.f32 %v9372, %v9974
        %v10329 = vadd.f32 %v9375, %v9977
        %v10330 = vadd.f32 %v9380, %v9982
        %v10331 = vadd.f32 %v9383, %v9985
        %v10332 = vadd.f32 %v9388, %v9990
        %v10333 = vadd.f32 %v9391, %v9993
        %v10334 = vadd.f32 %v9396, %v9998
        %v10335 = vadd.f32 %v9399, %v10001
        %v10336 = vadd.f32 %v9404, %v10006
        %v10337 = vadd.f32 %v9407, %v10009
        %v10338 = vadd.f32 %v9412, %v10014
        %v10339 = vadd.f32 %v9415, %v10017
        %v10340 = vadd.f32 %v9420, %v10022
        %v10341 = vadd.f32 %v9423, %v10025
        %v10342 = vadd.f32 %v9428, %v10030
        %v10343 = vadd.f32 %v9431, %v10033
        %v10344 = vadd.f32 %v9436, %v10038
        %v10345 = vadd.f32 %v9439, %v10041
        %v10346 = vadd.f32 %v9444, %v10046
        %v10347 = vadd.f32 %v9447, %v10049
        %v10348 = vadd.f32 %v9452, %v10054
        %v10349 = vadd.f32 %v9455, %v10057
        %v10350 = vadd.f32 %v9460, %v10062
        %v10351 = vadd.f32 %v9463, %v10065
        %v10352 = vadd.f32 %v9468, %v10070
        %v10353 = vadd.f32 %v9471, %v10073
        %v10354 = vadd.f32 %v9476, %v10078
        %v10355 = vadd.f32 %v9479, %v10081
        %v10356 = vadd.f32 %v9484, %v10086
        %v10357 = vadd.f32 %v9487, %v10089
        %v10358 = vadd.f32 %v9492, %v10094
        %v10359 = vadd.f32 %v9495, %v10097
        %v10360 = vadd.f32 %v9500, %v10102
        %v10361 = vadd.f32 %v9503, %v10105
        %v10362 = vadd.f32 %v9508, %v10110
        %v10363 = vadd.f32 %v9511, %v10113
        %v10364 = vadd.f32 %v9516, %v10118
        %v10365 = vadd.f32 %v9519, %v10121
        %v10366 = vadd.f32 %v9524, %v10126
        %v10367 = vadd.f32 %v9527, %v10129
        %v10368 = vadd.f32 %v9532, %v10134
        %v10369 = vadd.f32 %v9535, %v10137
        %v10370 = vadd.f32 %v9540, %v10142
        %v10371 = vadd.f32 %v9543, %v10145
        %v10372 = vadd.f32 %v9548, %v10150
        %v10373 = vadd.f32 %v9551, %v10153
        %v10374 = vadd.f32 %v9556, %v10158
        %v10375 = vadd.f32 %v9559, %v10161
        %v10376 = vadd.f32 %v9564, %v10166
        %v10377 = vadd.f32 %v9567, %v10169
        %v10378 = vadd.f32 %v9572, %v10174
        %v10379 = vadd.f32 %v9575, %v10177
        %v10380 = vadd.f32 %v9580, %v10182
        %v10381 = vadd.f32 %v9583, %v10185
        %v10382 = vadd.f32 %v9588, %v10190
        %v10383 = vadd.f32 %v9591, %v10193
        %v10384 = vadd.f32 %v9596, %v10198
        %v10385 = vadd.f32 %v9599, %v10201
        %v10386 = vadd.f32 %v9604, %v10206
        %v10387 = vadd.f32 %v9607, %v10209
        %v10388 = vadd.f32 %v9612, %v10214
        %v10389 = vadd.f32 %v9615, %v10217
        %v10390 = vadd.f32 %v9620, %v10222
        %v10391 = vadd.f32 %v9623, %v10225
        %v10392 = vadd.f32 %v9628, %v10230
        %v10393 = vadd.f32 %v9631, %v10233
        %v10394 = vadd.f32 %v9636, %v10238
        %v10395 = vadd.f32 %v9639, %v10241
        %v10396 = vadd.f32 %v9644, %v10246
        %v10397 = vadd.f32 %v9647, %v10249
        %v10398 = vadd.f32 %v9652, %v10254
        %v10399 = vadd.f32 %v9655, %v10257
        %v10400 = vadd.f32 %v9660, %v10262
        %v10401 = vadd.f32 %v9663, %v10265
        %v10402 = vadd.f32 %v9668, %v10270
        %v10403 = vadd.f32 %v9671, %v10273
        %v10404 = vld [vmem:[%s5] sm:$0x1]
        %v10406 = vlaneseq
        %v10407 = vshrl.u32 %v10406, 7
        %v10408 = vsub.s32 0, %v10407
        %v10409 = vrot.slane %v10404, %v10408
        %v10411 = vmul.f32 %v10276, %v10409
        %v10412 = vmul.f32 %v10277, %v10409
        %v10413 = vmul.f32 %v10278, %v10409
        %v10414 = vmul.f32 %v10279, %v10409
        %v10415 = vmul.f32 %v10280, %v10409
        %v10416 = vmul.f32 %v10281, %v10409
        %v10417 = vmul.f32 %v10282, %v10409
        %v10418 = vmul.f32 %v10283, %v10409
        %v10419 = vmul.f32 %v10284, %v10409
        %v10420 = vmul.f32 %v10285, %v10409
        %v10421 = vmul.f32 %v10286, %v10409
        %v10422 = vmul.f32 %v10287, %v10409
        %v10423 = vmul.f32 %v10288, %v10409
        %v10424 = vmul.f32 %v10289, %v10409
        %v10425 = vmul.f32 %v10290, %v10409
        %v10426 = vmul.f32 %v10291, %v10409
        %v10427 = vmul.f32 %v10292, %v10409
        %v10428 = vmul.f32 %v10293, %v10409
        %v10429 = vmul.f32 %v10294, %v10409
        %v10430 = vmul.f32 %v10295, %v10409
        %v10431 = vmul.f32 %v10296, %v10409
        %v10432 = vmul.f32 %v10297, %v10409
        %v10433 = vmul.f32 %v10298, %v10409
        %v10434 = vmul.f32 %v10299, %v10409
        %v10435 = vmul.f32 %v10300, %v10409
        %v10436 = vmul.f32 %v10301, %v10409
        %v10437 = vmul.f32 %v10302, %v10409
        %v10438 = vmul.f32 %v10303, %v10409
        %v10439 = vmul.f32 %v10304, %v10409
        %v10440 = vmul.f32 %v10305, %v10409
        %v10441 = vmul.f32 %v10306, %v10409
        %v10442 = vmul.f32 %v10307, %v10409
        %v10443 = vmul.f32 %v10308, %v10409
        %v10444 = vmul.f32 %v10309, %v10409
        %v10445 = vmul.f32 %v10310, %v10409
        %v10446 = vmul.f32 %v10311, %v10409
        %v10447 = vmul.f32 %v10312, %v10409
        %v10448 = vmul.f32 %v10313, %v10409
        %v10449 = vmul.f32 %v10314, %v10409
        %v10450 = vmul.f32 %v10315, %v10409
        %v10451 = vmul.f32 %v10316, %v10409
        %v10452 = vmul.f32 %v10317, %v10409
        %v10453 = vmul.f32 %v10318, %v10409
        %v10454 = vmul.f32 %v10319, %v10409
        %v10455 = vmul.f32 %v10320, %v10409
        %v10456 = vmul.f32 %v10321, %v10409
        %v10457 = vmul.f32 %v10322, %v10409
        %v10458 = vmul.f32 %v10323, %v10409
        %v10459 = vmul.f32 %v10324, %v10409
        %v10460 = vmul.f32 %v10325, %v10409
        %v10461 = vmul.f32 %v10326, %v10409
        %v10462 = vmul.f32 %v10327, %v10409
        %v10463 = vmul.f32 %v10328, %v10409
        %v10464 = vmul.f32 %v10329, %v10409
        %v10465 = vmul.f32 %v10330, %v10409
        %v10466 = vmul.f32 %v10331, %v10409
        %v10467 = vmul.f32 %v10332, %v10409
        %v10468 = vmul.f32 %v10333, %v10409
        %v10469 = vmul.f32 %v10334, %v10409
        %v10470 = vmul.f32 %v10335, %v10409
        %v10471 = vmul.f32 %v10336, %v10409
        %v10472 = vmul.f32 %v10337, %v10409
        %v10473 = vmul.f32 %v10338, %v10409
        %v10474 = vmul.f32 %v10339, %v10409
        %v10475 = vmul.f32 %v10340, %v10409
        %v10476 = vmul.f32 %v10341, %v10409
        %v10477 = vmul.f32 %v10342, %v10409
        %v10478 = vmul.f32 %v10343, %v10409
        %v10479 = vmul.f32 %v10344, %v10409
        %v10480 = vmul.f32 %v10345, %v10409
        %v10481 = vmul.f32 %v10346, %v10409
        %v10482 = vmul.f32 %v10347, %v10409
        %v10483 = vmul.f32 %v10348, %v10409
        %v10484 = vmul.f32 %v10349, %v10409
        %v10485 = vmul.f32 %v10350, %v10409
        %v10486 = vmul.f32 %v10351, %v10409
        %v10487 = vmul.f32 %v10352, %v10409
        %v10488 = vmul.f32 %v10353, %v10409
        %v10489 = vmul.f32 %v10354, %v10409
        %v10490 = vmul.f32 %v10355, %v10409
        %v10491 = vmul.f32 %v10356, %v10409
        %v10492 = vmul.f32 %v10357, %v10409
        %v10493 = vmul.f32 %v10358, %v10409
        %v10494 = vmul.f32 %v10359, %v10409
        %v10495 = vmul.f32 %v10360, %v10409
        %v10496 = vmul.f32 %v10361, %v10409
        %v10497 = vmul.f32 %v10362, %v10409
        %v10498 = vmul.f32 %v10363, %v10409
        %v10499 = vmul.f32 %v10364, %v10409
        %v10500 = vmul.f32 %v10365, %v10409
        %v10501 = vmul.f32 %v10366, %v10409
        %v10502 = vmul.f32 %v10367, %v10409
        %v10503 = vmul.f32 %v10368, %v10409
        %v10504 = vmul.f32 %v10369, %v10409
        %v10505 = vmul.f32 %v10370, %v10409
        %v10506 = vmul.f32 %v10371, %v10409
        %v10507 = vmul.f32 %v10372, %v10409
        %v10508 = vmul.f32 %v10373, %v10409
        %v10509 = vmul.f32 %v10374, %v10409
        %v10510 = vmul.f32 %v10375, %v10409
        %v10511 = vmul.f32 %v10376, %v10409
        %v10512 = vmul.f32 %v10377, %v10409
        %v10513 = vmul.f32 %v10378, %v10409
        %v10514 = vmul.f32 %v10379, %v10409
        %v10515 = vmul.f32 %v10380, %v10409
        %v10516 = vmul.f32 %v10381, %v10409
        %v10517 = vmul.f32 %v10382, %v10409
        %v10518 = vmul.f32 %v10383, %v10409
        %v10519 = vmul.f32 %v10384, %v10409
        %v10520 = vmul.f32 %v10385, %v10409
        %v10521 = vmul.f32 %v10386, %v10409
        %v10522 = vmul.f32 %v10387, %v10409
        %v10523 = vmul.f32 %v10388, %v10409
        %v10524 = vmul.f32 %v10389, %v10409
        %v10525 = vmul.f32 %v10390, %v10409
        %v10526 = vmul.f32 %v10391, %v10409
        %v10527 = vmul.f32 %v10392, %v10409
        %v10528 = vmul.f32 %v10393, %v10409
        %v10529 = vmul.f32 %v10394, %v10409
        %v10530 = vmul.f32 %v10395, %v10409
        %v10531 = vmul.f32 %v10396, %v10409
        %v10532 = vmul.f32 %v10397, %v10409
        %v10533 = vmul.f32 %v10398, %v10409
        %v10534 = vmul.f32 %v10399, %v10409
        %v10535 = vmul.f32 %v10400, %v10409
        %v10536 = vmul.f32 %v10401, %v10409
        %v10537 = vmul.f32 %v10402, %v10409
        %v10538 = vmul.f32 %v10403, %v10409
        %v10539 = vld [vmem:[%s6] sm:$0x1]
        %v10541 = vlaneseq
        %v10542 = vshrl.u32 %v10541, 7
        %v10543 = vsub.s32 0, %v10542
        %v10544 = vrot.slane %v10539, %v10543
        %v10546 = vadd.f32 %v10411, %v10544
        %v10547 = vadd.f32 %v10412, %v10544
        %v10548 = vadd.f32 %v10413, %v10544
        %v10549 = vadd.f32 %v10414, %v10544
        %v10550 = vadd.f32 %v10415, %v10544
        %v10551 = vadd.f32 %v10416, %v10544
        %v10552 = vadd.f32 %v10417, %v10544
        %v10553 = vadd.f32 %v10418, %v10544
        %v10554 = vadd.f32 %v10419, %v10544
        %v10555 = vadd.f32 %v10420, %v10544
        %v10556 = vadd.f32 %v10421, %v10544
        %v10557 = vadd.f32 %v10422, %v10544
        %v10558 = vadd.f32 %v10423, %v10544
        %v10559 = vadd.f32 %v10424, %v10544
        %v10560 = vadd.f32 %v10425, %v10544
        %v10561 = vadd.f32 %v10426, %v10544
        %v10562 = vadd.f32 %v10427, %v10544
        %v10563 = vadd.f32 %v10428, %v10544
        %v10564 = vadd.f32 %v10429, %v10544
        %v10565 = vadd.f32 %v10430, %v10544
        %v10566 = vadd.f32 %v10431, %v10544
        %v10567 = vadd.f32 %v10432, %v10544
        %v10568 = vadd.f32 %v10433, %v10544
        %v10569 = vadd.f32 %v10434, %v10544
        %v10570 = vadd.f32 %v10435, %v10544
        %v10571 = vadd.f32 %v10436, %v10544
        %v10572 = vadd.f32 %v10437, %v10544
        %v10573 = vadd.f32 %v10438, %v10544
        %v10574 = vadd.f32 %v10439, %v10544
        %v10575 = vadd.f32 %v10440, %v10544
        %v10576 = vadd.f32 %v10441, %v10544
        %v10577 = vadd.f32 %v10442, %v10544
        %v10578 = vadd.f32 %v10443, %v10544
        %v10579 = vadd.f32 %v10444, %v10544
        %v10580 = vadd.f32 %v10445, %v10544
        %v10581 = vadd.f32 %v10446, %v10544
        %v10582 = vadd.f32 %v10447, %v10544
        %v10583 = vadd.f32 %v10448, %v10544
        %v10584 = vadd.f32 %v10449, %v10544
        %v10585 = vadd.f32 %v10450, %v10544
        %v10586 = vadd.f32 %v10451, %v10544
        %v10587 = vadd.f32 %v10452, %v10544
        %v10588 = vadd.f32 %v10453, %v10544
        %v10589 = vadd.f32 %v10454, %v10544
        %v10590 = vadd.f32 %v10455, %v10544
        %v10591 = vadd.f32 %v10456, %v10544
        %v10592 = vadd.f32 %v10457, %v10544
        %v10593 = vadd.f32 %v10458, %v10544
        %v10594 = vadd.f32 %v10459, %v10544
        %v10595 = vadd.f32 %v10460, %v10544
        %v10596 = vadd.f32 %v10461, %v10544
        %v10597 = vadd.f32 %v10462, %v10544
        %v10598 = vadd.f32 %v10463, %v10544
        %v10599 = vadd.f32 %v10464, %v10544
        %v10600 = vadd.f32 %v10465, %v10544
        %v10601 = vadd.f32 %v10466, %v10544
        %v10602 = vadd.f32 %v10467, %v10544
        %v10603 = vadd.f32 %v10468, %v10544
        %v10604 = vadd.f32 %v10469, %v10544
        %v10605 = vadd.f32 %v10470, %v10544
        %v10606 = vadd.f32 %v10471, %v10544
        %v10607 = vadd.f32 %v10472, %v10544
        %v10608 = vadd.f32 %v10473, %v10544
        %v10609 = vadd.f32 %v10474, %v10544
        %v10610 = vadd.f32 %v10475, %v10544
        %v10611 = vadd.f32 %v10476, %v10544
        %v10612 = vadd.f32 %v10477, %v10544
        %v10613 = vadd.f32 %v10478, %v10544
        %v10614 = vadd.f32 %v10479, %v10544
        %v10615 = vadd.f32 %v10480, %v10544
        %v10616 = vadd.f32 %v10481, %v10544
        %v10617 = vadd.f32 %v10482, %v10544
        %v10618 = vadd.f32 %v10483, %v10544
        %v10619 = vadd.f32 %v10484, %v10544
        %v10620 = vadd.f32 %v10485, %v10544
        %v10621 = vadd.f32 %v10486, %v10544
        %v10622 = vadd.f32 %v10487, %v10544
        %v10623 = vadd.f32 %v10488, %v10544
        %v10624 = vadd.f32 %v10489, %v10544
        %v10625 = vadd.f32 %v10490, %v10544
        %v10626 = vadd.f32 %v10491, %v10544
        %v10627 = vadd.f32 %v10492, %v10544
        %v10628 = vadd.f32 %v10493, %v10544
        %v10629 = vadd.f32 %v10494, %v10544
        %v10630 = vadd.f32 %v10495, %v10544
        %v10631 = vadd.f32 %v10496, %v10544
        %v10632 = vadd.f32 %v10497, %v10544
        %v10633 = vadd.f32 %v10498, %v10544
        %v10634 = vadd.f32 %v10499, %v10544
        %v10635 = vadd.f32 %v10500, %v10544
        %v10636 = vadd.f32 %v10501, %v10544
        %v10637 = vadd.f32 %v10502, %v10544
        %v10638 = vadd.f32 %v10503, %v10544
        %v10639 = vadd.f32 %v10504, %v10544
        %v10640 = vadd.f32 %v10505, %v10544
        %v10641 = vadd.f32 %v10506, %v10544
        %v10642 = vadd.f32 %v10507, %v10544
        %v10643 = vadd.f32 %v10508, %v10544
        %v10644 = vadd.f32 %v10509, %v10544
        %v10645 = vadd.f32 %v10510, %v10544
        %v10646 = vadd.f32 %v10511, %v10544
        %v10647 = vadd.f32 %v10512, %v10544
        %v10648 = vadd.f32 %v10513, %v10544
        %v10649 = vadd.f32 %v10514, %v10544
        %v10650 = vadd.f32 %v10515, %v10544
        %v10651 = vadd.f32 %v10516, %v10544
        %v10652 = vadd.f32 %v10517, %v10544
        %v10653 = vadd.f32 %v10518, %v10544
        %v10654 = vadd.f32 %v10519, %v10544
        %v10655 = vadd.f32 %v10520, %v10544
        %v10656 = vadd.f32 %v10521, %v10544
        %v10657 = vadd.f32 %v10522, %v10544
        %v10658 = vadd.f32 %v10523, %v10544
        %v10659 = vadd.f32 %v10524, %v10544
        %v10660 = vadd.f32 %v10525, %v10544
        %v10661 = vadd.f32 %v10526, %v10544
        %v10662 = vadd.f32 %v10527, %v10544
        %v10663 = vadd.f32 %v10528, %v10544
        %v10664 = vadd.f32 %v10529, %v10544
        %v10665 = vadd.f32 %v10530, %v10544
        %v10666 = vadd.f32 %v10531, %v10544
        %v10667 = vadd.f32 %v10532, %v10544
        %v10668 = vadd.f32 %v10533, %v10544
        %v10669 = vadd.f32 %v10534, %v10544
        %v10670 = vadd.f32 %v10535, %v10544
        %v10671 = vadd.f32 %v10536, %v10544
        %v10672 = vadd.f32 %v10537, %v10544
        %v10673 = vadd.f32 %v10538, %v10544
        %v10674 = vmax.f32 %v10546, 0.0
        %v10675 = vmax.f32 %v10547, 0.0
        %v10676 = vmax.f32 %v10548, 0.0
        %v10677 = vmax.f32 %v10549, 0.0
        %v10678 = vmax.f32 %v10550, 0.0
        %v10679 = vmax.f32 %v10551, 0.0
        %v10680 = vmax.f32 %v10552, 0.0
        %v10681 = vmax.f32 %v10553, 0.0
        %v10682 = vmax.f32 %v10554, 0.0
        %v10683 = vmax.f32 %v10555, 0.0
        %v10684 = vmax.f32 %v10556, 0.0
        %v10685 = vmax.f32 %v10557, 0.0
        %v10686 = vmax.f32 %v10558, 0.0
        %v10687 = vmax.f32 %v10559, 0.0
        %v10688 = vmax.f32 %v10560, 0.0
        %v10689 = vmax.f32 %v10561, 0.0
        %v10690 = vmax.f32 %v10562, 0.0
        %v10691 = vmax.f32 %v10563, 0.0
        %v10692 = vmax.f32 %v10564, 0.0
        %v10693 = vmax.f32 %v10565, 0.0
        %v10694 = vmax.f32 %v10566, 0.0
        %v10695 = vmax.f32 %v10567, 0.0
        %v10696 = vmax.f32 %v10568, 0.0
        %v10697 = vmax.f32 %v10569, 0.0
        %v10698 = vmax.f32 %v10570, 0.0
        %v10699 = vmax.f32 %v10571, 0.0
        %v10700 = vmax.f32 %v10572, 0.0
        %v10701 = vmax.f32 %v10573, 0.0
        %v10702 = vmax.f32 %v10574, 0.0
        %v10703 = vmax.f32 %v10575, 0.0
        %v10704 = vmax.f32 %v10576, 0.0
        %v10705 = vmax.f32 %v10577, 0.0
        %v10706 = vmax.f32 %v10578, 0.0
        %v10707 = vmax.f32 %v10579, 0.0
        %v10708 = vmax.f32 %v10580, 0.0
        %v10709 = vmax.f32 %v10581, 0.0
        %v10710 = vmax.f32 %v10582, 0.0
        %v10711 = vmax.f32 %v10583, 0.0
        %v10712 = vmax.f32 %v10584, 0.0
        %v10713 = vmax.f32 %v10585, 0.0
        %v10714 = vmax.f32 %v10586, 0.0
        %v10715 = vmax.f32 %v10587, 0.0
        %v10716 = vmax.f32 %v10588, 0.0
        %v10717 = vmax.f32 %v10589, 0.0
        %v10718 = vmax.f32 %v10590, 0.0
        %v10719 = vmax.f32 %v10591, 0.0
        %v10720 = vmax.f32 %v10592, 0.0
        %v10721 = vmax.f32 %v10593, 0.0
        %v10722 = vmax.f32 %v10594, 0.0
        %v10723 = vmax.f32 %v10595, 0.0
        %v10724 = vmax.f32 %v10596, 0.0
        %v10725 = vmax.f32 %v10597, 0.0
        %v10726 = vmax.f32 %v10598, 0.0
        %v10727 = vmax.f32 %v10599, 0.0
        %v10728 = vmax.f32 %v10600, 0.0
        %v10729 = vmax.f32 %v10601, 0.0
        %v10730 = vmax.f32 %v10602, 0.0
        %v10731 = vmax.f32 %v10603, 0.0
        %v10732 = vmax.f32 %v10604, 0.0
        %v10733 = vmax.f32 %v10605, 0.0
        %v10734 = vmax.f32 %v10606, 0.0
        %v10735 = vmax.f32 %v10607, 0.0
        %v10736 = vmax.f32 %v10608, 0.0
        %v10737 = vmax.f32 %v10609, 0.0
        %v10738 = vmax.f32 %v10610, 0.0
        %v10739 = vmax.f32 %v10611, 0.0
        %v10740 = vmax.f32 %v10612, 0.0
        %v10741 = vmax.f32 %v10613, 0.0
        %v10742 = vmax.f32 %v10614, 0.0
        %v10743 = vmax.f32 %v10615, 0.0
        %v10744 = vmax.f32 %v10616, 0.0
        %v10745 = vmax.f32 %v10617, 0.0
        %v10746 = vmax.f32 %v10618, 0.0
        %v10747 = vmax.f32 %v10619, 0.0
        %v10748 = vmax.f32 %v10620, 0.0
        %v10749 = vmax.f32 %v10621, 0.0
        %v10750 = vmax.f32 %v10622, 0.0
        %v10751 = vmax.f32 %v10623, 0.0
        %v10752 = vmax.f32 %v10624, 0.0
        %v10753 = vmax.f32 %v10625, 0.0
        %v10754 = vmax.f32 %v10626, 0.0
        %v10755 = vmax.f32 %v10627, 0.0
        %v10756 = vmax.f32 %v10628, 0.0
        %v10757 = vmax.f32 %v10629, 0.0
        %v10758 = vmax.f32 %v10630, 0.0
        %v10759 = vmax.f32 %v10631, 0.0
        %v10760 = vmax.f32 %v10632, 0.0
        %v10761 = vmax.f32 %v10633, 0.0
        %v10762 = vmax.f32 %v10634, 0.0
        %v10763 = vmax.f32 %v10635, 0.0
        %v10764 = vmax.f32 %v10636, 0.0
        %v10765 = vmax.f32 %v10637, 0.0
        %v10766 = vmax.f32 %v10638, 0.0
        %v10767 = vmax.f32 %v10639, 0.0
        %v10768 = vmax.f32 %v10640, 0.0
        %v10769 = vmax.f32 %v10641, 0.0
        %v10770 = vmax.f32 %v10642, 0.0
        %v10771 = vmax.f32 %v10643, 0.0
        %v10772 = vmax.f32 %v10644, 0.0
        %v10773 = vmax.f32 %v10645, 0.0
        %v10774 = vmax.f32 %v10646, 0.0
        %v10775 = vmax.f32 %v10647, 0.0
        %v10776 = vmax.f32 %v10648, 0.0
        %v10777 = vmax.f32 %v10649, 0.0
        %v10778 = vmax.f32 %v10650, 0.0
        %v10779 = vmax.f32 %v10651, 0.0
        %v10780 = vmax.f32 %v10652, 0.0
        %v10781 = vmax.f32 %v10653, 0.0
        %v10782 = vmax.f32 %v10654, 0.0
        %v10783 = vmax.f32 %v10655, 0.0
        %v10784 = vmax.f32 %v10656, 0.0
        %v10785 = vmax.f32 %v10657, 0.0
        %v10786 = vmax.f32 %v10658, 0.0
        %v10787 = vmax.f32 %v10659, 0.0
        %v10788 = vmax.f32 %v10660, 0.0
        %v10789 = vmax.f32 %v10661, 0.0
        %v10790 = vmax.f32 %v10662, 0.0
        %v10791 = vmax.f32 %v10663, 0.0
        %v10792 = vmax.f32 %v10664, 0.0
        %v10793 = vmax.f32 %v10665, 0.0
        %v10794 = vmax.f32 %v10666, 0.0
        %v10795 = vmax.f32 %v10667, 0.0
        %v10796 = vmax.f32 %v10668, 0.0
        %v10797 = vmax.f32 %v10669, 0.0
        %v10798 = vmax.f32 %v10670, 0.0
        %v10799 = vmax.f32 %v10671, 0.0
        %v10800 = vmax.f32 %v10672, 0.0
        %v10801 = vmax.f32 %v10673, 0.0
        %10802 = vst.msk [vmem:[%s285] sm:$0xff] %vm4836, %v10674
        %10803 = vst.msk [vmem:[%s285 + $0x8] sm:$0xff] %vm4836, %v10675
        %10804 = vst.msk [vmem:[%s285 + $0x10] sm:$0xff] %vm4836, %v10676
        %10805 = vst.msk [vmem:[%s285 + $0x18] sm:$0xff] %vm4836, %v10677
        %10806 = vst.msk [vmem:[%s285 + $0x20] sm:$0xff] %vm4836, %v10678
        %10807 = vst.msk [vmem:[%s285 + $0x28] sm:$0xff] %vm4836, %v10679
        %10808 = vst.msk [vmem:[%s285 + $0x30] sm:$0xff] %vm4836, %v10680
        %10809 = vst.msk [vmem:[%s285 + $0x38] sm:$0xff] %vm4836, %v10681
        %10810 = vst.msk [vmem:[%s285 + $0x40] sm:$0xff] %vm4836, %v10682
        %10811 = vst.msk [vmem:[%s285 + $0x48] sm:$0xff] %vm4836, %v10683
        %10812 = vst.msk [vmem:[%s285 + $0x50] sm:$0xff] %vm4836, %v10684
        %10813 = vst.msk [vmem:[%s285 + $0x58] sm:$0xff] %vm4836, %v10685
        %10814 = vst.msk [vmem:[%s285 + $0x60] sm:$0xff] %vm4836, %v10686
        %10815 = vst.msk [vmem:[%s285 + $0x68] sm:$0xff] %vm4836, %v10687
        %10816 = vst.msk [vmem:[%s285 + $0x70] sm:$0xff] %vm4836, %v10688
        %10817 = vst.msk [vmem:[%s285 + $0x78] sm:$0xff] %vm4836, %v10689
        %10818 = vst.msk [vmem:[%s285 + $0x80] sm:$0xff] %vm4836, %v10690
        %10819 = vst.msk [vmem:[%s285 + $0x88] sm:$0xff] %vm4836, %v10691
        %10820 = vst.msk [vmem:[%s285 + $0x90] sm:$0xff] %vm4836, %v10692
        %10821 = vst.msk [vmem:[%s285 + $0x98] sm:$0xff] %vm4836, %v10693
        %10822 = vst.msk [vmem:[%s285 + $0xa0] sm:$0xff] %vm4836, %v10694
        %10823 = vst.msk [vmem:[%s285 + $0xa8] sm:$0xff] %vm4836, %v10695
        %10824 = vst.msk [vmem:[%s285 + $0xb0] sm:$0xff] %vm4836, %v10696
        %10825 = vst.msk [vmem:[%s285 + $0xb8] sm:$0xff] %vm4836, %v10697
        %10826 = vst.msk [vmem:[%s285 + $0xc0] sm:$0xff] %vm4836, %v10698
        %10827 = vst.msk [vmem:[%s285 + $0xc8] sm:$0xff] %vm4836, %v10699
        %10828 = vst.msk [vmem:[%s285 + $0xd0] sm:$0xff] %vm4836, %v10700
        %10829 = vst.msk [vmem:[%s285 + $0xd8] sm:$0xff] %vm4836, %v10701
        %10830 = vst.msk [vmem:[%s285 + $0xe0] sm:$0xff] %vm4836, %v10702
        %10831 = vst.msk [vmem:[%s285 + $0xe8] sm:$0xff] %vm4836, %v10703
        %10832 = vst.msk [vmem:[%s285 + $0xf0] sm:$0xff] %vm4836, %v10704
        %10833 = vst.msk [vmem:[%s285 + $0xf8] sm:$0xff] %vm4836, %v10705
        %10834 = vst.msk [vmem:[%s285 + $0x100] sm:$0xff] %vm4836, %v10706
        %10835 = vst.msk [vmem:[%s285 + $0x108] sm:$0xff] %vm4836, %v10707
        %10836 = vst.msk [vmem:[%s285 + $0x110] sm:$0xff] %vm4836, %v10708
        %10837 = vst.msk [vmem:[%s285 + $0x118] sm:$0xff] %vm4836, %v10709
        %10838 = vst.msk [vmem:[%s285 + $0x120] sm:$0xff] %vm4836, %v10710
        %10839 = vst.msk [vmem:[%s285 + $0x128] sm:$0xff] %vm4836, %v10711
        %10840 = vst.msk [vmem:[%s285 + $0x130] sm:$0xff] %vm4836, %v10712
        %10841 = vst.msk [vmem:[%s285 + $0x138] sm:$0xff] %vm4836, %v10713
        %10842 = vst.msk [vmem:[%s285 + $0x140] sm:$0xff] %vm4836, %v10714
        %10843 = vst.msk [vmem:[%s285 + $0x148] sm:$0xff] %vm4836, %v10715
        %10844 = vst.msk [vmem:[%s285 + $0x150] sm:$0xff] %vm4836, %v10716
        %10845 = vst.msk [vmem:[%s285 + $0x158] sm:$0xff] %vm4836, %v10717
        %10846 = vst.msk [vmem:[%s285 + $0x160] sm:$0xff] %vm4836, %v10718
        %10847 = vst.msk [vmem:[%s285 + $0x168] sm:$0xff] %vm4836, %v10719
        %10848 = vst.msk [vmem:[%s285 + $0x170] sm:$0xff] %vm4836, %v10720
        %10849 = vst.msk [vmem:[%s285 + $0x178] sm:$0xff] %vm4836, %v10721
        %10850 = vst.msk [vmem:[%s285 + $0x180] sm:$0xff] %vm4836, %v10722
        %10851 = vst.msk [vmem:[%s285 + $0x188] sm:$0xff] %vm4836, %v10723
        %10852 = vst.msk [vmem:[%s285 + $0x190] sm:$0xff] %vm4836, %v10724
        %10853 = vst.msk [vmem:[%s285 + $0x198] sm:$0xff] %vm4836, %v10725
        %10854 = vst.msk [vmem:[%s285 + $0x1a0] sm:$0xff] %vm4836, %v10726
        %10855 = vst.msk [vmem:[%s285 + $0x1a8] sm:$0xff] %vm4836, %v10727
        %10856 = vst.msk [vmem:[%s285 + $0x1b0] sm:$0xff] %vm4836, %v10728
        %10857 = vst.msk [vmem:[%s285 + $0x1b8] sm:$0xff] %vm4836, %v10729
        %10858 = vst.msk [vmem:[%s285 + $0x1c0] sm:$0xff] %vm4836, %v10730
        %10859 = vst.msk [vmem:[%s285 + $0x1c8] sm:$0xff] %vm4836, %v10731
        %10860 = vst.msk [vmem:[%s285 + $0x1d0] sm:$0xff] %vm4836, %v10732
        %10861 = vst.msk [vmem:[%s285 + $0x1d8] sm:$0xff] %vm4836, %v10733
        %10862 = vst.msk [vmem:[%s285 + $0x1e0] sm:$0xff] %vm4836, %v10734
        %10863 = vst.msk [vmem:[%s285 + $0x1e8] sm:$0xff] %vm4836, %v10735
        %10864 = vst.msk [vmem:[%s285 + $0x1f0] sm:$0xff] %vm4836, %v10736
        %10865 = vst.msk [vmem:[%s285 + $0x1f8] sm:$0xff] %vm4836, %v10737
        %10866 = vst.msk [vmem:[%s285 + $0x200] sm:$0xff] %vm4836, %v10738
        %10867 = vst.msk [vmem:[%s285 + $0x208] sm:$0xff] %vm4836, %v10739
        %10868 = vst.msk [vmem:[%s285 + $0x210] sm:$0xff] %vm4836, %v10740
        %10869 = vst.msk [vmem:[%s285 + $0x218] sm:$0xff] %vm4836, %v10741
        %10870 = vst.msk [vmem:[%s285 + $0x220] sm:$0xff] %vm4836, %v10742
        %10871 = vst.msk [vmem:[%s285 + $0x228] sm:$0xff] %vm4836, %v10743
        %10872 = vst.msk [vmem:[%s285 + $0x230] sm:$0xff] %vm4836, %v10744
        %10873 = vst.msk [vmem:[%s285 + $0x238] sm:$0xff] %vm4836, %v10745
        %10874 = vst.msk [vmem:[%s285 + $0x240] sm:$0xff] %vm4836, %v10746
        %10875 = vst.msk [vmem:[%s285 + $0x248] sm:$0xff] %vm4836, %v10747
        %10876 = vst.msk [vmem:[%s285 + $0x250] sm:$0xff] %vm4836, %v10748
        %10877 = vst.msk [vmem:[%s285 + $0x258] sm:$0xff] %vm4836, %v10749
        %10878 = vst.msk [vmem:[%s285 + $0x260] sm:$0xff] %vm4836, %v10750
        %10879 = vst.msk [vmem:[%s285 + $0x268] sm:$0xff] %vm4836, %v10751
        %10880 = vst.msk [vmem:[%s285 + $0x270] sm:$0xff] %vm4836, %v10752
        %10881 = vst.msk [vmem:[%s285 + $0x278] sm:$0xff] %vm4836, %v10753
        %10882 = vst.msk [vmem:[%s285 + $0x280] sm:$0xff] %vm4836, %v10754
        %10883 = vst.msk [vmem:[%s285 + $0x288] sm:$0xff] %vm4836, %v10755
        %10884 = vst.msk [vmem:[%s285 + $0x290] sm:$0xff] %vm4836, %v10756
        %10885 = vst.msk [vmem:[%s285 + $0x298] sm:$0xff] %vm4836, %v10757
        %10886 = vst.msk [vmem:[%s285 + $0x2a0] sm:$0xff] %vm4836, %v10758
        %10887 = vst.msk [vmem:[%s285 + $0x2a8] sm:$0xff] %vm4836, %v10759
        %10888 = vst.msk [vmem:[%s285 + $0x2b0] sm:$0xff] %vm4836, %v10760
        %10889 = vst.msk [vmem:[%s285 + $0x2b8] sm:$0xff] %vm4836, %v10761
        %10890 = vst.msk [vmem:[%s285 + $0x2c0] sm:$0xff] %vm4836, %v10762
        %10891 = vst.msk [vmem:[%s285 + $0x2c8] sm:$0xff] %vm4836, %v10763
        %10892 = vst.msk [vmem:[%s285 + $0x2d0] sm:$0xff] %vm4836, %v10764
        %10893 = vst.msk [vmem:[%s285 + $0x2d8] sm:$0xff] %vm4836, %v10765
        %10894 = vst.msk [vmem:[%s285 + $0x2e0] sm:$0xff] %vm4836, %v10766
        %10895 = vst.msk [vmem:[%s285 + $0x2e8] sm:$0xff] %vm4836, %v10767
        %10896 = vst.msk [vmem:[%s285 + $0x2f0] sm:$0xff] %vm4836, %v10768
        %10897 = vst.msk [vmem:[%s285 + $0x2f8] sm:$0xff] %vm4836, %v10769
        %10898 = vst.msk [vmem:[%s285 + $0x300] sm:$0xff] %vm4836, %v10770
        %10899 = vst.msk [vmem:[%s285 + $0x308] sm:$0xff] %vm4836, %v10771
        %10900 = vst.msk [vmem:[%s285 + $0x310] sm:$0xff] %vm4836, %v10772
        %10901 = vst.msk [vmem:[%s285 + $0x318] sm:$0xff] %vm4836, %v10773
        %10902 = vst.msk [vmem:[%s285 + $0x320] sm:$0xff] %vm4836, %v10774
        %10903 = vst.msk [vmem:[%s285 + $0x328] sm:$0xff] %vm4836, %v10775
        %10904 = vst.msk [vmem:[%s285 + $0x330] sm:$0xff] %vm4836, %v10776
        %10905 = vst.msk [vmem:[%s285 + $0x338] sm:$0xff] %vm4836, %v10777
        %10906 = vst.msk [vmem:[%s285 + $0x340] sm:$0xff] %vm4836, %v10778
        %10907 = vst.msk [vmem:[%s285 + $0x348] sm:$0xff] %vm4836, %v10779
        %10908 = vst.msk [vmem:[%s285 + $0x350] sm:$0xff] %vm4836, %v10780
        %10909 = vst.msk [vmem:[%s285 + $0x358] sm:$0xff] %vm4836, %v10781
        %10910 = vst.msk [vmem:[%s285 + $0x360] sm:$0xff] %vm4836, %v10782
        %10911 = vst.msk [vmem:[%s285 + $0x368] sm:$0xff] %vm4836, %v10783
        %10912 = vst.msk [vmem:[%s285 + $0x370] sm:$0xff] %vm4836, %v10784
        %10913 = vst.msk [vmem:[%s285 + $0x378] sm:$0xff] %vm4836, %v10785
        %10914 = vst.msk [vmem:[%s285 + $0x380] sm:$0xff] %vm4836, %v10786
        %10915 = vst.msk [vmem:[%s285 + $0x388] sm:$0xff] %vm4836, %v10787
        %10916 = vst.msk [vmem:[%s285 + $0x390] sm:$0xff] %vm4836, %v10788
        %10917 = vst.msk [vmem:[%s285 + $0x398] sm:$0xff] %vm4836, %v10789
        %10918 = vst.msk [vmem:[%s285 + $0x3a0] sm:$0xff] %vm4836, %v10790
        %10919 = vst.msk [vmem:[%s285 + $0x3a8] sm:$0xff] %vm4836, %v10791
        %10920 = vst.msk [vmem:[%s285 + $0x3b0] sm:$0xff] %vm4836, %v10792
        %10921 = vst.msk [vmem:[%s285 + $0x3b8] sm:$0xff] %vm4836, %v10793
        %10922 = vst.msk [vmem:[%s285 + $0x3c0] sm:$0xff] %vm4836, %v10794
        %10923 = vst.msk [vmem:[%s285 + $0x3c8] sm:$0xff] %vm4836, %v10795
        %10924 = vst.msk [vmem:[%s285 + $0x3d0] sm:$0xff] %vm4836, %v10796
        %10925 = vst.msk [vmem:[%s285 + $0x3d8] sm:$0xff] %vm4836, %v10797
        %10926 = vst.msk [vmem:[%s285 + $0x3e0] sm:$0xff] %vm4836, %v10798
        %10927 = vst.msk [vmem:[%s285 + $0x3e8] sm:$0xff] %vm4836, %v10799
        %10928 = vst.msk [vmem:[%s285 + $0x3f0] sm:$0xff] %vm4836, %v10800
        %10929 = vst.msk [vmem:[%s285 + $0x3f8] sm:$0xff] %vm4836, %v10801
        %s10930 = sand.u32 %s195, 1
        %s10931 = scalar_lea.sflag [#allocation4], %s10930
        %s10932 = sand.u32 %s195, 1
        %s10933 = smul.addr %s10932, 1024
        %s10934 = scalar_lea.vmem [#allocation3], %s10933
        // Predicated region
        $region49: #{tpu_custom_call.1} parent=47 // pred_check
          %p10935 = pneg %p205
        $region50: #{tpu_custom_call.1} parent=47 // pred_check_branch
          %10937 = sbr.rel (%p10935) target = $region52
        $region51: #{tpu_custom_call.1} parent=47 // pred_region
          %s10938 = smul.u32 4, %s26
          %s10940 = ssub.s32 16384, 16384
          %10941 = vsyncadd %s10931, %s10940
          %s10942 = smul.addr %s10938, 32
          %s10943 = smul.addr %s25, 256
          %s10944 = sadd.s32 %s10942, %s10943
          %s10945 = smul.addr %s10944, 128
          %s10946 = scalar_lea.hbm %s7, %s10945
          %s10947 = sshll.u32 %s10934, 4
          %s10948 = int_to_ptr.vmem [resolvable:$true] %s10947
          %10953 = dma.vmem_to_hbm [thread:$0]  %s10948, 16384, %s10946, %s10931, 128, 128, 8
        $region52: #{tpu_custom_call.1} parent=47 // pred_fallthru
          _
      $region48: #{tpu_custom_call.1} parent=5 // pred_fallthru
        _
      %p10954 = scmp.le.s32.totalorder 2, %s16
      // Predicated region
      $region53: #{tpu_custom_call.1} parent=5 // pred_check
        %p10955 = pneg %p10954
      $region54: #{tpu_custom_call.1} parent=5 // pred_check_branch
        %10957 = sbr.rel (%p10955) target = $region56
      $region55: #{tpu_custom_call.1} parent=5 // pred_region
        %s10958 = ssub.s32 %s16, 2
        // Predicated region
        $region57: #{tpu_custom_call.1} parent=55 // pred_check
          %p10959 = pneg %p211
        $region58: #{tpu_custom_call.1} parent=55 // pred_check_branch
          %10961 = sbr.rel (%p10959) target = $region60
        $region59: #{tpu_custom_call.1} parent=55 // pred_region
          %s10962 = sand.u32 %s196, 1
          %s10963 = scalar_lea.sflag [#allocation4], %s10962
          %s10964 = sand.u32 %s196, 1
          %s10965 = smul.addr %s10964, 1024
          %s10966 = scalar_lea.vmem [#allocation3], %s10965
          %10967 = dma.done %s10963, 16384
        $region60: #{tpu_custom_call.1} parent=55 // pred_fallthru
          _
      $region56: #{tpu_custom_call.1} parent=5 // pred_fallthru
        _
    $region6: #{tpu_custom_call.1} parent=1 // loop_footer
      %s20 = sadd.s32 1, %s16
    $region7: #{tpu_custom_call.1} parent=1 // loop_footer_branch
      %15 = sbr.rel target = $region3
    $region8: #{tpu_custom_call.1} parent=1 // loop_exit
      _
    %10968 = vsyncpa [#allocation4], 1
    %s10969 = scalar_lea.sflag [#allocation4], 1
    %10970 = vsyncpa %s10969, 1

</llo_original>
